<compile_context>
chip_gen: v6e
topology: v6e:2x2x1
jax: 0.10.0
libtpu: 0.0.40
codegen_flags: <defaults>
</compile_context>

<pallas_src>
import math

import jax
import jax.numpy as jnp
from jax.experimental import pallas as pl
from jax.experimental.pallas import tpu as pltpu

BN_EPS = 1e-5

# MXU operand / inter-stage activation dtype. Set to jnp.bfloat16 on v6e/v7x
# for peak MXU throughput and half the HBM traffic (accumulation and the
# BN+SiLU epilogues stay f32 regardless).
COMPUTE_DTYPE = jnp.float32


def _vmem_limit_bytes():
    """Generation-aware scoped-VMEM budget (v7x: 64 MiB physical vs 128 MiB on
    v5e/v6e). Use ~3/4 of physical, capped, leaving DMA double-buffer headroom."""
    cap = 128 * 1024 * 1024
    try:
        cap = int(pltpu.get_tpu_info().vmem_capacity_bytes)
    except Exception:
        pass
    return int(min(cap * 3 // 4, 100 * 1024 * 1024))


_VMEM_LIMIT = _vmem_limit_bytes()


def _cparams(*sem):
    return pltpu.CompilerParams(dimension_semantics=sem,
                                vmem_limit_bytes=_VMEM_LIMIT)


def _silu(y):
    # exp and the approximate reciprocal both route to the EUP slot.
    return y * pl.reciprocal(1.0 + jnp.exp(-y), approx=True)


def _round_up(x, m):
    return ((x + m - 1) // m) * m


# --------------------------------------------------------------------------
# cv1: 1x1 conv (c1 -> 2c) + BN + SiLU, single matmul, dual outputs (a, b).
# --------------------------------------------------------------------------
def _cv1_split_kernel(x_ref, w_ref, s_ref, b_ref, oa_ref, ob_ref):
    y = jnp.dot(x_ref[...].astype(w_ref.dtype), w_ref[...],
                preferred_element_type=jnp.float32)
    y = _silu(y * s_ref[...] + b_ref[...])           # f32 epilogue
    c = oa_ref.shape[-1]
    oa_ref[...] = y[:, :c].astype(oa_ref.dtype)
    ob_ref[...] = y[:, c:].astype(ob_ref.dtype)


def cv1_split(x, w, scale, bias, c, tm=512):
    """x: (B,H,W,Cin), w: (Cin, 2c), scale/bias: (2c,). Returns (a, b)."""
    B, H, W, Cin = x.shape
    N = B * H * W
    xf = x.reshape(N, Cin)
    wf = w.astype(COMPUTE_DTYPE)
    c2w = w.shape[1]

    TM = min(tm, _round_up(N, 8))
    grid = (pl.cdiv(N, TM),)
    full = lambda shape: pl.BlockSpec(shape, lambda i: (0, 0))

    oa, ob = pl.pallas_call(
        _cv1_split_kernel,
        out_shape=(jax.ShapeDtypeStruct((N, c), COMPUTE_DTYPE),
                   jax.ShapeDtypeStruct((N, c), COMPUTE_DTYPE)),
        grid=grid,
        in_specs=[pl.BlockSpec((TM, Cin), lambda i: (i, 0)),
                  full((Cin, c2w)), full((1, c2w)), full((1, c2w))],
        out_specs=(pl.BlockSpec((TM, c), lambda i: (i, 0)),
                   pl.BlockSpec((TM, c), lambda i: (i, 0))),
        compiler_params=_cparams("parallel"),
    )(xf, wf, scale.reshape(1, c2w), bias.reshape(1, c2w))
    return oa.reshape(B, H, W, c), ob.reshape(B, H, W, c)


# --------------------------------------------------------------------------
# cv2: 1x1 conv (2c -> c2) + BN + SiLU on cat(a, b) WITHOUT materializing the
# concatenation: out = silu((a @ W[:c] + b @ W[c:]) * s + bias)
# --------------------------------------------------------------------------
def _cv2_pair_kernel(a_ref, b_ref, wa_ref, wb_ref, s_ref, bias_ref, o_ref):
    acc = jnp.dot(a_ref[...].astype(wa_ref.dtype), wa_ref[...],
                  preferred_element_type=jnp.float32)
    acc = acc + jnp.dot(b_ref[...].astype(wb_ref.dtype), wb_ref[...],
                        preferred_element_type=jnp.float32)
    o_ref[...] = _silu(acc * s_ref[...] + bias_ref[...]).astype(o_ref.dtype)


def cv2_pair(a, b, w, scale, bias, out_dtype=jnp.float32, tm=512):
    """a, b: (B,H,W,c), w: (2c, Cout), scale/bias: (Cout,)."""
    B, H, W, c = a.shape
    Cout = w.shape[1]
    N = B * H * W
    af = a.reshape(N, c)
    bf = b.reshape(N, c)
    wa = w[:c].astype(COMPUTE_DTYPE)
    wb = w[c:].astype(COMPUTE_DTYPE)

    TM = min(tm, _round_up(N, 8))
    grid = (pl.cdiv(N, TM),)
    row_in = pl.BlockSpec((TM, c), lambda i: (i, 0))
    full = lambda shape: pl.BlockSpec(shape, lambda i: (0, 0))

    out = pl.pallas_call(
        _cv2_pair_kernel,
        out_shape=jax.ShapeDtypeStruct((N, Cout), out_dtype),
        grid=grid,
        in_specs=[row_in, row_in, full((c, Cout)), full((c, Cout)),
                  full((1, Cout)), full((1, Cout))],
        out_specs=pl.BlockSpec((TM, Cout), lambda i: (i, 0)),
        compiler_params=_cparams("parallel"),
    )(af, bf, wa, wb, scale.reshape(1, Cout), bias.reshape(1, Cout))
    return out.reshape(B, H, W, Cout)


# --------------------------------------------------------------------------
# Fused Bottleneck(c, c, shortcut=True):
#   out = a + SiLU(BN(conv3x3( SiLU(BN(conv3x3(a))) )))
# One grid step per image. Intermediate h stays in VMEM. Each 3x3 conv is a
# single MXU matmul with K = 9*C (im2col built from a scratch-resident padded
# buffer; halo stores are sublane-aligned).
# --------------------------------------------------------------------------
def _bottleneck_kernel(a_ref, w1_ref, s1_ref, b1_ref, w2_ref, s2_ref, b2_ref,
                       o_ref, xp_ref, hp_ref):
    _, H, W, C = a_ref.shape
    cdt = xp_ref.dtype
    zcol = jnp.zeros((H, 1, C), cdt)
    zrow = jnp.zeros((1, W + 2, C), cdt)

    def store_padded(p_ref, x_hwc):
        # 1-pixel halo assembled in the VMEM scratch with aligned stores only.
        p_ref[0:1] = zrow
        p_ref[H + 1:H + 2] = zrow
        p_ref[1:H + 1] = jnp.concatenate([zcol, x_hwc.astype(cdt), zcol],
                                         axis=1)

    def conv3x3(p_ref, w_ref, s_ref, b_ref):
        # im2col with K = 9*C over all H*W rows -> one fat MXU matmul.
        cols = []
        for dy in range(3):
            rows = p_ref[dy:dy + H]                       # (H, W+2, C)
            for dx in range(3):
                cols.append(rows[:, dx:dx + W, :].reshape(H * W, C))
        patch = jnp.concatenate(cols, axis=-1)            # (H*W, 9*C)
        y = jnp.dot(patch, w_ref[...], preferred_element_type=jnp.float32)
        return _silu(y * s_ref[...] + b_ref[...])         # f32 epilogue

    a = a_ref[0]                                          # (H, W, C)

    store_padded(xp_ref, a)
    h = conv3x3(xp_ref, w1_ref, s1_ref, b1_ref)           # stays in VMEM

    store_padded(hp_ref, h.reshape(H, W, C))              # re-pad intermediate
    y = conv3x3(hp_ref, w2_ref, s2_ref, b2_ref)

    y = y + a.astype(jnp.float32).reshape(H * W, C)       # residual after SiLU
    o_ref[0] = y.reshape(H, W, C).astype(o_ref.dtype)


def bottleneck_fused(a, w1, s1, b1, w2, s2, b2):
    """a: (B,H,W,C); w1,w2: (3,3,C,C) HWIO; s/b: folded BN scale/bias (C,)."""
    B, H, W, C = a.shape
    w1f = w1.reshape(9 * C, C).astype(COMPUTE_DTYPE)      # (ky*kx*Cin, Cout)
    w2f = w2.reshape(9 * C, C).astype(COMPUTE_DTYPE)
    img = pl.BlockSpec((1, H, W, C), lambda bb: (bb, 0, 0, 0))
    full = lambda shape: pl.BlockSpec(shape, lambda bb: (0, 0))

    return pl.pallas_call(
        _bottleneck_kernel,
        out_shape=jax.ShapeDtypeStruct((B, H, W, C), COMPUTE_DTYPE),
        grid=(B,),
        in_specs=[img,
                  full((9 * C, C)), full((1, C)), full((1, C)),
                  full((9 * C, C)), full((1, C)), full((1, C))],
        out_specs=img,
        scratch_shapes=[pltpu.VMEM((H + 2, W + 2, C), COMPUTE_DTYPE),
                        pltpu.VMEM((H + 2, W + 2, C), COMPUTE_DTYPE)],
        compiler_params=_cparams("parallel"),
    )(a, w1f, s1.reshape(1, C), b1.reshape(1, C),
      w2f, s2.reshape(1, C), b2.reshape(1, C))


# --------------------------------------------------------------------------
# Deterministic parameter construction (Conv weight + folded BN scale/bias)
# --------------------------------------------------------------------------
def make_conv_params(key, cin, cout, k):
    kw, kg, kb = jax.random.split(key, 3)
    fan_in = cin * k * k
    w = jax.random.normal(kw, (k, k, cin, cout), jnp.float32) / math.sqrt(fan_in)
    gamma = 1.0 + 0.1 * jax.random.normal(kg, (cout,), jnp.float32)
    beta = 0.1 * jax.random.normal(kb, (cout,), jnp.float32)
    running_mean = jnp.zeros((cout,), jnp.float32)
    running_var = jnp.ones((cout,), jnp.float32)
    scale = gamma / jnp.sqrt(running_var + BN_EPS)
    bias = beta - running_mean * scale
    return w, scale, bias


# --------------------------------------------------------------------------
# Pure-JAX reference (lax.conv) used to verify the Pallas implementation
# --------------------------------------------------------------------------
def ref_conv_bn_silu(x, w, scale, bias, pad):
    y = jax.lax.conv_general_dilated(
        x, w, window_strides=(1, 1), padding=[(pad, pad), (pad, pad)],
        dimension_numbers=("NHWC", "HWIO", "NHWC"))
    y = y * scale + bias
    return y * jax.nn.sigmoid(y)


if __name__ == "__main__":
    B, H, W = 2, 16, 16
    c1 = c2 = 16
    n = 1
    e = 0.5
    c = int(c2 * e)  # hidden channels = 8

    key = jax.random.PRNGKey(0)
    keys = jax.random.split(key, 3 + 2 * n)
    k_x, k_cv1, k_cv2 = keys[0], keys[1], keys[2]
    k_m = keys[3:]

    x = jax.random.normal(k_x, (B, H, W, c1), jnp.float32)

    cv1_w, cv1_s, cv1_b = make_conv_params(k_cv1, c1, 2 * c, 1)
    cv2_w, cv2_s, cv2_b = make_conv_params(k_cv2, 2 * c, c2, 1)
    m_params = []
    for i in range(n):
        p1 = make_conv_params(k_m[2 * i], c, c, 3)
        p2 = make_conv_params(k_m[2 * i + 1], c, c, 3)
        m_params.append((p1, p2))

    def c2_forward(x):
        # cv1 (1x1) emitting the two channel halves directly
        a, b = cv1_split(x, cv1_w.reshape(c1, 2 * c), cv1_s, cv1_b, c)
        # Bottleneck stack: both 3x3 convs + residual fused per bottleneck
        for (w1, s1, b1), (w2, s2, b2) in m_params:
            a = bottleneck_fused(a, w1, s1, b1, w2, s2, b2)
        # cv2 (1x1) on cat(m(a), b), fused (no HBM concatenate)
        return cv2_pair(a, b, cv2_w.reshape(2 * c, c2), cv2_s, cv2_b,
                        out_dtype=x.dtype)

    out = jax.jit(c2_forward)(x)
    out = jax.block_until_ready(out)

    # pure-JAX reference check
    def c2_ref(x):
        y = ref_conv_bn_silu(x, cv1_w, cv1_s, cv1_b, 0)
        a, b = y[..., :c], y[..., c:]
        for (w1, s1, b1), (w2, s2, b2) in m_params:
            h = ref_conv_bn_silu(a, w1, s1, b1, 1)
            a = a + ref_conv_bn_silu(h, w2, s2, b2, 1)
        return ref_conv_bn_silu(
            jnp.concatenate([a, b], axis=-1), cv2_w, cv2_s, cv2_b, 0
        )

    expected = c2_ref(x)
    # approximate EUP reciprocal in SiLU -> slightly loosened f32 tolerance;
    # much looser when COMPUTE_DTYPE is flipped to bf16.
    tol = 2e-2 if COMPUTE_DTYPE == jnp.float32 else 1e-1
    err = float(jnp.max(jnp.abs(out - expected)))
    assert bool(jnp.allclose(out, expected, atol=tol, rtol=tol)), f"max err {err}"

    print("KERNEL_OK")
</pallas_src>

<mosaic_0001>
module attributes {stable_mosaic.version = 11 : i64} {
  func.func @_cv1_split_kernel(%arg0: i32, %arg1: memref<512x16xf32, #tpu.memory_space<vmem>>, %arg2: memref<16x16xf32, #tpu.memory_space<vmem>>, %arg3: memref<1x16xf32, #tpu.memory_space<vmem>>, %arg4: memref<1x16xf32, #tpu.memory_space<vmem>>, %arg5: memref<512x8xf32, #tpu.memory_space<vmem>>, %arg6: memref<512x8xf32, #tpu.memory_space<vmem>>) attributes {dimension_semantics = [#tpu.dimension_semantics<parallel>], iteration_bounds = array<i64: 1>, scalar_prefetch = 0 : i64, scratch_operands = 0 : i64, tpu.core_type = #tpu.core_type<tc>, window_params = [{transform_indices = @transform_0, window_bounds = array<i64: 512, 16>}, {pipeline_mode = #tpu.pipeline_mode<synchronous>, transform_indices = @transform_1, window_bounds = array<i64: 16, 16>}, {pipeline_mode = #tpu.pipeline_mode<synchronous>, transform_indices = @transform_2, window_bounds = array<i64: 1, 16>}, {pipeline_mode = #tpu.pipeline_mode<synchronous>, transform_indices = @transform_3, window_bounds = array<i64: 1, 16>}, {transform_indices = @transform_4, window_bounds = array<i64: 512, 8>}, {transform_indices = @transform_5, window_bounds = array<i64: 512, 8>}]} {
    %c0 = arith.constant 0 : index
    %c0_0 = arith.constant 0 : index
    %0 = vector.load %arg1[%c0, %c0_0] : memref<512x16xf32, #tpu.memory_space<vmem>>, vector<512x16xf32>
    %c0_1 = arith.constant 0 : index
    %c0_2 = arith.constant 0 : index
    %1 = vector.load %arg2[%c0_1, %c0_2] : memref<16x16xf32, #tpu.memory_space<vmem>>, vector<16x16xf32>
    %cst = arith.constant dense<0.000000e+00> : vector<512x16xf32>
    %2 = tpu.matmul %0, %1, %cst {dimension_numbers = #tpu.dot_dimension_numbers<[1], [0], [0], [1], [0, 0, 1, 1], [], []>} : vector<512x16xf32>, vector<16x16xf32>, vector<512x16xf32> -> vector<512x16xf32>
    %c0_3 = arith.constant 0 : index
    %c0_4 = arith.constant 0 : index
    %3 = vector.load %arg3[%c0_3, %c0_4] : memref<1x16xf32, #tpu.memory_space<vmem>>, vector<1x16xf32>
    %4 = vector.broadcast %3 : vector<1x16xf32> to vector<512x16xf32>
    %5 = arith.mulf %2, %4 : vector<512x16xf32>
    %c0_5 = arith.constant 0 : index
    %c0_6 = arith.constant 0 : index
    %6 = vector.load %arg4[%c0_5, %c0_6] : memref<1x16xf32, #tpu.memory_space<vmem>>, vector<1x16xf32>
    %7 = vector.broadcast %6 : vector<1x16xf32> to vector<512x16xf32>
    %8 = arith.addf %5, %7 : vector<512x16xf32>
    %cst_7 = arith.constant 0.000000e+00 : f32
    %9 = vector.broadcast %cst_7 : f32 to vector<512x16xf32>
    %10 = arith.subf %9, %8 : vector<512x16xf32>
    %11 = math.exp %10 : vector<512x16xf32>
    %cst_8 = arith.constant 1.000000e+00 : f32
    %12 = vector.broadcast %cst_8 : f32 to vector<512x16xf32>
    %13 = arith.addf %12, %11 : vector<512x16xf32>
    %14 = tpu.reciprocal %13 {approx = true} : vector<512x16xf32> -> vector<512x16xf32>
    %15 = arith.mulf %8, %14 : vector<512x16xf32>
    %16 = vector.extract_strided_slice %15 {offsets = [0, 0], sizes = [512, 8], strides = [1, 1]} : vector<512x16xf32> to vector<512x8xf32>
    %c0_9 = arith.constant 0 : index
    %c0_10 = arith.constant 0 : index
    %17 = vector.load %arg5[%c0_9, %c0_10] : memref<512x8xf32, #tpu.memory_space<vmem>>, vector<512x8xf32>
    tpu.vector_store %arg5[%c0_9, %c0_10], %16 {strides = array<i32>} : memref<512x8xf32, #tpu.memory_space<vmem>>, vector<512x8xf32>,
    %18 = vector.extract_strided_slice %15 {offsets = [0, 8], sizes = [512, 8], strides = [1, 1]} : vector<512x16xf32> to vector<512x8xf32>
    %c0_11 = arith.constant 0 : index
    %c0_12 = arith.constant 0 : index
    %19 = vector.load %arg6[%c0_11, %c0_12] : memref<512x8xf32, #tpu.memory_space<vmem>>, vector<512x8xf32>
    tpu.vector_store %arg6[%c0_11, %c0_12], %18 {strides = array<i32>} : memref<512x8xf32, #tpu.memory_space<vmem>>, vector<512x8xf32>,
    return
  }
  func.func @transform_0(%arg0: i32) -> (i32, i32) {
    %c0_i32 = arith.constant 0 : i32
    %c0_i32_0 = arith.constant 0 : i32
    return %arg0, %c0_i32 : i32, i32
  }
  func.func @transform_1(%arg0: i32) -> (i32, i32) {
    %c0_i32 = arith.constant 0 : i32
    %c0_i32_0 = arith.constant 0 : i32
    %c0_i32_1 = arith.constant 0 : i32
    return %c0_i32, %c0_i32_0 : i32, i32
  }
  func.func @transform_2(%arg0: i32) -> (i32, i32) {
    %c0_i32 = arith.constant 0 : i32
    %c0_i32_0 = arith.constant 0 : i32
    %c0_i32_1 = arith.constant 0 : i32
    return %c0_i32, %c0_i32_0 : i32, i32
  }
  func.func @transform_3(%arg0: i32) -> (i32, i32) {
    %c0_i32 = arith.constant 0 : i32
    %c0_i32_0 = arith.constant 0 : i32
    %c0_i32_1 = arith.constant 0 : i32
    return %c0_i32, %c0_i32_0 : i32, i32
  }
  func.func @transform_4(%arg0: i32) -> (i32, i32) {
    %c0_i32 = arith.constant 0 : i32
    %c0_i32_0 = arith.constant 0 : i32
    return %arg0, %c0_i32 : i32, i32
  }
  func.func @transform_5(%arg0: i32) -> (i32, i32) {
    %c0_i32 = arith.constant 0 : i32
    %c0_i32_0 = arith.constant 0 : i32
    return %arg0, %c0_i32 : i32, i32
  }
}

module attributes {stable_mosaic.version = 11 : i64} {
  func.func @_bottleneck_kernel(%arg0: i32, %arg1: memref<1x16x16x8xf32, #tpu.memory_space<vmem>>, %arg2: memref<72x8xf32, #tpu.memory_space<vmem>>, %arg3: memref<1x8xf32, #tpu.memory_space<vmem>>, %arg4: memref<1x8xf32, #tpu.memory_space<vmem>>, %arg5: memref<72x8xf32, #tpu.memory_space<vmem>>, %arg6: memref<1x8xf32, #tpu.memory_space<vmem>>, %arg7: memref<1x8xf32, #tpu.memory_space<vmem>>, %arg8: memref<1x16x16x8xf32, #tpu.memory_space<vmem>>, %arg9: memref<18x18x8xf32, #tpu.memory_space<vmem>>, %arg10: memref<18x18x8xf32, #tpu.memory_space<vmem>>) attributes {dimension_semantics = [#tpu.dimension_semantics<parallel>], iteration_bounds = array<i64: 2>, scalar_prefetch = 0 : i64, scratch_operands = 2 : i64, tpu.core_type = #tpu.core_type<tc>, window_params = [{transform_indices = @transform_0, window_bounds = array<i64: 1, 16, 16, 8>}, {pipeline_mode = #tpu.pipeline_mode<synchronous>, transform_indices = @transform_1, window_bounds = array<i64: 72, 8>}, {pipeline_mode = #tpu.pipeline_mode<synchronous>, transform_indices = @transform_2, window_bounds = array<i64: 1, 8>}, {pipeline_mode = #tpu.pipeline_mode<synchronous>, transform_indices = @transform_3, window_bounds = array<i64: 1, 8>}, {pipeline_mode = #tpu.pipeline_mode<synchronous>, transform_indices = @transform_4, window_bounds = array<i64: 72, 8>}, {pipeline_mode = #tpu.pipeline_mode<synchronous>, transform_indices = @transform_5, window_bounds = array<i64: 1, 8>}, {pipeline_mode = #tpu.pipeline_mode<synchronous>, transform_indices = @transform_6, window_bounds = array<i64: 1, 8>}, {transform_indices = @transform_7, window_bounds = array<i64: 1, 16, 16, 8>}]} {
    %cst = arith.constant 0.000000e+00 : f32
    %0 = vector.broadcast %cst : f32 to vector<16x1x8xf32>
    %cst_0 = arith.constant 0.000000e+00 : f32
    %1 = vector.broadcast %cst_0 : f32 to vector<1x18x8xf32>
    %c0 = arith.constant 0 : index
    %c0_1 = arith.constant 0 : index
    %c0_2 = arith.constant 0 : index
    %c0_3 = arith.constant 0 : index
    %2 = vector.load %arg1[%c0, %c0_1, %c0_2, %c0_3] : memref<1x16x16x8xf32, #tpu.memory_space<vmem>>, vector<1x16x16x8xf32>
    %3 = vector.shape_cast %2 : vector<1x16x16x8xf32> to vector<16x16x8xf32>
    %c0_4 = arith.constant 0 : index
    %c0_5 = arith.constant 0 : index
    %c0_6 = arith.constant 0 : index
    %4 = vector.load %arg9[%c0_4, %c0_5, %c0_6] : memref<18x18x8xf32, #tpu.memory_space<vmem>>, vector<1x18x8xf32>
    tpu.vector_store %arg9[%c0_4, %c0_5, %c0_6], %1 {strides = array<i32>} : memref<18x18x8xf32, #tpu.memory_space<vmem>>, vector<1x18x8xf32>,
    %c17 = arith.constant 17 : index
    %c0_7 = arith.constant 0 : index
    %c0_8 = arith.constant 0 : index
    %5 = vector.load %arg9[%c17, %c0_7, %c0_8] : memref<18x18x8xf32, #tpu.memory_space<vmem>>, vector<1x18x8xf32>
    tpu.vector_store %arg9[%c17, %c0_7, %c0_8], %1 {strides = array<i32>} : memref<18x18x8xf32, #tpu.memory_space<vmem>>, vector<1x18x8xf32>,
    %6 = tpu.concatenate %0, %3, %0 in 1 : vector<16x1x8xf32>, vector<16x16x8xf32>, vector<16x1x8xf32> -> vector<16x18x8xf32>
    %c1 = arith.constant 1 : index
    %c0_9 = arith.constant 0 : index
    %c0_10 = arith.constant 0 : index
    %7 = vector.load %arg9[%c1, %c0_9, %c0_10] : memref<18x18x8xf32, #tpu.memory_space<vmem>>, vector<16x18x8xf32>
    tpu.vector_store %arg9[%c1, %c0_9, %c0_10], %6 {strides = array<i32>} : memref<18x18x8xf32, #tpu.memory_space<vmem>>, vector<16x18x8xf32>,
    %c0_11 = arith.constant 0 : index
    %c0_12 = arith.constant 0 : index
    %c0_13 = arith.constant 0 : index
    %8 = vector.load %arg9[%c0_11, %c0_12, %c0_13] : memref<18x18x8xf32, #tpu.memory_space<vmem>>, vector<16x18x8xf32>
    %9 = vector.extract_strided_slice %8 {offsets = [0, 0, 0], sizes = [16, 16, 8], strides = [1, 1, 1]} : vector<16x18x8xf32> to vector<16x16x8xf32>
    %10 = vector.shape_cast %9 : vector<16x16x8xf32> to vector<256x8xf32>
    %11 = vector.extract_strided_slice %8 {offsets = [0, 1, 0], sizes = [16, 16, 8], strides = [1, 1, 1]} : vector<16x18x8xf32> to vector<16x16x8xf32>
    %12 = vector.shape_cast %11 : vector<16x16x8xf32> to vector<256x8xf32>
    %13 = vector.extract_strided_slice %8 {offsets = [0, 2, 0], sizes = [16, 16, 8], strides = [1, 1, 1]} : vector<16x18x8xf32> to vector<16x16x8xf32>
    %14 = vector.shape_cast %13 : vector<16x16x8xf32> to vector<256x8xf32>
    %c1_14 = arith.constant 1 : index
    %c0_15 = arith.constant 0 : index
    %c0_16 = arith.constant 0 : index
    %15 = vector.load %arg9[%c1_14, %c0_15, %c0_16] : memref<18x18x8xf32, #tpu.memory_space<vmem>>, vector<16x18x8xf32>
    %16 = vector.extract_strided_slice %15 {offsets = [0, 0, 0], sizes = [16, 16, 8], strides = [1, 1, 1]} : vector<16x18x8xf32> to vector<16x16x8xf32>
    %17 = vector.shape_cast %16 : vector<16x16x8xf32> to vector<256x8xf32>
    %18 = vector.extract_strided_slice %15 {offsets = [0, 1, 0], sizes = [16, 16, 8], strides = [1, 1, 1]} : vector<16x18x8xf32> to vector<16x16x8xf32>
    %19 = vector.shape_cast %18 : vector<16x16x8xf32> to vector<256x8xf32>
    %20 = vector.extract_strided_slice %15 {offsets = [0, 2, 0], sizes = [16, 16, 8], strides = [1, 1, 1]} : vector<16x18x8xf32> to vector<16x16x8xf32>
    %21 = vector.shape_cast %20 : vector<16x16x8xf32> to vector<256x8xf32>
    %c2 = arith.constant 2 : index
    %c0_17 = arith.constant 0 : index
    %c0_18 = arith.constant 0 : index
    %22 = vector.load %arg9[%c2, %c0_17, %c0_18] : memref<18x18x8xf32, #tpu.memory_space<vmem>>, vector<16x18x8xf32>
    %23 = vector.extract_strided_slice %22 {offsets = [0, 0, 0], sizes = [16, 16, 8], strides = [1, 1, 1]} : vector<16x18x8xf32> to vector<16x16x8xf32>
    %24 = vector.shape_cast %23 : vector<16x16x8xf32> to vector<256x8xf32>
    %25 = vector.extract_strided_slice %22 {offsets = [0, 1, 0], sizes = [16, 16, 8], strides = [1, 1, 1]} : vector<16x18x8xf32> to vector<16x16x8xf32>
    %26 = vector.shape_cast %25 : vector<16x16x8xf32> to vector<256x8xf32>
    %27 = vector.extract_strided_slice %22 {offsets = [0, 2, 0], sizes = [16, 16, 8], strides = [1, 1, 1]} : vector<16x18x8xf32> to vector<16x16x8xf32>
    %28 = vector.shape_cast %27 : vector<16x16x8xf32> to vector<256x8xf32>
    %29 = tpu.concatenate %10, %12, %14, %17, %19, %21, %24, %26, %28 in 1 : vector<256x8xf32>, vector<256x8xf32>, vector<256x8xf32>, vector<256x8xf32>, vector<256x8xf32>, vector<256x8xf32>, vector<256x8xf32>, vector<256x8xf32>, vector<256x8xf32> -> vector<256x72xf32>
    %c0_19 = arith.constant 0 : index
    %c0_20 = arith.constant 0 : index
    %30 = vector.load %arg2[%c0_19, %c0_20] : memref<72x8xf32, #tpu.memory_space<vmem>>, vector<72x8xf32>
    %cst_21 = arith.constant dense<0.000000e+00> : vector<256x8xf32>
    %31 = tpu.matmul %29, %30, %cst_21 {dimension_numbers = #tpu.dot_dimension_numbers<[1], [0], [0], [1], [0, 0, 1, 1], [], []>} : vector<256x72xf32>, vector<72x8xf32>, vector<256x8xf32> -> vector<256x8xf32>
    %c0_22 = arith.constant 0 : index
    %c0_23 = arith.constant 0 : index
    %32 = vector.load %arg3[%c0_22, %c0_23] : memref<1x8xf32, #tpu.memory_space<vmem>>, vector<1x8xf32>
    %33 = vector.broadcast %32 : vector<1x8xf32> to vector<256x8xf32>
    %34 = arith.mulf %31, %33 : vector<256x8xf32>
    %c0_24 = arith.constant 0 : index
    %c0_25 = arith.constant 0 : index
    %35 = vector.load %arg4[%c0_24, %c0_25] : memref<1x8xf32, #tpu.memory_space<vmem>>, vector<1x8xf32>
    %36 = vector.broadcast %35 : vector<1x8xf32> to vector<256x8xf32>
    %37 = arith.addf %34, %36 : vector<256x8xf32>
    %cst_26 = arith.constant 0.000000e+00 : f32
    %38 = vector.broadcast %cst_26 : f32 to vector<256x8xf32>
    %39 = arith.subf %38, %37 : vector<256x8xf32>
    %40 = math.exp %39 : vector<256x8xf32>
    %cst_27 = arith.constant 1.000000e+00 : f32
    %41 = vector.broadcast %cst_27 : f32 to vector<256x8xf32>
    %42 = arith.addf %41, %40 : vector<256x8xf32>
    %43 = tpu.reciprocal %42 {approx = true} : vector<256x8xf32> -> vector<256x8xf32>
    %44 = arith.mulf %37, %43 : vector<256x8xf32>
    %45 = vector.shape_cast %44 : vector<256x8xf32> to vector<16x16x8xf32>
    %c0_28 = arith.constant 0 : index
    %c0_29 = arith.constant 0 : index
    %c0_30 = arith.constant 0 : index
    %46 = vector.load %arg10[%c0_28, %c0_29, %c0_30] : memref<18x18x8xf32, #tpu.memory_space<vmem>>, vector<1x18x8xf32>
    tpu.vector_store %arg10[%c0_28, %c0_29, %c0_30], %1 {strides = array<i32>} : memref<18x18x8xf32, #tpu.memory_space<vmem>>, vector<1x18x8xf32>,
    %c17_31 = arith.constant 17 : index
    %c0_32 = arith.constant 0 : index
    %c0_33 = arith.constant 0 : index
    %47 = vector.load %arg10[%c17_31, %c0_32, %c0_33] : memref<18x18x8xf32, #tpu.memory_space<vmem>>, vector<1x18x8xf32>
    tpu.vector_store %arg10[%c17_31, %c0_32, %c0_33], %1 {strides = array<i32>} : memref<18x18x8xf32, #tpu.memory_space<vmem>>, vector<1x18x8xf32>,
    %48 = tpu.concatenate %0, %45, %0 in 1 : vector<16x1x8xf32>, vector<16x16x8xf32>, vector<16x1x8xf32> -> vector<16x18x8xf32>
    %c1_34 = arith.constant 1 : index
    %c0_35 = arith.constant 0 : index
    %c0_36 = arith.constant 0 : index
    %49 = vector.load %arg10[%c1_34, %c0_35, %c0_36] : memref<18x18x8xf32, #tpu.memory_space<vmem>>, vector<16x18x8xf32>
    tpu.vector_store %arg10[%c1_34, %c0_35, %c0_36], %48 {strides = array<i32>} : memref<18x18x8xf32, #tpu.memory_space<vmem>>, vector<16x18x8xf32>,
    %c0_37 = arith.constant 0 : index
    %c0_38 = arith.constant 0 : index
    %c0_39 = arith.constant 0 : index
    %50 = vector.load %arg10[%c0_37, %c0_38, %c0_39] : memref<18x18x8xf32, #tpu.memory_space<vmem>>, vector<16x18x8xf32>
    %51 = vector.extract_strided_slice %50 {offsets = [0, 0, 0], sizes = [16, 16, 8], strides = [1, 1, 1]} : vector<16x18x8xf32> to vector<16x16x8xf32>
    %52 = vector.shape_cast %51 : vector<16x16x8xf32> to vector<256x8xf32>
    %53 = vector.extract_strided_slice %50 {offsets = [0, 1, 0], sizes = [16, 16, 8], strides = [1, 1, 1]} : vector<16x18x8xf32> to vector<16x16x8xf32>
    %54 = vector.shape_cast %53 : vector<16x16x8xf32> to vector<256x8xf32>
    %55 = vector.extract_strided_slice %50 {offsets = [0, 2, 0], sizes = [16, 16, 8], strides = [1, 1, 1]} : vector<16x18x8xf32> to vector<16x16x8xf32>
    %56 = vector.shape_cast %55 : vector<16x16x8xf32> to vector<256x8xf32>
    %c1_40 = arith.constant 1 : index
    %c0_41 = arith.constant 0 : index
    %c0_42 = arith.constant 0 : index
    %57 = vector.load %arg10[%c1_40, %c0_41, %c0_42] : memref<18x18x8xf32, #tpu.memory_space<vmem>>, vector<16x18x8xf32>
    %58 = vector.extract_strided_slice %57 {offsets = [0, 0, 0], sizes = [16, 16, 8], strides = [1, 1, 1]} : vector<16x18x8xf32> to vector<16x16x8xf32>
    %59 = vector.shape_cast %58 : vector<16x16x8xf32> to vector<256x8xf32>
    %60 = vector.extract_strided_slice %57 {offsets = [0, 1, 0], sizes = [16, 16, 8], strides = [1, 1, 1]} : vector<16x18x8xf32> to vector<16x16x8xf32>
    %61 = vector.shape_cast %60 : vector<16x16x8xf32> to vector<256x8xf32>
    %62 = vector.extract_strided_slice %57 {offsets = [0, 2, 0], sizes = [16, 16, 8], strides = [1, 1, 1]} : vector<16x18x8xf32> to vector<16x16x8xf32>
    %63 = vector.shape_cast %62 : vector<16x16x8xf32> to vector<256x8xf32>
    %c2_43 = arith.constant 2 : index
    %c0_44 = arith.constant 0 : index
    %c0_45 = arith.constant 0 : index
    %64 = vector.load %arg10[%c2_43, %c0_44, %c0_45] : memref<18x18x8xf32, #tpu.memory_space<vmem>>, vector<16x18x8xf32>
    %65 = vector.extract_strided_slice %64 {offsets = [0, 0, 0], sizes = [16, 16, 8], strides = [1, 1, 1]} : vector<16x18x8xf32> to vector<16x16x8xf32>
    %66 = vector.shape_cast %65 : vector<16x16x8xf32> to vector<256x8xf32>
    %67 = vector.extract_strided_slice %64 {offsets = [0, 1, 0], sizes = [16, 16, 8], strides = [1, 1, 1]} : vector<16x18x8xf32> to vector<16x16x8xf32>
    %68 = vector.shape_cast %67 : vector<16x16x8xf32> to vector<256x8xf32>
    %69 = vector.extract_strided_slice %64 {offsets = [0, 2, 0], sizes = [16, 16, 8], strides = [1, 1, 1]} : vector<16x18x8xf32> to vector<16x16x8xf32>
    %70 = vector.shape_cast %69 : vector<16x16x8xf32> to vector<256x8xf32>
    %71 = tpu.concatenate %52, %54, %56, %59, %61, %63, %66, %68, %70 in 1 : vector<256x8xf32>, vector<256x8xf32>, vector<256x8xf32>, vector<256x8xf32>, vector<256x8xf32>, vector<256x8xf32>, vector<256x8xf32>, vector<256x8xf32>, vector<256x8xf32> -> vector<256x72xf32>
    %c0_46 = arith.constant 0 : index
    %c0_47 = arith.constant 0 : index
    %72 = vector.load %arg5[%c0_46, %c0_47] : memref<72x8xf32, #tpu.memory_space<vmem>>, vector<72x8xf32>
    %cst_48 = arith.constant dense<0.000000e+00> : vector<256x8xf32>
    %73 = tpu.matmul %71, %72, %cst_48 {dimension_numbers = #tpu.dot_dimension_numbers<[1], [0], [0], [1], [0, 0, 1, 1], [], []>} : vector<256x72xf32>, vector<72x8xf32>, vector<256x8xf32> -> vector<256x8xf32>
    %c0_49 = arith.constant 0 : index
    %c0_50 = arith.constant 0 : index
    %74 = vector.load %arg6[%c0_49, %c0_50] : memref<1x8xf32, #tpu.memory_space<vmem>>, vector<1x8xf32>
    %75 = vector.broadcast %74 : vector<1x8xf32> to vector<256x8xf32>
    %76 = arith.mulf %73, %75 : vector<256x8xf32>
    %c0_51 = arith.constant 0 : index
    %c0_52 = arith.constant 0 : index
    %77 = vector.load %arg7[%c0_51, %c0_52] : memref<1x8xf32, #tpu.memory_space<vmem>>, vector<1x8xf32>
    %78 = vector.broadcast %77 : vector<1x8xf32> to vector<256x8xf32>
    %79 = arith.addf %76, %78 : vector<256x8xf32>
    %cst_53 = arith.constant 0.000000e+00 : f32
    %80 = vector.broadcast %cst_53 : f32 to vector<256x8xf32>
    %81 = arith.subf %80, %79 : vector<256x8xf32>
    %82 = math.exp %81 : vector<256x8xf32>
    %cst_54 = arith.constant 1.000000e+00 : f32
    %83 = vector.broadcast %cst_54 : f32 to vector<256x8xf32>
    %84 = arith.addf %83, %82 : vector<256x8xf32>
    %85 = tpu.reciprocal %84 {approx = true} : vector<256x8xf32> -> vector<256x8xf32>
    %86 = arith.mulf %79, %85 : vector<256x8xf32>
    %87 = vector.shape_cast %3 : vector<16x16x8xf32> to vector<256x8xf32>
    %88 = arith.addf %86, %87 : vector<256x8xf32>
    %89 = vector.shape_cast %88 : vector<256x8xf32> to vector<16x16x8xf32>
    %c0_55 = arith.constant 0 : index
    %c0_56 = arith.constant 0 : index
    %c0_57 = arith.constant 0 : index
    %c0_58 = arith.constant 0 : index
    %90 = vector.load %arg8[%c0_55, %c0_56, %c0_57, %c0_58] : memref<1x16x16x8xf32, #tpu.memory_space<vmem>>, vector<1x16x16x8xf32>
    %91 = vector.shape_cast %90 : vector<1x16x16x8xf32> to vector<16x16x8xf32>
    %92 = vector.shape_cast %89 : vector<16x16x8xf32> to vector<1x16x16x8xf32>
    tpu.vector_store %arg8[%c0_55, %c0_56, %c0_57, %c0_58], %92 {strides = array<i32>} : memref<1x16x16x8xf32, #tpu.memory_space<vmem>>, vector<1x16x16x8xf32>,
    return
  }
  func.func @transform_0(%arg0: i32) -> (i32, i32, i32, i32) {
    %c0_i32 = arith.constant 0 : i32
    %c0_i32_0 = arith.constant 0 : i32
    %c0_i32_1 = arith.constant 0 : i32
    %c0_i32_2 = arith.constant 0 : i32
    return %arg0, %c0_i32, %c0_i32_0, %c0_i32_1 : i32, i32, i32, i32
  }
  func.func @transform_1(%arg0: i32) -> (i32, i32) {
    %c0_i32 = arith.constant 0 : i32
    %c0_i32_0 = arith.constant 0 : i32
    %c0_i32_1 = arith.constant 0 : i32
    return %c0_i32, %c0_i32_0 : i32, i32
  }
  func.func @transform_2(%arg0: i32) -> (i32, i32) {
    %c0_i32 = arith.constant 0 : i32
    %c0_i32_0 = arith.constant 0 : i32
    %c0_i32_1 = arith.constant 0 : i32
    return %c0_i32, %c0_i32_0 : i32, i32
  }
  func.func @transform_3(%arg0: i32) -> (i32, i32) {
    %c0_i32 = arith.constant 0 : i32
    %c0_i32_0 = arith.constant 0 : i32
    %c0_i32_1 = arith.constant 0 : i32
    return %c0_i32, %c0_i32_0 : i32, i32
  }
  func.func @transform_4(%arg0: i32) -> (i32, i32) {
    %c0_i32 = arith.constant 0 : i32
    %c0_i32_0 = arith.constant 0 : i32
    %c0_i32_1 = arith.constant 0 : i32
    return %c0_i32, %c0_i32_0 : i32, i32
  }
  func.func @transform_5(%arg0: i32) -> (i32, i32) {
    %c0_i32 = arith.constant 0 : i32
    %c0_i32_0 = arith.constant 0 : i32
    %c0_i32_1 = arith.constant 0 : i32
    return %c0_i32, %c0_i32_0 : i32, i32
  }
  func.func @transform_6(%arg0: i32) -> (i32, i32) {
    %c0_i32 = arith.constant 0 : i32
    %c0_i32_0 = arith.constant 0 : i32
    %c0_i32_1 = arith.constant 0 : i32
    return %c0_i32, %c0_i32_0 : i32, i32
  }
  func.func @transform_7(%arg0: i32) -> (i32, i32, i32, i32) {
    %c0_i32 = arith.constant 0 : i32
    %c0_i32_0 = arith.constant 0 : i32
    %c0_i32_1 = arith.constant 0 : i32
    %c0_i32_2 = arith.constant 0 : i32
    return %arg0, %c0_i32, %c0_i32_0, %c0_i32_1 : i32, i32, i32, i32
  }
}

module attributes {stable_mosaic.version = 11 : i64} {
  func.func @_cv2_pair_kernel(%arg0: i32, %arg1: memref<512x8xf32, #tpu.memory_space<vmem>>, %arg2: memref<512x8xf32, #tpu.memory_space<vmem>>, %arg3: memref<8x16xf32, #tpu.memory_space<vmem>>, %arg4: memref<8x16xf32, #tpu.memory_space<vmem>>, %arg5: memref<1x16xf32, #tpu.memory_space<vmem>>, %arg6: memref<1x16xf32, #tpu.memory_space<vmem>>, %arg7: memref<512x16xf32, #tpu.memory_space<vmem>>) attributes {dimension_semantics = [#tpu.dimension_semantics<parallel>], iteration_bounds = array<i64: 1>, scalar_prefetch = 0 : i64, scratch_operands = 0 : i64, tpu.core_type = #tpu.core_type<tc>, window_params = [{transform_indices = @transform_0, window_bounds = array<i64: 512, 8>}, {transform_indices = @transform_1, window_bounds = array<i64: 512, 8>}, {pipeline_mode = #tpu.pipeline_mode<synchronous>, transform_indices = @transform_2, window_bounds = array<i64: 8, 16>}, {pipeline_mode = #tpu.pipeline_mode<synchronous>, transform_indices = @transform_3, window_bounds = array<i64: 8, 16>}, {pipeline_mode = #tpu.pipeline_mode<synchronous>, transform_indices = @transform_4, window_bounds = array<i64: 1, 16>}, {pipeline_mode = #tpu.pipeline_mode<synchronous>, transform_indices = @transform_5, window_bounds = array<i64: 1, 16>}, {transform_indices = @transform_6, window_bounds = array<i64: 512, 16>}]} {
    %c0 = arith.constant 0 : index
    %c0_0 = arith.constant 0 : index
    %0 = vector.load %arg1[%c0, %c0_0] : memref<512x8xf32, #tpu.memory_space<vmem>>, vector<512x8xf32>
    %c0_1 = arith.constant 0 : index
    %c0_2 = arith.constant 0 : index
    %1 = vector.load %arg3[%c0_1, %c0_2] : memref<8x16xf32, #tpu.memory_space<vmem>>, vector<8x16xf32>
    %cst = arith.constant dense<0.000000e+00> : vector<512x16xf32>
    %2 = tpu.matmul %0, %1, %cst {dimension_numbers = #tpu.dot_dimension_numbers<[1], [0], [0], [1], [0, 0, 1, 1], [], []>} : vector<512x8xf32>, vector<8x16xf32>, vector<512x16xf32> -> vector<512x16xf32>
    %c0_3 = arith.constant 0 : index
    %c0_4 = arith.constant 0 : index
    %3 = vector.load %arg2[%c0_3, %c0_4] : memref<512x8xf32, #tpu.memory_space<vmem>>, vector<512x8xf32>
    %c0_5 = arith.constant 0 : index
    %c0_6 = arith.constant 0 : index
    %4 = vector.load %arg4[%c0_5, %c0_6] : memref<8x16xf32, #tpu.memory_space<vmem>>, vector<8x16xf32>
    %cst_7 = arith.constant dense<0.000000e+00> : vector<512x16xf32>
    %5 = tpu.matmul %3, %4, %cst_7 {dimension_numbers = #tpu.dot_dimension_numbers<[1], [0], [0], [1], [0, 0, 1, 1], [], []>} : vector<512x8xf32>, vector<8x16xf32>, vector<512x16xf32> -> vector<512x16xf32>
    %6 = arith.addf %2, %5 : vector<512x16xf32>
    %c0_8 = arith.constant 0 : index
    %c0_9 = arith.constant 0 : index
    %7 = vector.load %arg5[%c0_8, %c0_9] : memref<1x16xf32, #tpu.memory_space<vmem>>, vector<1x16xf32>
    %8 = vector.broadcast %7 : vector<1x16xf32> to vector<512x16xf32>
    %9 = arith.mulf %6, %8 : vector<512x16xf32>
    %c0_10 = arith.constant 0 : index
    %c0_11 = arith.constant 0 : index
    %10 = vector.load %arg6[%c0_10, %c0_11] : memref<1x16xf32, #tpu.memory_space<vmem>>, vector<1x16xf32>
    %11 = vector.broadcast %10 : vector<1x16xf32> to vector<512x16xf32>
    %12 = arith.addf %9, %11 : vector<512x16xf32>
    %cst_12 = arith.constant 0.000000e+00 : f32
    %13 = vector.broadcast %cst_12 : f32 to vector<512x16xf32>
    %14 = arith.subf %13, %12 : vector<512x16xf32>
    %15 = math.exp %14 : vector<512x16xf32>
    %cst_13 = arith.constant 1.000000e+00 : f32
    %16 = vector.broadcast %cst_13 : f32 to vector<512x16xf32>
    %17 = arith.addf %16, %15 : vector<512x16xf32>
    %18 = tpu.reciprocal %17 {approx = true} : vector<512x16xf32> -> vector<512x16xf32>
    %19 = arith.mulf %12, %18 : vector<512x16xf32>
    %c0_14 = arith.constant 0 : index
    %c0_15 = arith.constant 0 : index
    %20 = vector.load %arg7[%c0_14, %c0_15] : memref<512x16xf32, #tpu.memory_space<vmem>>, vector<512x16xf32>
    tpu.vector_store %arg7[%c0_14, %c0_15], %19 {strides = array<i32>} : memref<512x16xf32, #tpu.memory_space<vmem>>, vector<512x16xf32>,
    return
  }
  func.func @transform_0(%arg0: i32) -> (i32, i32) {
    %c0_i32 = arith.constant 0 : i32
    %c0_i32_0 = arith.constant 0 : i32
    return %arg0, %c0_i32 : i32, i32
  }
  func.func @transform_1(%arg0: i32) -> (i32, i32) {
    %c0_i32 = arith.constant 0 : i32
    %c0_i32_0 = arith.constant 0 : i32
    return %arg0, %c0_i32 : i32, i32
  }
  func.func @transform_2(%arg0: i32) -> (i32, i32) {
    %c0_i32 = arith.constant 0 : i32
    %c0_i32_0 = arith.constant 0 : i32
    %c0_i32_1 = arith.constant 0 : i32
    return %c0_i32, %c0_i32_0 : i32, i32
  }
  func.func @transform_3(%arg0: i32) -> (i32, i32) {
    %c0_i32 = arith.constant 0 : i32
    %c0_i32_0 = arith.constant 0 : i32
    %c0_i32_1 = arith.constant 0 : i32
    return %c0_i32, %c0_i32_0 : i32, i32
  }
  func.func @transform_4(%arg0: i32) -> (i32, i32) {
    %c0_i32 = arith.constant 0 : i32
    %c0_i32_0 = arith.constant 0 : i32
    %c0_i32_1 = arith.constant 0 : i32
    return %c0_i32, %c0_i32_0 : i32, i32
  }
  func.func @transform_5(%arg0: i32) -> (i32, i32) {
    %c0_i32 = arith.constant 0 : i32
    %c0_i32_0 = arith.constant 0 : i32
    %c0_i32_1 = arith.constant 0 : i32
    return %c0_i32, %c0_i32_0 : i32, i32
  }
  func.func @transform_6(%arg0: i32) -> (i32, i32) {
    %c0_i32 = arith.constant 0 : i32
    %c0_i32_0 = arith.constant 0 : i32
    return %arg0, %c0_i32 : i32, i32
  }
}

</mosaic_0001>

<llo_original>
// kernel: c2_forward.3
$region0: #{c2_forward.3}
  #allocation0 [shape = 'u32[]', space=smem, size = 0x4, offset = 0x4, fixed_abs, tag = 'smem constant byte address 0x4 - core index']
  #allocation1 [shape = 'u32[144,128]{1,0:T(1,128)}', space=vmem, size = 0x12000, scoped, tag = 'internal scratch']
  %s0 = inlined_call_operand.hbm [shape: f32[512,16], index: 0, kind: input, shape index: {}]
  %s1 = inlined_call_operand.vmem [shape: f32[16,16], index: 1, kind: input, shape index: {}]
  %s2 = inlined_call_operand.vmem [shape: f32[1,16], index: 2, kind: input, shape index: {}]
  %s3 = inlined_call_operand.vmem [shape: f32[1,16], index: 3, kind: input, shape index: {}]
  %s4 = inlined_call_operand.vmem [shape: f32[512,8], index: 4, kind: output, shape index: {0}]
  %s5 = inlined_call_operand.vmem [shape: f32[512,8], index: 5, kind: output, shape index: {1}]
  %6 = xla_tuple %s4, %s5
  %s7 = sld [smem:[#allocation0]]
  $region38: #{c2_forward.3} parent=0
    _
  %s9 = ssub.s32 1, %s7
  %s10 = scalar_select 0, %s9, %s7
  $region1: #{c2_forward.3} parent=0
    #allocation2 [shape = 'u8[262144]{0}', space=vmem, size = 0x40000, scoped, tag = 'input window, operand 0, single buffered']
    #allocation3 [shape = 's32[1]{0}', space=sflag, size = 0x4, scoped, tag = 'scoped memory for c2_forward.3']
    %11 = vsyncpa [#allocation3], 0
    // Predicated region
    $region2: #{c2_forward.3} parent=1 // pred_check
      _
    $region3: #{c2_forward.3} parent=1 // pred_check_branch
      %13 = sbr.rel (0) target = $region5
    $region4: #{c2_forward.3} parent=1 // pred_region
      %s15 = ssub.s32 8192, 8192
      %16 = vsyncadd [#allocation3], %s15
      %s17 = sshll.u32 [#allocation2], 4
      %s18 = int_to_ptr.vmem [resolvable:$true] %s17
      %23 = dma.hbm_to_vmem [thread:$0]  %s0, 8192, %s18, [#allocation3], 128, 128, 8
    $region5: #{c2_forward.3} parent=1 // pred_fallthru
      _
    // Predicated region
    $region6: #{c2_forward.3} parent=1 // pred_check
      _
    $region7: #{c2_forward.3} parent=1 // pred_check_branch
      %25 = sbr.rel (0) target = $region9
    $region8: #{c2_forward.3} parent=1 // pred_region
      _
    $region9: #{c2_forward.3} parent=1 // pred_fallthru
      _
    // Predicated region
    $region10: #{c2_forward.3} parent=1 // pred_check
      _
    $region11: #{c2_forward.3} parent=1 // pred_check_branch
      %27 = sbr.rel (0) target = $region13
    $region12: #{c2_forward.3} parent=1 // pred_region
      _
    $region13: #{c2_forward.3} parent=1 // pred_fallthru
      _
    // Predicated region
    $region14: #{c2_forward.3} parent=1 // pred_check
      _
    $region15: #{c2_forward.3} parent=1 // pred_check_branch
      %29 = sbr.rel (0) target = $region17
    $region16: #{c2_forward.3} parent=1 // pred_region
      _
    $region17: #{c2_forward.3} parent=1 // pred_fallthru
      _
    // Predicated region
    $region18: #{c2_forward.3} parent=1 // pred_check
      _
    $region19: #{c2_forward.3} parent=1 // pred_check_branch
      %31 = sbr.rel (0) target = $region21
    $region20: #{c2_forward.3} parent=1 // pred_region
      %32 = dma.done [#allocation3], 8192
    $region21: #{c2_forward.3} parent=1 // pred_fallthru
      _
    %v33 = vld [vmem:[#allocation2] sm:$0xff]
    %v34 = vld [vmem:[#allocation2 + $0x8] sm:$0xff]
    %v35 = vld [vmem:[#allocation2 + $0x10] sm:$0xff]
    %v36 = vld [vmem:[#allocation2 + $0x18] sm:$0xff]
    %v37 = vld [vmem:[#allocation2 + $0x20] sm:$0xff]
    %v38 = vld [vmem:[#allocation2 + $0x28] sm:$0xff]
    %v39 = vld [vmem:[#allocation2 + $0x30] sm:$0xff]
    %v40 = vld [vmem:[#allocation2 + $0x38] sm:$0xff]
    %v41 = vld [vmem:[#allocation2 + $0x40] sm:$0xff]
    %v42 = vld [vmem:[#allocation2 + $0x48] sm:$0xff]
    %v43 = vld [vmem:[#allocation2 + $0x50] sm:$0xff]
    %v44 = vld [vmem:[#allocation2 + $0x58] sm:$0xff]
    %v45 = vld [vmem:[#allocation2 + $0x60] sm:$0xff]
    %v46 = vld [vmem:[#allocation2 + $0x68] sm:$0xff]
    %v47 = vld [vmem:[#allocation2 + $0x70] sm:$0xff]
    %v48 = vld [vmem:[#allocation2 + $0x78] sm:$0xff]
    %v49 = vld [vmem:[#allocation2 + $0x80] sm:$0xff]
    %v50 = vld [vmem:[#allocation2 + $0x88] sm:$0xff]
    %v51 = vld [vmem:[#allocation2 + $0x90] sm:$0xff]
    %v52 = vld [vmem:[#allocation2 + $0x98] sm:$0xff]
    %v53 = vld [vmem:[#allocation2 + $0xa0] sm:$0xff]
    %v54 = vld [vmem:[#allocation2 + $0xa8] sm:$0xff]
    %v55 = vld [vmem:[#allocation2 + $0xb0] sm:$0xff]
    %v56 = vld [vmem:[#allocation2 + $0xb8] sm:$0xff]
    %v57 = vld [vmem:[#allocation2 + $0xc0] sm:$0xff]
    %v58 = vld [vmem:[#allocation2 + $0xc8] sm:$0xff]
    %v59 = vld [vmem:[#allocation2 + $0xd0] sm:$0xff]
    %v60 = vld [vmem:[#allocation2 + $0xd8] sm:$0xff]
    %v61 = vld [vmem:[#allocation2 + $0xe0] sm:$0xff]
    %v62 = vld [vmem:[#allocation2 + $0xe8] sm:$0xff]
    %v63 = vld [vmem:[#allocation2 + $0xf0] sm:$0xff]
    %v64 = vld [vmem:[#allocation2 + $0xf8] sm:$0xff]
    %v65 = vld [vmem:[#allocation2 + $0x100] sm:$0xff]
    %v66 = vld [vmem:[#allocation2 + $0x108] sm:$0xff]
    %v67 = vld [vmem:[#allocation2 + $0x110] sm:$0xff]
    %v68 = vld [vmem:[#allocation2 + $0x118] sm:$0xff]
    %v69 = vld [vmem:[#allocation2 + $0x120] sm:$0xff]
    %v70 = vld [vmem:[#allocation2 + $0x128] sm:$0xff]
    %v71 = vld [vmem:[#allocation2 + $0x130] sm:$0xff]
    %v72 = vld [vmem:[#allocation2 + $0x138] sm:$0xff]
    %v73 = vld [vmem:[#allocation2 + $0x140] sm:$0xff]
    %v74 = vld [vmem:[#allocation2 + $0x148] sm:$0xff]
    %v75 = vld [vmem:[#allocation2 + $0x150] sm:$0xff]
    %v76 = vld [vmem:[#allocation2 + $0x158] sm:$0xff]
    %v77 = vld [vmem:[#allocation2 + $0x160] sm:$0xff]
    %v78 = vld [vmem:[#allocation2 + $0x168] sm:$0xff]
    %v79 = vld [vmem:[#allocation2 + $0x170] sm:$0xff]
    %v80 = vld [vmem:[#allocation2 + $0x178] sm:$0xff]
    %v81 = vld [vmem:[#allocation2 + $0x180] sm:$0xff]
    %v82 = vld [vmem:[#allocation2 + $0x188] sm:$0xff]
    %v83 = vld [vmem:[#allocation2 + $0x190] sm:$0xff]
    %v84 = vld [vmem:[#allocation2 + $0x198] sm:$0xff]
    %v85 = vld [vmem:[#allocation2 + $0x1a0] sm:$0xff]
    %v86 = vld [vmem:[#allocation2 + $0x1a8] sm:$0xff]
    %v87 = vld [vmem:[#allocation2 + $0x1b0] sm:$0xff]
    %v88 = vld [vmem:[#allocation2 + $0x1b8] sm:$0xff]
    %v89 = vld [vmem:[#allocation2 + $0x1c0] sm:$0xff]
    %v90 = vld [vmem:[#allocation2 + $0x1c8] sm:$0xff]
    %v91 = vld [vmem:[#allocation2 + $0x1d0] sm:$0xff]
    %v92 = vld [vmem:[#allocation2 + $0x1d8] sm:$0xff]
    %v93 = vld [vmem:[#allocation2 + $0x1e0] sm:$0xff]
    %v94 = vld [vmem:[#allocation2 + $0x1e8] sm:$0xff]
    %v95 = vld [vmem:[#allocation2 + $0x1f0] sm:$0xff]
    %v96 = vld [vmem:[#allocation2 + $0x1f8] sm:$0xff]
    %v97 = vld [vmem:[%s1] sm:$0xff]
    %v98 = vld [vmem:[%s1 + $0x8] sm:$0xff]
    %vm99 = vcmask 130048
    %v101 = vsel %vm99, %v33, 0
    %v104 = vsel %vm99, %v34, 0
    %v107 = vsel %vm99, %v35, 0
    %v110 = vsel %vm99, %v36, 0
    %v113 = vsel %vm99, %v37, 0
    %v116 = vsel %vm99, %v38, 0
    %v119 = vsel %vm99, %v39, 0
    %v122 = vsel %vm99, %v40, 0
    %v125 = vsel %vm99, %v41, 0
    %v128 = vsel %vm99, %v42, 0
    %v131 = vsel %vm99, %v43, 0
    %v134 = vsel %vm99, %v44, 0
    %v137 = vsel %vm99, %v45, 0
    %v140 = vsel %vm99, %v46, 0
    %v143 = vsel %vm99, %v47, 0
    %v146 = vsel %vm99, %v48, 0
    %v149 = vsel %vm99, %v49, 0
    %v152 = vsel %vm99, %v50, 0
    %v155 = vsel %vm99, %v51, 0
    %v158 = vsel %vm99, %v52, 0
    %v161 = vsel %vm99, %v53, 0
    %v164 = vsel %vm99, %v54, 0
    %v167 = vsel %vm99, %v55, 0
    %v170 = vsel %vm99, %v56, 0
    %v173 = vsel %vm99, %v57, 0
    %v176 = vsel %vm99, %v58, 0
    %v179 = vsel %vm99, %v59, 0
    %v182 = vsel %vm99, %v60, 0
    %v185 = vsel %vm99, %v61, 0
    %v188 = vsel %vm99, %v62, 0
    %v191 = vsel %vm99, %v63, 0
    %v194 = vsel %vm99, %v64, 0
    %v197 = vsel %vm99, %v65, 0
    %v200 = vsel %vm99, %v66, 0
    %v203 = vsel %vm99, %v67, 0
    %v206 = vsel %vm99, %v68, 0
    %v209 = vsel %vm99, %v69, 0
    %v212 = vsel %vm99, %v70, 0
    %v215 = vsel %vm99, %v71, 0
    %v218 = vsel %vm99, %v72, 0
    %v221 = vsel %vm99, %v73, 0
    %v224 = vsel %vm99, %v74, 0
    %v227 = vsel %vm99, %v75, 0
    %v230 = vsel %vm99, %v76, 0
    %v233 = vsel %vm99, %v77, 0
    %v236 = vsel %vm99, %v78, 0
    %v239 = vsel %vm99, %v79, 0
    %v242 = vsel %vm99, %v80, 0
    %v245 = vsel %vm99, %v81, 0
    %v248 = vsel %vm99, %v82, 0
    %v251 = vsel %vm99, %v83, 0
    %v254 = vsel %vm99, %v84, 0
    %v257 = vsel %vm99, %v85, 0
    %v260 = vsel %vm99, %v86, 0
    %v263 = vsel %vm99, %v87, 0
    %v266 = vsel %vm99, %v88, 0
    %v269 = vsel %vm99, %v89, 0
    %v272 = vsel %vm99, %v90, 0
    %v275 = vsel %vm99, %v91, 0
    %v278 = vsel %vm99, %v92, 0
    %v281 = vsel %vm99, %v93, 0
    %v284 = vsel %vm99, %v94, 0
    %v287 = vsel %vm99, %v95, 0
    %v290 = vsel %vm99, %v96, 0
    %292 = vmatprep.subr.mxu0 0.0
    %293 = vmatpush1.msra.mxu0 0.0
    %294 = vmatprep.subr.mxu0 0.0
    %295 = vmatpush1.msra.mxu0 0.0
    %296 = vmatprep.subr.mxu0 0.0
    %297 = vmatpush1.msra.mxu0 0.0
    %298 = vmatprep.subr.mxu0 0.0
    %299 = vmatpush1.msra.mxu0 0.0
    %300 = vmatprep.subr.mxu0 0.0
    %301 = vmatpush1.msra.mxu0 0.0
    %302 = vmatprep.subr.mxu0 0.0
    %303 = vmatpush1.msra.mxu0 0.0
    %304 = vmatprep.subr.mxu0 0.0
    %305 = vmatpush1.msra.mxu0 0.0
    %306 = vmatprep.subr.mxu0 0.0
    %307 = vmatpush1.msra.mxu0 0.0
    %308 = vmatprep.subr.mxu0 0.0
    %309 = vmatpush1.msra.mxu0 0.0
    %310 = vmatprep.subr.mxu0 0.0
    %311 = vmatpush1.msra.mxu0 0.0
    %312 = vmatprep.subr.mxu0 0.0
    %313 = vmatpush1.msra.mxu0 0.0
    %314 = vmatprep.subr.mxu0 0.0
    %315 = vmatpush1.msra.mxu0 0.0
    %316 = vmatprep.subr.mxu0 0.0
    %317 = vmatpush1.msra.mxu0 0.0
    %318 = vmatprep.subr.mxu0 0.0
    %319 = vmatpush1.msra.mxu0 0.0
    %320 = vmatprep.subr.mxu0 0.0
    %321 = vmatpush1.msra.mxu0 %v98
    %322 = vmatprep.subr.mxu0 0.0
    %323 = vmatpush1.msra.mxu0 %v97
    %324 = vmatprep.subr.mxu0 0.0
    %325 = vmatpush2.msra.mxu0 0.0
    %326 = vmatprep.subr.mxu0 0.0
    %327 = vmatpush2.msra.mxu0 0.0
    %328 = vmatprep.subr.mxu0 0.0
    %329 = vmatpush2.msra.mxu0 0.0
    %330 = vmatprep.subr.mxu0 0.0
    %331 = vmatpush2.msra.mxu0 0.0
    %332 = vmatprep.subr.mxu0 0.0
    %333 = vmatpush2.msra.mxu0 0.0
    %334 = vmatprep.subr.mxu0 0.0
    %335 = vmatpush2.msra.mxu0 0.0
    %336 = vmatprep.subr.mxu0 0.0
    %337 = vmatpush2.msra.mxu0 0.0
    %338 = vmatprep.subr.mxu0 0.0
    %339 = vmatpush2.msra.mxu0 0.0
    %340 = vmatprep.subr.mxu0 0.0
    %341 = vmatpush2.msra.mxu0 0.0
    %342 = vmatprep.subr.mxu0 0.0
    %343 = vmatpush2.msra.mxu0 0.0
    %344 = vmatprep.subr.mxu0 0.0
    %345 = vmatpush2.msra.mxu0 0.0
    %346 = vmatprep.subr.mxu0 0.0
    %347 = vmatpush2.msra.mxu0 0.0
    %348 = vmatprep.subr.mxu0 0.0
    %349 = vmatpush2.msra.mxu0 0.0
    %350 = vmatprep.subr.mxu0 0.0
    %351 = vmatpush2.msra.mxu0 0.0
    %352 = vmatprep.subr.mxu0 0.0
    %353 = vmatpush2.msra.mxu0 0.0
    %354 = vmatprep.subr.mxu0 0.0
    %355 = vmatpush2.msra.mxu0 0.0
    %356 = vmatprep.mubr.f32.mxu0 0.0
    %357 = vmatmul.mubr.f32.gmra.mxu0 %v101
    %v358 = vpop.f32.mrf.mxu0
    %v359 = vadd.f32 0.0, %v358
    %v360 = vpop.f32.mrf.mxu0
    %361 = vmatprep.mubr.f32.mxu0 0.0
    %362 = vmatmul.mubr.f32.gmra.mxu0 %v104
    %v363 = vpop.f32.mrf.mxu0
    %v364 = vadd.f32 0.0, %v363
    %v365 = vpop.f32.mrf.mxu0
    %366 = vmatprep.mubr.f32.mxu0 0.0
    %367 = vmatmul.mubr.f32.gmra.mxu0 %v107
    %v368 = vpop.f32.mrf.mxu0
    %v369 = vadd.f32 0.0, %v368
    %v370 = vpop.f32.mrf.mxu0
    %371 = vmatprep.mubr.f32.mxu0 0.0
    %372 = vmatmul.mubr.f32.gmra.mxu0 %v110
    %v373 = vpop.f32.mrf.mxu0
    %v374 = vadd.f32 0.0, %v373
    %v375 = vpop.f32.mrf.mxu0
    %376 = vmatprep.mubr.f32.mxu0 0.0
    %377 = vmatmul.mubr.f32.gmra.mxu0 %v113
    %v378 = vpop.f32.mrf.mxu0
    %v379 = vadd.f32 0.0, %v378
    %v380 = vpop.f32.mrf.mxu0
    %381 = vmatprep.mubr.f32.mxu0 0.0
    %382 = vmatmul.mubr.f32.gmra.mxu0 %v116
    %v383 = vpop.f32.mrf.mxu0
    %v384 = vadd.f32 0.0, %v383
    %v385 = vpop.f32.mrf.mxu0
    %386 = vmatprep.mubr.f32.mxu0 0.0
    %387 = vmatmul.mubr.f32.gmra.mxu0 %v119
    %v388 = vpop.f32.mrf.mxu0
    %v389 = vadd.f32 0.0, %v388
    %v390 = vpop.f32.mrf.mxu0
    %391 = vmatprep.mubr.f32.mxu0 0.0
    %392 = vmatmul.mubr.f32.gmra.mxu0 %v122
    %v393 = vpop.f32.mrf.mxu0
    %v394 = vadd.f32 0.0, %v393
    %v395 = vpop.f32.mrf.mxu0
    %396 = vmatprep.mubr.f32.mxu0 0.0
    %397 = vmatmul.mubr.f32.gmra.mxu0 %v125
    %v398 = vpop.f32.mrf.mxu0
    %v399 = vadd.f32 0.0, %v398
    %v400 = vpop.f32.mrf.mxu0
    %401 = vmatprep.mubr.f32.mxu0 0.0
    %402 = vmatmul.mubr.f32.gmra.mxu0 %v128
    %v403 = vpop.f32.mrf.mxu0
    %v404 = vadd.f32 0.0, %v403
    %v405 = vpop.f32.mrf.mxu0
    %406 = vmatprep.mubr.f32.mxu0 0.0
    %407 = vmatmul.mubr.f32.gmra.mxu0 %v131
    %v408 = vpop.f32.mrf.mxu0
    %v409 = vadd.f32 0.0, %v408
    %v410 = vpop.f32.mrf.mxu0
    %411 = vmatprep.mubr.f32.mxu0 0.0
    %412 = vmatmul.mubr.f32.gmra.mxu0 %v134
    %v413 = vpop.f32.mrf.mxu0
    %v414 = vadd.f32 0.0, %v413
    %v415 = vpop.f32.mrf.mxu0
    %416 = vmatprep.mubr.f32.mxu0 0.0
    %417 = vmatmul.mubr.f32.gmra.mxu0 %v137
    %v418 = vpop.f32.mrf.mxu0
    %v419 = vadd.f32 0.0, %v418
    %v420 = vpop.f32.mrf.mxu0
    %421 = vmatprep.mubr.f32.mxu0 0.0
    %422 = vmatmul.mubr.f32.gmra.mxu0 %v140
    %v423 = vpop.f32.mrf.mxu0
    %v424 = vadd.f32 0.0, %v423
    %v425 = vpop.f32.mrf.mxu0
    %426 = vmatprep.mubr.f32.mxu0 0.0
    %427 = vmatmul.mubr.f32.gmra.mxu0 %v143
    %v428 = vpop.f32.mrf.mxu0
    %v429 = vadd.f32 0.0, %v428
    %v430 = vpop.f32.mrf.mxu0
    %431 = vmatprep.mubr.f32.mxu0 0.0
    %432 = vmatmul.mubr.f32.gmra.mxu0 %v146
    %v433 = vpop.f32.mrf.mxu0
    %v434 = vadd.f32 0.0, %v433
    %v435 = vpop.f32.mrf.mxu0
    %436 = vmatprep.mubr.f32.mxu0 0.0
    %437 = vmatmul.mubr.f32.gmra.mxu0 %v149
    %v438 = vpop.f32.mrf.mxu0
    %v439 = vadd.f32 0.0, %v438
    %v440 = vpop.f32.mrf.mxu0
    %441 = vmatprep.mubr.f32.mxu0 0.0
    %442 = vmatmul.mubr.f32.gmra.mxu0 %v152
    %v443 = vpop.f32.mrf.mxu0
    %v444 = vadd.f32 0.0, %v443
    %v445 = vpop.f32.mrf.mxu0
    %446 = vmatprep.mubr.f32.mxu0 0.0
    %447 = vmatmul.mubr.f32.gmra.mxu0 %v155
    %v448 = vpop.f32.mrf.mxu0
    %v449 = vadd.f32 0.0, %v448
    %v450 = vpop.f32.mrf.mxu0
    %451 = vmatprep.mubr.f32.mxu0 0.0
    %452 = vmatmul.mubr.f32.gmra.mxu0 %v158
    %v453 = vpop.f32.mrf.mxu0
    %v454 = vadd.f32 0.0, %v453
    %v455 = vpop.f32.mrf.mxu0
    %456 = vmatprep.mubr.f32.mxu0 0.0
    %457 = vmatmul.mubr.f32.gmra.mxu0 %v161
    %v458 = vpop.f32.mrf.mxu0
    %v459 = vadd.f32 0.0, %v458
    %v460 = vpop.f32.mrf.mxu0
    %461 = vmatprep.mubr.f32.mxu0 0.0
    %462 = vmatmul.mubr.f32.gmra.mxu0 %v164
    %v463 = vpop.f32.mrf.mxu0
    %v464 = vadd.f32 0.0, %v463
    %v465 = vpop.f32.mrf.mxu0
    %466 = vmatprep.mubr.f32.mxu0 0.0
    %467 = vmatmul.mubr.f32.gmra.mxu0 %v167
    %v468 = vpop.f32.mrf.mxu0
    %v469 = vadd.f32 0.0, %v468
    %v470 = vpop.f32.mrf.mxu0
    %471 = vmatprep.mubr.f32.mxu0 0.0
    %472 = vmatmul.mubr.f32.gmra.mxu0 %v170
    %v473 = vpop.f32.mrf.mxu0
    %v474 = vadd.f32 0.0, %v473
    %v475 = vpop.f32.mrf.mxu0
    %476 = vmatprep.mubr.f32.mxu0 0.0
    %477 = vmatmul.mubr.f32.gmra.mxu0 %v173
    %v478 = vpop.f32.mrf.mxu0
    %v479 = vadd.f32 0.0, %v478
    %v480 = vpop.f32.mrf.mxu0
    %481 = vmatprep.mubr.f32.mxu0 0.0
    %482 = vmatmul.mubr.f32.gmra.mxu0 %v176
    %v483 = vpop.f32.mrf.mxu0
    %v484 = vadd.f32 0.0, %v483
    %v485 = vpop.f32.mrf.mxu0
    %486 = vmatprep.mubr.f32.mxu0 0.0
    %487 = vmatmul.mubr.f32.gmra.mxu0 %v179
    %v488 = vpop.f32.mrf.mxu0
    %v489 = vadd.f32 0.0, %v488
    %v490 = vpop.f32.mrf.mxu0
    %491 = vmatprep.mubr.f32.mxu0 0.0
    %492 = vmatmul.mubr.f32.gmra.mxu0 %v182
    %v493 = vpop.f32.mrf.mxu0
    %v494 = vadd.f32 0.0, %v493
    %v495 = vpop.f32.mrf.mxu0
    %496 = vmatprep.mubr.f32.mxu0 0.0
    %497 = vmatmul.mubr.f32.gmra.mxu0 %v185
    %v498 = vpop.f32.mrf.mxu0
    %v499 = vadd.f32 0.0, %v498
    %v500 = vpop.f32.mrf.mxu0
    %501 = vmatprep.mubr.f32.mxu0 0.0
    %502 = vmatmul.mubr.f32.gmra.mxu0 %v188
    %v503 = vpop.f32.mrf.mxu0
    %v504 = vadd.f32 0.0, %v503
    %v505 = vpop.f32.mrf.mxu0
    %506 = vmatprep.mubr.f32.mxu0 0.0
    %507 = vmatmul.mubr.f32.gmra.mxu0 %v191
    %v508 = vpop.f32.mrf.mxu0
    %v509 = vadd.f32 0.0, %v508
    %v510 = vpop.f32.mrf.mxu0
    %511 = vmatprep.mubr.f32.mxu0 0.0
    %512 = vmatmul.mubr.f32.gmra.mxu0 %v194
    %v513 = vpop.f32.mrf.mxu0
    %v514 = vadd.f32 0.0, %v513
    %v515 = vpop.f32.mrf.mxu0
    %516 = vmatprep.mubr.f32.mxu0 0.0
    %517 = vmatmul.mubr.f32.gmra.mxu0 %v197
    %v518 = vpop.f32.mrf.mxu0
    %v519 = vadd.f32 0.0, %v518
    %v520 = vpop.f32.mrf.mxu0
    %521 = vmatprep.mubr.f32.mxu0 0.0
    %522 = vmatmul.mubr.f32.gmra.mxu0 %v200
    %v523 = vpop.f32.mrf.mxu0
    %v524 = vadd.f32 0.0, %v523
    %v525 = vpop.f32.mrf.mxu0
    %526 = vmatprep.mubr.f32.mxu0 0.0
    %527 = vmatmul.mubr.f32.gmra.mxu0 %v203
    %v528 = vpop.f32.mrf.mxu0
    %v529 = vadd.f32 0.0, %v528
    %v530 = vpop.f32.mrf.mxu0
    %531 = vmatprep.mubr.f32.mxu0 0.0
    %532 = vmatmul.mubr.f32.gmra.mxu0 %v206
    %v533 = vpop.f32.mrf.mxu0
    %v534 = vadd.f32 0.0, %v533
    %v535 = vpop.f32.mrf.mxu0
    %536 = vmatprep.mubr.f32.mxu0 0.0
    %537 = vmatmul.mubr.f32.gmra.mxu0 %v209
    %v538 = vpop.f32.mrf.mxu0
    %v539 = vadd.f32 0.0, %v538
    %v540 = vpop.f32.mrf.mxu0
    %541 = vmatprep.mubr.f32.mxu0 0.0
    %542 = vmatmul.mubr.f32.gmra.mxu0 %v212
    %v543 = vpop.f32.mrf.mxu0
    %v544 = vadd.f32 0.0, %v543
    %v545 = vpop.f32.mrf.mxu0
    %546 = vmatprep.mubr.f32.mxu0 0.0
    %547 = vmatmul.mubr.f32.gmra.mxu0 %v215
    %v548 = vpop.f32.mrf.mxu0
    %v549 = vadd.f32 0.0, %v548
    %v550 = vpop.f32.mrf.mxu0
    %551 = vmatprep.mubr.f32.mxu0 0.0
    %552 = vmatmul.mubr.f32.gmra.mxu0 %v218
    %v553 = vpop.f32.mrf.mxu0
    %v554 = vadd.f32 0.0, %v553
    %v555 = vpop.f32.mrf.mxu0
    %556 = vmatprep.mubr.f32.mxu0 0.0
    %557 = vmatmul.mubr.f32.gmra.mxu0 %v221
    %v558 = vpop.f32.mrf.mxu0
    %v559 = vadd.f32 0.0, %v558
    %v560 = vpop.f32.mrf.mxu0
    %561 = vmatprep.mubr.f32.mxu0 0.0
    %562 = vmatmul.mubr.f32.gmra.mxu0 %v224
    %v563 = vpop.f32.mrf.mxu0
    %v564 = vadd.f32 0.0, %v563
    %v565 = vpop.f32.mrf.mxu0
    %566 = vmatprep.mubr.f32.mxu0 0.0
    %567 = vmatmul.mubr.f32.gmra.mxu0 %v227
    %v568 = vpop.f32.mrf.mxu0
    %v569 = vadd.f32 0.0, %v568
    %v570 = vpop.f32.mrf.mxu0
    %571 = vmatprep.mubr.f32.mxu0 0.0
    %572 = vmatmul.mubr.f32.gmra.mxu0 %v230
    %v573 = vpop.f32.mrf.mxu0
    %v574 = vadd.f32 0.0, %v573
    %v575 = vpop.f32.mrf.mxu0
    %576 = vmatprep.mubr.f32.mxu0 0.0
    %577 = vmatmul.mubr.f32.gmra.mxu0 %v233
    %v578 = vpop.f32.mrf.mxu0
    %v579 = vadd.f32 0.0, %v578
    %v580 = vpop.f32.mrf.mxu0
    %581 = vmatprep.mubr.f32.mxu0 0.0
    %582 = vmatmul.mubr.f32.gmra.mxu0 %v236
    %v583 = vpop.f32.mrf.mxu0
    %v584 = vadd.f32 0.0, %v583
    %v585 = vpop.f32.mrf.mxu0
    %586 = vmatprep.mubr.f32.mxu0 0.0
    %587 = vmatmul.mubr.f32.gmra.mxu0 %v239
    %v588 = vpop.f32.mrf.mxu0
    %v589 = vadd.f32 0.0, %v588
    %v590 = vpop.f32.mrf.mxu0
    %591 = vmatprep.mubr.f32.mxu0 0.0
    %592 = vmatmul.mubr.f32.gmra.mxu0 %v242
    %v593 = vpop.f32.mrf.mxu0
    %v594 = vadd.f32 0.0, %v593
    %v595 = vpop.f32.mrf.mxu0
    %596 = vmatprep.mubr.f32.mxu0 0.0
    %597 = vmatmul.mubr.f32.gmra.mxu0 %v245
    %v598 = vpop.f32.mrf.mxu0
    %v599 = vadd.f32 0.0, %v598
    %v600 = vpop.f32.mrf.mxu0
    %601 = vmatprep.mubr.f32.mxu0 0.0
    %602 = vmatmul.mubr.f32.gmra.mxu0 %v248
    %v603 = vpop.f32.mrf.mxu0
    %v604 = vadd.f32 0.0, %v603
    %v605 = vpop.f32.mrf.mxu0
    %606 = vmatprep.mubr.f32.mxu0 0.0
    %607 = vmatmul.mubr.f32.gmra.mxu0 %v251
    %v608 = vpop.f32.mrf.mxu0
    %v609 = vadd.f32 0.0, %v608
    %v610 = vpop.f32.mrf.mxu0
    %611 = vmatprep.mubr.f32.mxu0 0.0
    %612 = vmatmul.mubr.f32.gmra.mxu0 %v254
    %v613 = vpop.f32.mrf.mxu0
    %v614 = vadd.f32 0.0, %v613
    %v615 = vpop.f32.mrf.mxu0
    %616 = vmatprep.mubr.f32.mxu0 0.0
    %617 = vmatmul.mubr.f32.gmra.mxu0 %v257
    %v618 = vpop.f32.mrf.mxu0
    %v619 = vadd.f32 0.0, %v618
    %v620 = vpop.f32.mrf.mxu0
    %621 = vmatprep.mubr.f32.mxu0 0.0
    %622 = vmatmul.mubr.f32.gmra.mxu0 %v260
    %v623 = vpop.f32.mrf.mxu0
    %v624 = vadd.f32 0.0, %v623
    %v625 = vpop.f32.mrf.mxu0
    %626 = vmatprep.mubr.f32.mxu0 0.0
    %627 = vmatmul.mubr.f32.gmra.mxu0 %v263
    %v628 = vpop.f32.mrf.mxu0
    %v629 = vadd.f32 0.0, %v628
    %v630 = vpop.f32.mrf.mxu0
    %631 = vmatprep.mubr.f32.mxu0 0.0
    %632 = vmatmul.mubr.f32.gmra.mxu0 %v266
    %v633 = vpop.f32.mrf.mxu0
    %v634 = vadd.f32 0.0, %v633
    %v635 = vpop.f32.mrf.mxu0
    %636 = vmatprep.mubr.f32.mxu0 0.0
    %637 = vmatmul.mubr.f32.gmra.mxu0 %v269
    %v638 = vpop.f32.mrf.mxu0
    %v639 = vadd.f32 0.0, %v638
    %v640 = vpop.f32.mrf.mxu0
    %641 = vmatprep.mubr.f32.mxu0 0.0
    %642 = vmatmul.mubr.f32.gmra.mxu0 %v272
    %v643 = vpop.f32.mrf.mxu0
    %v644 = vadd.f32 0.0, %v643
    %v645 = vpop.f32.mrf.mxu0
    %646 = vmatprep.mubr.f32.mxu0 0.0
    %647 = vmatmul.mubr.f32.gmra.mxu0 %v275
    %v648 = vpop.f32.mrf.mxu0
    %v649 = vadd.f32 0.0, %v648
    %v650 = vpop.f32.mrf.mxu0
    %651 = vmatprep.mubr.f32.mxu0 0.0
    %652 = vmatmul.mubr.f32.gmra.mxu0 %v278
    %v653 = vpop.f32.mrf.mxu0
    %v654 = vadd.f32 0.0, %v653
    %v655 = vpop.f32.mrf.mxu0
    %656 = vmatprep.mubr.f32.mxu0 0.0
    %657 = vmatmul.mubr.f32.gmra.mxu0 %v281
    %v658 = vpop.f32.mrf.mxu0
    %v659 = vadd.f32 0.0, %v658
    %v660 = vpop.f32.mrf.mxu0
    %661 = vmatprep.mubr.f32.mxu0 0.0
    %662 = vmatmul.mubr.f32.gmra.mxu0 %v284
    %v663 = vpop.f32.mrf.mxu0
    %v664 = vadd.f32 0.0, %v663
    %v665 = vpop.f32.mrf.mxu0
    %666 = vmatprep.mubr.f32.mxu0 0.0
    %667 = vmatmul.mubr.f32.gmra.mxu0 %v287
    %v668 = vpop.f32.mrf.mxu0
    %v669 = vadd.f32 0.0, %v668
    %v670 = vpop.f32.mrf.mxu0
    %671 = vmatprep.mubr.f32.mxu0 0.0
    %672 = vmatmul.mubr.f32.gmra.mxu0 %v290
    %v673 = vpop.f32.mrf.mxu0
    %v674 = vadd.f32 0.0, %v673
    %v675 = vpop.f32.mrf.mxu0
    %676 = vdwg.mxu0
    %v677 = vld [vmem:[%s2] sm:$0x1]
    %v679 = vlaneseq
    %v680 = vshrl.u32 %v679, 7
    %v681 = vsub.s32 0, %v680
    %v682 = vrot.slane %v677, %v681
    %v684 = vmul.f32 %v359, %v682
    %v685 = vmul.f32 %v364, %v682
    %v686 = vmul.f32 %v369, %v682
    %v687 = vmul.f32 %v374, %v682
    %v688 = vmul.f32 %v379, %v682
    %v689 = vmul.f32 %v384, %v682
    %v690 = vmul.f32 %v389, %v682
    %v691 = vmul.f32 %v394, %v682
    %v692 = vmul.f32 %v399, %v682
    %v693 = vmul.f32 %v404, %v682
    %v694 = vmul.f32 %v409, %v682
    %v695 = vmul.f32 %v414, %v682
    %v696 = vmul.f32 %v419, %v682
    %v697 = vmul.f32 %v424, %v682
    %v698 = vmul.f32 %v429, %v682
    %v699 = vmul.f32 %v434, %v682
    %v700 = vmul.f32 %v439, %v682
    %v701 = vmul.f32 %v444, %v682
    %v702 = vmul.f32 %v449, %v682
    %v703 = vmul.f32 %v454, %v682
    %v704 = vmul.f32 %v459, %v682
    %v705 = vmul.f32 %v464, %v682
    %v706 = vmul.f32 %v469, %v682
    %v707 = vmul.f32 %v474, %v682
    %v708 = vmul.f32 %v479, %v682
    %v709 = vmul.f32 %v484, %v682
    %v710 = vmul.f32 %v489, %v682
    %v711 = vmul.f32 %v494, %v682
    %v712 = vmul.f32 %v499, %v682
    %v713 = vmul.f32 %v504, %v682
    %v714 = vmul.f32 %v509, %v682
    %v715 = vmul.f32 %v514, %v682
    %v716 = vmul.f32 %v519, %v682
    %v717 = vmul.f32 %v524, %v682
    %v718 = vmul.f32 %v529, %v682
    %v719 = vmul.f32 %v534, %v682
    %v720 = vmul.f32 %v539, %v682
    %v721 = vmul.f32 %v544, %v682
    %v722 = vmul.f32 %v549, %v682
    %v723 = vmul.f32 %v554, %v682
    %v724 = vmul.f32 %v559, %v682
    %v725 = vmul.f32 %v564, %v682
    %v726 = vmul.f32 %v569, %v682
    %v727 = vmul.f32 %v574, %v682
    %v728 = vmul.f32 %v579, %v682
    %v729 = vmul.f32 %v584, %v682
    %v730 = vmul.f32 %v589, %v682
    %v731 = vmul.f32 %v594, %v682
    %v732 = vmul.f32 %v599, %v682
    %v733 = vmul.f32 %v604, %v682
    %v734 = vmul.f32 %v609, %v682
    %v735 = vmul.f32 %v614, %v682
    %v736 = vmul.f32 %v619, %v682
    %v737 = vmul.f32 %v624, %v682
    %v738 = vmul.f32 %v629, %v682
    %v739 = vmul.f32 %v634, %v682
    %v740 = vmul.f32 %v639, %v682
    %v741 = vmul.f32 %v644, %v682
    %v742 = vmul.f32 %v649, %v682
    %v743 = vmul.f32 %v654, %v682
    %v744 = vmul.f32 %v659, %v682
    %v745 = vmul.f32 %v664, %v682
    %v746 = vmul.f32 %v669, %v682
    %v747 = vmul.f32 %v674, %v682
    %v748 = vld [vmem:[%s3] sm:$0x1]
    %v750 = vlaneseq
    %v751 = vshrl.u32 %v750, 7
    %v752 = vsub.s32 0, %v751
    %v753 = vrot.slane %v748, %v752
    %v755 = vadd.f32 %v684, %v753
    %v756 = vadd.f32 %v685, %v753
    %v757 = vadd.f32 %v686, %v753
    %v758 = vadd.f32 %v687, %v753
    %v759 = vadd.f32 %v688, %v753
    %v760 = vadd.f32 %v689, %v753
    %v761 = vadd.f32 %v690, %v753
    %v762 = vadd.f32 %v691, %v753
    %v763 = vadd.f32 %v692, %v753
    %v764 = vadd.f32 %v693, %v753
    %v765 = vadd.f32 %v694, %v753
    %v766 = vadd.f32 %v695, %v753
    %v767 = vadd.f32 %v696, %v753
    %v768 = vadd.f32 %v697, %v753
    %v769 = vadd.f32 %v698, %v753
    %v770 = vadd.f32 %v699, %v753
    %v771 = vadd.f32 %v700, %v753
    %v772 = vadd.f32 %v701, %v753
    %v773 = vadd.f32 %v702, %v753
    %v774 = vadd.f32 %v703, %v753
    %v775 = vadd.f32 %v704, %v753
    %v776 = vadd.f32 %v705, %v753
    %v777 = vadd.f32 %v706, %v753
    %v778 = vadd.f32 %v707, %v753
    %v779 = vadd.f32 %v708, %v753
    %v780 = vadd.f32 %v709, %v753
    %v781 = vadd.f32 %v710, %v753
    %v782 = vadd.f32 %v711, %v753
    %v783 = vadd.f32 %v712, %v753
    %v784 = vadd.f32 %v713, %v753
    %v785 = vadd.f32 %v714, %v753
    %v786 = vadd.f32 %v715, %v753
    %v787 = vadd.f32 %v716, %v753
    %v788 = vadd.f32 %v717, %v753
    %v789 = vadd.f32 %v718, %v753
    %v790 = vadd.f32 %v719, %v753
    %v791 = vadd.f32 %v720, %v753
    %v792 = vadd.f32 %v721, %v753
    %v793 = vadd.f32 %v722, %v753
    %v794 = vadd.f32 %v723, %v753
    %v795 = vadd.f32 %v724, %v753
    %v796 = vadd.f32 %v725, %v753
    %v797 = vadd.f32 %v726, %v753
    %v798 = vadd.f32 %v727, %v753
    %v799 = vadd.f32 %v728, %v753
    %v800 = vadd.f32 %v729, %v753
    %v801 = vadd.f32 %v730, %v753
    %v802 = vadd.f32 %v731, %v753
    %v803 = vadd.f32 %v732, %v753
    %v804 = vadd.f32 %v733, %v753
    %v805 = vadd.f32 %v734, %v753
    %v806 = vadd.f32 %v735, %v753
    %v807 = vadd.f32 %v736, %v753
    %v808 = vadd.f32 %v737, %v753
    %v809 = vadd.f32 %v738, %v753
    %v810 = vadd.f32 %v739, %v753
    %v811 = vadd.f32 %v740, %v753
    %v812 = vadd.f32 %v741, %v753
    %v813 = vadd.f32 %v742, %v753
    %v814 = vadd.f32 %v743, %v753
    %v815 = vadd.f32 %v744, %v753
    %v816 = vadd.f32 %v745, %v753
    %v817 = vadd.f32 %v746, %v753
    %v818 = vadd.f32 %v747, %v753
    %v819 = vsub.f32 0.0, %v755
    %v820 = vsub.f32 0.0, %v756
    %v821 = vsub.f32 0.0, %v757
    %v822 = vsub.f32 0.0, %v758
    %v823 = vsub.f32 0.0, %v759
    %v824 = vsub.f32 0.0, %v760
    %v825 = vsub.f32 0.0, %v761
    %v826 = vsub.f32 0.0, %v762
    %v827 = vsub.f32 0.0, %v763
    %v828 = vsub.f32 0.0, %v764
    %v829 = vsub.f32 0.0, %v765
    %v830 = vsub.f32 0.0, %v766
    %v831 = vsub.f32 0.0, %v767
    %v832 = vsub.f32 0.0, %v768
    %v833 = vsub.f32 0.0, %v769
    %v834 = vsub.f32 0.0, %v770
    %v835 = vsub.f32 0.0, %v771
    %v836 = vsub.f32 0.0, %v772
    %v837 = vsub.f32 0.0, %v773
    %v838 = vsub.f32 0.0, %v774
    %v839 = vsub.f32 0.0, %v775
    %v840 = vsub.f32 0.0, %v776
    %v841 = vsub.f32 0.0, %v777
    %v842 = vsub.f32 0.0, %v778
    %v843 = vsub.f32 0.0, %v779
    %v844 = vsub.f32 0.0, %v780
    %v845 = vsub.f32 0.0, %v781
    %v846 = vsub.f32 0.0, %v782
    %v847 = vsub.f32 0.0, %v783
    %v848 = vsub.f32 0.0, %v784
    %v849 = vsub.f32 0.0, %v785
    %v850 = vsub.f32 0.0, %v786
    %v851 = vsub.f32 0.0, %v787
    %v852 = vsub.f32 0.0, %v788
    %v853 = vsub.f32 0.0, %v789
    %v854 = vsub.f32 0.0, %v790
    %v855 = vsub.f32 0.0, %v791
    %v856 = vsub.f32 0.0, %v792
    %v857 = vsub.f32 0.0, %v793
    %v858 = vsub.f32 0.0, %v794
    %v859 = vsub.f32 0.0, %v795
    %v860 = vsub.f32 0.0, %v796
    %v861 = vsub.f32 0.0, %v797
    %v862 = vsub.f32 0.0, %v798
    %v863 = vsub.f32 0.0, %v799
    %v864 = vsub.f32 0.0, %v800
    %v865 = vsub.f32 0.0, %v801
    %v866 = vsub.f32 0.0, %v802
    %v867 = vsub.f32 0.0, %v803
    %v868 = vsub.f32 0.0, %v804
    %v869 = vsub.f32 0.0, %v805
    %v870 = vsub.f32 0.0, %v806
    %v871 = vsub.f32 0.0, %v807
    %v872 = vsub.f32 0.0, %v808
    %v873 = vsub.f32 0.0, %v809
    %v874 = vsub.f32 0.0, %v810
    %v875 = vsub.f32 0.0, %v811
    %v876 = vsub.f32 0.0, %v812
    %v877 = vsub.f32 0.0, %v813
    %v878 = vsub.f32 0.0, %v814
    %v879 = vsub.f32 0.0, %v815
    %v880 = vsub.f32 0.0, %v816
    %v881 = vsub.f32 0.0, %v817
    %v882 = vsub.f32 0.0, %v818
    %v883 = vmul.f32 %v819, 1.442695
    %v884 = vpow.pop %v883
    %v885 = vmul.f32 %v820, 1.442695
    %v886 = vpow.pop %v885
    %v887 = vmul.f32 %v821, 1.442695
    %v888 = vpow.pop %v887
    %v889 = vmul.f32 %v822, 1.442695
    %v890 = vpow.pop %v889
    %v891 = vmul.f32 %v823, 1.442695
    %v892 = vpow.pop %v891
    %v893 = vmul.f32 %v824, 1.442695
    %v894 = vpow.pop %v893
    %v895 = vmul.f32 %v825, 1.442695
    %v896 = vpow.pop %v895
    %v897 = vmul.f32 %v826, 1.442695
    %v898 = vpow.pop %v897
    %v899 = vmul.f32 %v827, 1.442695
    %v900 = vpow.pop %v899
    %v901 = vmul.f32 %v828, 1.442695
    %v902 = vpow.pop %v901
    %v903 = vmul.f32 %v829, 1.442695
    %v904 = vpow.pop %v903
    %v905 = vmul.f32 %v830, 1.442695
    %v906 = vpow.pop %v905
    %v907 = vmul.f32 %v831, 1.442695
    %v908 = vpow.pop %v907
    %v909 = vmul.f32 %v832, 1.442695
    %v910 = vpow.pop %v909
    %v911 = vmul.f32 %v833, 1.442695
    %v912 = vpow.pop %v911
    %v913 = vmul.f32 %v834, 1.442695
    %v914 = vpow.pop %v913
    %v915 = vmul.f32 %v835, 1.442695
    %v916 = vpow.pop %v915
    %v917 = vmul.f32 %v836, 1.442695
    %v918 = vpow.pop %v917
    %v919 = vmul.f32 %v837, 1.442695
    %v920 = vpow.pop %v919
    %v921 = vmul.f32 %v838, 1.442695
    %v922 = vpow.pop %v921
    %v923 = vmul.f32 %v839, 1.442695
    %v924 = vpow.pop %v923
    %v925 = vmul.f32 %v840, 1.442695
    %v926 = vpow.pop %v925
    %v927 = vmul.f32 %v841, 1.442695
    %v928 = vpow.pop %v927
    %v929 = vmul.f32 %v842, 1.442695
    %v930 = vpow.pop %v929
    %v931 = vmul.f32 %v843, 1.442695
    %v932 = vpow.pop %v931
    %v933 = vmul.f32 %v844, 1.442695
    %v934 = vpow.pop %v933
    %v935 = vmul.f32 %v845, 1.442695
    %v936 = vpow.pop %v935
    %v937 = vmul.f32 %v846, 1.442695
    %v938 = vpow.pop %v937
    %v939 = vmul.f32 %v847, 1.442695
    %v940 = vpow.pop %v939
    %v941 = vmul.f32 %v848, 1.442695
    %v942 = vpow.pop %v941
    %v943 = vmul.f32 %v849, 1.442695
    %v944 = vpow.pop %v943
    %v945 = vmul.f32 %v850, 1.442695
    %v946 = vpow.pop %v945
    %v947 = vmul.f32 %v851, 1.442695
    %v948 = vpow.pop %v947
    %v949 = vmul.f32 %v852, 1.442695
    %v950 = vpow.pop %v949
    %v951 = vmul.f32 %v853, 1.442695
    %v952 = vpow.pop %v951
    %v953 = vmul.f32 %v854, 1.442695
    %v954 = vpow.pop %v953
    %v955 = vmul.f32 %v855, 1.442695
    %v956 = vpow.pop %v955
    %v957 = vmul.f32 %v856, 1.442695
    %v958 = vpow.pop %v957
    %v959 = vmul.f32 %v857, 1.442695
    %v960 = vpow.pop %v959
    %v961 = vmul.f32 %v858, 1.442695
    %v962 = vpow.pop %v961
    %v963 = vmul.f32 %v859, 1.442695
    %v964 = vpow.pop %v963
    %v965 = vmul.f32 %v860, 1.442695
    %v966 = vpow.pop %v965
    %v967 = vmul.f32 %v861, 1.442695
    %v968 = vpow.pop %v967
    %v969 = vmul.f32 %v862, 1.442695
    %v970 = vpow.pop %v969
    %v971 = vmul.f32 %v863, 1.442695
    %v972 = vpow.pop %v971
    %v973 = vmul.f32 %v864, 1.442695
    %v974 = vpow.pop %v973
    %v975 = vmul.f32 %v865, 1.442695
    %v976 = vpow.pop %v975
    %v977 = vmul.f32 %v866, 1.442695
    %v978 = vpow.pop %v977
    %v979 = vmul.f32 %v867, 1.442695
    %v980 = vpow.pop %v979
    %v981 = vmul.f32 %v868, 1.442695
    %v982 = vpow.pop %v981
    %v983 = vmul.f32 %v869, 1.442695
    %v984 = vpow.pop %v983
    %v985 = vmul.f32 %v870, 1.442695
    %v986 = vpow.pop %v985
    %v987 = vmul.f32 %v871, 1.442695
    %v988 = vpow.pop %v987
    %v989 = vmul.f32 %v872, 1.442695
    %v990 = vpow.pop %v989
    %v991 = vmul.f32 %v873, 1.442695
    %v992 = vpow.pop %v991
    %v993 = vmul.f32 %v874, 1.442695
    %v994 = vpow.pop %v993
    %v995 = vmul.f32 %v875, 1.442695
    %v996 = vpow.pop %v995
    %v997 = vmul.f32 %v876, 1.442695
    %v998 = vpow.pop %v997
    %v999 = vmul.f32 %v877, 1.442695
    %v1000 = vpow.pop %v999
    %v1001 = vmul.f32 %v878, 1.442695
    %v1002 = vpow.pop %v1001
    %v1003 = vmul.f32 %v879, 1.442695
    %v1004 = vpow.pop %v1003
    %v1005 = vmul.f32 %v880, 1.442695
    %v1006 = vpow.pop %v1005
    %v1007 = vmul.f32 %v881, 1.442695
    %v1008 = vpow.pop %v1007
    %v1009 = vmul.f32 %v882, 1.442695
    %v1010 = vpow.pop %v1009
    %v1011 = vadd.f32 %v884, 1.0
    %v1012 = vadd.f32 %v886, 1.0
    %v1013 = vadd.f32 %v888, 1.0
    %v1014 = vadd.f32 %v890, 1.0
    %v1015 = vadd.f32 %v892, 1.0
    %v1016 = vadd.f32 %v894, 1.0
    %v1017 = vadd.f32 %v896, 1.0
    %v1018 = vadd.f32 %v898, 1.0
    %v1019 = vadd.f32 %v900, 1.0
    %v1020 = vadd.f32 %v902, 1.0
    %v1021 = vadd.f32 %v904, 1.0
    %v1022 = vadd.f32 %v906, 1.0
    %v1023 = vadd.f32 %v908, 1.0
    %v1024 = vadd.f32 %v910, 1.0
    %v1025 = vadd.f32 %v912, 1.0
    %v1026 = vadd.f32 %v914, 1.0
    %v1027 = vadd.f32 %v916, 1.0
    %v1028 = vadd.f32 %v918, 1.0
    %v1029 = vadd.f32 %v920, 1.0
    %v1030 = vadd.f32 %v922, 1.0
    %v1031 = vadd.f32 %v924, 1.0
    %v1032 = vadd.f32 %v926, 1.0
    %v1033 = vadd.f32 %v928, 1.0
    %v1034 = vadd.f32 %v930, 1.0
    %v1035 = vadd.f32 %v932, 1.0
    %v1036 = vadd.f32 %v934, 1.0
    %v1037 = vadd.f32 %v936, 1.0
    %v1038 = vadd.f32 %v938, 1.0
    %v1039 = vadd.f32 %v940, 1.0
    %v1040 = vadd.f32 %v942, 1.0
    %v1041 = vadd.f32 %v944, 1.0
    %v1042 = vadd.f32 %v946, 1.0
    %v1043 = vadd.f32 %v948, 1.0
    %v1044 = vadd.f32 %v950, 1.0
    %v1045 = vadd.f32 %v952, 1.0
    %v1046 = vadd.f32 %v954, 1.0
    %v1047 = vadd.f32 %v956, 1.0
    %v1048 = vadd.f32 %v958, 1.0
    %v1049 = vadd.f32 %v960, 1.0
    %v1050 = vadd.f32 %v962, 1.0
    %v1051 = vadd.f32 %v964, 1.0
    %v1052 = vadd.f32 %v966, 1.0
    %v1053 = vadd.f32 %v968, 1.0
    %v1054 = vadd.f32 %v970, 1.0
    %v1055 = vadd.f32 %v972, 1.0
    %v1056 = vadd.f32 %v974, 1.0
    %v1057 = vadd.f32 %v976, 1.0
    %v1058 = vadd.f32 %v978, 1.0
    %v1059 = vadd.f32 %v980, 1.0
    %v1060 = vadd.f32 %v982, 1.0
    %v1061 = vadd.f32 %v984, 1.0
    %v1062 = vadd.f32 %v986, 1.0
    %v1063 = vadd.f32 %v988, 1.0
    %v1064 = vadd.f32 %v990, 1.0
    %v1065 = vadd.f32 %v992, 1.0
    %v1066 = vadd.f32 %v994, 1.0
    %v1067 = vadd.f32 %v996, 1.0
    %v1068 = vadd.f32 %v998, 1.0
    %v1069 = vadd.f32 %v1000, 1.0
    %v1070 = vadd.f32 %v1002, 1.0
    %v1071 = vadd.f32 %v1004, 1.0
    %v1072 = vadd.f32 %v1006, 1.0
    %v1073 = vadd.f32 %v1008, 1.0
    %v1074 = vadd.f32 %v1010, 1.0
    %v1075 = vrcp.pop %v1011
    %v1076 = vrcp.pop %v1012
    %v1077 = vrcp.pop %v1013
    %v1078 = vrcp.pop %v1014
    %v1079 = vrcp.pop %v1015
    %v1080 = vrcp.pop %v1016
    %v1081 = vrcp.pop %v1017
    %v1082 = vrcp.pop %v1018
    %v1083 = vrcp.pop %v1019
    %v1084 = vrcp.pop %v1020
    %v1085 = vrcp.pop %v1021
    %v1086 = vrcp.pop %v1022
    %v1087 = vrcp.pop %v1023
    %v1088 = vrcp.pop %v1024
    %v1089 = vrcp.pop %v1025
    %v1090 = vrcp.pop %v1026
    %v1091 = vrcp.pop %v1027
    %v1092 = vrcp.pop %v1028
    %v1093 = vrcp.pop %v1029
    %v1094 = vrcp.pop %v1030
    %v1095 = vrcp.pop %v1031
    %v1096 = vrcp.pop %v1032
    %v1097 = vrcp.pop %v1033
    %v1098 = vrcp.pop %v1034
    %v1099 = vrcp.pop %v1035
    %v1100 = vrcp.pop %v1036
    %v1101 = vrcp.pop %v1037
    %v1102 = vrcp.pop %v1038
    %v1103 = vrcp.pop %v1039
    %v1104 = vrcp.pop %v1040
    %v1105 = vrcp.pop %v1041
    %v1106 = vrcp.pop %v1042
    %v1107 = vrcp.pop %v1043
    %v1108 = vrcp.pop %v1044
    %v1109 = vrcp.pop %v1045
    %v1110 = vrcp.pop %v1046
    %v1111 = vrcp.pop %v1047
    %v1112 = vrcp.pop %v1048
    %v1113 = vrcp.pop %v1049
    %v1114 = vrcp.pop %v1050
    %v1115 = vrcp.pop %v1051
    %v1116 = vrcp.pop %v1052
    %v1117 = vrcp.pop %v1053
    %v1118 = vrcp.pop %v1054
    %v1119 = vrcp.pop %v1055
    %v1120 = vrcp.pop %v1056
    %v1121 = vrcp.pop %v1057
    %v1122 = vrcp.pop %v1058
    %v1123 = vrcp.pop %v1059
    %v1124 = vrcp.pop %v1060
    %v1125 = vrcp.pop %v1061
    %v1126 = vrcp.pop %v1062
    %v1127 = vrcp.pop %v1063
    %v1128 = vrcp.pop %v1064
    %v1129 = vrcp.pop %v1065
    %v1130 = vrcp.pop %v1066
    %v1131 = vrcp.pop %v1067
    %v1132 = vrcp.pop %v1068
    %v1133 = vrcp.pop %v1069
    %v1134 = vrcp.pop %v1070
    %v1135 = vrcp.pop %v1071
    %v1136 = vrcp.pop %v1072
    %v1137 = vrcp.pop %v1073
    %v1138 = vrcp.pop %v1074
    %v1139 = vmul.f32 %v755, %v1075
    %v1140 = vmul.f32 %v756, %v1076
    %v1141 = vmul.f32 %v757, %v1077
    %v1142 = vmul.f32 %v758, %v1078
    %v1143 = vmul.f32 %v759, %v1079
    %v1144 = vmul.f32 %v760, %v1080
    %v1145 = vmul.f32 %v761, %v1081
    %v1146 = vmul.f32 %v762, %v1082
    %v1147 = vmul.f32 %v763, %v1083
    %v1148 = vmul.f32 %v764, %v1084
    %v1149 = vmul.f32 %v765, %v1085
    %v1150 = vmul.f32 %v766, %v1086
    %v1151 = vmul.f32 %v767, %v1087
    %v1152 = vmul.f32 %v768, %v1088
    %v1153 = vmul.f32 %v769, %v1089
    %v1154 = vmul.f32 %v770, %v1090
    %v1155 = vmul.f32 %v771, %v1091
    %v1156 = vmul.f32 %v772, %v1092
    %v1157 = vmul.f32 %v773, %v1093
    %v1158 = vmul.f32 %v774, %v1094
    %v1159 = vmul.f32 %v775, %v1095
    %v1160 = vmul.f32 %v776, %v1096
    %v1161 = vmul.f32 %v777, %v1097
    %v1162 = vmul.f32 %v778, %v1098
    %v1163 = vmul.f32 %v779, %v1099
    %v1164 = vmul.f32 %v780, %v1100
    %v1165 = vmul.f32 %v781, %v1101
    %v1166 = vmul.f32 %v782, %v1102
    %v1167 = vmul.f32 %v783, %v1103
    %v1168 = vmul.f32 %v784, %v1104
    %v1169 = vmul.f32 %v785, %v1105
    %v1170 = vmul.f32 %v786, %v1106
    %v1171 = vmul.f32 %v787, %v1107
    %v1172 = vmul.f32 %v788, %v1108
    %v1173 = vmul.f32 %v789, %v1109
    %v1174 = vmul.f32 %v790, %v1110
    %v1175 = vmul.f32 %v791, %v1111
    %v1176 = vmul.f32 %v792, %v1112
    %v1177 = vmul.f32 %v793, %v1113
    %v1178 = vmul.f32 %v794, %v1114
    %v1179 = vmul.f32 %v795, %v1115
    %v1180 = vmul.f32 %v796, %v1116
    %v1181 = vmul.f32 %v797, %v1117
    %v1182 = vmul.f32 %v798, %v1118
    %v1183 = vmul.f32 %v799, %v1119
    %v1184 = vmul.f32 %v800, %v1120
    %v1185 = vmul.f32 %v801, %v1121
    %v1186 = vmul.f32 %v802, %v1122
    %v1187 = vmul.f32 %v803, %v1123
    %v1188 = vmul.f32 %v804, %v1124
    %v1189 = vmul.f32 %v805, %v1125
    %v1190 = vmul.f32 %v806, %v1126
    %v1191 = vmul.f32 %v807, %v1127
    %v1192 = vmul.f32 %v808, %v1128
    %v1193 = vmul.f32 %v809, %v1129
    %v1194 = vmul.f32 %v810, %v1130
    %v1195 = vmul.f32 %v811, %v1131
    %v1196 = vmul.f32 %v812, %v1132
    %v1197 = vmul.f32 %v813, %v1133
    %v1198 = vmul.f32 %v814, %v1134
    %v1199 = vmul.f32 %v815, %v1135
    %v1200 = vmul.f32 %v816, %v1136
    %v1201 = vmul.f32 %v817, %v1137
    %v1202 = vmul.f32 %v818, %v1138
    %vm1203 = vcmask 64512
    %1204 = vst.msk [vmem:[%s4] sm:$0xff] %vm1203, %v1139
    %1205 = vst.msk [vmem:[%s4 + $0x8] sm:$0xff] %vm1203, %v1140
    %1206 = vst.msk [vmem:[%s4 + $0x10] sm:$0xff] %vm1203, %v1141
    %1207 = vst.msk [vmem:[%s4 + $0x18] sm:$0xff] %vm1203, %v1142
    %1208 = vst.msk [vmem:[%s4 + $0x20] sm:$0xff] %vm1203, %v1143
    %1209 = vst.msk [vmem:[%s4 + $0x28] sm:$0xff] %vm1203, %v1144
    %1210 = vst.msk [vmem:[%s4 + $0x30] sm:$0xff] %vm1203, %v1145
    %1211 = vst.msk [vmem:[%s4 + $0x38] sm:$0xff] %vm1203, %v1146
    %1212 = vst.msk [vmem:[%s4 + $0x40] sm:$0xff] %vm1203, %v1147
    %1213 = vst.msk [vmem:[%s4 + $0x48] sm:$0xff] %vm1203, %v1148
    %1214 = vst.msk [vmem:[%s4 + $0x50] sm:$0xff] %vm1203, %v1149
    %1215 = vst.msk [vmem:[%s4 + $0x58] sm:$0xff] %vm1203, %v1150
    %1216 = vst.msk [vmem:[%s4 + $0x60] sm:$0xff] %vm1203, %v1151
    %1217 = vst.msk [vmem:[%s4 + $0x68] sm:$0xff] %vm1203, %v1152
    %1218 = vst.msk [vmem:[%s4 + $0x70] sm:$0xff] %vm1203, %v1153
    %1219 = vst.msk [vmem:[%s4 + $0x78] sm:$0xff] %vm1203, %v1154
    %1220 = vst.msk [vmem:[%s4 + $0x80] sm:$0xff] %vm1203, %v1155
    %1221 = vst.msk [vmem:[%s4 + $0x88] sm:$0xff] %vm1203, %v1156
    %1222 = vst.msk [vmem:[%s4 + $0x90] sm:$0xff] %vm1203, %v1157
    %1223 = vst.msk [vmem:[%s4 + $0x98] sm:$0xff] %vm1203, %v1158
    %1224 = vst.msk [vmem:[%s4 + $0xa0] sm:$0xff] %vm1203, %v1159
    %1225 = vst.msk [vmem:[%s4 + $0xa8] sm:$0xff] %vm1203, %v1160
    %1226 = vst.msk [vmem:[%s4 + $0xb0] sm:$0xff] %vm1203, %v1161
    %1227 = vst.msk [vmem:[%s4 + $0xb8] sm:$0xff] %vm1203, %v1162
    %1228 = vst.msk [vmem:[%s4 + $0xc0] sm:$0xff] %vm1203, %v1163
    %1229 = vst.msk [vmem:[%s4 + $0xc8] sm:$0xff] %vm1203, %v1164
    %1230 = vst.msk [vmem:[%s4 + $0xd0] sm:$0xff] %vm1203, %v1165
    %1231 = vst.msk [vmem:[%s4 + $0xd8] sm:$0xff] %vm1203, %v1166
    %1232 = vst.msk [vmem:[%s4 + $0xe0] sm:$0xff] %vm1203, %v1167
    %1233 = vst.msk [vmem:[%s4 + $0xe8] sm:$0xff] %vm1203, %v1168
    %1234 = vst.msk [vmem:[%s4 + $0xf0] sm:$0xff] %vm1203, %v1169
    %1235 = vst.msk [vmem:[%s4 + $0xf8] sm:$0xff] %vm1203, %v1170
    %1236 = vst.msk [vmem:[%s4 + $0x100] sm:$0xff] %vm1203, %v1171
    %1237 = vst.msk [vmem:[%s4 + $0x108] sm:$0xff] %vm1203, %v1172
    %1238 = vst.msk [vmem:[%s4 + $0x110] sm:$0xff] %vm1203, %v1173
    %1239 = vst.msk [vmem:[%s4 + $0x118] sm:$0xff] %vm1203, %v1174
    %1240 = vst.msk [vmem:[%s4 + $0x120] sm:$0xff] %vm1203, %v1175
    %1241 = vst.msk [vmem:[%s4 + $0x128] sm:$0xff] %vm1203, %v1176
    %1242 = vst.msk [vmem:[%s4 + $0x130] sm:$0xff] %vm1203, %v1177
    %1243 = vst.msk [vmem:[%s4 + $0x138] sm:$0xff] %vm1203, %v1178
    %1244 = vst.msk [vmem:[%s4 + $0x140] sm:$0xff] %vm1203, %v1179
    %1245 = vst.msk [vmem:[%s4 + $0x148] sm:$0xff] %vm1203, %v1180
    %1246 = vst.msk [vmem:[%s4 + $0x150] sm:$0xff] %vm1203, %v1181
    %1247 = vst.msk [vmem:[%s4 + $0x158] sm:$0xff] %vm1203, %v1182
    %1248 = vst.msk [vmem:[%s4 + $0x160] sm:$0xff] %vm1203, %v1183
    %1249 = vst.msk [vmem:[%s4 + $0x168] sm:$0xff] %vm1203, %v1184
    %1250 = vst.msk [vmem:[%s4 + $0x170] sm:$0xff] %vm1203, %v1185
    %1251 = vst.msk [vmem:[%s4 + $0x178] sm:$0xff] %vm1203, %v1186
    %1252 = vst.msk [vmem:[%s4 + $0x180] sm:$0xff] %vm1203, %v1187
    %1253 = vst.msk [vmem:[%s4 + $0x188] sm:$0xff] %vm1203, %v1188
    %1254 = vst.msk [vmem:[%s4 + $0x190] sm:$0xff] %vm1203, %v1189
    %1255 = vst.msk [vmem:[%s4 + $0x198] sm:$0xff] %vm1203, %v1190
    %1256 = vst.msk [vmem:[%s4 + $0x1a0] sm:$0xff] %vm1203, %v1191
    %1257 = vst.msk [vmem:[%s4 + $0x1a8] sm:$0xff] %vm1203, %v1192
    %1258 = vst.msk [vmem:[%s4 + $0x1b0] sm:$0xff] %vm1203, %v1193
    %1259 = vst.msk [vmem:[%s4 + $0x1b8] sm:$0xff] %vm1203, %v1194
    %1260 = vst.msk [vmem:[%s4 + $0x1c0] sm:$0xff] %vm1203, %v1195
    %1261 = vst.msk [vmem:[%s4 + $0x1c8] sm:$0xff] %vm1203, %v1196
    %1262 = vst.msk [vmem:[%s4 + $0x1d0] sm:$0xff] %vm1203, %v1197
    %1263 = vst.msk [vmem:[%s4 + $0x1d8] sm:$0xff] %vm1203, %v1198
    %1264 = vst.msk [vmem:[%s4 + $0x1e0] sm:$0xff] %vm1203, %v1199
    %1265 = vst.msk [vmem:[%s4 + $0x1e8] sm:$0xff] %vm1203, %v1200
    %1266 = vst.msk [vmem:[%s4 + $0x1f0] sm:$0xff] %vm1203, %v1201
    %1267 = vst.msk [vmem:[%s4 + $0x1f8] sm:$0xff] %vm1203, %v1202
    %1332 = vrot.lane.b32.xlu0 %v1139, 120
    %v1333 = vpop.permute.xlu0 %1332
    %1334 = vrot.lane.b32.xlu0 %v1140, 120
    %v1335 = vpop.permute.xlu0 %1334
    %1336 = vrot.lane.b32.xlu0 %v1141, 120
    %v1337 = vpop.permute.xlu0 %1336
    %1338 = vrot.lane.b32.xlu0 %v1142, 120
    %v1339 = vpop.permute.xlu0 %1338
    %1340 = vrot.lane.b32.xlu0 %v1143, 120
    %v1341 = vpop.permute.xlu0 %1340
    %1342 = vrot.lane.b32.xlu0 %v1144, 120
    %v1343 = vpop.permute.xlu0 %1342
    %1344 = vrot.lane.b32.xlu0 %v1145, 120
    %v1345 = vpop.permute.xlu0 %1344
    %1346 = vrot.lane.b32.xlu0 %v1146, 120
    %v1347 = vpop.permute.xlu0 %1346
    %1348 = vrot.lane.b32.xlu0 %v1147, 120
    %v1349 = vpop.permute.xlu0 %1348
    %1350 = vrot.lane.b32.xlu0 %v1148, 120
    %v1351 = vpop.permute.xlu0 %1350
    %1352 = vrot.lane.b32.xlu0 %v1149, 120
    %v1353 = vpop.permute.xlu0 %1352
    %1354 = vrot.lane.b32.xlu0 %v1150, 120
    %v1355 = vpop.permute.xlu0 %1354
    %1356 = vrot.lane.b32.xlu0 %v1151, 120
    %v1357 = vpop.permute.xlu0 %1356
    %1358 = vrot.lane.b32.xlu0 %v1152, 120
    %v1359 = vpop.permute.xlu0 %1358
    %1360 = vrot.lane.b32.xlu0 %v1153, 120
    %v1361 = vpop.permute.xlu0 %1360
    %1362 = vrot.lane.b32.xlu0 %v1154, 120
    %v1363 = vpop.permute.xlu0 %1362
    %1364 = vrot.lane.b32.xlu0 %v1155, 120
    %v1365 = vpop.permute.xlu0 %1364
    %1366 = vrot.lane.b32.xlu0 %v1156, 120
    %v1367 = vpop.permute.xlu0 %1366
    %1368 = vrot.lane.b32.xlu0 %v1157, 120
    %v1369 = vpop.permute.xlu0 %1368
    %1370 = vrot.lane.b32.xlu0 %v1158, 120
    %v1371 = vpop.permute.xlu0 %1370
    %1372 = vrot.lane.b32.xlu0 %v1159, 120
    %v1373 = vpop.permute.xlu0 %1372
    %1374 = vrot.lane.b32.xlu0 %v1160, 120
    %v1375 = vpop.permute.xlu0 %1374
    %1376 = vrot.lane.b32.xlu0 %v1161, 120
    %v1377 = vpop.permute.xlu0 %1376
    %1378 = vrot.lane.b32.xlu0 %v1162, 120
    %v1379 = vpop.permute.xlu0 %1378
    %1380 = vrot.lane.b32.xlu0 %v1163, 120
    %v1381 = vpop.permute.xlu0 %1380
    %1382 = vrot.lane.b32.xlu0 %v1164, 120
    %v1383 = vpop.permute.xlu0 %1382
    %1384 = vrot.lane.b32.xlu0 %v1165, 120
    %v1385 = vpop.permute.xlu0 %1384
    %1386 = vrot.lane.b32.xlu0 %v1166, 120
    %v1387 = vpop.permute.xlu0 %1386
    %1388 = vrot.lane.b32.xlu0 %v1167, 120
    %v1389 = vpop.permute.xlu0 %1388
    %1390 = vrot.lane.b32.xlu0 %v1168, 120
    %v1391 = vpop.permute.xlu0 %1390
    %1392 = vrot.lane.b32.xlu0 %v1169, 120
    %v1393 = vpop.permute.xlu0 %1392
    %1394 = vrot.lane.b32.xlu0 %v1170, 120
    %v1395 = vpop.permute.xlu0 %1394
    %1396 = vrot.lane.b32.xlu0 %v1171, 120
    %v1397 = vpop.permute.xlu0 %1396
    %1398 = vrot.lane.b32.xlu0 %v1172, 120
    %v1399 = vpop.permute.xlu0 %1398
    %1400 = vrot.lane.b32.xlu0 %v1173, 120
    %v1401 = vpop.permute.xlu0 %1400
    %1402 = vrot.lane.b32.xlu0 %v1174, 120
    %v1403 = vpop.permute.xlu0 %1402
    %1404 = vrot.lane.b32.xlu0 %v1175, 120
    %v1405 = vpop.permute.xlu0 %1404
    %1406 = vrot.lane.b32.xlu0 %v1176, 120
    %v1407 = vpop.permute.xlu0 %1406
    %1408 = vrot.lane.b32.xlu0 %v1177, 120
    %v1409 = vpop.permute.xlu0 %1408
    %1410 = vrot.lane.b32.xlu0 %v1178, 120
    %v1411 = vpop.permute.xlu0 %1410
    %1412 = vrot.lane.b32.xlu0 %v1179, 120
    %v1413 = vpop.permute.xlu0 %1412
    %1414 = vrot.lane.b32.xlu0 %v1180, 120
    %v1415 = vpop.permute.xlu0 %1414
    %1416 = vrot.lane.b32.xlu0 %v1181, 120
    %v1417 = vpop.permute.xlu0 %1416
    %1418 = vrot.lane.b32.xlu0 %v1182, 120
    %v1419 = vpop.permute.xlu0 %1418
    %1420 = vrot.lane.b32.xlu0 %v1183, 120
    %v1421 = vpop.permute.xlu0 %1420
    %1422 = vrot.lane.b32.xlu0 %v1184, 120
    %v1423 = vpop.permute.xlu0 %1422
    %1424 = vrot.lane.b32.xlu0 %v1185, 120
    %v1425 = vpop.permute.xlu0 %1424
    %1426 = vrot.lane.b32.xlu0 %v1186, 120
    %v1427 = vpop.permute.xlu0 %1426
    %1428 = vrot.lane.b32.xlu0 %v1187, 120
    %v1429 = vpop.permute.xlu0 %1428
    %1430 = vrot.lane.b32.xlu0 %v1188, 120
    %v1431 = vpop.permute.xlu0 %1430
    %1432 = vrot.lane.b32.xlu0 %v1189, 120
    %v1433 = vpop.permute.xlu0 %1432
    %1434 = vrot.lane.b32.xlu0 %v1190, 120
    %v1435 = vpop.permute.xlu0 %1434
    %1436 = vrot.lane.b32.xlu0 %v1191, 120
    %v1437 = vpop.permute.xlu0 %1436
    %1438 = vrot.lane.b32.xlu0 %v1192, 120
    %v1439 = vpop.permute.xlu0 %1438
    %1440 = vrot.lane.b32.xlu0 %v1193, 120
    %v1441 = vpop.permute.xlu0 %1440
    %1442 = vrot.lane.b32.xlu0 %v1194, 120
    %v1443 = vpop.permute.xlu0 %1442
    %1444 = vrot.lane.b32.xlu0 %v1195, 120
    %v1445 = vpop.permute.xlu0 %1444
    %1446 = vrot.lane.b32.xlu0 %v1196, 120
    %v1447 = vpop.permute.xlu0 %1446
    %1448 = vrot.lane.b32.xlu0 %v1197, 120
    %v1449 = vpop.permute.xlu0 %1448
    %1450 = vrot.lane.b32.xlu0 %v1198, 120
    %v1451 = vpop.permute.xlu0 %1450
    %1452 = vrot.lane.b32.xlu0 %v1199, 120
    %v1453 = vpop.permute.xlu0 %1452
    %1454 = vrot.lane.b32.xlu0 %v1200, 120
    %v1455 = vpop.permute.xlu0 %1454
    %1456 = vrot.lane.b32.xlu0 %v1201, 120
    %v1457 = vpop.permute.xlu0 %1456
    %1458 = vrot.lane.b32.xlu0 %v1202, 120
    %v1459 = vpop.permute.xlu0 %1458
    %1524 = vst.msk [vmem:[%s5] sm:$0xff] %vm1203, %v1333
    %1525 = vst.msk [vmem:[%s5 + $0x8] sm:$0xff] %vm1203, %v1335
    %1526 = vst.msk [vmem:[%s5 + $0x10] sm:$0xff] %vm1203, %v1337
    %1527 = vst.msk [vmem:[%s5 + $0x18] sm:$0xff] %vm1203, %v1339
    %1528 = vst.msk [vmem:[%s5 + $0x20] sm:$0xff] %vm1203, %v1341
    %1529 = vst.msk [vmem:[%s5 + $0x28] sm:$0xff] %vm1203, %v1343
    %1530 = vst.msk [vmem:[%s5 + $0x30] sm:$0xff] %vm1203, %v1345
    %1531 = vst.msk [vmem:[%s5 + $0x38] sm:$0xff] %vm1203, %v1347
    %1532 = vst.msk [vmem:[%s5 + $0x40] sm:$0xff] %vm1203, %v1349
    %1533 = vst.msk [vmem:[%s5 + $0x48] sm:$0xff] %vm1203, %v1351
    %1534 = vst.msk [vmem:[%s5 + $0x50] sm:$0xff] %vm1203, %v1353
    %1535 = vst.msk [vmem:[%s5 + $0x58] sm:$0xff] %vm1203, %v1355
    %1536 = vst.msk [vmem:[%s5 + $0x60] sm:$0xff] %vm1203, %v1357
    %1537 = vst.msk [vmem:[%s5 + $0x68] sm:$0xff] %vm1203, %v1359
    %1538 = vst.msk [vmem:[%s5 + $0x70] sm:$0xff] %vm1203, %v1361
    %1539 = vst.msk [vmem:[%s5 + $0x78] sm:$0xff] %vm1203, %v1363
    %1540 = vst.msk [vmem:[%s5 + $0x80] sm:$0xff] %vm1203, %v1365
    %1541 = vst.msk [vmem:[%s5 + $0x88] sm:$0xff] %vm1203, %v1367
    %1542 = vst.msk [vmem:[%s5 + $0x90] sm:$0xff] %vm1203, %v1369
    %1543 = vst.msk [vmem:[%s5 + $0x98] sm:$0xff] %vm1203, %v1371
    %1544 = vst.msk [vmem:[%s5 + $0xa0] sm:$0xff] %vm1203, %v1373
    %1545 = vst.msk [vmem:[%s5 + $0xa8] sm:$0xff] %vm1203, %v1375
    %1546 = vst.msk [vmem:[%s5 + $0xb0] sm:$0xff] %vm1203, %v1377
    %1547 = vst.msk [vmem:[%s5 + $0xb8] sm:$0xff] %vm1203, %v1379
    %1548 = vst.msk [vmem:[%s5 + $0xc0] sm:$0xff] %vm1203, %v1381
    %1549 = vst.msk [vmem:[%s5 + $0xc8] sm:$0xff] %vm1203, %v1383
    %1550 = vst.msk [vmem:[%s5 + $0xd0] sm:$0xff] %vm1203, %v1385
    %1551 = vst.msk [vmem:[%s5 + $0xd8] sm:$0xff] %vm1203, %v1387
    %1552 = vst.msk [vmem:[%s5 + $0xe0] sm:$0xff] %vm1203, %v1389
    %1553 = vst.msk [vmem:[%s5 + $0xe8] sm:$0xff] %vm1203, %v1391
    %1554 = vst.msk [vmem:[%s5 + $0xf0] sm:$0xff] %vm1203, %v1393
    %1555 = vst.msk [vmem:[%s5 + $0xf8] sm:$0xff] %vm1203, %v1395
    %1556 = vst.msk [vmem:[%s5 + $0x100] sm:$0xff] %vm1203, %v1397
    %1557 = vst.msk [vmem:[%s5 + $0x108] sm:$0xff] %vm1203, %v1399
    %1558 = vst.msk [vmem:[%s5 + $0x110] sm:$0xff] %vm1203, %v1401
    %1559 = vst.msk [vmem:[%s5 + $0x118] sm:$0xff] %vm1203, %v1403
    %1560 = vst.msk [vmem:[%s5 + $0x120] sm:$0xff] %vm1203, %v1405
    %1561 = vst.msk [vmem:[%s5 + $0x128] sm:$0xff] %vm1203, %v1407
    %1562 = vst.msk [vmem:[%s5 + $0x130] sm:$0xff] %vm1203, %v1409
    %1563 = vst.msk [vmem:[%s5 + $0x138] sm:$0xff] %vm1203, %v1411
    %1564 = vst.msk [vmem:[%s5 + $0x140] sm:$0xff] %vm1203, %v1413
    %1565 = vst.msk [vmem:[%s5 + $0x148] sm:$0xff] %vm1203, %v1415
    %1566 = vst.msk [vmem:[%s5 + $0x150] sm:$0xff] %vm1203, %v1417
    %1567 = vst.msk [vmem:[%s5 + $0x158] sm:$0xff] %vm1203, %v1419
    %1568 = vst.msk [vmem:[%s5 + $0x160] sm:$0xff] %vm1203, %v1421
    %1569 = vst.msk [vmem:[%s5 + $0x168] sm:$0xff] %vm1203, %v1423
    %1570 = vst.msk [vmem:[%s5 + $0x170] sm:$0xff] %vm1203, %v1425
    %1571 = vst.msk [vmem:[%s5 + $0x178] sm:$0xff] %vm1203, %v1427
    %1572 = vst.msk [vmem:[%s5 + $0x180] sm:$0xff] %vm1203, %v1429
    %1573 = vst.msk [vmem:[%s5 + $0x188] sm:$0xff] %vm1203, %v1431
    %1574 = vst.msk [vmem:[%s5 + $0x190] sm:$0xff] %vm1203, %v1433
    %1575 = vst.msk [vmem:[%s5 + $0x198] sm:$0xff] %vm1203, %v1435
    %1576 = vst.msk [vmem:[%s5 + $0x1a0] sm:$0xff] %vm1203, %v1437
    %1577 = vst.msk [vmem:[%s5 + $0x1a8] sm:$0xff] %vm1203, %v1439
    %1578 = vst.msk [vmem:[%s5 + $0x1b0] sm:$0xff] %vm1203, %v1441
    %1579 = vst.msk [vmem:[%s5 + $0x1b8] sm:$0xff] %vm1203, %v1443
    %1580 = vst.msk [vmem:[%s5 + $0x1c0] sm:$0xff] %vm1203, %v1445
    %1581 = vst.msk [vmem:[%s5 + $0x1c8] sm:$0xff] %vm1203, %v1447
    %1582 = vst.msk [vmem:[%s5 + $0x1d0] sm:$0xff] %vm1203, %v1449
    %1583 = vst.msk [vmem:[%s5 + $0x1d8] sm:$0xff] %vm1203, %v1451
    %1584 = vst.msk [vmem:[%s5 + $0x1e0] sm:$0xff] %vm1203, %v1453
    %1585 = vst.msk [vmem:[%s5 + $0x1e8] sm:$0xff] %vm1203, %v1455
    %1586 = vst.msk [vmem:[%s5 + $0x1f0] sm:$0xff] %vm1203, %v1457
    %1587 = vst.msk [vmem:[%s5 + $0x1f8] sm:$0xff] %vm1203, %v1459
    // Predicated region
    $region22: #{c2_forward.3} parent=1 // pred_check
      _
    $region23: #{c2_forward.3} parent=1 // pred_check_branch
      %1589 = sbr.rel (0) target = $region25
    $region24: #{c2_forward.3} parent=1 // pred_region
      _
    $region25: #{c2_forward.3} parent=1 // pred_fallthru
      _
    // Predicated region
    $region26: #{c2_forward.3} parent=1 // pred_check
      _
    $region27: #{c2_forward.3} parent=1 // pred_check_branch
      %1591 = sbr.rel (0) target = $region29
    $region28: #{c2_forward.3} parent=1 // pred_region
      _
    $region29: #{c2_forward.3} parent=1 // pred_fallthru
      _
    // Predicated region
    $region30: #{c2_forward.3} parent=1 // pred_check
      _
    $region31: #{c2_forward.3} parent=1 // pred_check_branch
      %1593 = sbr.rel (0) target = $region33
    $region32: #{c2_forward.3} parent=1 // pred_region
      _
    $region33: #{c2_forward.3} parent=1 // pred_fallthru
      _
    // Predicated region
    $region34: #{c2_forward.3} parent=1 // pred_check
      _
    $region35: #{c2_forward.3} parent=1 // pred_check_branch
      %1595 = sbr.rel (0) target = $region37
    $region36: #{c2_forward.3} parent=1 // pred_region
      _
    $region37: #{c2_forward.3} parent=1 // pred_fallthru
      _
    %1596 = vsyncpa [#allocation3], 1

// kernel: c2_forward.5
$region0: #{c2_forward.5}
  #allocation0 [shape = 'u32[]', space=smem, size = 0x4, offset = 0x4, fixed_abs, tag = 'smem constant byte address 0x4 - core index']
  #allocation1 [shape = 'u32[144,128]{1,0:T(1,128)}', space=vmem, size = 0x12000, scoped, tag = 'internal scratch']
  %s0 = inlined_call_operand.vmem [shape: f32[512,8], index: 0, kind: input, shape index: {}]
  %s1 = inlined_call_operand.vmem [shape: f32[512,8], index: 1, kind: input, shape index: {}]
  %s2 = inlined_call_operand.vmem [shape: f32[8,16], index: 2, kind: input, shape index: {}]
  %s3 = inlined_call_operand.vmem [shape: f32[8,16], index: 3, kind: input, shape index: {}]
  %s4 = inlined_call_operand.vmem [shape: f32[1,16], index: 4, kind: input, shape index: {}]
  %s5 = inlined_call_operand.vmem [shape: f32[1,16], index: 5, kind: input, shape index: {}]
  %s6 = inlined_call_operand.hbm [shape: f32[512,16], index: 6, kind: output, shape index: {}]
  %s7 = sld [smem:[#allocation0]]
  $region34: #{c2_forward.5} parent=0
    _
  %s9 = ssub.s32 1, %s7
  %s10 = scalar_select 0, %s9, %s7
  $region1: #{c2_forward.5} parent=0
    #allocation2 [shape = 'u8[262144]{0}', space=vmem, size = 0x40000, scoped, tag = 'output window, operand 0, single buffered']
    #allocation3 [shape = 's32[1]{0}', space=sflag, size = 0x4, scoped, tag = 'scoped memory for c2_forward.5']
    %11 = vsyncpa [#allocation3], 0
    // Predicated region
    $region2: #{c2_forward.5} parent=1 // pred_check
      _
    $region3: #{c2_forward.5} parent=1 // pred_check_branch
      %13 = sbr.rel (0) target = $region5
    $region4: #{c2_forward.5} parent=1 // pred_region
      _
    $region5: #{c2_forward.5} parent=1 // pred_fallthru
      _
    // Predicated region
    $region6: #{c2_forward.5} parent=1 // pred_check
      _
    $region7: #{c2_forward.5} parent=1 // pred_check_branch
      %15 = sbr.rel (0) target = $region9
    $region8: #{c2_forward.5} parent=1 // pred_region
      _
    $region9: #{c2_forward.5} parent=1 // pred_fallthru
      _
    // Predicated region
    $region10: #{c2_forward.5} parent=1 // pred_check
      _
    $region11: #{c2_forward.5} parent=1 // pred_check_branch
      %17 = sbr.rel (0) target = $region13
    $region12: #{c2_forward.5} parent=1 // pred_region
      _
    $region13: #{c2_forward.5} parent=1 // pred_fallthru
      _
    // Predicated region
    $region14: #{c2_forward.5} parent=1 // pred_check
      _
    $region15: #{c2_forward.5} parent=1 // pred_check_branch
      %19 = sbr.rel (0) target = $region17
    $region16: #{c2_forward.5} parent=1 // pred_region
      _
    $region17: #{c2_forward.5} parent=1 // pred_fallthru
      _
    // Predicated region
    $region18: #{c2_forward.5} parent=1 // pred_check
      _
    $region19: #{c2_forward.5} parent=1 // pred_check_branch
      %21 = sbr.rel (0) target = $region21
    $region20: #{c2_forward.5} parent=1 // pred_region
      _
    $region21: #{c2_forward.5} parent=1 // pred_fallthru
      _
    // Predicated region
    $region22: #{c2_forward.5} parent=1 // pred_check
      _
    $region23: #{c2_forward.5} parent=1 // pred_check_branch
      %23 = sbr.rel (0) target = $region25
    $region24: #{c2_forward.5} parent=1 // pred_region
      _
    $region25: #{c2_forward.5} parent=1 // pred_fallthru
      _
    %v24 = vld [vmem:[%s0] sm:$0xff]
    %v25 = vld [vmem:[%s0 + $0x8] sm:$0xff]
    %v26 = vld [vmem:[%s0 + $0x10] sm:$0xff]
    %v27 = vld [vmem:[%s0 + $0x18] sm:$0xff]
    %v28 = vld [vmem:[%s0 + $0x20] sm:$0xff]
    %v29 = vld [vmem:[%s0 + $0x28] sm:$0xff]
    %v30 = vld [vmem:[%s0 + $0x30] sm:$0xff]
    %v31 = vld [vmem:[%s0 + $0x38] sm:$0xff]
    %v32 = vld [vmem:[%s0 + $0x40] sm:$0xff]
    %v33 = vld [vmem:[%s0 + $0x48] sm:$0xff]
    %v34 = vld [vmem:[%s0 + $0x50] sm:$0xff]
    %v35 = vld [vmem:[%s0 + $0x58] sm:$0xff]
    %v36 = vld [vmem:[%s0 + $0x60] sm:$0xff]
    %v37 = vld [vmem:[%s0 + $0x68] sm:$0xff]
    %v38 = vld [vmem:[%s0 + $0x70] sm:$0xff]
    %v39 = vld [vmem:[%s0 + $0x78] sm:$0xff]
    %v40 = vld [vmem:[%s0 + $0x80] sm:$0xff]
    %v41 = vld [vmem:[%s0 + $0x88] sm:$0xff]
    %v42 = vld [vmem:[%s0 + $0x90] sm:$0xff]
    %v43 = vld [vmem:[%s0 + $0x98] sm:$0xff]
    %v44 = vld [vmem:[%s0 + $0xa0] sm:$0xff]
    %v45 = vld [vmem:[%s0 + $0xa8] sm:$0xff]
    %v46 = vld [vmem:[%s0 + $0xb0] sm:$0xff]
    %v47 = vld [vmem:[%s0 + $0xb8] sm:$0xff]
    %v48 = vld [vmem:[%s0 + $0xc0] sm:$0xff]
    %v49 = vld [vmem:[%s0 + $0xc8] sm:$0xff]
    %v50 = vld [vmem:[%s0 + $0xd0] sm:$0xff]
    %v51 = vld [vmem:[%s0 + $0xd8] sm:$0xff]
    %v52 = vld [vmem:[%s0 + $0xe0] sm:$0xff]
    %v53 = vld [vmem:[%s0 + $0xe8] sm:$0xff]
    %v54 = vld [vmem:[%s0 + $0xf0] sm:$0xff]
    %v55 = vld [vmem:[%s0 + $0xf8] sm:$0xff]
    %v56 = vld [vmem:[%s0 + $0x100] sm:$0xff]
    %v57 = vld [vmem:[%s0 + $0x108] sm:$0xff]
    %v58 = vld [vmem:[%s0 + $0x110] sm:$0xff]
    %v59 = vld [vmem:[%s0 + $0x118] sm:$0xff]
    %v60 = vld [vmem:[%s0 + $0x120] sm:$0xff]
    %v61 = vld [vmem:[%s0 + $0x128] sm:$0xff]
    %v62 = vld [vmem:[%s0 + $0x130] sm:$0xff]
    %v63 = vld [vmem:[%s0 + $0x138] sm:$0xff]
    %v64 = vld [vmem:[%s0 + $0x140] sm:$0xff]
    %v65 = vld [vmem:[%s0 + $0x148] sm:$0xff]
    %v66 = vld [vmem:[%s0 + $0x150] sm:$0xff]
    %v67 = vld [vmem:[%s0 + $0x158] sm:$0xff]
    %v68 = vld [vmem:[%s0 + $0x160] sm:$0xff]
    %v69 = vld [vmem:[%s0 + $0x168] sm:$0xff]
    %v70 = vld [vmem:[%s0 + $0x170] sm:$0xff]
    %v71 = vld [vmem:[%s0 + $0x178] sm:$0xff]
    %v72 = vld [vmem:[%s0 + $0x180] sm:$0xff]
    %v73 = vld [vmem:[%s0 + $0x188] sm:$0xff]
    %v74 = vld [vmem:[%s0 + $0x190] sm:$0xff]
    %v75 = vld [vmem:[%s0 + $0x198] sm:$0xff]
    %v76 = vld [vmem:[%s0 + $0x1a0] sm:$0xff]
    %v77 = vld [vmem:[%s0 + $0x1a8] sm:$0xff]
    %v78 = vld [vmem:[%s0 + $0x1b0] sm:$0xff]
    %v79 = vld [vmem:[%s0 + $0x1b8] sm:$0xff]
    %v80 = vld [vmem:[%s0 + $0x1c0] sm:$0xff]
    %v81 = vld [vmem:[%s0 + $0x1c8] sm:$0xff]
    %v82 = vld [vmem:[%s0 + $0x1d0] sm:$0xff]
    %v83 = vld [vmem:[%s0 + $0x1d8] sm:$0xff]
    %v84 = vld [vmem:[%s0 + $0x1e0] sm:$0xff]
    %v85 = vld [vmem:[%s0 + $0x1e8] sm:$0xff]
    %v86 = vld [vmem:[%s0 + $0x1f0] sm:$0xff]
    %v87 = vld [vmem:[%s0 + $0x1f8] sm:$0xff]
    %v88 = vld [vmem:[%s2] sm:$0xff]
    %v89 = vld [vmem:[%s1] sm:$0xff]
    %v90 = vld [vmem:[%s1 + $0x8] sm:$0xff]
    %v91 = vld [vmem:[%s1 + $0x10] sm:$0xff]
    %v92 = vld [vmem:[%s1 + $0x18] sm:$0xff]
    %v93 = vld [vmem:[%s1 + $0x20] sm:$0xff]
    %v94 = vld [vmem:[%s1 + $0x28] sm:$0xff]
    %v95 = vld [vmem:[%s1 + $0x30] sm:$0xff]
    %v96 = vld [vmem:[%s1 + $0x38] sm:$0xff]
    %v97 = vld [vmem:[%s1 + $0x40] sm:$0xff]
    %v98 = vld [vmem:[%s1 + $0x48] sm:$0xff]
    %v99 = vld [vmem:[%s1 + $0x50] sm:$0xff]
    %v100 = vld [vmem:[%s1 + $0x58] sm:$0xff]
    %v101 = vld [vmem:[%s1 + $0x60] sm:$0xff]
    %v102 = vld [vmem:[%s1 + $0x68] sm:$0xff]
    %v103 = vld [vmem:[%s1 + $0x70] sm:$0xff]
    %v104 = vld [vmem:[%s1 + $0x78] sm:$0xff]
    %v105 = vld [vmem:[%s1 + $0x80] sm:$0xff]
    %v106 = vld [vmem:[%s1 + $0x88] sm:$0xff]
    %v107 = vld [vmem:[%s1 + $0x90] sm:$0xff]
    %v108 = vld [vmem:[%s1 + $0x98] sm:$0xff]
    %v109 = vld [vmem:[%s1 + $0xa0] sm:$0xff]
    %v110 = vld [vmem:[%s1 + $0xa8] sm:$0xff]
    %v111 = vld [vmem:[%s1 + $0xb0] sm:$0xff]
    %v112 = vld [vmem:[%s1 + $0xb8] sm:$0xff]
    %v113 = vld [vmem:[%s1 + $0xc0] sm:$0xff]
    %v114 = vld [vmem:[%s1 + $0xc8] sm:$0xff]
    %v115 = vld [vmem:[%s1 + $0xd0] sm:$0xff]
    %v116 = vld [vmem:[%s1 + $0xd8] sm:$0xff]
    %v117 = vld [vmem:[%s1 + $0xe0] sm:$0xff]
    %v118 = vld [vmem:[%s1 + $0xe8] sm:$0xff]
    %v119 = vld [vmem:[%s1 + $0xf0] sm:$0xff]
    %v120 = vld [vmem:[%s1 + $0xf8] sm:$0xff]
    %v121 = vld [vmem:[%s1 + $0x100] sm:$0xff]
    %v122 = vld [vmem:[%s1 + $0x108] sm:$0xff]
    %v123 = vld [vmem:[%s1 + $0x110] sm:$0xff]
    %v124 = vld [vmem:[%s1 + $0x118] sm:$0xff]
    %v125 = vld [vmem:[%s1 + $0x120] sm:$0xff]
    %v126 = vld [vmem:[%s1 + $0x128] sm:$0xff]
    %v127 = vld [vmem:[%s1 + $0x130] sm:$0xff]
    %v128 = vld [vmem:[%s1 + $0x138] sm:$0xff]
    %v129 = vld [vmem:[%s1 + $0x140] sm:$0xff]
    %v130 = vld [vmem:[%s1 + $0x148] sm:$0xff]
    %v131 = vld [vmem:[%s1 + $0x150] sm:$0xff]
    %v132 = vld [vmem:[%s1 + $0x158] sm:$0xff]
    %v133 = vld [vmem:[%s1 + $0x160] sm:$0xff]
    %v134 = vld [vmem:[%s1 + $0x168] sm:$0xff]
    %v135 = vld [vmem:[%s1 + $0x170] sm:$0xff]
    %v136 = vld [vmem:[%s1 + $0x178] sm:$0xff]
    %v137 = vld [vmem:[%s1 + $0x180] sm:$0xff]
    %v138 = vld [vmem:[%s1 + $0x188] sm:$0xff]
    %v139 = vld [vmem:[%s1 + $0x190] sm:$0xff]
    %v140 = vld [vmem:[%s1 + $0x198] sm:$0xff]
    %v141 = vld [vmem:[%s1 + $0x1a0] sm:$0xff]
    %v142 = vld [vmem:[%s1 + $0x1a8] sm:$0xff]
    %v143 = vld [vmem:[%s1 + $0x1b0] sm:$0xff]
    %v144 = vld [vmem:[%s1 + $0x1b8] sm:$0xff]
    %v145 = vld [vmem:[%s1 + $0x1c0] sm:$0xff]
    %v146 = vld [vmem:[%s1 + $0x1c8] sm:$0xff]
    %v147 = vld [vmem:[%s1 + $0x1d0] sm:$0xff]
    %v148 = vld [vmem:[%s1 + $0x1d8] sm:$0xff]
    %v149 = vld [vmem:[%s1 + $0x1e0] sm:$0xff]
    %v150 = vld [vmem:[%s1 + $0x1e8] sm:$0xff]
    %v151 = vld [vmem:[%s1 + $0x1f0] sm:$0xff]
    %v152 = vld [vmem:[%s1 + $0x1f8] sm:$0xff]
    %v153 = vld [vmem:[%s3] sm:$0xff]
    %vm154 = vcmask 64512
    %v156 = vsel %vm154, %v89, 0
    %v159 = vsel %vm154, %v90, 0
    %v162 = vsel %vm154, %v91, 0
    %v165 = vsel %vm154, %v92, 0
    %v168 = vsel %vm154, %v93, 0
    %v171 = vsel %vm154, %v94, 0
    %v174 = vsel %vm154, %v95, 0
    %v177 = vsel %vm154, %v96, 0
    %v180 = vsel %vm154, %v97, 0
    %v183 = vsel %vm154, %v98, 0
    %v186 = vsel %vm154, %v99, 0
    %v189 = vsel %vm154, %v100, 0
    %v192 = vsel %vm154, %v101, 0
    %v195 = vsel %vm154, %v102, 0
    %v198 = vsel %vm154, %v103, 0
    %v201 = vsel %vm154, %v104, 0
    %v204 = vsel %vm154, %v105, 0
    %v207 = vsel %vm154, %v106, 0
    %v210 = vsel %vm154, %v107, 0
    %v213 = vsel %vm154, %v108, 0
    %v216 = vsel %vm154, %v109, 0
    %v219 = vsel %vm154, %v110, 0
    %v222 = vsel %vm154, %v111, 0
    %v225 = vsel %vm154, %v112, 0
    %v228 = vsel %vm154, %v113, 0
    %v231 = vsel %vm154, %v114, 0
    %v234 = vsel %vm154, %v115, 0
    %v237 = vsel %vm154, %v116, 0
    %v240 = vsel %vm154, %v117, 0
    %v243 = vsel %vm154, %v118, 0
    %v246 = vsel %vm154, %v119, 0
    %v249 = vsel %vm154, %v120, 0
    %v252 = vsel %vm154, %v121, 0
    %v255 = vsel %vm154, %v122, 0
    %v258 = vsel %vm154, %v123, 0
    %v261 = vsel %vm154, %v124, 0
    %v264 = vsel %vm154, %v125, 0
    %v267 = vsel %vm154, %v126, 0
    %v270 = vsel %vm154, %v127, 0
    %v273 = vsel %vm154, %v128, 0
    %v276 = vsel %vm154, %v129, 0
    %v279 = vsel %vm154, %v130, 0
    %v282 = vsel %vm154, %v131, 0
    %v285 = vsel %vm154, %v132, 0
    %v288 = vsel %vm154, %v133, 0
    %v291 = vsel %vm154, %v134, 0
    %v294 = vsel %vm154, %v135, 0
    %v297 = vsel %vm154, %v136, 0
    %v300 = vsel %vm154, %v137, 0
    %v303 = vsel %vm154, %v138, 0
    %v306 = vsel %vm154, %v139, 0
    %v309 = vsel %vm154, %v140, 0
    %v312 = vsel %vm154, %v141, 0
    %v315 = vsel %vm154, %v142, 0
    %v318 = vsel %vm154, %v143, 0
    %v321 = vsel %vm154, %v144, 0
    %v324 = vsel %vm154, %v145, 0
    %v327 = vsel %vm154, %v146, 0
    %v330 = vsel %vm154, %v147, 0
    %v333 = vsel %vm154, %v148, 0
    %v336 = vsel %vm154, %v149, 0
    %v339 = vsel %vm154, %v150, 0
    %v342 = vsel %vm154, %v151, 0
    %v345 = vsel %vm154, %v152, 0
    %347 = vmatprep.subr.mxu0 0.0
    %348 = vmatpush1.msra.mxu0 0.0
    %349 = vmatprep.subr.mxu0 0.0
    %350 = vmatpush1.msra.mxu0 0.0
    %351 = vmatprep.subr.mxu0 0.0
    %352 = vmatpush1.msra.mxu0 0.0
    %353 = vmatprep.subr.mxu0 0.0
    %354 = vmatpush1.msra.mxu0 0.0
    %355 = vmatprep.subr.mxu0 0.0
    %356 = vmatpush1.msra.mxu0 0.0
    %357 = vmatprep.subr.mxu0 0.0
    %358 = vmatpush1.msra.mxu0 0.0
    %359 = vmatprep.subr.mxu0 0.0
    %360 = vmatpush1.msra.mxu0 0.0
    %361 = vmatprep.subr.mxu0 0.0
    %362 = vmatpush1.msra.mxu0 0.0
    %363 = vmatprep.subr.mxu0 0.0
    %364 = vmatpush1.msra.mxu0 0.0
    %365 = vmatprep.subr.mxu0 0.0
    %366 = vmatpush1.msra.mxu0 0.0
    %367 = vmatprep.subr.mxu0 0.0
    %368 = vmatpush1.msra.mxu0 0.0
    %369 = vmatprep.subr.mxu0 0.0
    %370 = vmatpush1.msra.mxu0 0.0
    %371 = vmatprep.subr.mxu0 0.0
    %372 = vmatpush1.msra.mxu0 0.0
    %373 = vmatprep.subr.mxu0 0.0
    %374 = vmatpush1.msra.mxu0 0.0
    %375 = vmatprep.subr.mxu0 0.0
    %376 = vmatpush1.msra.mxu0 0.0
    %377 = vmatprep.subr.mxu0 0.0
    %378 = vmatpush1.msra.mxu0 %v153
    %379 = vmatprep.subr.mxu0 0.0
    %380 = vmatpush2.msra.mxu0 0.0
    %381 = vmatprep.subr.mxu0 0.0
    %382 = vmatpush2.msra.mxu0 0.0
    %383 = vmatprep.subr.mxu0 0.0
    %384 = vmatpush2.msra.mxu0 0.0
    %385 = vmatprep.subr.mxu0 0.0
    %386 = vmatpush2.msra.mxu0 0.0
    %387 = vmatprep.subr.mxu0 0.0
    %388 = vmatpush2.msra.mxu0 0.0
    %389 = vmatprep.subr.mxu0 0.0
    %390 = vmatpush2.msra.mxu0 0.0
    %391 = vmatprep.subr.mxu0 0.0
    %392 = vmatpush2.msra.mxu0 0.0
    %393 = vmatprep.subr.mxu0 0.0
    %394 = vmatpush2.msra.mxu0 0.0
    %395 = vmatprep.subr.mxu0 0.0
    %396 = vmatpush2.msra.mxu0 0.0
    %397 = vmatprep.subr.mxu0 0.0
    %398 = vmatpush2.msra.mxu0 0.0
    %399 = vmatprep.subr.mxu0 0.0
    %400 = vmatpush2.msra.mxu0 0.0
    %401 = vmatprep.subr.mxu0 0.0
    %402 = vmatpush2.msra.mxu0 0.0
    %403 = vmatprep.subr.mxu0 0.0
    %404 = vmatpush2.msra.mxu0 0.0
    %405 = vmatprep.subr.mxu0 0.0
    %406 = vmatpush2.msra.mxu0 0.0
    %407 = vmatprep.subr.mxu0 0.0
    %408 = vmatpush2.msra.mxu0 0.0
    %409 = vmatprep.subr.mxu0 0.0
    %410 = vmatpush2.msra.mxu0 0.0
    %411 = vmatprep.mubr.f32.mxu0 0.0
    %412 = vmatmul.mubr.f32.gmra.mxu0 %v156
    %v413 = vpop.f32.mrf.mxu0
    %v414 = vadd.f32 0.0, %v413
    %v415 = vpop.f32.mrf.mxu0
    %416 = vmatprep.mubr.f32.mxu0 0.0
    %417 = vmatmul.mubr.f32.gmra.mxu0 %v159
    %v418 = vpop.f32.mrf.mxu0
    %v419 = vadd.f32 0.0, %v418
    %v420 = vpop.f32.mrf.mxu0
    %421 = vmatprep.mubr.f32.mxu0 0.0
    %422 = vmatmul.mubr.f32.gmra.mxu0 %v162
    %v423 = vpop.f32.mrf.mxu0
    %v424 = vadd.f32 0.0, %v423
    %v425 = vpop.f32.mrf.mxu0
    %426 = vmatprep.mubr.f32.mxu0 0.0
    %427 = vmatmul.mubr.f32.gmra.mxu0 %v165
    %v428 = vpop.f32.mrf.mxu0
    %v429 = vadd.f32 0.0, %v428
    %v430 = vpop.f32.mrf.mxu0
    %431 = vmatprep.mubr.f32.mxu0 0.0
    %432 = vmatmul.mubr.f32.gmra.mxu0 %v168
    %v433 = vpop.f32.mrf.mxu0
    %v434 = vadd.f32 0.0, %v433
    %v435 = vpop.f32.mrf.mxu0
    %436 = vmatprep.mubr.f32.mxu0 0.0
    %437 = vmatmul.mubr.f32.gmra.mxu0 %v171
    %v438 = vpop.f32.mrf.mxu0
    %v439 = vadd.f32 0.0, %v438
    %v440 = vpop.f32.mrf.mxu0
    %441 = vmatprep.mubr.f32.mxu0 0.0
    %442 = vmatmul.mubr.f32.gmra.mxu0 %v174
    %v443 = vpop.f32.mrf.mxu0
    %v444 = vadd.f32 0.0, %v443
    %v445 = vpop.f32.mrf.mxu0
    %446 = vmatprep.mubr.f32.mxu0 0.0
    %447 = vmatmul.mubr.f32.gmra.mxu0 %v177
    %v448 = vpop.f32.mrf.mxu0
    %v449 = vadd.f32 0.0, %v448
    %v450 = vpop.f32.mrf.mxu0
    %451 = vmatprep.mubr.f32.mxu0 0.0
    %452 = vmatmul.mubr.f32.gmra.mxu0 %v180
    %v453 = vpop.f32.mrf.mxu0
    %v454 = vadd.f32 0.0, %v453
    %v455 = vpop.f32.mrf.mxu0
    %456 = vmatprep.mubr.f32.mxu0 0.0
    %457 = vmatmul.mubr.f32.gmra.mxu0 %v183
    %v458 = vpop.f32.mrf.mxu0
    %v459 = vadd.f32 0.0, %v458
    %v460 = vpop.f32.mrf.mxu0
    %461 = vmatprep.mubr.f32.mxu0 0.0
    %462 = vmatmul.mubr.f32.gmra.mxu0 %v186
    %v463 = vpop.f32.mrf.mxu0
    %v464 = vadd.f32 0.0, %v463
    %v465 = vpop.f32.mrf.mxu0
    %466 = vmatprep.mubr.f32.mxu0 0.0
    %467 = vmatmul.mubr.f32.gmra.mxu0 %v189
    %v468 = vpop.f32.mrf.mxu0
    %v469 = vadd.f32 0.0, %v468
    %v470 = vpop.f32.mrf.mxu0
    %471 = vmatprep.mubr.f32.mxu0 0.0
    %472 = vmatmul.mubr.f32.gmra.mxu0 %v192
    %v473 = vpop.f32.mrf.mxu0
    %v474 = vadd.f32 0.0, %v473
    %v475 = vpop.f32.mrf.mxu0
    %476 = vmatprep.mubr.f32.mxu0 0.0
    %477 = vmatmul.mubr.f32.gmra.mxu0 %v195
    %v478 = vpop.f32.mrf.mxu0
    %v479 = vadd.f32 0.0, %v478
    %v480 = vpop.f32.mrf.mxu0
    %481 = vmatprep.mubr.f32.mxu0 0.0
    %482 = vmatmul.mubr.f32.gmra.mxu0 %v198
    %v483 = vpop.f32.mrf.mxu0
    %v484 = vadd.f32 0.0, %v483
    %v485 = vpop.f32.mrf.mxu0
    %486 = vmatprep.mubr.f32.mxu0 0.0
    %487 = vmatmul.mubr.f32.gmra.mxu0 %v201
    %v488 = vpop.f32.mrf.mxu0
    %v489 = vadd.f32 0.0, %v488
    %v490 = vpop.f32.mrf.mxu0
    %491 = vmatprep.mubr.f32.mxu0 0.0
    %492 = vmatmul.mubr.f32.gmra.mxu0 %v204
    %v493 = vpop.f32.mrf.mxu0
    %v494 = vadd.f32 0.0, %v493
    %v495 = vpop.f32.mrf.mxu0
    %496 = vmatprep.mubr.f32.mxu0 0.0
    %497 = vmatmul.mubr.f32.gmra.mxu0 %v207
    %v498 = vpop.f32.mrf.mxu0
    %v499 = vadd.f32 0.0, %v498
    %v500 = vpop.f32.mrf.mxu0
    %501 = vmatprep.mubr.f32.mxu0 0.0
    %502 = vmatmul.mubr.f32.gmra.mxu0 %v210
    %v503 = vpop.f32.mrf.mxu0
    %v504 = vadd.f32 0.0, %v503
    %v505 = vpop.f32.mrf.mxu0
    %506 = vmatprep.mubr.f32.mxu0 0.0
    %507 = vmatmul.mubr.f32.gmra.mxu0 %v213
    %v508 = vpop.f32.mrf.mxu0
    %v509 = vadd.f32 0.0, %v508
    %v510 = vpop.f32.mrf.mxu0
    %511 = vmatprep.mubr.f32.mxu0 0.0
    %512 = vmatmul.mubr.f32.gmra.mxu0 %v216
    %v513 = vpop.f32.mrf.mxu0
    %v514 = vadd.f32 0.0, %v513
    %v515 = vpop.f32.mrf.mxu0
    %516 = vmatprep.mubr.f32.mxu0 0.0
    %517 = vmatmul.mubr.f32.gmra.mxu0 %v219
    %v518 = vpop.f32.mrf.mxu0
    %v519 = vadd.f32 0.0, %v518
    %v520 = vpop.f32.mrf.mxu0
    %521 = vmatprep.mubr.f32.mxu0 0.0
    %522 = vmatmul.mubr.f32.gmra.mxu0 %v222
    %v523 = vpop.f32.mrf.mxu0
    %v524 = vadd.f32 0.0, %v523
    %v525 = vpop.f32.mrf.mxu0
    %526 = vmatprep.mubr.f32.mxu0 0.0
    %527 = vmatmul.mubr.f32.gmra.mxu0 %v225
    %v528 = vpop.f32.mrf.mxu0
    %v529 = vadd.f32 0.0, %v528
    %v530 = vpop.f32.mrf.mxu0
    %531 = vmatprep.mubr.f32.mxu0 0.0
    %532 = vmatmul.mubr.f32.gmra.mxu0 %v228
    %v533 = vpop.f32.mrf.mxu0
    %v534 = vadd.f32 0.0, %v533
    %v535 = vpop.f32.mrf.mxu0
    %536 = vmatprep.mubr.f32.mxu0 0.0
    %537 = vmatmul.mubr.f32.gmra.mxu0 %v231
    %v538 = vpop.f32.mrf.mxu0
    %v539 = vadd.f32 0.0, %v538
    %v540 = vpop.f32.mrf.mxu0
    %541 = vmatprep.mubr.f32.mxu0 0.0
    %542 = vmatmul.mubr.f32.gmra.mxu0 %v234
    %v543 = vpop.f32.mrf.mxu0
    %v544 = vadd.f32 0.0, %v543
    %v545 = vpop.f32.mrf.mxu0
    %546 = vmatprep.mubr.f32.mxu0 0.0
    %547 = vmatmul.mubr.f32.gmra.mxu0 %v237
    %v548 = vpop.f32.mrf.mxu0
    %v549 = vadd.f32 0.0, %v548
    %v550 = vpop.f32.mrf.mxu0
    %551 = vmatprep.mubr.f32.mxu0 0.0
    %552 = vmatmul.mubr.f32.gmra.mxu0 %v240
    %v553 = vpop.f32.mrf.mxu0
    %v554 = vadd.f32 0.0, %v553
    %v555 = vpop.f32.mrf.mxu0
    %556 = vmatprep.mubr.f32.mxu0 0.0
    %557 = vmatmul.mubr.f32.gmra.mxu0 %v243
    %v558 = vpop.f32.mrf.mxu0
    %v559 = vadd.f32 0.0, %v558
    %v560 = vpop.f32.mrf.mxu0
    %561 = vmatprep.mubr.f32.mxu0 0.0
    %562 = vmatmul.mubr.f32.gmra.mxu0 %v246
    %v563 = vpop.f32.mrf.mxu0
    %v564 = vadd.f32 0.0, %v563
    %v565 = vpop.f32.mrf.mxu0
    %566 = vmatprep.mubr.f32.mxu0 0.0
    %567 = vmatmul.mubr.f32.gmra.mxu0 %v249
    %v568 = vpop.f32.mrf.mxu0
    %v569 = vadd.f32 0.0, %v568
    %v570 = vpop.f32.mrf.mxu0
    %571 = vmatprep.mubr.f32.mxu0 0.0
    %572 = vmatmul.mubr.f32.gmra.mxu0 %v252
    %v573 = vpop.f32.mrf.mxu0
    %v574 = vadd.f32 0.0, %v573
    %v575 = vpop.f32.mrf.mxu0
    %576 = vmatprep.mubr.f32.mxu0 0.0
    %577 = vmatmul.mubr.f32.gmra.mxu0 %v255
    %v578 = vpop.f32.mrf.mxu0
    %v579 = vadd.f32 0.0, %v578
    %v580 = vpop.f32.mrf.mxu0
    %581 = vmatprep.mubr.f32.mxu0 0.0
    %582 = vmatmul.mubr.f32.gmra.mxu0 %v258
    %v583 = vpop.f32.mrf.mxu0
    %v584 = vadd.f32 0.0, %v583
    %v585 = vpop.f32.mrf.mxu0
    %586 = vmatprep.mubr.f32.mxu0 0.0
    %587 = vmatmul.mubr.f32.gmra.mxu0 %v261
    %v588 = vpop.f32.mrf.mxu0
    %v589 = vadd.f32 0.0, %v588
    %v590 = vpop.f32.mrf.mxu0
    %591 = vmatprep.mubr.f32.mxu0 0.0
    %592 = vmatmul.mubr.f32.gmra.mxu0 %v264
    %v593 = vpop.f32.mrf.mxu0
    %v594 = vadd.f32 0.0, %v593
    %v595 = vpop.f32.mrf.mxu0
    %596 = vmatprep.mubr.f32.mxu0 0.0
    %597 = vmatmul.mubr.f32.gmra.mxu0 %v267
    %v598 = vpop.f32.mrf.mxu0
    %v599 = vadd.f32 0.0, %v598
    %v600 = vpop.f32.mrf.mxu0
    %601 = vmatprep.mubr.f32.mxu0 0.0
    %602 = vmatmul.mubr.f32.gmra.mxu0 %v270
    %v603 = vpop.f32.mrf.mxu0
    %v604 = vadd.f32 0.0, %v603
    %v605 = vpop.f32.mrf.mxu0
    %606 = vmatprep.mubr.f32.mxu0 0.0
    %607 = vmatmul.mubr.f32.gmra.mxu0 %v273
    %v608 = vpop.f32.mrf.mxu0
    %v609 = vadd.f32 0.0, %v608
    %v610 = vpop.f32.mrf.mxu0
    %611 = vmatprep.mubr.f32.mxu0 0.0
    %612 = vmatmul.mubr.f32.gmra.mxu0 %v276
    %v613 = vpop.f32.mrf.mxu0
    %v614 = vadd.f32 0.0, %v613
    %v615 = vpop.f32.mrf.mxu0
    %616 = vmatprep.mubr.f32.mxu0 0.0
    %617 = vmatmul.mubr.f32.gmra.mxu0 %v279
    %v618 = vpop.f32.mrf.mxu0
    %v619 = vadd.f32 0.0, %v618
    %v620 = vpop.f32.mrf.mxu0
    %621 = vmatprep.mubr.f32.mxu0 0.0
    %622 = vmatmul.mubr.f32.gmra.mxu0 %v282
    %v623 = vpop.f32.mrf.mxu0
    %v624 = vadd.f32 0.0, %v623
    %v625 = vpop.f32.mrf.mxu0
    %626 = vmatprep.mubr.f32.mxu0 0.0
    %627 = vmatmul.mubr.f32.gmra.mxu0 %v285
    %v628 = vpop.f32.mrf.mxu0
    %v629 = vadd.f32 0.0, %v628
    %v630 = vpop.f32.mrf.mxu0
    %631 = vmatprep.mubr.f32.mxu0 0.0
    %632 = vmatmul.mubr.f32.gmra.mxu0 %v288
    %v633 = vpop.f32.mrf.mxu0
    %v634 = vadd.f32 0.0, %v633
    %v635 = vpop.f32.mrf.mxu0
    %636 = vmatprep.mubr.f32.mxu0 0.0
    %637 = vmatmul.mubr.f32.gmra.mxu0 %v291
    %v638 = vpop.f32.mrf.mxu0
    %v639 = vadd.f32 0.0, %v638
    %v640 = vpop.f32.mrf.mxu0
    %641 = vmatprep.mubr.f32.mxu0 0.0
    %642 = vmatmul.mubr.f32.gmra.mxu0 %v294
    %v643 = vpop.f32.mrf.mxu0
    %v644 = vadd.f32 0.0, %v643
    %v645 = vpop.f32.mrf.mxu0
    %646 = vmatprep.mubr.f32.mxu0 0.0
    %647 = vmatmul.mubr.f32.gmra.mxu0 %v297
    %v648 = vpop.f32.mrf.mxu0
    %v649 = vadd.f32 0.0, %v648
    %v650 = vpop.f32.mrf.mxu0
    %651 = vmatprep.mubr.f32.mxu0 0.0
    %652 = vmatmul.mubr.f32.gmra.mxu0 %v300
    %v653 = vpop.f32.mrf.mxu0
    %v654 = vadd.f32 0.0, %v653
    %v655 = vpop.f32.mrf.mxu0
    %656 = vmatprep.mubr.f32.mxu0 0.0
    %657 = vmatmul.mubr.f32.gmra.mxu0 %v303
    %v658 = vpop.f32.mrf.mxu0
    %v659 = vadd.f32 0.0, %v658
    %v660 = vpop.f32.mrf.mxu0
    %661 = vmatprep.mubr.f32.mxu0 0.0
    %662 = vmatmul.mubr.f32.gmra.mxu0 %v306
    %v663 = vpop.f32.mrf.mxu0
    %v664 = vadd.f32 0.0, %v663
    %v665 = vpop.f32.mrf.mxu0
    %666 = vmatprep.mubr.f32.mxu0 0.0
    %667 = vmatmul.mubr.f32.gmra.mxu0 %v309
    %v668 = vpop.f32.mrf.mxu0
    %v669 = vadd.f32 0.0, %v668
    %v670 = vpop.f32.mrf.mxu0
    %671 = vmatprep.mubr.f32.mxu0 0.0
    %672 = vmatmul.mubr.f32.gmra.mxu0 %v312
    %v673 = vpop.f32.mrf.mxu0
    %v674 = vadd.f32 0.0, %v673
    %v675 = vpop.f32.mrf.mxu0
    %676 = vmatprep.mubr.f32.mxu0 0.0
    %677 = vmatmul.mubr.f32.gmra.mxu0 %v315
    %v678 = vpop.f32.mrf.mxu0
    %v679 = vadd.f32 0.0, %v678
    %v680 = vpop.f32.mrf.mxu0
    %681 = vmatprep.mubr.f32.mxu0 0.0
    %682 = vmatmul.mubr.f32.gmra.mxu0 %v318
    %v683 = vpop.f32.mrf.mxu0
    %v684 = vadd.f32 0.0, %v683
    %v685 = vpop.f32.mrf.mxu0
    %686 = vmatprep.mubr.f32.mxu0 0.0
    %687 = vmatmul.mubr.f32.gmra.mxu0 %v321
    %v688 = vpop.f32.mrf.mxu0
    %v689 = vadd.f32 0.0, %v688
    %v690 = vpop.f32.mrf.mxu0
    %691 = vmatprep.mubr.f32.mxu0 0.0
    %692 = vmatmul.mubr.f32.gmra.mxu0 %v324
    %v693 = vpop.f32.mrf.mxu0
    %v694 = vadd.f32 0.0, %v693
    %v695 = vpop.f32.mrf.mxu0
    %696 = vmatprep.mubr.f32.mxu0 0.0
    %697 = vmatmul.mubr.f32.gmra.mxu0 %v327
    %v698 = vpop.f32.mrf.mxu0
    %v699 = vadd.f32 0.0, %v698
    %v700 = vpop.f32.mrf.mxu0
    %701 = vmatprep.mubr.f32.mxu0 0.0
    %702 = vmatmul.mubr.f32.gmra.mxu0 %v330
    %v703 = vpop.f32.mrf.mxu0
    %v704 = vadd.f32 0.0, %v703
    %v705 = vpop.f32.mrf.mxu0
    %706 = vmatprep.mubr.f32.mxu0 0.0
    %707 = vmatmul.mubr.f32.gmra.mxu0 %v333
    %v708 = vpop.f32.mrf.mxu0
    %v709 = vadd.f32 0.0, %v708
    %v710 = vpop.f32.mrf.mxu0
    %711 = vmatprep.mubr.f32.mxu0 0.0
    %712 = vmatmul.mubr.f32.gmra.mxu0 %v336
    %v713 = vpop.f32.mrf.mxu0
    %v714 = vadd.f32 0.0, %v713
    %v715 = vpop.f32.mrf.mxu0
    %716 = vmatprep.mubr.f32.mxu0 0.0
    %717 = vmatmul.mubr.f32.gmra.mxu0 %v339
    %v718 = vpop.f32.mrf.mxu0
    %v719 = vadd.f32 0.0, %v718
    %v720 = vpop.f32.mrf.mxu0
    %721 = vmatprep.mubr.f32.mxu0 0.0
    %722 = vmatmul.mubr.f32.gmra.mxu0 %v342
    %v723 = vpop.f32.mrf.mxu0
    %v724 = vadd.f32 0.0, %v723
    %v725 = vpop.f32.mrf.mxu0
    %726 = vmatprep.mubr.f32.mxu0 0.0
    %727 = vmatmul.mubr.f32.gmra.mxu0 %v345
    %v728 = vpop.f32.mrf.mxu0
    %v729 = vadd.f32 0.0, %v728
    %v730 = vpop.f32.mrf.mxu0
    %731 = vdwg.mxu0
    %v733 = vsel %vm154, %v24, 0
    %v736 = vsel %vm154, %v25, 0
    %v739 = vsel %vm154, %v26, 0
    %v742 = vsel %vm154, %v27, 0
    %v745 = vsel %vm154, %v28, 0
    %v748 = vsel %vm154, %v29, 0
    %v751 = vsel %vm154, %v30, 0
    %v754 = vsel %vm154, %v31, 0
    %v757 = vsel %vm154, %v32, 0
    %v760 = vsel %vm154, %v33, 0
    %v763 = vsel %vm154, %v34, 0
    %v766 = vsel %vm154, %v35, 0
    %v769 = vsel %vm154, %v36, 0
    %v772 = vsel %vm154, %v37, 0
    %v775 = vsel %vm154, %v38, 0
    %v778 = vsel %vm154, %v39, 0
    %v781 = vsel %vm154, %v40, 0
    %v784 = vsel %vm154, %v41, 0
    %v787 = vsel %vm154, %v42, 0
    %v790 = vsel %vm154, %v43, 0
    %v793 = vsel %vm154, %v44, 0
    %v796 = vsel %vm154, %v45, 0
    %v799 = vsel %vm154, %v46, 0
    %v802 = vsel %vm154, %v47, 0
    %v805 = vsel %vm154, %v48, 0
    %v808 = vsel %vm154, %v49, 0
    %v811 = vsel %vm154, %v50, 0
    %v814 = vsel %vm154, %v51, 0
    %v817 = vsel %vm154, %v52, 0
    %v820 = vsel %vm154, %v53, 0
    %v823 = vsel %vm154, %v54, 0
    %v826 = vsel %vm154, %v55, 0
    %v829 = vsel %vm154, %v56, 0
    %v832 = vsel %vm154, %v57, 0
    %v835 = vsel %vm154, %v58, 0
    %v838 = vsel %vm154, %v59, 0
    %v841 = vsel %vm154, %v60, 0
    %v844 = vsel %vm154, %v61, 0
    %v847 = vsel %vm154, %v62, 0
    %v850 = vsel %vm154, %v63, 0
    %v853 = vsel %vm154, %v64, 0
    %v856 = vsel %vm154, %v65, 0
    %v859 = vsel %vm154, %v66, 0
    %v862 = vsel %vm154, %v67, 0
    %v865 = vsel %vm154, %v68, 0
    %v868 = vsel %vm154, %v69, 0
    %v871 = vsel %vm154, %v70, 0
    %v874 = vsel %vm154, %v71, 0
    %v877 = vsel %vm154, %v72, 0
    %v880 = vsel %vm154, %v73, 0
    %v883 = vsel %vm154, %v74, 0
    %v886 = vsel %vm154, %v75, 0
    %v889 = vsel %vm154, %v76, 0
    %v892 = vsel %vm154, %v77, 0
    %v895 = vsel %vm154, %v78, 0
    %v898 = vsel %vm154, %v79, 0
    %v901 = vsel %vm154, %v80, 0
    %v904 = vsel %vm154, %v81, 0
    %v907 = vsel %vm154, %v82, 0
    %v910 = vsel %vm154, %v83, 0
    %v913 = vsel %vm154, %v84, 0
    %v916 = vsel %vm154, %v85, 0
    %v919 = vsel %vm154, %v86, 0
    %v922 = vsel %vm154, %v87, 0
    %924 = vmatprep.subr.mxu0 0.0
    %925 = vmatpush1.msra.mxu0 0.0
    %926 = vmatprep.subr.mxu0 0.0
    %927 = vmatpush1.msra.mxu0 0.0
    %928 = vmatprep.subr.mxu0 0.0
    %929 = vmatpush1.msra.mxu0 0.0
    %930 = vmatprep.subr.mxu0 0.0
    %931 = vmatpush1.msra.mxu0 0.0
    %932 = vmatprep.subr.mxu0 0.0
    %933 = vmatpush1.msra.mxu0 0.0
    %934 = vmatprep.subr.mxu0 0.0
    %935 = vmatpush1.msra.mxu0 0.0
    %936 = vmatprep.subr.mxu0 0.0
    %937 = vmatpush1.msra.mxu0 0.0
    %938 = vmatprep.subr.mxu0 0.0
    %939 = vmatpush1.msra.mxu0 0.0
    %940 = vmatprep.subr.mxu0 0.0
    %941 = vmatpush1.msra.mxu0 0.0
    %942 = vmatprep.subr.mxu0 0.0
    %943 = vmatpush1.msra.mxu0 0.0
    %944 = vmatprep.subr.mxu0 0.0
    %945 = vmatpush1.msra.mxu0 0.0
    %946 = vmatprep.subr.mxu0 0.0
    %947 = vmatpush1.msra.mxu0 0.0
    %948 = vmatprep.subr.mxu0 0.0
    %949 = vmatpush1.msra.mxu0 0.0
    %950 = vmatprep.subr.mxu0 0.0
    %951 = vmatpush1.msra.mxu0 0.0
    %952 = vmatprep.subr.mxu0 0.0
    %953 = vmatpush1.msra.mxu0 0.0
    %954 = vmatprep.subr.mxu0 0.0
    %955 = vmatpush1.msra.mxu0 %v88
    %956 = vmatprep.subr.mxu0 0.0
    %957 = vmatpush2.msra.mxu0 0.0
    %958 = vmatprep.subr.mxu0 0.0
    %959 = vmatpush2.msra.mxu0 0.0
    %960 = vmatprep.subr.mxu0 0.0
    %961 = vmatpush2.msra.mxu0 0.0
    %962 = vmatprep.subr.mxu0 0.0
    %963 = vmatpush2.msra.mxu0 0.0
    %964 = vmatprep.subr.mxu0 0.0
    %965 = vmatpush2.msra.mxu0 0.0
    %966 = vmatprep.subr.mxu0 0.0
    %967 = vmatpush2.msra.mxu0 0.0
    %968 = vmatprep.subr.mxu0 0.0
    %969 = vmatpush2.msra.mxu0 0.0
    %970 = vmatprep.subr.mxu0 0.0
    %971 = vmatpush2.msra.mxu0 0.0
    %972 = vmatprep.subr.mxu0 0.0
    %973 = vmatpush2.msra.mxu0 0.0
    %974 = vmatprep.subr.mxu0 0.0
    %975 = vmatpush2.msra.mxu0 0.0
    %976 = vmatprep.subr.mxu0 0.0
    %977 = vmatpush2.msra.mxu0 0.0
    %978 = vmatprep.subr.mxu0 0.0
    %979 = vmatpush2.msra.mxu0 0.0
    %980 = vmatprep.subr.mxu0 0.0
    %981 = vmatpush2.msra.mxu0 0.0
    %982 = vmatprep.subr.mxu0 0.0
    %983 = vmatpush2.msra.mxu0 0.0
    %984 = vmatprep.subr.mxu0 0.0
    %985 = vmatpush2.msra.mxu0 0.0
    %986 = vmatprep.subr.mxu0 0.0
    %987 = vmatpush2.msra.mxu0 0.0
    %988 = vmatprep.mubr.f32.mxu0 0.0
    %989 = vmatmul.mubr.f32.gmra.mxu0 %v733
    %v990 = vpop.f32.mrf.mxu0
    %v991 = vadd.f32 %v414, %v990
    %v992 = vpop.f32.mrf.mxu0
    %993 = vmatprep.mubr.f32.mxu0 0.0
    %994 = vmatmul.mubr.f32.gmra.mxu0 %v736
    %v995 = vpop.f32.mrf.mxu0
    %v996 = vadd.f32 %v419, %v995
    %v997 = vpop.f32.mrf.mxu0
    %998 = vmatprep.mubr.f32.mxu0 0.0
    %999 = vmatmul.mubr.f32.gmra.mxu0 %v739
    %v1000 = vpop.f32.mrf.mxu0
    %v1001 = vadd.f32 %v424, %v1000
    %v1002 = vpop.f32.mrf.mxu0
    %1003 = vmatprep.mubr.f32.mxu0 0.0
    %1004 = vmatmul.mubr.f32.gmra.mxu0 %v742
    %v1005 = vpop.f32.mrf.mxu0
    %v1006 = vadd.f32 %v429, %v1005
    %v1007 = vpop.f32.mrf.mxu0
    %1008 = vmatprep.mubr.f32.mxu0 0.0
    %1009 = vmatmul.mubr.f32.gmra.mxu0 %v745
    %v1010 = vpop.f32.mrf.mxu0
    %v1011 = vadd.f32 %v434, %v1010
    %v1012 = vpop.f32.mrf.mxu0
    %1013 = vmatprep.mubr.f32.mxu0 0.0
    %1014 = vmatmul.mubr.f32.gmra.mxu0 %v748
    %v1015 = vpop.f32.mrf.mxu0
    %v1016 = vadd.f32 %v439, %v1015
    %v1017 = vpop.f32.mrf.mxu0
    %1018 = vmatprep.mubr.f32.mxu0 0.0
    %1019 = vmatmul.mubr.f32.gmra.mxu0 %v751
    %v1020 = vpop.f32.mrf.mxu0
    %v1021 = vadd.f32 %v444, %v1020
    %v1022 = vpop.f32.mrf.mxu0
    %1023 = vmatprep.mubr.f32.mxu0 0.0
    %1024 = vmatmul.mubr.f32.gmra.mxu0 %v754
    %v1025 = vpop.f32.mrf.mxu0
    %v1026 = vadd.f32 %v449, %v1025
    %v1027 = vpop.f32.mrf.mxu0
    %1028 = vmatprep.mubr.f32.mxu0 0.0
    %1029 = vmatmul.mubr.f32.gmra.mxu0 %v757
    %v1030 = vpop.f32.mrf.mxu0
    %v1031 = vadd.f32 %v454, %v1030
    %v1032 = vpop.f32.mrf.mxu0
    %1033 = vmatprep.mubr.f32.mxu0 0.0
    %1034 = vmatmul.mubr.f32.gmra.mxu0 %v760
    %v1035 = vpop.f32.mrf.mxu0
    %v1036 = vadd.f32 %v459, %v1035
    %v1037 = vpop.f32.mrf.mxu0
    %1038 = vmatprep.mubr.f32.mxu0 0.0
    %1039 = vmatmul.mubr.f32.gmra.mxu0 %v763
    %v1040 = vpop.f32.mrf.mxu0
    %v1041 = vadd.f32 %v464, %v1040
    %v1042 = vpop.f32.mrf.mxu0
    %1043 = vmatprep.mubr.f32.mxu0 0.0
    %1044 = vmatmul.mubr.f32.gmra.mxu0 %v766
    %v1045 = vpop.f32.mrf.mxu0
    %v1046 = vadd.f32 %v469, %v1045
    %v1047 = vpop.f32.mrf.mxu0
    %1048 = vmatprep.mubr.f32.mxu0 0.0
    %1049 = vmatmul.mubr.f32.gmra.mxu0 %v769
    %v1050 = vpop.f32.mrf.mxu0
    %v1051 = vadd.f32 %v474, %v1050
    %v1052 = vpop.f32.mrf.mxu0
    %1053 = vmatprep.mubr.f32.mxu0 0.0
    %1054 = vmatmul.mubr.f32.gmra.mxu0 %v772
    %v1055 = vpop.f32.mrf.mxu0
    %v1056 = vadd.f32 %v479, %v1055
    %v1057 = vpop.f32.mrf.mxu0
    %1058 = vmatprep.mubr.f32.mxu0 0.0
    %1059 = vmatmul.mubr.f32.gmra.mxu0 %v775
    %v1060 = vpop.f32.mrf.mxu0
    %v1061 = vadd.f32 %v484, %v1060
    %v1062 = vpop.f32.mrf.mxu0
    %1063 = vmatprep.mubr.f32.mxu0 0.0
    %1064 = vmatmul.mubr.f32.gmra.mxu0 %v778
    %v1065 = vpop.f32.mrf.mxu0
    %v1066 = vadd.f32 %v489, %v1065
    %v1067 = vpop.f32.mrf.mxu0
    %1068 = vmatprep.mubr.f32.mxu0 0.0
    %1069 = vmatmul.mubr.f32.gmra.mxu0 %v781
    %v1070 = vpop.f32.mrf.mxu0
    %v1071 = vadd.f32 %v494, %v1070
    %v1072 = vpop.f32.mrf.mxu0
    %1073 = vmatprep.mubr.f32.mxu0 0.0
    %1074 = vmatmul.mubr.f32.gmra.mxu0 %v784
    %v1075 = vpop.f32.mrf.mxu0
    %v1076 = vadd.f32 %v499, %v1075
    %v1077 = vpop.f32.mrf.mxu0
    %1078 = vmatprep.mubr.f32.mxu0 0.0
    %1079 = vmatmul.mubr.f32.gmra.mxu0 %v787
    %v1080 = vpop.f32.mrf.mxu0
    %v1081 = vadd.f32 %v504, %v1080
    %v1082 = vpop.f32.mrf.mxu0
    %1083 = vmatprep.mubr.f32.mxu0 0.0
    %1084 = vmatmul.mubr.f32.gmra.mxu0 %v790
    %v1085 = vpop.f32.mrf.mxu0
    %v1086 = vadd.f32 %v509, %v1085
    %v1087 = vpop.f32.mrf.mxu0
    %1088 = vmatprep.mubr.f32.mxu0 0.0
    %1089 = vmatmul.mubr.f32.gmra.mxu0 %v793
    %v1090 = vpop.f32.mrf.mxu0
    %v1091 = vadd.f32 %v514, %v1090
    %v1092 = vpop.f32.mrf.mxu0
    %1093 = vmatprep.mubr.f32.mxu0 0.0
    %1094 = vmatmul.mubr.f32.gmra.mxu0 %v796
    %v1095 = vpop.f32.mrf.mxu0
    %v1096 = vadd.f32 %v519, %v1095
    %v1097 = vpop.f32.mrf.mxu0
    %1098 = vmatprep.mubr.f32.mxu0 0.0
    %1099 = vmatmul.mubr.f32.gmra.mxu0 %v799
    %v1100 = vpop.f32.mrf.mxu0
    %v1101 = vadd.f32 %v524, %v1100
    %v1102 = vpop.f32.mrf.mxu0
    %1103 = vmatprep.mubr.f32.mxu0 0.0
    %1104 = vmatmul.mubr.f32.gmra.mxu0 %v802
    %v1105 = vpop.f32.mrf.mxu0
    %v1106 = vadd.f32 %v529, %v1105
    %v1107 = vpop.f32.mrf.mxu0
    %1108 = vmatprep.mubr.f32.mxu0 0.0
    %1109 = vmatmul.mubr.f32.gmra.mxu0 %v805
    %v1110 = vpop.f32.mrf.mxu0
    %v1111 = vadd.f32 %v534, %v1110
    %v1112 = vpop.f32.mrf.mxu0
    %1113 = vmatprep.mubr.f32.mxu0 0.0
    %1114 = vmatmul.mubr.f32.gmra.mxu0 %v808
    %v1115 = vpop.f32.mrf.mxu0
    %v1116 = vadd.f32 %v539, %v1115
    %v1117 = vpop.f32.mrf.mxu0
    %1118 = vmatprep.mubr.f32.mxu0 0.0
    %1119 = vmatmul.mubr.f32.gmra.mxu0 %v811
    %v1120 = vpop.f32.mrf.mxu0
    %v1121 = vadd.f32 %v544, %v1120
    %v1122 = vpop.f32.mrf.mxu0
    %1123 = vmatprep.mubr.f32.mxu0 0.0
    %1124 = vmatmul.mubr.f32.gmra.mxu0 %v814
    %v1125 = vpop.f32.mrf.mxu0
    %v1126 = vadd.f32 %v549, %v1125
    %v1127 = vpop.f32.mrf.mxu0
    %1128 = vmatprep.mubr.f32.mxu0 0.0
    %1129 = vmatmul.mubr.f32.gmra.mxu0 %v817
    %v1130 = vpop.f32.mrf.mxu0
    %v1131 = vadd.f32 %v554, %v1130
    %v1132 = vpop.f32.mrf.mxu0
    %1133 = vmatprep.mubr.f32.mxu0 0.0
    %1134 = vmatmul.mubr.f32.gmra.mxu0 %v820
    %v1135 = vpop.f32.mrf.mxu0
    %v1136 = vadd.f32 %v559, %v1135
    %v1137 = vpop.f32.mrf.mxu0
    %1138 = vmatprep.mubr.f32.mxu0 0.0
    %1139 = vmatmul.mubr.f32.gmra.mxu0 %v823
    %v1140 = vpop.f32.mrf.mxu0
    %v1141 = vadd.f32 %v564, %v1140
    %v1142 = vpop.f32.mrf.mxu0
    %1143 = vmatprep.mubr.f32.mxu0 0.0
    %1144 = vmatmul.mubr.f32.gmra.mxu0 %v826
    %v1145 = vpop.f32.mrf.mxu0
    %v1146 = vadd.f32 %v569, %v1145
    %v1147 = vpop.f32.mrf.mxu0
    %1148 = vmatprep.mubr.f32.mxu0 0.0
    %1149 = vmatmul.mubr.f32.gmra.mxu0 %v829
    %v1150 = vpop.f32.mrf.mxu0
    %v1151 = vadd.f32 %v574, %v1150
    %v1152 = vpop.f32.mrf.mxu0
    %1153 = vmatprep.mubr.f32.mxu0 0.0
    %1154 = vmatmul.mubr.f32.gmra.mxu0 %v832
    %v1155 = vpop.f32.mrf.mxu0
    %v1156 = vadd.f32 %v579, %v1155
    %v1157 = vpop.f32.mrf.mxu0
    %1158 = vmatprep.mubr.f32.mxu0 0.0
    %1159 = vmatmul.mubr.f32.gmra.mxu0 %v835
    %v1160 = vpop.f32.mrf.mxu0
    %v1161 = vadd.f32 %v584, %v1160
    %v1162 = vpop.f32.mrf.mxu0
    %1163 = vmatprep.mubr.f32.mxu0 0.0
    %1164 = vmatmul.mubr.f32.gmra.mxu0 %v838
    %v1165 = vpop.f32.mrf.mxu0
    %v1166 = vadd.f32 %v589, %v1165
    %v1167 = vpop.f32.mrf.mxu0
    %1168 = vmatprep.mubr.f32.mxu0 0.0
    %1169 = vmatmul.mubr.f32.gmra.mxu0 %v841
    %v1170 = vpop.f32.mrf.mxu0
    %v1171 = vadd.f32 %v594, %v1170
    %v1172 = vpop.f32.mrf.mxu0
    %1173 = vmatprep.mubr.f32.mxu0 0.0
    %1174 = vmatmul.mubr.f32.gmra.mxu0 %v844
    %v1175 = vpop.f32.mrf.mxu0
    %v1176 = vadd.f32 %v599, %v1175
    %v1177 = vpop.f32.mrf.mxu0
    %1178 = vmatprep.mubr.f32.mxu0 0.0
    %1179 = vmatmul.mubr.f32.gmra.mxu0 %v847
    %v1180 = vpop.f32.mrf.mxu0
    %v1181 = vadd.f32 %v604, %v1180
    %v1182 = vpop.f32.mrf.mxu0
    %1183 = vmatprep.mubr.f32.mxu0 0.0
    %1184 = vmatmul.mubr.f32.gmra.mxu0 %v850
    %v1185 = vpop.f32.mrf.mxu0
    %v1186 = vadd.f32 %v609, %v1185
    %v1187 = vpop.f32.mrf.mxu0
    %1188 = vmatprep.mubr.f32.mxu0 0.0
    %1189 = vmatmul.mubr.f32.gmra.mxu0 %v853
    %v1190 = vpop.f32.mrf.mxu0
    %v1191 = vadd.f32 %v614, %v1190
    %v1192 = vpop.f32.mrf.mxu0
    %1193 = vmatprep.mubr.f32.mxu0 0.0
    %1194 = vmatmul.mubr.f32.gmra.mxu0 %v856
    %v1195 = vpop.f32.mrf.mxu0
    %v1196 = vadd.f32 %v619, %v1195
    %v1197 = vpop.f32.mrf.mxu0
    %1198 = vmatprep.mubr.f32.mxu0 0.0
    %1199 = vmatmul.mubr.f32.gmra.mxu0 %v859
    %v1200 = vpop.f32.mrf.mxu0
    %v1201 = vadd.f32 %v624, %v1200
    %v1202 = vpop.f32.mrf.mxu0
    %1203 = vmatprep.mubr.f32.mxu0 0.0
    %1204 = vmatmul.mubr.f32.gmra.mxu0 %v862
    %v1205 = vpop.f32.mrf.mxu0
    %v1206 = vadd.f32 %v629, %v1205
    %v1207 = vpop.f32.mrf.mxu0
    %1208 = vmatprep.mubr.f32.mxu0 0.0
    %1209 = vmatmul.mubr.f32.gmra.mxu0 %v865
    %v1210 = vpop.f32.mrf.mxu0
    %v1211 = vadd.f32 %v634, %v1210
    %v1212 = vpop.f32.mrf.mxu0
    %1213 = vmatprep.mubr.f32.mxu0 0.0
    %1214 = vmatmul.mubr.f32.gmra.mxu0 %v868
    %v1215 = vpop.f32.mrf.mxu0
    %v1216 = vadd.f32 %v639, %v1215
    %v1217 = vpop.f32.mrf.mxu0
    %1218 = vmatprep.mubr.f32.mxu0 0.0
    %1219 = vmatmul.mubr.f32.gmra.mxu0 %v871
    %v1220 = vpop.f32.mrf.mxu0
    %v1221 = vadd.f32 %v644, %v1220
    %v1222 = vpop.f32.mrf.mxu0
    %1223 = vmatprep.mubr.f32.mxu0 0.0
    %1224 = vmatmul.mubr.f32.gmra.mxu0 %v874
    %v1225 = vpop.f32.mrf.mxu0
    %v1226 = vadd.f32 %v649, %v1225
    %v1227 = vpop.f32.mrf.mxu0
    %1228 = vmatprep.mubr.f32.mxu0 0.0
    %1229 = vmatmul.mubr.f32.gmra.mxu0 %v877
    %v1230 = vpop.f32.mrf.mxu0
    %v1231 = vadd.f32 %v654, %v1230
    %v1232 = vpop.f32.mrf.mxu0
    %1233 = vmatprep.mubr.f32.mxu0 0.0
    %1234 = vmatmul.mubr.f32.gmra.mxu0 %v880
    %v1235 = vpop.f32.mrf.mxu0
    %v1236 = vadd.f32 %v659, %v1235
    %v1237 = vpop.f32.mrf.mxu0
    %1238 = vmatprep.mubr.f32.mxu0 0.0
    %1239 = vmatmul.mubr.f32.gmra.mxu0 %v883
    %v1240 = vpop.f32.mrf.mxu0
    %v1241 = vadd.f32 %v664, %v1240
    %v1242 = vpop.f32.mrf.mxu0
    %1243 = vmatprep.mubr.f32.mxu0 0.0
    %1244 = vmatmul.mubr.f32.gmra.mxu0 %v886
    %v1245 = vpop.f32.mrf.mxu0
    %v1246 = vadd.f32 %v669, %v1245
    %v1247 = vpop.f32.mrf.mxu0
    %1248 = vmatprep.mubr.f32.mxu0 0.0
    %1249 = vmatmul.mubr.f32.gmra.mxu0 %v889
    %v1250 = vpop.f32.mrf.mxu0
    %v1251 = vadd.f32 %v674, %v1250
    %v1252 = vpop.f32.mrf.mxu0
    %1253 = vmatprep.mubr.f32.mxu0 0.0
    %1254 = vmatmul.mubr.f32.gmra.mxu0 %v892
    %v1255 = vpop.f32.mrf.mxu0
    %v1256 = vadd.f32 %v679, %v1255
    %v1257 = vpop.f32.mrf.mxu0
    %1258 = vmatprep.mubr.f32.mxu0 0.0
    %1259 = vmatmul.mubr.f32.gmra.mxu0 %v895
    %v1260 = vpop.f32.mrf.mxu0
    %v1261 = vadd.f32 %v684, %v1260
    %v1262 = vpop.f32.mrf.mxu0
    %1263 = vmatprep.mubr.f32.mxu0 0.0
    %1264 = vmatmul.mubr.f32.gmra.mxu0 %v898
    %v1265 = vpop.f32.mrf.mxu0
    %v1266 = vadd.f32 %v689, %v1265
    %v1267 = vpop.f32.mrf.mxu0
    %1268 = vmatprep.mubr.f32.mxu0 0.0
    %1269 = vmatmul.mubr.f32.gmra.mxu0 %v901
    %v1270 = vpop.f32.mrf.mxu0
    %v1271 = vadd.f32 %v694, %v1270
    %v1272 = vpop.f32.mrf.mxu0
    %1273 = vmatprep.mubr.f32.mxu0 0.0
    %1274 = vmatmul.mubr.f32.gmra.mxu0 %v904
    %v1275 = vpop.f32.mrf.mxu0
    %v1276 = vadd.f32 %v699, %v1275
    %v1277 = vpop.f32.mrf.mxu0
    %1278 = vmatprep.mubr.f32.mxu0 0.0
    %1279 = vmatmul.mubr.f32.gmra.mxu0 %v907
    %v1280 = vpop.f32.mrf.mxu0
    %v1281 = vadd.f32 %v704, %v1280
    %v1282 = vpop.f32.mrf.mxu0
    %1283 = vmatprep.mubr.f32.mxu0 0.0
    %1284 = vmatmul.mubr.f32.gmra.mxu0 %v910
    %v1285 = vpop.f32.mrf.mxu0
    %v1286 = vadd.f32 %v709, %v1285
    %v1287 = vpop.f32.mrf.mxu0
    %1288 = vmatprep.mubr.f32.mxu0 0.0
    %1289 = vmatmul.mubr.f32.gmra.mxu0 %v913
    %v1290 = vpop.f32.mrf.mxu0
    %v1291 = vadd.f32 %v714, %v1290
    %v1292 = vpop.f32.mrf.mxu0
    %1293 = vmatprep.mubr.f32.mxu0 0.0
    %1294 = vmatmul.mubr.f32.gmra.mxu0 %v916
    %v1295 = vpop.f32.mrf.mxu0
    %v1296 = vadd.f32 %v719, %v1295
    %v1297 = vpop.f32.mrf.mxu0
    %1298 = vmatprep.mubr.f32.mxu0 0.0
    %1299 = vmatmul.mubr.f32.gmra.mxu0 %v919
    %v1300 = vpop.f32.mrf.mxu0
    %v1301 = vadd.f32 %v724, %v1300
    %v1302 = vpop.f32.mrf.mxu0
    %1303 = vmatprep.mubr.f32.mxu0 0.0
    %1304 = vmatmul.mubr.f32.gmra.mxu0 %v922
    %v1305 = vpop.f32.mrf.mxu0
    %v1306 = vadd.f32 %v729, %v1305
    %v1307 = vpop.f32.mrf.mxu0
    %1308 = vdwg.mxu0
    %v1309 = vld [vmem:[%s4] sm:$0x1]
    %v1311 = vlaneseq
    %v1312 = vshrl.u32 %v1311, 7
    %v1313 = vsub.s32 0, %v1312
    %v1314 = vrot.slane %v1309, %v1313
    %v1316 = vmul.f32 %v991, %v1314
    %v1317 = vmul.f32 %v996, %v1314
    %v1318 = vmul.f32 %v1001, %v1314
    %v1319 = vmul.f32 %v1006, %v1314
    %v1320 = vmul.f32 %v1011, %v1314
    %v1321 = vmul.f32 %v1016, %v1314
    %v1322 = vmul.f32 %v1021, %v1314
    %v1323 = vmul.f32 %v1026, %v1314
    %v1324 = vmul.f32 %v1031, %v1314
    %v1325 = vmul.f32 %v1036, %v1314
    %v1326 = vmul.f32 %v1041, %v1314
    %v1327 = vmul.f32 %v1046, %v1314
    %v1328 = vmul.f32 %v1051, %v1314
    %v1329 = vmul.f32 %v1056, %v1314
    %v1330 = vmul.f32 %v1061, %v1314
    %v1331 = vmul.f32 %v1066, %v1314
    %v1332 = vmul.f32 %v1071, %v1314
    %v1333 = vmul.f32 %v1076, %v1314
    %v1334 = vmul.f32 %v1081, %v1314
    %v1335 = vmul.f32 %v1086, %v1314
    %v1336 = vmul.f32 %v1091, %v1314
    %v1337 = vmul.f32 %v1096, %v1314
    %v1338 = vmul.f32 %v1101, %v1314
    %v1339 = vmul.f32 %v1106, %v1314
    %v1340 = vmul.f32 %v1111, %v1314
    %v1341 = vmul.f32 %v1116, %v1314
    %v1342 = vmul.f32 %v1121, %v1314
    %v1343 = vmul.f32 %v1126, %v1314
    %v1344 = vmul.f32 %v1131, %v1314
    %v1345 = vmul.f32 %v1136, %v1314
    %v1346 = vmul.f32 %v1141, %v1314
    %v1347 = vmul.f32 %v1146, %v1314
    %v1348 = vmul.f32 %v1151, %v1314
    %v1349 = vmul.f32 %v1156, %v1314
    %v1350 = vmul.f32 %v1161, %v1314
    %v1351 = vmul.f32 %v1166, %v1314
    %v1352 = vmul.f32 %v1171, %v1314
    %v1353 = vmul.f32 %v1176, %v1314
    %v1354 = vmul.f32 %v1181, %v1314
    %v1355 = vmul.f32 %v1186, %v1314
    %v1356 = vmul.f32 %v1191, %v1314
    %v1357 = vmul.f32 %v1196, %v1314
    %v1358 = vmul.f32 %v1201, %v1314
    %v1359 = vmul.f32 %v1206, %v1314
    %v1360 = vmul.f32 %v1211, %v1314
    %v1361 = vmul.f32 %v1216, %v1314
    %v1362 = vmul.f32 %v1221, %v1314
    %v1363 = vmul.f32 %v1226, %v1314
    %v1364 = vmul.f32 %v1231, %v1314
    %v1365 = vmul.f32 %v1236, %v1314
    %v1366 = vmul.f32 %v1241, %v1314
    %v1367 = vmul.f32 %v1246, %v1314
    %v1368 = vmul.f32 %v1251, %v1314
    %v1369 = vmul.f32 %v1256, %v1314
    %v1370 = vmul.f32 %v1261, %v1314
    %v1371 = vmul.f32 %v1266, %v1314
    %v1372 = vmul.f32 %v1271, %v1314
    %v1373 = vmul.f32 %v1276, %v1314
    %v1374 = vmul.f32 %v1281, %v1314
    %v1375 = vmul.f32 %v1286, %v1314
    %v1376 = vmul.f32 %v1291, %v1314
    %v1377 = vmul.f32 %v1296, %v1314
    %v1378 = vmul.f32 %v1301, %v1314
    %v1379 = vmul.f32 %v1306, %v1314
    %v1380 = vld [vmem:[%s5] sm:$0x1]
    %v1382 = vlaneseq
    %v1383 = vshrl.u32 %v1382, 7
    %v1384 = vsub.s32 0, %v1383
    %v1385 = vrot.slane %v1380, %v1384
    %v1387 = vadd.f32 %v1316, %v1385
    %v1388 = vadd.f32 %v1317, %v1385
    %v1389 = vadd.f32 %v1318, %v1385
    %v1390 = vadd.f32 %v1319, %v1385
    %v1391 = vadd.f32 %v1320, %v1385
    %v1392 = vadd.f32 %v1321, %v1385
    %v1393 = vadd.f32 %v1322, %v1385
    %v1394 = vadd.f32 %v1323, %v1385
    %v1395 = vadd.f32 %v1324, %v1385
    %v1396 = vadd.f32 %v1325, %v1385
    %v1397 = vadd.f32 %v1326, %v1385
    %v1398 = vadd.f32 %v1327, %v1385
    %v1399 = vadd.f32 %v1328, %v1385
    %v1400 = vadd.f32 %v1329, %v1385
    %v1401 = vadd.f32 %v1330, %v1385
    %v1402 = vadd.f32 %v1331, %v1385
    %v1403 = vadd.f32 %v1332, %v1385
    %v1404 = vadd.f32 %v1333, %v1385
    %v1405 = vadd.f32 %v1334, %v1385
    %v1406 = vadd.f32 %v1335, %v1385
    %v1407 = vadd.f32 %v1336, %v1385
    %v1408 = vadd.f32 %v1337, %v1385
    %v1409 = vadd.f32 %v1338, %v1385
    %v1410 = vadd.f32 %v1339, %v1385
    %v1411 = vadd.f32 %v1340, %v1385
    %v1412 = vadd.f32 %v1341, %v1385
    %v1413 = vadd.f32 %v1342, %v1385
    %v1414 = vadd.f32 %v1343, %v1385
    %v1415 = vadd.f32 %v1344, %v1385
    %v1416 = vadd.f32 %v1345, %v1385
    %v1417 = vadd.f32 %v1346, %v1385
    %v1418 = vadd.f32 %v1347, %v1385
    %v1419 = vadd.f32 %v1348, %v1385
    %v1420 = vadd.f32 %v1349, %v1385
    %v1421 = vadd.f32 %v1350, %v1385
    %v1422 = vadd.f32 %v1351, %v1385
    %v1423 = vadd.f32 %v1352, %v1385
    %v1424 = vadd.f32 %v1353, %v1385
    %v1425 = vadd.f32 %v1354, %v1385
    %v1426 = vadd.f32 %v1355, %v1385
    %v1427 = vadd.f32 %v1356, %v1385
    %v1428 = vadd.f32 %v1357, %v1385
    %v1429 = vadd.f32 %v1358, %v1385
    %v1430 = vadd.f32 %v1359, %v1385
    %v1431 = vadd.f32 %v1360, %v1385
    %v1432 = vadd.f32 %v1361, %v1385
    %v1433 = vadd.f32 %v1362, %v1385
    %v1434 = vadd.f32 %v1363, %v1385
    %v1435 = vadd.f32 %v1364, %v1385
    %v1436 = vadd.f32 %v1365, %v1385
    %v1437 = vadd.f32 %v1366, %v1385
    %v1438 = vadd.f32 %v1367, %v1385
    %v1439 = vadd.f32 %v1368, %v1385
    %v1440 = vadd.f32 %v1369, %v1385
    %v1441 = vadd.f32 %v1370, %v1385
    %v1442 = vadd.f32 %v1371, %v1385
    %v1443 = vadd.f32 %v1372, %v1385
    %v1444 = vadd.f32 %v1373, %v1385
    %v1445 = vadd.f32 %v1374, %v1385
    %v1446 = vadd.f32 %v1375, %v1385
    %v1447 = vadd.f32 %v1376, %v1385
    %v1448 = vadd.f32 %v1377, %v1385
    %v1449 = vadd.f32 %v1378, %v1385
    %v1450 = vadd.f32 %v1379, %v1385
    %v1451 = vsub.f32 0.0, %v1387
    %v1452 = vsub.f32 0.0, %v1388
    %v1453 = vsub.f32 0.0, %v1389
    %v1454 = vsub.f32 0.0, %v1390
    %v1455 = vsub.f32 0.0, %v1391
    %v1456 = vsub.f32 0.0, %v1392
    %v1457 = vsub.f32 0.0, %v1393
    %v1458 = vsub.f32 0.0, %v1394
    %v1459 = vsub.f32 0.0, %v1395
    %v1460 = vsub.f32 0.0, %v1396
    %v1461 = vsub.f32 0.0, %v1397
    %v1462 = vsub.f32 0.0, %v1398
    %v1463 = vsub.f32 0.0, %v1399
    %v1464 = vsub.f32 0.0, %v1400
    %v1465 = vsub.f32 0.0, %v1401
    %v1466 = vsub.f32 0.0, %v1402
    %v1467 = vsub.f32 0.0, %v1403
    %v1468 = vsub.f32 0.0, %v1404
    %v1469 = vsub.f32 0.0, %v1405
    %v1470 = vsub.f32 0.0, %v1406
    %v1471 = vsub.f32 0.0, %v1407
    %v1472 = vsub.f32 0.0, %v1408
    %v1473 = vsub.f32 0.0, %v1409
    %v1474 = vsub.f32 0.0, %v1410
    %v1475 = vsub.f32 0.0, %v1411
    %v1476 = vsub.f32 0.0, %v1412
    %v1477 = vsub.f32 0.0, %v1413
    %v1478 = vsub.f32 0.0, %v1414
    %v1479 = vsub.f32 0.0, %v1415
    %v1480 = vsub.f32 0.0, %v1416
    %v1481 = vsub.f32 0.0, %v1417
    %v1482 = vsub.f32 0.0, %v1418
    %v1483 = vsub.f32 0.0, %v1419
    %v1484 = vsub.f32 0.0, %v1420
    %v1485 = vsub.f32 0.0, %v1421
    %v1486 = vsub.f32 0.0, %v1422
    %v1487 = vsub.f32 0.0, %v1423
    %v1488 = vsub.f32 0.0, %v1424
    %v1489 = vsub.f32 0.0, %v1425
    %v1490 = vsub.f32 0.0, %v1426
    %v1491 = vsub.f32 0.0, %v1427
    %v1492 = vsub.f32 0.0, %v1428
    %v1493 = vsub.f32 0.0, %v1429
    %v1494 = vsub.f32 0.0, %v1430
    %v1495 = vsub.f32 0.0, %v1431
    %v1496 = vsub.f32 0.0, %v1432
    %v1497 = vsub.f32 0.0, %v1433
    %v1498 = vsub.f32 0.0, %v1434
    %v1499 = vsub.f32 0.0, %v1435
    %v1500 = vsub.f32 0.0, %v1436
    %v1501 = vsub.f32 0.0, %v1437
    %v1502 = vsub.f32 0.0, %v1438
    %v1503 = vsub.f32 0.0, %v1439
    %v1504 = vsub.f32 0.0, %v1440
    %v1505 = vsub.f32 0.0, %v1441
    %v1506 = vsub.f32 0.0, %v1442
    %v1507 = vsub.f32 0.0, %v1443
    %v1508 = vsub.f32 0.0, %v1444
    %v1509 = vsub.f32 0.0, %v1445
    %v1510 = vsub.f32 0.0, %v1446
    %v1511 = vsub.f32 0.0, %v1447
    %v1512 = vsub.f32 0.0, %v1448
    %v1513 = vsub.f32 0.0, %v1449
    %v1514 = vsub.f32 0.0, %v1450
    %v1515 = vmul.f32 %v1451, 1.442695
    %v1516 = vpow.pop %v1515
    %v1517 = vmul.f32 %v1452, 1.442695
    %v1518 = vpow.pop %v1517
    %v1519 = vmul.f32 %v1453, 1.442695
    %v1520 = vpow.pop %v1519
    %v1521 = vmul.f32 %v1454, 1.442695
    %v1522 = vpow.pop %v1521
    %v1523 = vmul.f32 %v1455, 1.442695
    %v1524 = vpow.pop %v1523
    %v1525 = vmul.f32 %v1456, 1.442695
    %v1526 = vpow.pop %v1525
    %v1527 = vmul.f32 %v1457, 1.442695
    %v1528 = vpow.pop %v1527
    %v1529 = vmul.f32 %v1458, 1.442695
    %v1530 = vpow.pop %v1529
    %v1531 = vmul.f32 %v1459, 1.442695
    %v1532 = vpow.pop %v1531
    %v1533 = vmul.f32 %v1460, 1.442695
    %v1534 = vpow.pop %v1533
    %v1535 = vmul.f32 %v1461, 1.442695
    %v1536 = vpow.pop %v1535
    %v1537 = vmul.f32 %v1462, 1.442695
    %v1538 = vpow.pop %v1537
    %v1539 = vmul.f32 %v1463, 1.442695
    %v1540 = vpow.pop %v1539
    %v1541 = vmul.f32 %v1464, 1.442695
    %v1542 = vpow.pop %v1541
    %v1543 = vmul.f32 %v1465, 1.442695
    %v1544 = vpow.pop %v1543
    %v1545 = vmul.f32 %v1466, 1.442695
    %v1546 = vpow.pop %v1545
    %v1547 = vmul.f32 %v1467, 1.442695
    %v1548 = vpow.pop %v1547
    %v1549 = vmul.f32 %v1468, 1.442695
    %v1550 = vpow.pop %v1549
    %v1551 = vmul.f32 %v1469, 1.442695
    %v1552 = vpow.pop %v1551
    %v1553 = vmul.f32 %v1470, 1.442695
    %v1554 = vpow.pop %v1553
    %v1555 = vmul.f32 %v1471, 1.442695
    %v1556 = vpow.pop %v1555
    %v1557 = vmul.f32 %v1472, 1.442695
    %v1558 = vpow.pop %v1557
    %v1559 = vmul.f32 %v1473, 1.442695
    %v1560 = vpow.pop %v1559
    %v1561 = vmul.f32 %v1474, 1.442695
    %v1562 = vpow.pop %v1561
    %v1563 = vmul.f32 %v1475, 1.442695
    %v1564 = vpow.pop %v1563
    %v1565 = vmul.f32 %v1476, 1.442695
    %v1566 = vpow.pop %v1565
    %v1567 = vmul.f32 %v1477, 1.442695
    %v1568 = vpow.pop %v1567
    %v1569 = vmul.f32 %v1478, 1.442695
    %v1570 = vpow.pop %v1569
    %v1571 = vmul.f32 %v1479, 1.442695
    %v1572 = vpow.pop %v1571
    %v1573 = vmul.f32 %v1480, 1.442695
    %v1574 = vpow.pop %v1573
    %v1575 = vmul.f32 %v1481, 1.442695
    %v1576 = vpow.pop %v1575
    %v1577 = vmul.f32 %v1482, 1.442695
    %v1578 = vpow.pop %v1577
    %v1579 = vmul.f32 %v1483, 1.442695
    %v1580 = vpow.pop %v1579
    %v1581 = vmul.f32 %v1484, 1.442695
    %v1582 = vpow.pop %v1581
    %v1583 = vmul.f32 %v1485, 1.442695
    %v1584 = vpow.pop %v1583
    %v1585 = vmul.f32 %v1486, 1.442695
    %v1586 = vpow.pop %v1585
    %v1587 = vmul.f32 %v1487, 1.442695
    %v1588 = vpow.pop %v1587
    %v1589 = vmul.f32 %v1488, 1.442695
    %v1590 = vpow.pop %v1589
    %v1591 = vmul.f32 %v1489, 1.442695
    %v1592 = vpow.pop %v1591
    %v1593 = vmul.f32 %v1490, 1.442695
    %v1594 = vpow.pop %v1593
    %v1595 = vmul.f32 %v1491, 1.442695
    %v1596 = vpow.pop %v1595
    %v1597 = vmul.f32 %v1492, 1.442695
    %v1598 = vpow.pop %v1597
    %v1599 = vmul.f32 %v1493, 1.442695
    %v1600 = vpow.pop %v1599
    %v1601 = vmul.f32 %v1494, 1.442695
    %v1602 = vpow.pop %v1601
    %v1603 = vmul.f32 %v1495, 1.442695
    %v1604 = vpow.pop %v1603
    %v1605 = vmul.f32 %v1496, 1.442695
    %v1606 = vpow.pop %v1605
    %v1607 = vmul.f32 %v1497, 1.442695
    %v1608 = vpow.pop %v1607
    %v1609 = vmul.f32 %v1498, 1.442695
    %v1610 = vpow.pop %v1609
    %v1611 = vmul.f32 %v1499, 1.442695
    %v1612 = vpow.pop %v1611
    %v1613 = vmul.f32 %v1500, 1.442695
    %v1614 = vpow.pop %v1613
    %v1615 = vmul.f32 %v1501, 1.442695
    %v1616 = vpow.pop %v1615
    %v1617 = vmul.f32 %v1502, 1.442695
    %v1618 = vpow.pop %v1617
    %v1619 = vmul.f32 %v1503, 1.442695
    %v1620 = vpow.pop %v1619
    %v1621 = vmul.f32 %v1504, 1.442695
    %v1622 = vpow.pop %v1621
    %v1623 = vmul.f32 %v1505, 1.442695
    %v1624 = vpow.pop %v1623
    %v1625 = vmul.f32 %v1506, 1.442695
    %v1626 = vpow.pop %v1625
    %v1627 = vmul.f32 %v1507, 1.442695
    %v1628 = vpow.pop %v1627
    %v1629 = vmul.f32 %v1508, 1.442695
    %v1630 = vpow.pop %v1629
    %v1631 = vmul.f32 %v1509, 1.442695
    %v1632 = vpow.pop %v1631
    %v1633 = vmul.f32 %v1510, 1.442695
    %v1634 = vpow.pop %v1633
    %v1635 = vmul.f32 %v1511, 1.442695
    %v1636 = vpow.pop %v1635
    %v1637 = vmul.f32 %v1512, 1.442695
    %v1638 = vpow.pop %v1637
    %v1639 = vmul.f32 %v1513, 1.442695
    %v1640 = vpow.pop %v1639
    %v1641 = vmul.f32 %v1514, 1.442695
    %v1642 = vpow.pop %v1641
    %v1643 = vadd.f32 %v1516, 1.0
    %v1644 = vadd.f32 %v1518, 1.0
    %v1645 = vadd.f32 %v1520, 1.0
    %v1646 = vadd.f32 %v1522, 1.0
    %v1647 = vadd.f32 %v1524, 1.0
    %v1648 = vadd.f32 %v1526, 1.0
    %v1649 = vadd.f32 %v1528, 1.0
    %v1650 = vadd.f32 %v1530, 1.0
    %v1651 = vadd.f32 %v1532, 1.0
    %v1652 = vadd.f32 %v1534, 1.0
    %v1653 = vadd.f32 %v1536, 1.0
    %v1654 = vadd.f32 %v1538, 1.0
    %v1655 = vadd.f32 %v1540, 1.0
    %v1656 = vadd.f32 %v1542, 1.0
    %v1657 = vadd.f32 %v1544, 1.0
    %v1658 = vadd.f32 %v1546, 1.0
    %v1659 = vadd.f32 %v1548, 1.0
    %v1660 = vadd.f32 %v1550, 1.0
    %v1661 = vadd.f32 %v1552, 1.0
    %v1662 = vadd.f32 %v1554, 1.0
    %v1663 = vadd.f32 %v1556, 1.0
    %v1664 = vadd.f32 %v1558, 1.0
    %v1665 = vadd.f32 %v1560, 1.0
    %v1666 = vadd.f32 %v1562, 1.0
    %v1667 = vadd.f32 %v1564, 1.0
    %v1668 = vadd.f32 %v1566, 1.0
    %v1669 = vadd.f32 %v1568, 1.0
    %v1670 = vadd.f32 %v1570, 1.0
    %v1671 = vadd.f32 %v1572, 1.0
    %v1672 = vadd.f32 %v1574, 1.0
    %v1673 = vadd.f32 %v1576, 1.0
    %v1674 = vadd.f32 %v1578, 1.0
    %v1675 = vadd.f32 %v1580, 1.0
    %v1676 = vadd.f32 %v1582, 1.0
    %v1677 = vadd.f32 %v1584, 1.0
    %v1678 = vadd.f32 %v1586, 1.0
    %v1679 = vadd.f32 %v1588, 1.0
    %v1680 = vadd.f32 %v1590, 1.0
    %v1681 = vadd.f32 %v1592, 1.0
    %v1682 = vadd.f32 %v1594, 1.0
    %v1683 = vadd.f32 %v1596, 1.0
    %v1684 = vadd.f32 %v1598, 1.0
    %v1685 = vadd.f32 %v1600, 1.0
    %v1686 = vadd.f32 %v1602, 1.0
    %v1687 = vadd.f32 %v1604, 1.0
    %v1688 = vadd.f32 %v1606, 1.0
    %v1689 = vadd.f32 %v1608, 1.0
    %v1690 = vadd.f32 %v1610, 1.0
    %v1691 = vadd.f32 %v1612, 1.0
    %v1692 = vadd.f32 %v1614, 1.0
    %v1693 = vadd.f32 %v1616, 1.0
    %v1694 = vadd.f32 %v1618, 1.0
    %v1695 = vadd.f32 %v1620, 1.0
    %v1696 = vadd.f32 %v1622, 1.0
    %v1697 = vadd.f32 %v1624, 1.0
    %v1698 = vadd.f32 %v1626, 1.0
    %v1699 = vadd.f32 %v1628, 1.0
    %v1700 = vadd.f32 %v1630, 1.0
    %v1701 = vadd.f32 %v1632, 1.0
    %v1702 = vadd.f32 %v1634, 1.0
    %v1703 = vadd.f32 %v1636, 1.0
    %v1704 = vadd.f32 %v1638, 1.0
    %v1705 = vadd.f32 %v1640, 1.0
    %v1706 = vadd.f32 %v1642, 1.0
    %v1707 = vrcp.pop %v1643
    %v1708 = vrcp.pop %v1644
    %v1709 = vrcp.pop %v1645
    %v1710 = vrcp.pop %v1646
    %v1711 = vrcp.pop %v1647
    %v1712 = vrcp.pop %v1648
    %v1713 = vrcp.pop %v1649
    %v1714 = vrcp.pop %v1650
    %v1715 = vrcp.pop %v1651
    %v1716 = vrcp.pop %v1652
    %v1717 = vrcp.pop %v1653
    %v1718 = vrcp.pop %v1654
    %v1719 = vrcp.pop %v1655
    %v1720 = vrcp.pop %v1656
    %v1721 = vrcp.pop %v1657
    %v1722 = vrcp.pop %v1658
    %v1723 = vrcp.pop %v1659
    %v1724 = vrcp.pop %v1660
    %v1725 = vrcp.pop %v1661
    %v1726 = vrcp.pop %v1662
    %v1727 = vrcp.pop %v1663
    %v1728 = vrcp.pop %v1664
    %v1729 = vrcp.pop %v1665
    %v1730 = vrcp.pop %v1666
    %v1731 = vrcp.pop %v1667
    %v1732 = vrcp.pop %v1668
    %v1733 = vrcp.pop %v1669
    %v1734 = vrcp.pop %v1670
    %v1735 = vrcp.pop %v1671
    %v1736 = vrcp.pop %v1672
    %v1737 = vrcp.pop %v1673
    %v1738 = vrcp.pop %v1674
    %v1739 = vrcp.pop %v1675
    %v1740 = vrcp.pop %v1676
    %v1741 = vrcp.pop %v1677
    %v1742 = vrcp.pop %v1678
    %v1743 = vrcp.pop %v1679
    %v1744 = vrcp.pop %v1680
    %v1745 = vrcp.pop %v1681
    %v1746 = vrcp.pop %v1682
    %v1747 = vrcp.pop %v1683
    %v1748 = vrcp.pop %v1684
    %v1749 = vrcp.pop %v1685
    %v1750 = vrcp.pop %v1686
    %v1751 = vrcp.pop %v1687
    %v1752 = vrcp.pop %v1688
    %v1753 = vrcp.pop %v1689
    %v1754 = vrcp.pop %v1690
    %v1755 = vrcp.pop %v1691
    %v1756 = vrcp.pop %v1692
    %v1757 = vrcp.pop %v1693
    %v1758 = vrcp.pop %v1694
    %v1759 = vrcp.pop %v1695
    %v1760 = vrcp.pop %v1696
    %v1761 = vrcp.pop %v1697
    %v1762 = vrcp.pop %v1698
    %v1763 = vrcp.pop %v1699
    %v1764 = vrcp.pop %v1700
    %v1765 = vrcp.pop %v1701
    %v1766 = vrcp.pop %v1702
    %v1767 = vrcp.pop %v1703
    %v1768 = vrcp.pop %v1704
    %v1769 = vrcp.pop %v1705
    %v1770 = vrcp.pop %v1706
    %v1771 = vmul.f32 %v1387, %v1707
    %v1772 = vmul.f32 %v1388, %v1708
    %v1773 = vmul.f32 %v1389, %v1709
    %v1774 = vmul.f32 %v1390, %v1710
    %v1775 = vmul.f32 %v1391, %v1711
    %v1776 = vmul.f32 %v1392, %v1712
    %v1777 = vmul.f32 %v1393, %v1713
    %v1778 = vmul.f32 %v1394, %v1714
    %v1779 = vmul.f32 %v1395, %v1715
    %v1780 = vmul.f32 %v1396, %v1716
    %v1781 = vmul.f32 %v1397, %v1717
    %v1782 = vmul.f32 %v1398, %v1718
    %v1783 = vmul.f32 %v1399, %v1719
    %v1784 = vmul.f32 %v1400, %v1720
    %v1785 = vmul.f32 %v1401, %v1721
    %v1786 = vmul.f32 %v1402, %v1722
    %v1787 = vmul.f32 %v1403, %v1723
    %v1788 = vmul.f32 %v1404, %v1724
    %v1789 = vmul.f32 %v1405, %v1725
    %v1790 = vmul.f32 %v1406, %v1726
    %v1791 = vmul.f32 %v1407, %v1727
    %v1792 = vmul.f32 %v1408, %v1728
    %v1793 = vmul.f32 %v1409, %v1729
    %v1794 = vmul.f32 %v1410, %v1730
    %v1795 = vmul.f32 %v1411, %v1731
    %v1796 = vmul.f32 %v1412, %v1732
    %v1797 = vmul.f32 %v1413, %v1733
    %v1798 = vmul.f32 %v1414, %v1734
    %v1799 = vmul.f32 %v1415, %v1735
    %v1800 = vmul.f32 %v1416, %v1736
    %v1801 = vmul.f32 %v1417, %v1737
    %v1802 = vmul.f32 %v1418, %v1738
    %v1803 = vmul.f32 %v1419, %v1739
    %v1804 = vmul.f32 %v1420, %v1740
    %v1805 = vmul.f32 %v1421, %v1741
    %v1806 = vmul.f32 %v1422, %v1742
    %v1807 = vmul.f32 %v1423, %v1743
    %v1808 = vmul.f32 %v1424, %v1744
    %v1809 = vmul.f32 %v1425, %v1745
    %v1810 = vmul.f32 %v1426, %v1746
    %v1811 = vmul.f32 %v1427, %v1747
    %v1812 = vmul.f32 %v1428, %v1748
    %v1813 = vmul.f32 %v1429, %v1749
    %v1814 = vmul.f32 %v1430, %v1750
    %v1815 = vmul.f32 %v1431, %v1751
    %v1816 = vmul.f32 %v1432, %v1752
    %v1817 = vmul.f32 %v1433, %v1753
    %v1818 = vmul.f32 %v1434, %v1754
    %v1819 = vmul.f32 %v1435, %v1755
    %v1820 = vmul.f32 %v1436, %v1756
    %v1821 = vmul.f32 %v1437, %v1757
    %v1822 = vmul.f32 %v1438, %v1758
    %v1823 = vmul.f32 %v1439, %v1759
    %v1824 = vmul.f32 %v1440, %v1760
    %v1825 = vmul.f32 %v1441, %v1761
    %v1826 = vmul.f32 %v1442, %v1762
    %v1827 = vmul.f32 %v1443, %v1763
    %v1828 = vmul.f32 %v1444, %v1764
    %v1829 = vmul.f32 %v1445, %v1765
    %v1830 = vmul.f32 %v1446, %v1766
    %v1831 = vmul.f32 %v1447, %v1767
    %v1832 = vmul.f32 %v1448, %v1768
    %v1833 = vmul.f32 %v1449, %v1769
    %v1834 = vmul.f32 %v1450, %v1770
    %vm1835 = vcmask 130048
    %1836 = vst.msk [vmem:[#allocation2] sm:$0xff] %vm1835, %v1771
    %1837 = vst.msk [vmem:[#allocation2 + $0x8] sm:$0xff] %vm1835, %v1772
    %1838 = vst.msk [vmem:[#allocation2 + $0x10] sm:$0xff] %vm1835, %v1773
    %1839 = vst.msk [vmem:[#allocation2 + $0x18] sm:$0xff] %vm1835, %v1774
    %1840 = vst.msk [vmem:[#allocation2 + $0x20] sm:$0xff] %vm1835, %v1775
    %1841 = vst.msk [vmem:[#allocation2 + $0x28] sm:$0xff] %vm1835, %v1776
    %1842 = vst.msk [vmem:[#allocation2 + $0x30] sm:$0xff] %vm1835, %v1777
    %1843 = vst.msk [vmem:[#allocation2 + $0x38] sm:$0xff] %vm1835, %v1778
    %1844 = vst.msk [vmem:[#allocation2 + $0x40] sm:$0xff] %vm1835, %v1779
    %1845 = vst.msk [vmem:[#allocation2 + $0x48] sm:$0xff] %vm1835, %v1780
    %1846 = vst.msk [vmem:[#allocation2 + $0x50] sm:$0xff] %vm1835, %v1781
    %1847 = vst.msk [vmem:[#allocation2 + $0x58] sm:$0xff] %vm1835, %v1782
    %1848 = vst.msk [vmem:[#allocation2 + $0x60] sm:$0xff] %vm1835, %v1783
    %1849 = vst.msk [vmem:[#allocation2 + $0x68] sm:$0xff] %vm1835, %v1784
    %1850 = vst.msk [vmem:[#allocation2 + $0x70] sm:$0xff] %vm1835, %v1785
    %1851 = vst.msk [vmem:[#allocation2 + $0x78] sm:$0xff] %vm1835, %v1786
    %1852 = vst.msk [vmem:[#allocation2 + $0x80] sm:$0xff] %vm1835, %v1787
    %1853 = vst.msk [vmem:[#allocation2 + $0x88] sm:$0xff] %vm1835, %v1788
    %1854 = vst.msk [vmem:[#allocation2 + $0x90] sm:$0xff] %vm1835, %v1789
    %1855 = vst.msk [vmem:[#allocation2 + $0x98] sm:$0xff] %vm1835, %v1790
    %1856 = vst.msk [vmem:[#allocation2 + $0xa0] sm:$0xff] %vm1835, %v1791
    %1857 = vst.msk [vmem:[#allocation2 + $0xa8] sm:$0xff] %vm1835, %v1792
    %1858 = vst.msk [vmem:[#allocation2 + $0xb0] sm:$0xff] %vm1835, %v1793
    %1859 = vst.msk [vmem:[#allocation2 + $0xb8] sm:$0xff] %vm1835, %v1794
    %1860 = vst.msk [vmem:[#allocation2 + $0xc0] sm:$0xff] %vm1835, %v1795
    %1861 = vst.msk [vmem:[#allocation2 + $0xc8] sm:$0xff] %vm1835, %v1796
    %1862 = vst.msk [vmem:[#allocation2 + $0xd0] sm:$0xff] %vm1835, %v1797
    %1863 = vst.msk [vmem:[#allocation2 + $0xd8] sm:$0xff] %vm1835, %v1798
    %1864 = vst.msk [vmem:[#allocation2 + $0xe0] sm:$0xff] %vm1835, %v1799
    %1865 = vst.msk [vmem:[#allocation2 + $0xe8] sm:$0xff] %vm1835, %v1800
    %1866 = vst.msk [vmem:[#allocation2 + $0xf0] sm:$0xff] %vm1835, %v1801
    %1867 = vst.msk [vmem:[#allocation2 + $0xf8] sm:$0xff] %vm1835, %v1802
    %1868 = vst.msk [vmem:[#allocation2 + $0x100] sm:$0xff] %vm1835, %v1803
    %1869 = vst.msk [vmem:[#allocation2 + $0x108] sm:$0xff] %vm1835, %v1804
    %1870 = vst.msk [vmem:[#allocation2 + $0x110] sm:$0xff] %vm1835, %v1805
    %1871 = vst.msk [vmem:[#allocation2 + $0x118] sm:$0xff] %vm1835, %v1806
    %1872 = vst.msk [vmem:[#allocation2 + $0x120] sm:$0xff] %vm1835, %v1807
    %1873 = vst.msk [vmem:[#allocation2 + $0x128] sm:$0xff] %vm1835, %v1808
    %1874 = vst.msk [vmem:[#allocation2 + $0x130] sm:$0xff] %vm1835, %v1809
    %1875 = vst.msk [vmem:[#allocation2 + $0x138] sm:$0xff] %vm1835, %v1810
    %1876 = vst.msk [vmem:[#allocation2 + $0x140] sm:$0xff] %vm1835, %v1811
    %1877 = vst.msk [vmem:[#allocation2 + $0x148] sm:$0xff] %vm1835, %v1812
    %1878 = vst.msk [vmem:[#allocation2 + $0x150] sm:$0xff] %vm1835, %v1813
    %1879 = vst.msk [vmem:[#allocation2 + $0x158] sm:$0xff] %vm1835, %v1814
    %1880 = vst.msk [vmem:[#allocation2 + $0x160] sm:$0xff] %vm1835, %v1815
    %1881 = vst.msk [vmem:[#allocation2 + $0x168] sm:$0xff] %vm1835, %v1816
    %1882 = vst.msk [vmem:[#allocation2 + $0x170] sm:$0xff] %vm1835, %v1817
    %1883 = vst.msk [vmem:[#allocation2 + $0x178] sm:$0xff] %vm1835, %v1818
    %1884 = vst.msk [vmem:[#allocation2 + $0x180] sm:$0xff] %vm1835, %v1819
    %1885 = vst.msk [vmem:[#allocation2 + $0x188] sm:$0xff] %vm1835, %v1820
    %1886 = vst.msk [vmem:[#allocation2 + $0x190] sm:$0xff] %vm1835, %v1821
    %1887 = vst.msk [vmem:[#allocation2 + $0x198] sm:$0xff] %vm1835, %v1822
    %1888 = vst.msk [vmem:[#allocation2 + $0x1a0] sm:$0xff] %vm1835, %v1823
    %1889 = vst.msk [vmem:[#allocation2 + $0x1a8] sm:$0xff] %vm1835, %v1824
    %1890 = vst.msk [vmem:[#allocation2 + $0x1b0] sm:$0xff] %vm1835, %v1825
    %1891 = vst.msk [vmem:[#allocation2 + $0x1b8] sm:$0xff] %vm1835, %v1826
    %1892 = vst.msk [vmem:[#allocation2 + $0x1c0] sm:$0xff] %vm1835, %v1827
    %1893 = vst.msk [vmem:[#allocation2 + $0x1c8] sm:$0xff] %vm1835, %v1828
    %1894 = vst.msk [vmem:[#allocation2 + $0x1d0] sm:$0xff] %vm1835, %v1829
    %1895 = vst.msk [vmem:[#allocation2 + $0x1d8] sm:$0xff] %vm1835, %v1830
    %1896 = vst.msk [vmem:[#allocation2 + $0x1e0] sm:$0xff] %vm1835, %v1831
    %1897 = vst.msk [vmem:[#allocation2 + $0x1e8] sm:$0xff] %vm1835, %v1832
    %1898 = vst.msk [vmem:[#allocation2 + $0x1f0] sm:$0xff] %vm1835, %v1833
    %1899 = vst.msk [vmem:[#allocation2 + $0x1f8] sm:$0xff] %vm1835, %v1834
    // Predicated region
    $region26: #{c2_forward.5} parent=1 // pred_check
      _
    $region27: #{c2_forward.5} parent=1 // pred_check_branch
      %1901 = sbr.rel (0) target = $region29
    $region28: #{c2_forward.5} parent=1 // pred_region
      %s1903 = ssub.s32 8192, 8192
      %1904 = vsyncadd [#allocation3], %s1903
      %s1905 = sshll.u32 [#allocation2], 4
      %s1906 = int_to_ptr.vmem [resolvable:$true] %s1905
      %1911 = dma.vmem_to_hbm [thread:$0]  %s1906, 8192, %s6, [#allocation3], 128, 128, 8
    $region29: #{c2_forward.5} parent=1 // pred_fallthru
      _
    // Predicated region
    $region30: #{c2_forward.5} parent=1 // pred_check
      _
    $region31: #{c2_forward.5} parent=1 // pred_check_branch
      %1913 = sbr.rel (0) target = $region33
    $region32: #{c2_forward.5} parent=1 // pred_region
      %1914 = dma.done [#allocation3], 8192
    $region33: #{c2_forward.5} parent=1 // pred_fallthru
      _
    %1915 = vsyncpa [#allocation3], 1

// kernel: c2_forward.4
$region0: #{c2_forward.4}
  #allocation0 [shape = 'u32[]', space=smem, size = 0x4, offset = 0x4, fixed_abs, tag = 'smem constant byte address 0x4 - core index']
  #allocation1 [shape = 'u32[144,128]{1,0:T(1,128)}', space=vmem, size = 0x12000, scoped, tag = 'internal scratch']
  #allocation2 [shape = 'f32[18,18,8]{2,1,0:T(8,128)}', space=vmem, size = 0x36000, scoped, tag = 'scratch operand']
  #allocation3 [shape = 'f32[18,18,8]{2,1,0:T(8,128)}', space=vmem, size = 0x36000, scoped, tag = 'scratch operand']
  %s0 = inlined_call_operand.vmem [shape: f32[2,16,16,8], index: 0, kind: input, shape index: {}]
  %s1 = inlined_call_operand.vmem [shape: f32[72,8], index: 1, kind: input, shape index: {}]
  %s2 = inlined_call_operand.vmem [shape: f32[1,8], index: 2, kind: input, shape index: {}]
  %s3 = inlined_call_operand.vmem [shape: f32[1,8], index: 3, kind: input, shape index: {}]
  %s4 = inlined_call_operand.vmem [shape: f32[72,8], index: 4, kind: input, shape index: {}]
  %s5 = inlined_call_operand.vmem [shape: f32[1,8], index: 5, kind: input, shape index: {}]
  %s6 = inlined_call_operand.vmem [shape: f32[1,8], index: 6, kind: input, shape index: {}]
  %s7 = inlined_call_operand.vmem [shape: f32[2,16,16,8], index: 7, kind: output, shape index: {}]
  %s8 = sld [smem:[#allocation0]]
  $region61: #{c2_forward.4} parent=0
    _
  %s10 = ssub.s32 1, %s8
  %s11 = scalar_select 0, %s10, %s8
  loop: start=0, step=1, limit=4
  $region2: #{c2_forward.4} parent=0 // loop_pre_header
    _
  $region3: #{c2_forward.4} parent=0 // loop_header
    %s13 = sphi 0, %s17
    %p14 = scmp.ge.s32.totalorder %s13, 4
    %s23 = sphi 0, %s25
    %s26 = sphi 0, %s23
    %s27 = sphi 0, %s26
    %s43 = sphi 0, %s27
    %s47 = sphi 0, %s47
    %s49 = sphi 0, %s47
    %s50 = sphi 0, %s49
    %s64 = sphi 0, %s50
    %s68 = sphi 0, %s68
    %s70 = sphi 0, %s68
    %s71 = sphi 0, %s70
    %s85 = sphi 0, %s71
    %s89 = sphi 0, %s89
    %s91 = sphi 0, %s89
    %s92 = sphi 0, %s91
    %s106 = sphi 0, %s92
    %s110 = sphi 0, %s110
    %s112 = sphi 0, %s110
    %s113 = sphi 0, %s112
    %s127 = sphi 0, %s113
    %s131 = sphi 0, %s131
    %s133 = sphi 0, %s131
    %s134 = sphi 0, %s133
    %s148 = sphi 0, %s134
    %s152 = sphi 0, %s152
    %s154 = sphi 0, %s152
    %s155 = sphi 0, %s154
    %s169 = sphi 0, %s155
    %s175 = sphi 0, %s177
    %s178 = sphi 0, %s175
    %s179 = sphi 0, %s178
    %s195 = sphi 0, %s179
  $region4: #{c2_forward.4} parent=0 // loop_header_branch
    %16 = sbr.rel (%p14) target = $region8
  $region5: #{c2_forward.4} parent=0 // loop_body
    %s18 = ssub.s32 %s13, 1
    %s19 = ssub.s32 %s13, 2
    %s20 = sadd.s32 %s13, 1
    %s21 = ssub.s32 %s13, %s20
    %p22 = scmp.eq.s32.totalorder %s21, 0
    %s24 = sadd.s32 %s23, 1
    %s25 = scalar_select %p22, %s23, %s24
    %p28 = pneg %p22
    %p29 = scmp.eq.s32.totalorder %s13, 1
    %p30 = por %p28, %p29
    %p31 = scmp.ne.s32.totalorder %s23, %s26
    %p32 = scmp.eq.s32.totalorder %s13, 0
    %p33 = por %p31, %p32
    %p34 = scmp.ne.s32.totalorder %s23, %s26
    %p35 = scmp.eq.s32.totalorder %s18, 1
    %p36 = por %p34, %p35
    %p37 = scmp.ne.s32.totalorder %s26, %s27
    %p38 = scmp.eq.s32.totalorder %s18, 0
    %p39 = por %p37, %p38
    %p40 = scmp.ne.s32.totalorder %s26, %s27
    %p41 = scmp.eq.s32.totalorder %s19, 1
    %p42 = por %p40, %p41
    %p44 = scmp.ne.s32.totalorder %s27, %s43
    %p45 = scmp.eq.s32.totalorder %s19, 0
    %p46 = por %p44, %p45
    %s48 = sadd.s32 %s47, 1
    %p51 = scmp.eq.s32.totalorder %s13, 1
    %p52 = scmp.ne.s32.totalorder %s47, %s49
    %p53 = scmp.eq.s32.totalorder %s13, 0
    %p54 = por %p52, %p53
    %p55 = scmp.ne.s32.totalorder %s47, %s49
    %p56 = scmp.eq.s32.totalorder %s18, 1
    %p57 = por %p55, %p56
    %p58 = scmp.ne.s32.totalorder %s49, %s50
    %p59 = scmp.eq.s32.totalorder %s18, 0
    %p60 = por %p58, %p59
    %p61 = scmp.ne.s32.totalorder %s49, %s50
    %p62 = scmp.eq.s32.totalorder %s19, 1
    %p63 = por %p61, %p62
    %p65 = scmp.ne.s32.totalorder %s50, %s64
    %p66 = scmp.eq.s32.totalorder %s19, 0
    %p67 = por %p65, %p66
    %s69 = sadd.s32 %s68, 1
    %p72 = scmp.eq.s32.totalorder %s13, 1
    %p73 = scmp.ne.s32.totalorder %s68, %s70
    %p74 = scmp.eq.s32.totalorder %s13, 0
    %p75 = por %p73, %p74
    %p76 = scmp.ne.s32.totalorder %s68, %s70
    %p77 = scmp.eq.s32.totalorder %s18, 1
    %p78 = por %p76, %p77
    %p79 = scmp.ne.s32.totalorder %s70, %s71
    %p80 = scmp.eq.s32.totalorder %s18, 0
    %p81 = por %p79, %p80
    %p82 = scmp.ne.s32.totalorder %s70, %s71
    %p83 = scmp.eq.s32.totalorder %s19, 1
    %p84 = por %p82, %p83
    %p86 = scmp.ne.s32.totalorder %s71, %s85
    %p87 = scmp.eq.s32.totalorder %s19, 0
    %p88 = por %p86, %p87
    %s90 = sadd.s32 %s89, 1
    %p93 = scmp.eq.s32.totalorder %s13, 1
    %p94 = scmp.ne.s32.totalorder %s89, %s91
    %p95 = scmp.eq.s32.totalorder %s13, 0
    %p96 = por %p94, %p95
    %p97 = scmp.ne.s32.totalorder %s89, %s91
    %p98 = scmp.eq.s32.totalorder %s18, 1
    %p99 = por %p97, %p98
    %p100 = scmp.ne.s32.totalorder %s91, %s92
    %p101 = scmp.eq.s32.totalorder %s18, 0
    %p102 = por %p100, %p101
    %p103 = scmp.ne.s32.totalorder %s91, %s92
    %p104 = scmp.eq.s32.totalorder %s19, 1
    %p105 = por %p103, %p104
    %p107 = scmp.ne.s32.totalorder %s92, %s106
    %p108 = scmp.eq.s32.totalorder %s19, 0
    %p109 = por %p107, %p108
    %s111 = sadd.s32 %s110, 1
    %p114 = scmp.eq.s32.totalorder %s13, 1
    %p115 = scmp.ne.s32.totalorder %s110, %s112
    %p116 = scmp.eq.s32.totalorder %s13, 0
    %p117 = por %p115, %p116
    %p118 = scmp.ne.s32.totalorder %s110, %s112
    %p119 = scmp.eq.s32.totalorder %s18, 1
    %p120 = por %p118, %p119
    %p121 = scmp.ne.s32.totalorder %s112, %s113
    %p122 = scmp.eq.s32.totalorder %s18, 0
    %p123 = por %p121, %p122
    %p124 = scmp.ne.s32.totalorder %s112, %s113
    %p125 = scmp.eq.s32.totalorder %s19, 1
    %p126 = por %p124, %p125
    %p128 = scmp.ne.s32.totalorder %s113, %s127
    %p129 = scmp.eq.s32.totalorder %s19, 0
    %p130 = por %p128, %p129
    %s132 = sadd.s32 %s131, 1
    %p135 = scmp.eq.s32.totalorder %s13, 1
    %p136 = scmp.ne.s32.totalorder %s131, %s133
    %p137 = scmp.eq.s32.totalorder %s13, 0
    %p138 = por %p136, %p137
    %p139 = scmp.ne.s32.totalorder %s131, %s133
    %p140 = scmp.eq.s32.totalorder %s18, 1
    %p141 = por %p139, %p140
    %p142 = scmp.ne.s32.totalorder %s133, %s134
    %p143 = scmp.eq.s32.totalorder %s18, 0
    %p144 = por %p142, %p143
    %p145 = scmp.ne.s32.totalorder %s133, %s134
    %p146 = scmp.eq.s32.totalorder %s19, 1
    %p147 = por %p145, %p146
    %p149 = scmp.ne.s32.totalorder %s134, %s148
    %p150 = scmp.eq.s32.totalorder %s19, 0
    %p151 = por %p149, %p150
    %s153 = sadd.s32 %s152, 1
    %p156 = scmp.eq.s32.totalorder %s13, 1
    %p157 = scmp.ne.s32.totalorder %s152, %s154
    %p158 = scmp.eq.s32.totalorder %s13, 0
    %p159 = por %p157, %p158
    %p160 = scmp.ne.s32.totalorder %s152, %s154
    %p161 = scmp.eq.s32.totalorder %s18, 1
    %p162 = por %p160, %p161
    %p163 = scmp.ne.s32.totalorder %s154, %s155
    %p164 = scmp.eq.s32.totalorder %s18, 0
    %p165 = por %p163, %p164
    %p166 = scmp.ne.s32.totalorder %s154, %s155
    %p167 = scmp.eq.s32.totalorder %s19, 1
    %p168 = por %p166, %p167
    %p170 = scmp.ne.s32.totalorder %s155, %s169
    %p171 = scmp.eq.s32.totalorder %s19, 0
    %p172 = por %p170, %p171
    %s173 = ssub.s32 %s13, %s20
    %p174 = scmp.eq.s32.totalorder %s173, 0
    %s176 = sadd.s32 %s175, 1
    %s177 = scalar_select %p174, %s175, %s176
    %p180 = pneg %p174
    %p181 = scmp.eq.s32.totalorder %s13, 1
    %p182 = por %p180, %p181
    %p183 = scmp.ne.s32.totalorder %s175, %s178
    %p184 = scmp.eq.s32.totalorder %s13, 0
    %p185 = por %p183, %p184
    %p186 = scmp.ne.s32.totalorder %s175, %s178
    %p187 = scmp.eq.s32.totalorder %s18, 1
    %p188 = por %p186, %p187
    %p189 = scmp.ne.s32.totalorder %s178, %s179
    %p190 = scmp.eq.s32.totalorder %s18, 0
    %p191 = por %p189, %p190
    %p192 = scmp.ne.s32.totalorder %s178, %s179
    %p193 = scmp.eq.s32.totalorder %s19, 1
    %p194 = por %p192, %p193
    %p196 = scmp.ne.s32.totalorder %s179, %s195
    %p197 = scmp.eq.s32.totalorder %s19, 0
    %p198 = por %p196, %p197
    %p199 = scmp.le.s32.totalorder 1, %s13
    %p200 = scmp.lt.s32.totalorder %s13, 3
    %p201 = pnand %p199, %p200
    %p202 = pneg %p201
    // Predicated region
    $region9: #{c2_forward.4} parent=5 // pred_check
      _
    $region10: #{c2_forward.4} parent=5 // pred_check_branch
      %204 = sbr.rel (%p201) target = $region12
    $region11: #{c2_forward.4} parent=5 // pred_region
      %s205 = ssub.s32 %s13, 1
      // Predicated region
      $region13: #{c2_forward.4} parent=11 // pred_check
        %p206 = pneg %p60
      $region14: #{c2_forward.4} parent=11 // pred_check_branch
        %208 = sbr.rel (%p206) target = $region16
      $region15: #{c2_forward.4} parent=11 // pred_region
        _
      $region16: #{c2_forward.4} parent=11 // pred_fallthru
        _
      // Predicated region
      $region17: #{c2_forward.4} parent=11 // pred_check
        %p209 = pneg %p81
      $region18: #{c2_forward.4} parent=11 // pred_check_branch
        %211 = sbr.rel (%p209) target = $region20
      $region19: #{c2_forward.4} parent=11 // pred_region
        _
      $region20: #{c2_forward.4} parent=11 // pred_fallthru
        _
      // Predicated region
      $region21: #{c2_forward.4} parent=11 // pred_check
        %p212 = pneg %p102
      $region22: #{c2_forward.4} parent=11 // pred_check_branch
        %214 = sbr.rel (%p212) target = $region24
      $region23: #{c2_forward.4} parent=11 // pred_region
        _
      $region24: #{c2_forward.4} parent=11 // pred_fallthru
        _
      // Predicated region
      $region25: #{c2_forward.4} parent=11 // pred_check
        %p215 = pneg %p123
      $region26: #{c2_forward.4} parent=11 // pred_check_branch
        %217 = sbr.rel (%p215) target = $region28
      $region27: #{c2_forward.4} parent=11 // pred_region
        _
      $region28: #{c2_forward.4} parent=11 // pred_fallthru
        _
      // Predicated region
      $region29: #{c2_forward.4} parent=11 // pred_check
        %p218 = pneg %p144
      $region30: #{c2_forward.4} parent=11 // pred_check_branch
        %220 = sbr.rel (%p218) target = $region32
      $region31: #{c2_forward.4} parent=11 // pred_region
        _
      $region32: #{c2_forward.4} parent=11 // pred_fallthru
        _
      // Predicated region
      $region33: #{c2_forward.4} parent=11 // pred_check
        %p221 = pneg %p165
      $region34: #{c2_forward.4} parent=11 // pred_check_branch
        %223 = sbr.rel (%p221) target = $region36
      $region35: #{c2_forward.4} parent=11 // pred_region
        _
      $region36: #{c2_forward.4} parent=11 // pred_fallthru
        _
    $region12: #{c2_forward.4} parent=5 // pred_fallthru
      _
    %p224 = scmp.lt.s32.totalorder %s13, 2
    // Predicated region
    $region37: #{c2_forward.4} parent=5 // pred_check
      %p225 = pneg %p224
    $region38: #{c2_forward.4} parent=5 // pred_check_branch
      %227 = sbr.rel (%p225) target = $region40
    $region39: #{c2_forward.4} parent=5 // pred_region
      // Predicated region
      $region41: #{c2_forward.4} parent=39 // pred_check
        %p228 = pneg %p33
      $region42: #{c2_forward.4} parent=39 // pred_check_branch
        %230 = sbr.rel (%p228) target = $region44
      $region43: #{c2_forward.4} parent=39 // pred_region
        %p231 = scmp.lt.s32.totalorder %s13, 1
        %s232 = scalar_select %p231, %s13, 1
        %s233 = smul.addr %s232, 32
        %s234 = smul.addr %s233, 8
        %s235 = scalar_lea.vmem %s0, %s234
      $region44: #{c2_forward.4} parent=39 // pred_fallthru
        _
    $region40: #{c2_forward.4} parent=5 // pred_fallthru
      _
    %p236 = scmp.le.s32.totalorder 1, %s13
    %p237 = scmp.lt.s32.totalorder %s13, 3
    %p238 = pnand %p236, %p237
    %p239 = pneg %p238
    // Predicated region
    $region45: #{c2_forward.4} parent=5 // pred_check
      _
    $region46: #{c2_forward.4} parent=5 // pred_check_branch
      %241 = sbr.rel (%p238) target = $region48
    $region47: #{c2_forward.4} parent=5 // pred_region
      %s242 = ssub.s32 %s13, 1
      %p243 = scmp.lt.s32.totalorder %s18, 1
      %s244 = scalar_select %p243, %s18, 1
      %s245 = smul.addr %s244, 32
      %s246 = smul.addr %s245, 8
      %s247 = scalar_lea.vmem %s0, %s246
      %p248 = pneg %p39
      %p249 = pneg %p36
      %p250 = pneg %p60
      %p251 = pneg %p57
      %p252 = pneg %p81
      %p253 = pneg %p78
      %p254 = pneg %p102
      %p255 = pneg %p99
      %p256 = pneg %p123
      %p257 = pneg %p120
      %p258 = pneg %p144
      %p259 = pneg %p141
      %p260 = pneg %p165
      %p261 = pneg %p162
      %p262 = pneg %p191
      %p263 = pneg %p188
      %p264 = scmp.lt.s32.totalorder %s18, 1
      %s265 = scalar_select %p264, %s18, 1
      %s266 = smul.addr %s265, 32
      %s267 = smul.addr %s266, 8
      %s268 = scalar_lea.vmem %s7, %s267
      %p269 = scmp.lt.s32.totalorder %s18, 1
      %s270 = scalar_select %p269, %s18, 1
      %s271 = smul.addr %s270, 32
      %s272 = smul.addr %s271, 8
      %s273 = scalar_lea.vmem %s0, %s272
      %p274 = scmp.lt.s32.totalorder %s18, 1
      %s275 = scalar_select %p274, %s18, 1
      %s276 = smul.addr %s275, 32
      %s277 = smul.addr %s276, 8
      %s278 = scalar_lea.vmem %s7, %s277
      %v279 = vld [vmem:[%s273] sm:$0xff]
      %v280 = vld [vmem:[%s273 + $0x8] sm:$0xff]
      %v281 = vld [vmem:[%s273 + $0x10] sm:$0xff]
      %v282 = vld [vmem:[%s273 + $0x18] sm:$0xff]
      %v283 = vld [vmem:[%s273 + $0x20] sm:$0xff]
      %v284 = vld [vmem:[%s273 + $0x28] sm:$0xff]
      %v285 = vld [vmem:[%s273 + $0x30] sm:$0xff]
      %v286 = vld [vmem:[%s273 + $0x38] sm:$0xff]
      %v287 = vld [vmem:[%s273 + $0x40] sm:$0xff]
      %v288 = vld [vmem:[%s273 + $0x48] sm:$0xff]
      %v289 = vld [vmem:[%s273 + $0x50] sm:$0xff]
      %v290 = vld [vmem:[%s273 + $0x58] sm:$0xff]
      %v291 = vld [vmem:[%s273 + $0x60] sm:$0xff]
      %v292 = vld [vmem:[%s273 + $0x68] sm:$0xff]
      %v293 = vld [vmem:[%s273 + $0x70] sm:$0xff]
      %v294 = vld [vmem:[%s273 + $0x78] sm:$0xff]
      %v295 = vld [vmem:[%s273 + $0x80] sm:$0xff]
      %v296 = vld [vmem:[%s273 + $0x88] sm:$0xff]
      %v297 = vld [vmem:[%s273 + $0x90] sm:$0xff]
      %v298 = vld [vmem:[%s273 + $0x98] sm:$0xff]
      %v299 = vld [vmem:[%s273 + $0xa0] sm:$0xff]
      %v300 = vld [vmem:[%s273 + $0xa8] sm:$0xff]
      %v301 = vld [vmem:[%s273 + $0xb0] sm:$0xff]
      %v302 = vld [vmem:[%s273 + $0xb8] sm:$0xff]
      %v303 = vld [vmem:[%s273 + $0xc0] sm:$0xff]
      %v304 = vld [vmem:[%s273 + $0xc8] sm:$0xff]
      %v305 = vld [vmem:[%s273 + $0xd0] sm:$0xff]
      %v306 = vld [vmem:[%s273 + $0xd8] sm:$0xff]
      %v307 = vld [vmem:[%s273 + $0xe0] sm:$0xff]
      %v308 = vld [vmem:[%s273 + $0xe8] sm:$0xff]
      %v309 = vld [vmem:[%s273 + $0xf0] sm:$0xff]
      %v310 = vld [vmem:[%s273 + $0xf8] sm:$0xff]
      %vm311 = vcmask 64512
      %312 = vst.msk [vmem:[#allocation2] sm:$0xff] %vm311, 0.0
      %313 = vst.msk [vmem:[#allocation2 + $0x8] sm:$0xff] %vm311, 0.0
      %vm314 = vcmask 58368
      %315 = vst.msk [vmem:[#allocation2 + $0x10] sm:$0x3] %vm314, 0.0
      %s316 = scalar_lea.vmem [#allocation2], 408
      %317 = vst.msk [vmem:[%s316] sm:$0xff] %vm311, 0.0
      %318 = vst.msk [vmem:[%s316 + $0x8] sm:$0xff] %vm311, 0.0
      %319 = vst.msk [vmem:[%s316 + $0x10] sm:$0x3] %vm314, 0.0
      %vm352 = vcmask 1040384
      %v353 = vrot.slane %v279, 7
      %v354 = vrot.slane %v280, 7
      %v355 = vsel %vm352, %v353, %v354
      %v356 = vrot.slane %v281, 7
      %v357 = vrot.slane %v282, 7
      %v358 = vsel %vm352, %v356, %v357
      %v359 = vrot.slane %v283, 7
      %v360 = vrot.slane %v284, 7
      %v361 = vsel %vm352, %v359, %v360
      %v362 = vrot.slane %v285, 7
      %v363 = vrot.slane %v286, 7
      %v364 = vsel %vm352, %v362, %v363
      %v365 = vrot.slane %v287, 7
      %v366 = vrot.slane %v288, 7
      %v367 = vsel %vm352, %v365, %v366
      %v368 = vrot.slane %v289, 7
      %v369 = vrot.slane %v290, 7
      %v370 = vsel %vm352, %v368, %v369
      %v371 = vrot.slane %v291, 7
      %v372 = vrot.slane %v292, 7
      %v373 = vsel %vm352, %v371, %v372
      %v374 = vrot.slane %v293, 7
      %v375 = vrot.slane %v294, 7
      %v376 = vsel %vm352, %v374, %v375
      %v377 = vrot.slane %v295, 7
      %v378 = vrot.slane %v296, 7
      %v379 = vsel %vm352, %v377, %v378
      %v380 = vrot.slane %v297, 7
      %v381 = vrot.slane %v298, 7
      %v382 = vsel %vm352, %v380, %v381
      %v383 = vrot.slane %v299, 7
      %v384 = vrot.slane %v300, 7
      %v385 = vsel %vm352, %v383, %v384
      %v386 = vrot.slane %v301, 7
      %v387 = vrot.slane %v302, 7
      %v388 = vsel %vm352, %v386, %v387
      %v389 = vrot.slane %v303, 7
      %v390 = vrot.slane %v304, 7
      %v391 = vsel %vm352, %v389, %v390
      %v392 = vrot.slane %v305, 7
      %v393 = vrot.slane %v306, 7
      %v394 = vsel %vm352, %v392, %v393
      %v395 = vrot.slane %v307, 7
      %v396 = vrot.slane %v308, 7
      %v397 = vsel %vm352, %v395, %v396
      %v398 = vrot.slane %v309, 7
      %v399 = vrot.slane %v310, 7
      %v400 = vsel %vm352, %v398, %v399
      %v449 = vsel %vm352, 0.0, %v353
      %v450 = vsel %vm352, 0.0, %v356
      %v451 = vsel %vm352, 0.0, %v359
      %v452 = vsel %vm352, 0.0, %v362
      %v453 = vsel %vm352, 0.0, %v365
      %v454 = vsel %vm352, 0.0, %v368
      %v455 = vsel %vm352, 0.0, %v371
      %v456 = vsel %vm352, 0.0, %v374
      %v457 = vsel %vm352, 0.0, %v377
      %v458 = vsel %vm352, 0.0, %v380
      %v459 = vsel %vm352, 0.0, %v383
      %v460 = vsel %vm352, 0.0, %v386
      %v461 = vsel %vm352, 0.0, %v389
      %v462 = vsel %vm352, 0.0, %v392
      %v463 = vsel %vm352, 0.0, %v395
      %v464 = vsel %vm352, 0.0, %v398
      %v465 = vsel %vm352, %v354, 0.0
      %v466 = vsel %vm352, %v357, 0.0
      %v467 = vsel %vm352, %v360, 0.0
      %v468 = vsel %vm352, %v363, 0.0
      %v469 = vsel %vm352, %v366, 0.0
      %v470 = vsel %vm352, %v369, 0.0
      %v471 = vsel %vm352, %v372, 0.0
      %v472 = vsel %vm352, %v375, 0.0
      %v473 = vsel %vm352, %v378, 0.0
      %v474 = vsel %vm352, %v381, 0.0
      %v475 = vsel %vm352, %v384, 0.0
      %v476 = vsel %vm352, %v387, 0.0
      %v477 = vsel %vm352, %v390, 0.0
      %v478 = vsel %vm352, %v393, 0.0
      %v479 = vsel %vm352, %v396, 0.0
      %v480 = vsel %vm352, %v399, 0.0
      %s481 = scalar_lea.vmem [#allocation2], 24
      %482 = vst.msk [vmem:[%s481] sm:$0xff] %vm311, %v449
      %483 = vst.msk [vmem:[%s481 + $0x8] sm:$0xff] %vm311, %v355
      %484 = vst.msk [vmem:[%s481 + $0x10] sm:$0x3] %vm314, %v465
      %485 = vst.msk [vmem:[%s481 + $0x18] sm:$0xff] %vm311, %v450
      %486 = vst.msk [vmem:[%s481 + $0x20] sm:$0xff] %vm311, %v358
      %487 = vst.msk [vmem:[%s481 + $0x28] sm:$0x3] %vm314, %v466
      %488 = vst.msk [vmem:[%s481 + $0x30] sm:$0xff] %vm311, %v451
      %489 = vst.msk [vmem:[%s481 + $0x38] sm:$0xff] %vm311, %v361
      %490 = vst.msk [vmem:[%s481 + $0x40] sm:$0x3] %vm314, %v467
      %491 = vst.msk [vmem:[%s481 + $0x48] sm:$0xff] %vm311, %v452
      %492 = vst.msk [vmem:[%s481 + $0x50] sm:$0xff] %vm311, %v364
      %493 = vst.msk [vmem:[%s481 + $0x58] sm:$0x3] %vm314, %v468
      %494 = vst.msk [vmem:[%s481 + $0x60] sm:$0xff] %vm311, %v453
      %495 = vst.msk [vmem:[%s481 + $0x68] sm:$0xff] %vm311, %v367
      %496 = vst.msk [vmem:[%s481 + $0x70] sm:$0x3] %vm314, %v469
      %497 = vst.msk [vmem:[%s481 + $0x78] sm:$0xff] %vm311, %v454
      %498 = vst.msk [vmem:[%s481 + $0x80] sm:$0xff] %vm311, %v370
      %499 = vst.msk [vmem:[%s481 + $0x88] sm:$0x3] %vm314, %v470
      %500 = vst.msk [vmem:[%s481 + $0x90] sm:$0xff] %vm311, %v455
      %501 = vst.msk [vmem:[%s481 + $0x98] sm:$0xff] %vm311, %v373
      %502 = vst.msk [vmem:[%s481 + $0xa0] sm:$0x3] %vm314, %v471
      %503 = vst.msk [vmem:[%s481 + $0xa8] sm:$0xff] %vm311, %v456
      %504 = vst.msk [vmem:[%s481 + $0xb0] sm:$0xff] %vm311, %v376
      %505 = vst.msk [vmem:[%s481 + $0xb8] sm:$0x3] %vm314, %v472
      %506 = vst.msk [vmem:[%s481 + $0xc0] sm:$0xff] %vm311, %v457
      %507 = vst.msk [vmem:[%s481 + $0xc8] sm:$0xff] %vm311, %v379
      %508 = vst.msk [vmem:[%s481 + $0xd0] sm:$0x3] %vm314, %v473
      %509 = vst.msk [vmem:[%s481 + $0xd8] sm:$0xff] %vm311, %v458
      %510 = vst.msk [vmem:[%s481 + $0xe0] sm:$0xff] %vm311, %v382
      %511 = vst.msk [vmem:[%s481 + $0xe8] sm:$0x3] %vm314, %v474
      %512 = vst.msk [vmem:[%s481 + $0xf0] sm:$0xff] %vm311, %v459
      %513 = vst.msk [vmem:[%s481 + $0xf8] sm:$0xff] %vm311, %v385
      %514 = vst.msk [vmem:[%s481 + $0x100] sm:$0x3] %vm314, %v475
      %515 = vst.msk [vmem:[%s481 + $0x108] sm:$0xff] %vm311, %v460
      %516 = vst.msk [vmem:[%s481 + $0x110] sm:$0xff] %vm311, %v388
      %517 = vst.msk [vmem:[%s481 + $0x118] sm:$0x3] %vm314, %v476
      %518 = vst.msk [vmem:[%s481 + $0x120] sm:$0xff] %vm311, %v461
      %519 = vst.msk [vmem:[%s481 + $0x128] sm:$0xff] %vm311, %v391
      %520 = vst.msk [vmem:[%s481 + $0x130] sm:$0x3] %vm314, %v477
      %521 = vst.msk [vmem:[%s481 + $0x138] sm:$0xff] %vm311, %v462
      %522 = vst.msk [vmem:[%s481 + $0x140] sm:$0xff] %vm311, %v394
      %523 = vst.msk [vmem:[%s481 + $0x148] sm:$0x3] %vm314, %v478
      %524 = vst.msk [vmem:[%s481 + $0x150] sm:$0xff] %vm311, %v463
      %525 = vst.msk [vmem:[%s481 + $0x158] sm:$0xff] %vm311, %v397
      %526 = vst.msk [vmem:[%s481 + $0x160] sm:$0x3] %vm314, %v479
      %527 = vst.msk [vmem:[%s481 + $0x168] sm:$0xff] %vm311, %v464
      %528 = vst.msk [vmem:[%s481 + $0x170] sm:$0xff] %vm311, %v400
      %529 = vst.msk [vmem:[%s481 + $0x178] sm:$0x3] %vm314, %v480
      %v530 = vld [vmem:[#allocation2] sm:$0xff]
      %v531 = vld [vmem:[#allocation2 + $0x8] sm:$0xff]
      %v532 = vld [vmem:[#allocation2 + $0x10] sm:$0x3]
      %v533 = vld [vmem:[#allocation2 + $0x18] sm:$0xff]
      %v534 = vld [vmem:[#allocation2 + $0x20] sm:$0xff]
      %v535 = vld [vmem:[#allocation2 + $0x28] sm:$0x3]
      %v536 = vld [vmem:[#allocation2 + $0x30] sm:$0xff]
      %v537 = vld [vmem:[#allocation2 + $0x38] sm:$0xff]
      %v538 = vld [vmem:[#allocation2 + $0x40] sm:$0x3]
      %v539 = vld [vmem:[#allocation2 + $0x48] sm:$0xff]
      %v540 = vld [vmem:[#allocation2 + $0x50] sm:$0xff]
      %v541 = vld [vmem:[#allocation2 + $0x58] sm:$0x3]
      %v542 = vld [vmem:[#allocation2 + $0x60] sm:$0xff]
      %v543 = vld [vmem:[#allocation2 + $0x68] sm:$0xff]
      %v544 = vld [vmem:[#allocation2 + $0x70] sm:$0x3]
      %v545 = vld [vmem:[#allocation2 + $0x78] sm:$0xff]
      %v546 = vld [vmem:[#allocation2 + $0x80] sm:$0xff]
      %v547 = vld [vmem:[#allocation2 + $0x88] sm:$0x3]
      %v548 = vld [vmem:[#allocation2 + $0x90] sm:$0xff]
      %v549 = vld [vmem:[#allocation2 + $0x98] sm:$0xff]
      %v550 = vld [vmem:[#allocation2 + $0xa0] sm:$0x3]
      %v551 = vld [vmem:[#allocation2 + $0xa8] sm:$0xff]
      %v552 = vld [vmem:[#allocation2 + $0xb0] sm:$0xff]
      %v553 = vld [vmem:[#allocation2 + $0xb8] sm:$0x3]
      %v554 = vld [vmem:[#allocation2 + $0xc0] sm:$0xff]
      %v555 = vld [vmem:[#allocation2 + $0xc8] sm:$0xff]
      %v556 = vld [vmem:[#allocation2 + $0xd0] sm:$0x3]
      %v557 = vld [vmem:[#allocation2 + $0xd8] sm:$0xff]
      %v558 = vld [vmem:[#allocation2 + $0xe0] sm:$0xff]
      %v559 = vld [vmem:[#allocation2 + $0xe8] sm:$0x3]
      %v560 = vld [vmem:[#allocation2 + $0xf0] sm:$0xff]
      %v561 = vld [vmem:[#allocation2 + $0xf8] sm:$0xff]
      %v562 = vld [vmem:[#allocation2 + $0x100] sm:$0x3]
      %v563 = vld [vmem:[#allocation2 + $0x108] sm:$0xff]
      %v564 = vld [vmem:[#allocation2 + $0x110] sm:$0xff]
      %v565 = vld [vmem:[#allocation2 + $0x118] sm:$0x3]
      %v566 = vld [vmem:[#allocation2 + $0x120] sm:$0xff]
      %v567 = vld [vmem:[#allocation2 + $0x128] sm:$0xff]
      %v568 = vld [vmem:[#allocation2 + $0x130] sm:$0x3]
      %v569 = vld [vmem:[#allocation2 + $0x138] sm:$0xff]
      %v570 = vld [vmem:[#allocation2 + $0x140] sm:$0xff]
      %v571 = vld [vmem:[#allocation2 + $0x148] sm:$0x3]
      %v572 = vld [vmem:[#allocation2 + $0x150] sm:$0xff]
      %v573 = vld [vmem:[#allocation2 + $0x158] sm:$0xff]
      %v574 = vld [vmem:[#allocation2 + $0x160] sm:$0x3]
      %v575 = vld [vmem:[#allocation2 + $0x168] sm:$0xff]
      %v576 = vld [vmem:[#allocation2 + $0x170] sm:$0xff]
      %v577 = vld [vmem:[#allocation2 + $0x178] sm:$0x3]
      %vm626 = vcmask 1046528
      %v627 = vrot.slane %v530, 1
      %v628 = vrot.slane %v531, 1
      %v629 = vsel %vm626, %v627, %v628
      %v630 = vrot.slane %v532, 1
      %v631 = vsel %vm626, %v628, %v630
      %v632 = vrot.slane %v533, 1
      %v633 = vrot.slane %v534, 1
      %v634 = vsel %vm626, %v632, %v633
      %v635 = vrot.slane %v535, 1
      %v636 = vsel %vm626, %v633, %v635
      %v637 = vrot.slane %v536, 1
      %v638 = vrot.slane %v537, 1
      %v639 = vsel %vm626, %v637, %v638
      %v640 = vrot.slane %v538, 1
      %v641 = vsel %vm626, %v638, %v640
      %v642 = vrot.slane %v539, 1
      %v643 = vrot.slane %v540, 1
      %v644 = vsel %vm626, %v642, %v643
      %v645 = vrot.slane %v541, 1
      %v646 = vsel %vm626, %v643, %v645
      %v647 = vrot.slane %v542, 1
      %v648 = vrot.slane %v543, 1
      %v649 = vsel %vm626, %v647, %v648
      %v650 = vrot.slane %v544, 1
      %v651 = vsel %vm626, %v648, %v650
      %v652 = vrot.slane %v545, 1
      %v653 = vrot.slane %v546, 1
      %v654 = vsel %vm626, %v652, %v653
      %v655 = vrot.slane %v547, 1
      %v656 = vsel %vm626, %v653, %v655
      %v657 = vrot.slane %v548, 1
      %v658 = vrot.slane %v549, 1
      %v659 = vsel %vm626, %v657, %v658
      %v660 = vrot.slane %v550, 1
      %v661 = vsel %vm626, %v658, %v660
      %v662 = vrot.slane %v551, 1
      %v663 = vrot.slane %v552, 1
      %v664 = vsel %vm626, %v662, %v663
      %v665 = vrot.slane %v553, 1
      %v666 = vsel %vm626, %v663, %v665
      %v667 = vrot.slane %v554, 1
      %v668 = vrot.slane %v555, 1
      %v669 = vsel %vm626, %v667, %v668
      %v670 = vrot.slane %v556, 1
      %v671 = vsel %vm626, %v668, %v670
      %v672 = vrot.slane %v557, 1
      %v673 = vrot.slane %v558, 1
      %v674 = vsel %vm626, %v672, %v673
      %v675 = vrot.slane %v559, 1
      %v676 = vsel %vm626, %v673, %v675
      %v677 = vrot.slane %v560, 1
      %v678 = vrot.slane %v561, 1
      %v679 = vsel %vm626, %v677, %v678
      %v680 = vrot.slane %v562, 1
      %v681 = vsel %vm626, %v678, %v680
      %v682 = vrot.slane %v563, 1
      %v683 = vrot.slane %v564, 1
      %v684 = vsel %vm626, %v682, %v683
      %v685 = vrot.slane %v565, 1
      %v686 = vsel %vm626, %v683, %v685
      %v687 = vrot.slane %v566, 1
      %v688 = vrot.slane %v567, 1
      %v689 = vsel %vm626, %v687, %v688
      %v690 = vrot.slane %v568, 1
      %v691 = vsel %vm626, %v688, %v690
      %v692 = vrot.slane %v569, 1
      %v693 = vrot.slane %v570, 1
      %v694 = vsel %vm626, %v692, %v693
      %v695 = vrot.slane %v571, 1
      %v696 = vsel %vm626, %v693, %v695
      %v697 = vrot.slane %v572, 1
      %v698 = vrot.slane %v573, 1
      %v699 = vsel %vm626, %v697, %v698
      %v700 = vrot.slane %v574, 1
      %v701 = vsel %vm626, %v698, %v700
      %v702 = vrot.slane %v575, 1
      %v703 = vrot.slane %v576, 1
      %v704 = vsel %vm626, %v702, %v703
      %v705 = vrot.slane %v577, 1
      %v706 = vsel %vm626, %v703, %v705
      %vm707 = vcmask 1045504
      %v708 = vrot.slane %v530, 2
      %v709 = vrot.slane %v531, 2
      %v710 = vsel %vm707, %v708, %v709
      %v711 = vrot.slane %v532, 2
      %v712 = vsel %vm707, %v709, %v711
      %v713 = vrot.slane %v533, 2
      %v714 = vrot.slane %v534, 2
      %v715 = vsel %vm707, %v713, %v714
      %v716 = vrot.slane %v535, 2
      %v717 = vsel %vm707, %v714, %v716
      %v718 = vrot.slane %v536, 2
      %v719 = vrot.slane %v537, 2
      %v720 = vsel %vm707, %v718, %v719
      %v721 = vrot.slane %v538, 2
      %v722 = vsel %vm707, %v719, %v721
      %v723 = vrot.slane %v539, 2
      %v724 = vrot.slane %v540, 2
      %v725 = vsel %vm707, %v723, %v724
      %v726 = vrot.slane %v541, 2
      %v727 = vsel %vm707, %v724, %v726
      %v728 = vrot.slane %v542, 2
      %v729 = vrot.slane %v543, 2
      %v730 = vsel %vm707, %v728, %v729
      %v731 = vrot.slane %v544, 2
      %v732 = vsel %vm707, %v729, %v731
      %v733 = vrot.slane %v545, 2
      %v734 = vrot.slane %v546, 2
      %v735 = vsel %vm707, %v733, %v734
      %v736 = vrot.slane %v547, 2
      %v737 = vsel %vm707, %v734, %v736
      %v738 = vrot.slane %v548, 2
      %v739 = vrot.slane %v549, 2
      %v740 = vsel %vm707, %v738, %v739
      %v741 = vrot.slane %v550, 2
      %v742 = vsel %vm707, %v739, %v741
      %v743 = vrot.slane %v551, 2
      %v744 = vrot.slane %v552, 2
      %v745 = vsel %vm707, %v743, %v744
      %v746 = vrot.slane %v553, 2
      %v747 = vsel %vm707, %v744, %v746
      %v748 = vrot.slane %v554, 2
      %v749 = vrot.slane %v555, 2
      %v750 = vsel %vm707, %v748, %v749
      %v751 = vrot.slane %v556, 2
      %v752 = vsel %vm707, %v749, %v751
      %v753 = vrot.slane %v557, 2
      %v754 = vrot.slane %v558, 2
      %v755 = vsel %vm707, %v753, %v754
      %v756 = vrot.slane %v559, 2
      %v757 = vsel %vm707, %v754, %v756
      %v758 = vrot.slane %v560, 2
      %v759 = vrot.slane %v561, 2
      %v760 = vsel %vm707, %v758, %v759
      %v761 = vrot.slane %v562, 2
      %v762 = vsel %vm707, %v759, %v761
      %v763 = vrot.slane %v563, 2
      %v764 = vrot.slane %v564, 2
      %v765 = vsel %vm707, %v763, %v764
      %v766 = vrot.slane %v565, 2
      %v767 = vsel %vm707, %v764, %v766
      %v768 = vrot.slane %v566, 2
      %v769 = vrot.slane %v567, 2
      %v770 = vsel %vm707, %v768, %v769
      %v771 = vrot.slane %v568, 2
      %v772 = vsel %vm707, %v769, %v771
      %v773 = vrot.slane %v569, 2
      %v774 = vrot.slane %v570, 2
      %v775 = vsel %vm707, %v773, %v774
      %v776 = vrot.slane %v571, 2
      %v777 = vsel %vm707, %v774, %v776
      %v778 = vrot.slane %v572, 2
      %v779 = vrot.slane %v573, 2
      %v780 = vsel %vm707, %v778, %v779
      %v781 = vrot.slane %v574, 2
      %v782 = vsel %vm707, %v779, %v781
      %v783 = vrot.slane %v575, 2
      %v784 = vrot.slane %v576, 2
      %v785 = vsel %vm707, %v783, %v784
      %v786 = vrot.slane %v577, 2
      %v787 = vsel %vm707, %v784, %v786
      %v788 = vld [vmem:[%s481] sm:$0xff]
      %v789 = vld [vmem:[%s481 + $0x8] sm:$0xff]
      %v790 = vld [vmem:[%s481 + $0x10] sm:$0x3]
      %v791 = vld [vmem:[%s481 + $0x18] sm:$0xff]
      %v792 = vld [vmem:[%s481 + $0x20] sm:$0xff]
      %v793 = vld [vmem:[%s481 + $0x28] sm:$0x3]
      %v794 = vld [vmem:[%s481 + $0x30] sm:$0xff]
      %v795 = vld [vmem:[%s481 + $0x38] sm:$0xff]
      %v796 = vld [vmem:[%s481 + $0x40] sm:$0x3]
      %v797 = vld [vmem:[%s481 + $0x48] sm:$0xff]
      %v798 = vld [vmem:[%s481 + $0x50] sm:$0xff]
      %v799 = vld [vmem:[%s481 + $0x58] sm:$0x3]
      %v800 = vld [vmem:[%s481 + $0x60] sm:$0xff]
      %v801 = vld [vmem:[%s481 + $0x68] sm:$0xff]
      %v802 = vld [vmem:[%s481 + $0x70] sm:$0x3]
      %v803 = vld [vmem:[%s481 + $0x78] sm:$0xff]
      %v804 = vld [vmem:[%s481 + $0x80] sm:$0xff]
      %v805 = vld [vmem:[%s481 + $0x88] sm:$0x3]
      %v806 = vld [vmem:[%s481 + $0x90] sm:$0xff]
      %v807 = vld [vmem:[%s481 + $0x98] sm:$0xff]
      %v808 = vld [vmem:[%s481 + $0xa0] sm:$0x3]
      %v809 = vld [vmem:[%s481 + $0xa8] sm:$0xff]
      %v810 = vld [vmem:[%s481 + $0xb0] sm:$0xff]
      %v811 = vld [vmem:[%s481 + $0xb8] sm:$0x3]
      %v812 = vld [vmem:[%s481 + $0xc0] sm:$0xff]
      %v813 = vld [vmem:[%s481 + $0xc8] sm:$0xff]
      %v814 = vld [vmem:[%s481 + $0xd0] sm:$0x3]
      %v815 = vld [vmem:[%s481 + $0xd8] sm:$0xff]
      %v816 = vld [vmem:[%s481 + $0xe0] sm:$0xff]
      %v817 = vld [vmem:[%s481 + $0xe8] sm:$0x3]
      %v818 = vld [vmem:[%s481 + $0xf0] sm:$0xff]
      %v819 = vld [vmem:[%s481 + $0xf8] sm:$0xff]
      %v820 = vld [vmem:[%s481 + $0x100] sm:$0x3]
      %v821 = vld [vmem:[%s481 + $0x108] sm:$0xff]
      %v822 = vld [vmem:[%s481 + $0x110] sm:$0xff]
      %v823 = vld [vmem:[%s481 + $0x118] sm:$0x3]
      %v824 = vld [vmem:[%s481 + $0x120] sm:$0xff]
      %v825 = vld [vmem:[%s481 + $0x128] sm:$0xff]
      %v826 = vld [vmem:[%s481 + $0x130] sm:$0x3]
      %v827 = vld [vmem:[%s481 + $0x138] sm:$0xff]
      %v828 = vld [vmem:[%s481 + $0x140] sm:$0xff]
      %v829 = vld [vmem:[%s481 + $0x148] sm:$0x3]
      %v830 = vld [vmem:[%s481 + $0x150] sm:$0xff]
      %v831 = vld [vmem:[%s481 + $0x158] sm:$0xff]
      %v832 = vld [vmem:[%s481 + $0x160] sm:$0x3]
      %v833 = vld [vmem:[%s481 + $0x168] sm:$0xff]
      %v834 = vld [vmem:[%s481 + $0x170] sm:$0xff]
      %v835 = vld [vmem:[%s481 + $0x178] sm:$0x3]
      %v884 = vrot.slane %v788, 1
      %v885 = vrot.slane %v789, 1
      %v886 = vsel %vm626, %v884, %v885
      %v887 = vrot.slane %v790, 1
      %v888 = vsel %vm626, %v885, %v887
      %v889 = vrot.slane %v791, 1
      %v890 = vrot.slane %v792, 1
      %v891 = vsel %vm626, %v889, %v890
      %v892 = vrot.slane %v793, 1
      %v893 = vsel %vm626, %v890, %v892
      %v894 = vrot.slane %v794, 1
      %v895 = vrot.slane %v795, 1
      %v896 = vsel %vm626, %v894, %v895
      %v897 = vrot.slane %v796, 1
      %v898 = vsel %vm626, %v895, %v897
      %v899 = vrot.slane %v797, 1
      %v900 = vrot.slane %v798, 1
      %v901 = vsel %vm626, %v899, %v900
      %v902 = vrot.slane %v799, 1
      %v903 = vsel %vm626, %v900, %v902
      %v904 = vrot.slane %v800, 1
      %v905 = vrot.slane %v801, 1
      %v906 = vsel %vm626, %v904, %v905
      %v907 = vrot.slane %v802, 1
      %v908 = vsel %vm626, %v905, %v907
      %v909 = vrot.slane %v803, 1
      %v910 = vrot.slane %v804, 1
      %v911 = vsel %vm626, %v909, %v910
      %v912 = vrot.slane %v805, 1
      %v913 = vsel %vm626, %v910, %v912
      %v914 = vrot.slane %v806, 1
      %v915 = vrot.slane %v807, 1
      %v916 = vsel %vm626, %v914, %v915
      %v917 = vrot.slane %v808, 1
      %v918 = vsel %vm626, %v915, %v917
      %v919 = vrot.slane %v809, 1
      %v920 = vrot.slane %v810, 1
      %v921 = vsel %vm626, %v919, %v920
      %v922 = vrot.slane %v811, 1
      %v923 = vsel %vm626, %v920, %v922
      %v924 = vrot.slane %v812, 1
      %v925 = vrot.slane %v813, 1
      %v926 = vsel %vm626, %v924, %v925
      %v927 = vrot.slane %v814, 1
      %v928 = vsel %vm626, %v925, %v927
      %v929 = vrot.slane %v815, 1
      %v930 = vrot.slane %v816, 1
      %v931 = vsel %vm626, %v929, %v930
      %v932 = vrot.slane %v817, 1
      %v933 = vsel %vm626, %v930, %v932
      %v934 = vrot.slane %v818, 1
      %v935 = vrot.slane %v819, 1
      %v936 = vsel %vm626, %v934, %v935
      %v937 = vrot.slane %v820, 1
      %v938 = vsel %vm626, %v935, %v937
      %v939 = vrot.slane %v821, 1
      %v940 = vrot.slane %v822, 1
      %v941 = vsel %vm626, %v939, %v940
      %v942 = vrot.slane %v823, 1
      %v943 = vsel %vm626, %v940, %v942
      %v944 = vrot.slane %v824, 1
      %v945 = vrot.slane %v825, 1
      %v946 = vsel %vm626, %v944, %v945
      %v947 = vrot.slane %v826, 1
      %v948 = vsel %vm626, %v945, %v947
      %v949 = vrot.slane %v827, 1
      %v950 = vrot.slane %v828, 1
      %v951 = vsel %vm626, %v949, %v950
      %v952 = vrot.slane %v829, 1
      %v953 = vsel %vm626, %v950, %v952
      %v954 = vrot.slane %v830, 1
      %v955 = vrot.slane %v831, 1
      %v956 = vsel %vm626, %v954, %v955
      %v957 = vrot.slane %v832, 1
      %v958 = vsel %vm626, %v955, %v957
      %v959 = vrot.slane %v833, 1
      %v960 = vrot.slane %v834, 1
      %v961 = vsel %vm626, %v959, %v960
      %v962 = vrot.slane %v835, 1
      %v963 = vsel %vm626, %v960, %v962
      %v964 = vrot.slane %v788, 2
      %v965 = vrot.slane %v789, 2
      %v966 = vsel %vm707, %v964, %v965
      %v967 = vrot.slane %v790, 2
      %v968 = vsel %vm707, %v965, %v967
      %v969 = vrot.slane %v791, 2
      %v970 = vrot.slane %v792, 2
      %v971 = vsel %vm707, %v969, %v970
      %v972 = vrot.slane %v793, 2
      %v973 = vsel %vm707, %v970, %v972
      %v974 = vrot.slane %v794, 2
      %v975 = vrot.slane %v795, 2
      %v976 = vsel %vm707, %v974, %v975
      %v977 = vrot.slane %v796, 2
      %v978 = vsel %vm707, %v975, %v977
      %v979 = vrot.slane %v797, 2
      %v980 = vrot.slane %v798, 2
      %v981 = vsel %vm707, %v979, %v980
      %v982 = vrot.slane %v799, 2
      %v983 = vsel %vm707, %v980, %v982
      %v984 = vrot.slane %v800, 2
      %v985 = vrot.slane %v801, 2
      %v986 = vsel %vm707, %v984, %v985
      %v987 = vrot.slane %v802, 2
      %v988 = vsel %vm707, %v985, %v987
      %v989 = vrot.slane %v803, 2
      %v990 = vrot.slane %v804, 2
      %v991 = vsel %vm707, %v989, %v990
      %v992 = vrot.slane %v805, 2
      %v993 = vsel %vm707, %v990, %v992
      %v994 = vrot.slane %v806, 2
      %v995 = vrot.slane %v807, 2
      %v996 = vsel %vm707, %v994, %v995
      %v997 = vrot.slane %v808, 2
      %v998 = vsel %vm707, %v995, %v997
      %v999 = vrot.slane %v809, 2
      %v1000 = vrot.slane %v810, 2
      %v1001 = vsel %vm707, %v999, %v1000
      %v1002 = vrot.slane %v811, 2
      %v1003 = vsel %vm707, %v1000, %v1002
      %v1004 = vrot.slane %v812, 2
      %v1005 = vrot.slane %v813, 2
      %v1006 = vsel %vm707, %v1004, %v1005
      %v1007 = vrot.slane %v814, 2
      %v1008 = vsel %vm707, %v1005, %v1007
      %v1009 = vrot.slane %v815, 2
      %v1010 = vrot.slane %v816, 2
      %v1011 = vsel %vm707, %v1009, %v1010
      %v1012 = vrot.slane %v817, 2
      %v1013 = vsel %vm707, %v1010, %v1012
      %v1014 = vrot.slane %v818, 2
      %v1015 = vrot.slane %v819, 2
      %v1016 = vsel %vm707, %v1014, %v1015
      %v1017 = vrot.slane %v820, 2
      %v1018 = vsel %vm707, %v1015, %v1017
      %v1019 = vrot.slane %v821, 2
      %v1020 = vrot.slane %v822, 2
      %v1021 = vsel %vm707, %v1019, %v1020
      %v1022 = vrot.slane %v823, 2
      %v1023 = vsel %vm707, %v1020, %v1022
      %v1024 = vrot.slane %v824, 2
      %v1025 = vrot.slane %v825, 2
      %v1026 = vsel %vm707, %v1024, %v1025
      %v1027 = vrot.slane %v826, 2
      %v1028 = vsel %vm707, %v1025, %v1027
      %v1029 = vrot.slane %v827, 2
      %v1030 = vrot.slane %v828, 2
      %v1031 = vsel %vm707, %v1029, %v1030
      %v1032 = vrot.slane %v829, 2
      %v1033 = vsel %vm707, %v1030, %v1032
      %v1034 = vrot.slane %v830, 2
      %v1035 = vrot.slane %v831, 2
      %v1036 = vsel %vm707, %v1034, %v1035
      %v1037 = vrot.slane %v832, 2
      %v1038 = vsel %vm707, %v1035, %v1037
      %v1039 = vrot.slane %v833, 2
      %v1040 = vrot.slane %v834, 2
      %v1041 = vsel %vm707, %v1039, %v1040
      %v1042 = vrot.slane %v835, 2
      %v1043 = vsel %vm707, %v1040, %v1042
      %s1044 = scalar_lea.vmem [#allocation2], 48
      %v1045 = vld [vmem:[%s1044] sm:$0xff]
      %v1046 = vld [vmem:[%s1044 + $0x8] sm:$0xff]
      %v1047 = vld [vmem:[%s1044 + $0x10] sm:$0x3]
      %v1048 = vld [vmem:[%s1044 + $0x18] sm:$0xff]
      %v1049 = vld [vmem:[%s1044 + $0x20] sm:$0xff]
      %v1050 = vld [vmem:[%s1044 + $0x28] sm:$0x3]
      %v1051 = vld [vmem:[%s1044 + $0x30] sm:$0xff]
      %v1052 = vld [vmem:[%s1044 + $0x38] sm:$0xff]
      %v1053 = vld [vmem:[%s1044 + $0x40] sm:$0x3]
      %v1054 = vld [vmem:[%s1044 + $0x48] sm:$0xff]
      %v1055 = vld [vmem:[%s1044 + $0x50] sm:$0xff]
      %v1056 = vld [vmem:[%s1044 + $0x58] sm:$0x3]
      %v1057 = vld [vmem:[%s1044 + $0x60] sm:$0xff]
      %v1058 = vld [vmem:[%s1044 + $0x68] sm:$0xff]
      %v1059 = vld [vmem:[%s1044 + $0x70] sm:$0x3]
      %v1060 = vld [vmem:[%s1044 + $0x78] sm:$0xff]
      %v1061 = vld [vmem:[%s1044 + $0x80] sm:$0xff]
      %v1062 = vld [vmem:[%s1044 + $0x88] sm:$0x3]
      %v1063 = vld [vmem:[%s1044 + $0x90] sm:$0xff]
      %v1064 = vld [vmem:[%s1044 + $0x98] sm:$0xff]
      %v1065 = vld [vmem:[%s1044 + $0xa0] sm:$0x3]
      %v1066 = vld [vmem:[%s1044 + $0xa8] sm:$0xff]
      %v1067 = vld [vmem:[%s1044 + $0xb0] sm:$0xff]
      %v1068 = vld [vmem:[%s1044 + $0xb8] sm:$0x3]
      %v1069 = vld [vmem:[%s1044 + $0xc0] sm:$0xff]
      %v1070 = vld [vmem:[%s1044 + $0xc8] sm:$0xff]
      %v1071 = vld [vmem:[%s1044 + $0xd0] sm:$0x3]
      %v1072 = vld [vmem:[%s1044 + $0xd8] sm:$0xff]
      %v1073 = vld [vmem:[%s1044 + $0xe0] sm:$0xff]
      %v1074 = vld [vmem:[%s1044 + $0xe8] sm:$0x3]
      %v1075 = vld [vmem:[%s1044 + $0xf0] sm:$0xff]
      %v1076 = vld [vmem:[%s1044 + $0xf8] sm:$0xff]
      %v1077 = vld [vmem:[%s1044 + $0x100] sm:$0x3]
      %v1078 = vld [vmem:[%s1044 + $0x108] sm:$0xff]
      %v1079 = vld [vmem:[%s1044 + $0x110] sm:$0xff]
      %v1080 = vld [vmem:[%s1044 + $0x118] sm:$0x3]
      %v1081 = vld [vmem:[%s1044 + $0x120] sm:$0xff]
      %v1082 = vld [vmem:[%s1044 + $0x128] sm:$0xff]
      %v1083 = vld [vmem:[%s1044 + $0x130] sm:$0x3]
      %v1084 = vld [vmem:[%s1044 + $0x138] sm:$0xff]
      %v1085 = vld [vmem:[%s1044 + $0x140] sm:$0xff]
      %v1086 = vld [vmem:[%s1044 + $0x148] sm:$0x3]
      %v1087 = vld [vmem:[%s1044 + $0x150] sm:$0xff]
      %v1088 = vld [vmem:[%s1044 + $0x158] sm:$0xff]
      %v1089 = vld [vmem:[%s1044 + $0x160] sm:$0x3]
      %v1090 = vld [vmem:[%s1044 + $0x168] sm:$0xff]
      %v1091 = vld [vmem:[%s1044 + $0x170] sm:$0xff]
      %v1092 = vld [vmem:[%s1044 + $0x178] sm:$0x3]
      %v1141 = vrot.slane %v1045, 1
      %v1142 = vrot.slane %v1046, 1
      %v1143 = vsel %vm626, %v1141, %v1142
      %v1144 = vrot.slane %v1047, 1
      %v1145 = vsel %vm626, %v1142, %v1144
      %v1146 = vrot.slane %v1048, 1
      %v1147 = vrot.slane %v1049, 1
      %v1148 = vsel %vm626, %v1146, %v1147
      %v1149 = vrot.slane %v1050, 1
      %v1150 = vsel %vm626, %v1147, %v1149
      %v1151 = vrot.slane %v1051, 1
      %v1152 = vrot.slane %v1052, 1
      %v1153 = vsel %vm626, %v1151, %v1152
      %v1154 = vrot.slane %v1053, 1
      %v1155 = vsel %vm626, %v1152, %v1154
      %v1156 = vrot.slane %v1054, 1
      %v1157 = vrot.slane %v1055, 1
      %v1158 = vsel %vm626, %v1156, %v1157
      %v1159 = vrot.slane %v1056, 1
      %v1160 = vsel %vm626, %v1157, %v1159
      %v1161 = vrot.slane %v1057, 1
      %v1162 = vrot.slane %v1058, 1
      %v1163 = vsel %vm626, %v1161, %v1162
      %v1164 = vrot.slane %v1059, 1
      %v1165 = vsel %vm626, %v1162, %v1164
      %v1166 = vrot.slane %v1060, 1
      %v1167 = vrot.slane %v1061, 1
      %v1168 = vsel %vm626, %v1166, %v1167
      %v1169 = vrot.slane %v1062, 1
      %v1170 = vsel %vm626, %v1167, %v1169
      %v1171 = vrot.slane %v1063, 1
      %v1172 = vrot.slane %v1064, 1
      %v1173 = vsel %vm626, %v1171, %v1172
      %v1174 = vrot.slane %v1065, 1
      %v1175 = vsel %vm626, %v1172, %v1174
      %v1176 = vrot.slane %v1066, 1
      %v1177 = vrot.slane %v1067, 1
      %v1178 = vsel %vm626, %v1176, %v1177
      %v1179 = vrot.slane %v1068, 1
      %v1180 = vsel %vm626, %v1177, %v1179
      %v1181 = vrot.slane %v1069, 1
      %v1182 = vrot.slane %v1070, 1
      %v1183 = vsel %vm626, %v1181, %v1182
      %v1184 = vrot.slane %v1071, 1
      %v1185 = vsel %vm626, %v1182, %v1184
      %v1186 = vrot.slane %v1072, 1
      %v1187 = vrot.slane %v1073, 1
      %v1188 = vsel %vm626, %v1186, %v1187
      %v1189 = vrot.slane %v1074, 1
      %v1190 = vsel %vm626, %v1187, %v1189
      %v1191 = vrot.slane %v1075, 1
      %v1192 = vrot.slane %v1076, 1
      %v1193 = vsel %vm626, %v1191, %v1192
      %v1194 = vrot.slane %v1077, 1
      %v1195 = vsel %vm626, %v1192, %v1194
      %v1196 = vrot.slane %v1078, 1
      %v1197 = vrot.slane %v1079, 1
      %v1198 = vsel %vm626, %v1196, %v1197
      %v1199 = vrot.slane %v1080, 1
      %v1200 = vsel %vm626, %v1197, %v1199
      %v1201 = vrot.slane %v1081, 1
      %v1202 = vrot.slane %v1082, 1
      %v1203 = vsel %vm626, %v1201, %v1202
      %v1204 = vrot.slane %v1083, 1
      %v1205 = vsel %vm626, %v1202, %v1204
      %v1206 = vrot.slane %v1084, 1
      %v1207 = vrot.slane %v1085, 1
      %v1208 = vsel %vm626, %v1206, %v1207
      %v1209 = vrot.slane %v1086, 1
      %v1210 = vsel %vm626, %v1207, %v1209
      %v1211 = vrot.slane %v1087, 1
      %v1212 = vrot.slane %v1088, 1
      %v1213 = vsel %vm626, %v1211, %v1212
      %v1214 = vrot.slane %v1089, 1
      %v1215 = vsel %vm626, %v1212, %v1214
      %v1216 = vrot.slane %v1090, 1
      %v1217 = vrot.slane %v1091, 1
      %v1218 = vsel %vm626, %v1216, %v1217
      %v1219 = vrot.slane %v1092, 1
      %v1220 = vsel %vm626, %v1217, %v1219
      %v1221 = vrot.slane %v1045, 2
      %v1222 = vrot.slane %v1046, 2
      %v1223 = vsel %vm707, %v1221, %v1222
      %v1224 = vrot.slane %v1047, 2
      %v1225 = vsel %vm707, %v1222, %v1224
      %v1226 = vrot.slane %v1048, 2
      %v1227 = vrot.slane %v1049, 2
      %v1228 = vsel %vm707, %v1226, %v1227
      %v1229 = vrot.slane %v1050, 2
      %v1230 = vsel %vm707, %v1227, %v1229
      %v1231 = vrot.slane %v1051, 2
      %v1232 = vrot.slane %v1052, 2
      %v1233 = vsel %vm707, %v1231, %v1232
      %v1234 = vrot.slane %v1053, 2
      %v1235 = vsel %vm707, %v1232, %v1234
      %v1236 = vrot.slane %v1054, 2
      %v1237 = vrot.slane %v1055, 2
      %v1238 = vsel %vm707, %v1236, %v1237
      %v1239 = vrot.slane %v1056, 2
      %v1240 = vsel %vm707, %v1237, %v1239
      %v1241 = vrot.slane %v1057, 2
      %v1242 = vrot.slane %v1058, 2
      %v1243 = vsel %vm707, %v1241, %v1242
      %v1244 = vrot.slane %v1059, 2
      %v1245 = vsel %vm707, %v1242, %v1244
      %v1246 = vrot.slane %v1060, 2
      %v1247 = vrot.slane %v1061, 2
      %v1248 = vsel %vm707, %v1246, %v1247
      %v1249 = vrot.slane %v1062, 2
      %v1250 = vsel %vm707, %v1247, %v1249
      %v1251 = vrot.slane %v1063, 2
      %v1252 = vrot.slane %v1064, 2
      %v1253 = vsel %vm707, %v1251, %v1252
      %v1254 = vrot.slane %v1065, 2
      %v1255 = vsel %vm707, %v1252, %v1254
      %v1256 = vrot.slane %v1066, 2
      %v1257 = vrot.slane %v1067, 2
      %v1258 = vsel %vm707, %v1256, %v1257
      %v1259 = vrot.slane %v1068, 2
      %v1260 = vsel %vm707, %v1257, %v1259
      %v1261 = vrot.slane %v1069, 2
      %v1262 = vrot.slane %v1070, 2
      %v1263 = vsel %vm707, %v1261, %v1262
      %v1264 = vrot.slane %v1071, 2
      %v1265 = vsel %vm707, %v1262, %v1264
      %v1266 = vrot.slane %v1072, 2
      %v1267 = vrot.slane %v1073, 2
      %v1268 = vsel %vm707, %v1266, %v1267
      %v1269 = vrot.slane %v1074, 2
      %v1270 = vsel %vm707, %v1267, %v1269
      %v1271 = vrot.slane %v1075, 2
      %v1272 = vrot.slane %v1076, 2
      %v1273 = vsel %vm707, %v1271, %v1272
      %v1274 = vrot.slane %v1077, 2
      %v1275 = vsel %vm707, %v1272, %v1274
      %v1276 = vrot.slane %v1078, 2
      %v1277 = vrot.slane %v1079, 2
      %v1278 = vsel %vm707, %v1276, %v1277
      %v1279 = vrot.slane %v1080, 2
      %v1280 = vsel %vm707, %v1277, %v1279
      %v1281 = vrot.slane %v1081, 2
      %v1282 = vrot.slane %v1082, 2
      %v1283 = vsel %vm707, %v1281, %v1282
      %v1284 = vrot.slane %v1083, 2
      %v1285 = vsel %vm707, %v1282, %v1284
      %v1286 = vrot.slane %v1084, 2
      %v1287 = vrot.slane %v1085, 2
      %v1288 = vsel %vm707, %v1286, %v1287
      %v1289 = vrot.slane %v1086, 2
      %v1290 = vsel %vm707, %v1287, %v1289
      %v1291 = vrot.slane %v1087, 2
      %v1292 = vrot.slane %v1088, 2
      %v1293 = vsel %vm707, %v1291, %v1292
      %v1294 = vrot.slane %v1089, 2
      %v1295 = vsel %vm707, %v1292, %v1294
      %v1296 = vrot.slane %v1090, 2
      %v1297 = vrot.slane %v1091, 2
      %v1298 = vsel %vm707, %v1296, %v1297
      %v1299 = vrot.slane %v1092, 2
      %v1300 = vsel %vm707, %v1297, %v1299
      %1301 = vrot.lane.b32.xlu0 %v629, 8
      %v1302 = vpop.permute.xlu0 %1301
      %1303 = vrot.lane.b32.xlu0 %v631, 8
      %v1304 = vpop.permute.xlu0 %1303
      %1305 = vrot.lane.b32.xlu0 %v634, 8
      %v1306 = vpop.permute.xlu0 %1305
      %1307 = vrot.lane.b32.xlu0 %v636, 8
      %v1308 = vpop.permute.xlu0 %1307
      %1309 = vrot.lane.b32.xlu0 %v639, 8
      %v1310 = vpop.permute.xlu0 %1309
      %1311 = vrot.lane.b32.xlu0 %v641, 8
      %v1312 = vpop.permute.xlu0 %1311
      %1313 = vrot.lane.b32.xlu0 %v644, 8
      %v1314 = vpop.permute.xlu0 %1313
      %1315 = vrot.lane.b32.xlu0 %v646, 8
      %v1316 = vpop.permute.xlu0 %1315
      %1317 = vrot.lane.b32.xlu0 %v649, 8
      %v1318 = vpop.permute.xlu0 %1317
      %1319 = vrot.lane.b32.xlu0 %v651, 8
      %v1320 = vpop.permute.xlu0 %1319
      %1321 = vrot.lane.b32.xlu0 %v654, 8
      %v1322 = vpop.permute.xlu0 %1321
      %1323 = vrot.lane.b32.xlu0 %v656, 8
      %v1324 = vpop.permute.xlu0 %1323
      %1325 = vrot.lane.b32.xlu0 %v659, 8
      %v1326 = vpop.permute.xlu0 %1325
      %1327 = vrot.lane.b32.xlu0 %v661, 8
      %v1328 = vpop.permute.xlu0 %1327
      %1329 = vrot.lane.b32.xlu0 %v664, 8
      %v1330 = vpop.permute.xlu0 %1329
      %1331 = vrot.lane.b32.xlu0 %v666, 8
      %v1332 = vpop.permute.xlu0 %1331
      %1333 = vrot.lane.b32.xlu0 %v669, 8
      %v1334 = vpop.permute.xlu0 %1333
      %1335 = vrot.lane.b32.xlu0 %v671, 8
      %v1336 = vpop.permute.xlu0 %1335
      %1337 = vrot.lane.b32.xlu0 %v674, 8
      %v1338 = vpop.permute.xlu0 %1337
      %1339 = vrot.lane.b32.xlu0 %v676, 8
      %v1340 = vpop.permute.xlu0 %1339
      %1341 = vrot.lane.b32.xlu0 %v679, 8
      %v1342 = vpop.permute.xlu0 %1341
      %1343 = vrot.lane.b32.xlu0 %v681, 8
      %v1344 = vpop.permute.xlu0 %1343
      %1345 = vrot.lane.b32.xlu0 %v684, 8
      %v1346 = vpop.permute.xlu0 %1345
      %1347 = vrot.lane.b32.xlu0 %v686, 8
      %v1348 = vpop.permute.xlu0 %1347
      %1349 = vrot.lane.b32.xlu0 %v689, 8
      %v1350 = vpop.permute.xlu0 %1349
      %1351 = vrot.lane.b32.xlu0 %v691, 8
      %v1352 = vpop.permute.xlu0 %1351
      %1353 = vrot.lane.b32.xlu0 %v694, 8
      %v1354 = vpop.permute.xlu0 %1353
      %1355 = vrot.lane.b32.xlu0 %v696, 8
      %v1356 = vpop.permute.xlu0 %1355
      %1357 = vrot.lane.b32.xlu0 %v699, 8
      %v1358 = vpop.permute.xlu0 %1357
      %1359 = vrot.lane.b32.xlu0 %v701, 8
      %v1360 = vpop.permute.xlu0 %1359
      %1361 = vrot.lane.b32.xlu0 %v704, 8
      %v1362 = vpop.permute.xlu0 %1361
      %1363 = vrot.lane.b32.xlu0 %v706, 8
      %v1364 = vpop.permute.xlu0 %1363
      %1397 = vrot.lane.b32.xlu0 %v710, 16
      %v1398 = vpop.permute.xlu0 %1397
      %1399 = vrot.lane.b32.xlu0 %v712, 16
      %v1400 = vpop.permute.xlu0 %1399
      %1401 = vrot.lane.b32.xlu0 %v715, 16
      %v1402 = vpop.permute.xlu0 %1401
      %1403 = vrot.lane.b32.xlu0 %v717, 16
      %v1404 = vpop.permute.xlu0 %1403
      %1405 = vrot.lane.b32.xlu0 %v720, 16
      %v1406 = vpop.permute.xlu0 %1405
      %1407 = vrot.lane.b32.xlu0 %v722, 16
      %v1408 = vpop.permute.xlu0 %1407
      %1409 = vrot.lane.b32.xlu0 %v725, 16
      %v1410 = vpop.permute.xlu0 %1409
      %1411 = vrot.lane.b32.xlu0 %v727, 16
      %v1412 = vpop.permute.xlu0 %1411
      %1413 = vrot.lane.b32.xlu0 %v730, 16
      %v1414 = vpop.permute.xlu0 %1413
      %1415 = vrot.lane.b32.xlu0 %v732, 16
      %v1416 = vpop.permute.xlu0 %1415
      %1417 = vrot.lane.b32.xlu0 %v735, 16
      %v1418 = vpop.permute.xlu0 %1417
      %1419 = vrot.lane.b32.xlu0 %v737, 16
      %v1420 = vpop.permute.xlu0 %1419
      %1421 = vrot.lane.b32.xlu0 %v740, 16
      %v1422 = vpop.permute.xlu0 %1421
      %1423 = vrot.lane.b32.xlu0 %v742, 16
      %v1424 = vpop.permute.xlu0 %1423
      %1425 = vrot.lane.b32.xlu0 %v745, 16
      %v1426 = vpop.permute.xlu0 %1425
      %1427 = vrot.lane.b32.xlu0 %v747, 16
      %v1428 = vpop.permute.xlu0 %1427
      %1429 = vrot.lane.b32.xlu0 %v750, 16
      %v1430 = vpop.permute.xlu0 %1429
      %1431 = vrot.lane.b32.xlu0 %v752, 16
      %v1432 = vpop.permute.xlu0 %1431
      %1433 = vrot.lane.b32.xlu0 %v755, 16
      %v1434 = vpop.permute.xlu0 %1433
      %1435 = vrot.lane.b32.xlu0 %v757, 16
      %v1436 = vpop.permute.xlu0 %1435
      %1437 = vrot.lane.b32.xlu0 %v760, 16
      %v1438 = vpop.permute.xlu0 %1437
      %1439 = vrot.lane.b32.xlu0 %v762, 16
      %v1440 = vpop.permute.xlu0 %1439
      %1441 = vrot.lane.b32.xlu0 %v765, 16
      %v1442 = vpop.permute.xlu0 %1441
      %1443 = vrot.lane.b32.xlu0 %v767, 16
      %v1444 = vpop.permute.xlu0 %1443
      %1445 = vrot.lane.b32.xlu0 %v770, 16
      %v1446 = vpop.permute.xlu0 %1445
      %1447 = vrot.lane.b32.xlu0 %v772, 16
      %v1448 = vpop.permute.xlu0 %1447
      %1449 = vrot.lane.b32.xlu0 %v775, 16
      %v1450 = vpop.permute.xlu0 %1449
      %1451 = vrot.lane.b32.xlu0 %v777, 16
      %v1452 = vpop.permute.xlu0 %1451
      %1453 = vrot.lane.b32.xlu0 %v780, 16
      %v1454 = vpop.permute.xlu0 %1453
      %1455 = vrot.lane.b32.xlu0 %v782, 16
      %v1456 = vpop.permute.xlu0 %1455
      %1457 = vrot.lane.b32.xlu0 %v785, 16
      %v1458 = vpop.permute.xlu0 %1457
      %1459 = vrot.lane.b32.xlu0 %v787, 16
      %v1460 = vpop.permute.xlu0 %1459
      %1493 = vrot.lane.b32.xlu0 %v788, 24
      %v1494 = vpop.permute.xlu0 %1493
      %1495 = vrot.lane.b32.xlu0 %v789, 24
      %v1496 = vpop.permute.xlu0 %1495
      %1497 = vrot.lane.b32.xlu0 %v791, 24
      %v1498 = vpop.permute.xlu0 %1497
      %1499 = vrot.lane.b32.xlu0 %v792, 24
      %v1500 = vpop.permute.xlu0 %1499
      %1501 = vrot.lane.b32.xlu0 %v794, 24
      %v1502 = vpop.permute.xlu0 %1501
      %1503 = vrot.lane.b32.xlu0 %v795, 24
      %v1504 = vpop.permute.xlu0 %1503
      %1505 = vrot.lane.b32.xlu0 %v797, 24
      %v1506 = vpop.permute.xlu0 %1505
      %1507 = vrot.lane.b32.xlu0 %v798, 24
      %v1508 = vpop.permute.xlu0 %1507
      %1509 = vrot.lane.b32.xlu0 %v800, 24
      %v1510 = vpop.permute.xlu0 %1509
      %1511 = vrot.lane.b32.xlu0 %v801, 24
      %v1512 = vpop.permute.xlu0 %1511
      %1513 = vrot.lane.b32.xlu0 %v803, 24
      %v1514 = vpop.permute.xlu0 %1513
      %1515 = vrot.lane.b32.xlu0 %v804, 24
      %v1516 = vpop.permute.xlu0 %1515
      %1517 = vrot.lane.b32.xlu0 %v806, 24
      %v1518 = vpop.permute.xlu0 %1517
      %1519 = vrot.lane.b32.xlu0 %v807, 24
      %v1520 = vpop.permute.xlu0 %1519
      %1521 = vrot.lane.b32.xlu0 %v809, 24
      %v1522 = vpop.permute.xlu0 %1521
      %1523 = vrot.lane.b32.xlu0 %v810, 24
      %v1524 = vpop.permute.xlu0 %1523
      %1525 = vrot.lane.b32.xlu0 %v812, 24
      %v1526 = vpop.permute.xlu0 %1525
      %1527 = vrot.lane.b32.xlu0 %v813, 24
      %v1528 = vpop.permute.xlu0 %1527
      %1529 = vrot.lane.b32.xlu0 %v815, 24
      %v1530 = vpop.permute.xlu0 %1529
      %1531 = vrot.lane.b32.xlu0 %v816, 24
      %v1532 = vpop.permute.xlu0 %1531
      %1533 = vrot.lane.b32.xlu0 %v818, 24
      %v1534 = vpop.permute.xlu0 %1533
      %1535 = vrot.lane.b32.xlu0 %v819, 24
      %v1536 = vpop.permute.xlu0 %1535
      %1537 = vrot.lane.b32.xlu0 %v821, 24
      %v1538 = vpop.permute.xlu0 %1537
      %1539 = vrot.lane.b32.xlu0 %v822, 24
      %v1540 = vpop.permute.xlu0 %1539
      %1541 = vrot.lane.b32.xlu0 %v824, 24
      %v1542 = vpop.permute.xlu0 %1541
      %1543 = vrot.lane.b32.xlu0 %v825, 24
      %v1544 = vpop.permute.xlu0 %1543
      %1545 = vrot.lane.b32.xlu0 %v827, 24
      %v1546 = vpop.permute.xlu0 %1545
      %1547 = vrot.lane.b32.xlu0 %v828, 24
      %v1548 = vpop.permute.xlu0 %1547
      %1549 = vrot.lane.b32.xlu0 %v830, 24
      %v1550 = vpop.permute.xlu0 %1549
      %1551 = vrot.lane.b32.xlu0 %v831, 24
      %v1552 = vpop.permute.xlu0 %1551
      %1553 = vrot.lane.b32.xlu0 %v833, 24
      %v1554 = vpop.permute.xlu0 %1553
      %1555 = vrot.lane.b32.xlu0 %v834, 24
      %v1556 = vpop.permute.xlu0 %1555
      %1589 = vrot.lane.b32.xlu0 %v886, 32
      %v1590 = vpop.permute.xlu0 %1589
      %1591 = vrot.lane.b32.xlu0 %v888, 32
      %v1592 = vpop.permute.xlu0 %1591
      %1593 = vrot.lane.b32.xlu0 %v891, 32
      %v1594 = vpop.permute.xlu0 %1593
      %1595 = vrot.lane.b32.xlu0 %v893, 32
      %v1596 = vpop.permute.xlu0 %1595
      %1597 = vrot.lane.b32.xlu0 %v896, 32
      %v1598 = vpop.permute.xlu0 %1597
      %1599 = vrot.lane.b32.xlu0 %v898, 32
      %v1600 = vpop.permute.xlu0 %1599
      %1601 = vrot.lane.b32.xlu0 %v901, 32
      %v1602 = vpop.permute.xlu0 %1601
      %1603 = vrot.lane.b32.xlu0 %v903, 32
      %v1604 = vpop.permute.xlu0 %1603
      %1605 = vrot.lane.b32.xlu0 %v906, 32
      %v1606 = vpop.permute.xlu0 %1605
      %1607 = vrot.lane.b32.xlu0 %v908, 32
      %v1608 = vpop.permute.xlu0 %1607
      %1609 = vrot.lane.b32.xlu0 %v911, 32
      %v1610 = vpop.permute.xlu0 %1609
      %1611 = vrot.lane.b32.xlu0 %v913, 32
      %v1612 = vpop.permute.xlu0 %1611
      %1613 = vrot.lane.b32.xlu0 %v916, 32
      %v1614 = vpop.permute.xlu0 %1613
      %1615 = vrot.lane.b32.xlu0 %v918, 32
      %v1616 = vpop.permute.xlu0 %1615
      %1617 = vrot.lane.b32.xlu0 %v921, 32
      %v1618 = vpop.permute.xlu0 %1617
      %1619 = vrot.lane.b32.xlu0 %v923, 32
      %v1620 = vpop.permute.xlu0 %1619
      %1621 = vrot.lane.b32.xlu0 %v926, 32
      %v1622 = vpop.permute.xlu0 %1621
      %1623 = vrot.lane.b32.xlu0 %v928, 32
      %v1624 = vpop.permute.xlu0 %1623
      %1625 = vrot.lane.b32.xlu0 %v931, 32
      %v1626 = vpop.permute.xlu0 %1625
      %1627 = vrot.lane.b32.xlu0 %v933, 32
      %v1628 = vpop.permute.xlu0 %1627
      %1629 = vrot.lane.b32.xlu0 %v936, 32
      %v1630 = vpop.permute.xlu0 %1629
      %1631 = vrot.lane.b32.xlu0 %v938, 32
      %v1632 = vpop.permute.xlu0 %1631
      %1633 = vrot.lane.b32.xlu0 %v941, 32
      %v1634 = vpop.permute.xlu0 %1633
      %1635 = vrot.lane.b32.xlu0 %v943, 32
      %v1636 = vpop.permute.xlu0 %1635
      %1637 = vrot.lane.b32.xlu0 %v946, 32
      %v1638 = vpop.permute.xlu0 %1637
      %1639 = vrot.lane.b32.xlu0 %v948, 32
      %v1640 = vpop.permute.xlu0 %1639
      %1641 = vrot.lane.b32.xlu0 %v951, 32
      %v1642 = vpop.permute.xlu0 %1641
      %1643 = vrot.lane.b32.xlu0 %v953, 32
      %v1644 = vpop.permute.xlu0 %1643
      %1645 = vrot.lane.b32.xlu0 %v956, 32
      %v1646 = vpop.permute.xlu0 %1645
      %1647 = vrot.lane.b32.xlu0 %v958, 32
      %v1648 = vpop.permute.xlu0 %1647
      %1649 = vrot.lane.b32.xlu0 %v961, 32
      %v1650 = vpop.permute.xlu0 %1649
      %1651 = vrot.lane.b32.xlu0 %v963, 32
      %v1652 = vpop.permute.xlu0 %1651
      %1685 = vrot.lane.b32.xlu0 %v966, 40
      %v1686 = vpop.permute.xlu0 %1685
      %1687 = vrot.lane.b32.xlu0 %v968, 40
      %v1688 = vpop.permute.xlu0 %1687
      %1689 = vrot.lane.b32.xlu0 %v971, 40
      %v1690 = vpop.permute.xlu0 %1689
      %1691 = vrot.lane.b32.xlu0 %v973, 40
      %v1692 = vpop.permute.xlu0 %1691
      %1693 = vrot.lane.b32.xlu0 %v976, 40
      %v1694 = vpop.permute.xlu0 %1693
      %1695 = vrot.lane.b32.xlu0 %v978, 40
      %v1696 = vpop.permute.xlu0 %1695
      %1697 = vrot.lane.b32.xlu0 %v981, 40
      %v1698 = vpop.permute.xlu0 %1697
      %1699 = vrot.lane.b32.xlu0 %v983, 40
      %v1700 = vpop.permute.xlu0 %1699
      %1701 = vrot.lane.b32.xlu0 %v986, 40
      %v1702 = vpop.permute.xlu0 %1701
      %1703 = vrot.lane.b32.xlu0 %v988, 40
      %v1704 = vpop.permute.xlu0 %1703
      %1705 = vrot.lane.b32.xlu0 %v991, 40
      %v1706 = vpop.permute.xlu0 %1705
      %1707 = vrot.lane.b32.xlu0 %v993, 40
      %v1708 = vpop.permute.xlu0 %1707
      %1709 = vrot.lane.b32.xlu0 %v996, 40
      %v1710 = vpop.permute.xlu0 %1709
      %1711 = vrot.lane.b32.xlu0 %v998, 40
      %v1712 = vpop.permute.xlu0 %1711
      %1713 = vrot.lane.b32.xlu0 %v1001, 40
      %v1714 = vpop.permute.xlu0 %1713
      %1715 = vrot.lane.b32.xlu0 %v1003, 40
      %v1716 = vpop.permute.xlu0 %1715
      %1717 = vrot.lane.b32.xlu0 %v1006, 40
      %v1718 = vpop.permute.xlu0 %1717
      %1719 = vrot.lane.b32.xlu0 %v1008, 40
      %v1720 = vpop.permute.xlu0 %1719
      %1721 = vrot.lane.b32.xlu0 %v1011, 40
      %v1722 = vpop.permute.xlu0 %1721
      %1723 = vrot.lane.b32.xlu0 %v1013, 40
      %v1724 = vpop.permute.xlu0 %1723
      %1725 = vrot.lane.b32.xlu0 %v1016, 40
      %v1726 = vpop.permute.xlu0 %1725
      %1727 = vrot.lane.b32.xlu0 %v1018, 40
      %v1728 = vpop.permute.xlu0 %1727
      %1729 = vrot.lane.b32.xlu0 %v1021, 40
      %v1730 = vpop.permute.xlu0 %1729
      %1731 = vrot.lane.b32.xlu0 %v1023, 40
      %v1732 = vpop.permute.xlu0 %1731
      %1733 = vrot.lane.b32.xlu0 %v1026, 40
      %v1734 = vpop.permute.xlu0 %1733
      %1735 = vrot.lane.b32.xlu0 %v1028, 40
      %v1736 = vpop.permute.xlu0 %1735
      %1737 = vrot.lane.b32.xlu0 %v1031, 40
      %v1738 = vpop.permute.xlu0 %1737
      %1739 = vrot.lane.b32.xlu0 %v1033, 40
      %v1740 = vpop.permute.xlu0 %1739
      %1741 = vrot.lane.b32.xlu0 %v1036, 40
      %v1742 = vpop.permute.xlu0 %1741
      %1743 = vrot.lane.b32.xlu0 %v1038, 40
      %v1744 = vpop.permute.xlu0 %1743
      %1745 = vrot.lane.b32.xlu0 %v1041, 40
      %v1746 = vpop.permute.xlu0 %1745
      %1747 = vrot.lane.b32.xlu0 %v1043, 40
      %v1748 = vpop.permute.xlu0 %1747
      %1781 = vrot.lane.b32.xlu0 %v1045, 48
      %v1782 = vpop.permute.xlu0 %1781
      %1783 = vrot.lane.b32.xlu0 %v1046, 48
      %v1784 = vpop.permute.xlu0 %1783
      %1785 = vrot.lane.b32.xlu0 %v1048, 48
      %v1786 = vpop.permute.xlu0 %1785
      %1787 = vrot.lane.b32.xlu0 %v1049, 48
      %v1788 = vpop.permute.xlu0 %1787
      %1789 = vrot.lane.b32.xlu0 %v1051, 48
      %v1790 = vpop.permute.xlu0 %1789
      %1791 = vrot.lane.b32.xlu0 %v1052, 48
      %v1792 = vpop.permute.xlu0 %1791
      %1793 = vrot.lane.b32.xlu0 %v1054, 48
      %v1794 = vpop.permute.xlu0 %1793
      %1795 = vrot.lane.b32.xlu0 %v1055, 48
      %v1796 = vpop.permute.xlu0 %1795
      %1797 = vrot.lane.b32.xlu0 %v1057, 48
      %v1798 = vpop.permute.xlu0 %1797
      %1799 = vrot.lane.b32.xlu0 %v1058, 48
      %v1800 = vpop.permute.xlu0 %1799
      %1801 = vrot.lane.b32.xlu0 %v1060, 48
      %v1802 = vpop.permute.xlu0 %1801
      %1803 = vrot.lane.b32.xlu0 %v1061, 48
      %v1804 = vpop.permute.xlu0 %1803
      %1805 = vrot.lane.b32.xlu0 %v1063, 48
      %v1806 = vpop.permute.xlu0 %1805
      %1807 = vrot.lane.b32.xlu0 %v1064, 48
      %v1808 = vpop.permute.xlu0 %1807
      %1809 = vrot.lane.b32.xlu0 %v1066, 48
      %v1810 = vpop.permute.xlu0 %1809
      %1811 = vrot.lane.b32.xlu0 %v1067, 48
      %v1812 = vpop.permute.xlu0 %1811
      %1813 = vrot.lane.b32.xlu0 %v1069, 48
      %v1814 = vpop.permute.xlu0 %1813
      %1815 = vrot.lane.b32.xlu0 %v1070, 48
      %v1816 = vpop.permute.xlu0 %1815
      %1817 = vrot.lane.b32.xlu0 %v1072, 48
      %v1818 = vpop.permute.xlu0 %1817
      %1819 = vrot.lane.b32.xlu0 %v1073, 48
      %v1820 = vpop.permute.xlu0 %1819
      %1821 = vrot.lane.b32.xlu0 %v1075, 48
      %v1822 = vpop.permute.xlu0 %1821
      %1823 = vrot.lane.b32.xlu0 %v1076, 48
      %v1824 = vpop.permute.xlu0 %1823
      %1825 = vrot.lane.b32.xlu0 %v1078, 48
      %v1826 = vpop.permute.xlu0 %1825
      %1827 = vrot.lane.b32.xlu0 %v1079, 48
      %v1828 = vpop.permute.xlu0 %1827
      %1829 = vrot.lane.b32.xlu0 %v1081, 48
      %v1830 = vpop.permute.xlu0 %1829
      %1831 = vrot.lane.b32.xlu0 %v1082, 48
      %v1832 = vpop.permute.xlu0 %1831
      %1833 = vrot.lane.b32.xlu0 %v1084, 48
      %v1834 = vpop.permute.xlu0 %1833
      %1835 = vrot.lane.b32.xlu0 %v1085, 48
      %v1836 = vpop.permute.xlu0 %1835
      %1837 = vrot.lane.b32.xlu0 %v1087, 48
      %v1838 = vpop.permute.xlu0 %1837
      %1839 = vrot.lane.b32.xlu0 %v1088, 48
      %v1840 = vpop.permute.xlu0 %1839
      %1841 = vrot.lane.b32.xlu0 %v1090, 48
      %v1842 = vpop.permute.xlu0 %1841
      %1843 = vrot.lane.b32.xlu0 %v1091, 48
      %v1844 = vpop.permute.xlu0 %1843
      %1877 = vrot.lane.b32.xlu0 %v1143, 56
      %v1878 = vpop.permute.xlu0 %1877
      %1879 = vrot.lane.b32.xlu0 %v1145, 56
      %v1880 = vpop.permute.xlu0 %1879
      %1881 = vrot.lane.b32.xlu0 %v1148, 56
      %v1882 = vpop.permute.xlu0 %1881
      %1883 = vrot.lane.b32.xlu0 %v1150, 56
      %v1884 = vpop.permute.xlu0 %1883
      %1885 = vrot.lane.b32.xlu0 %v1153, 56
      %v1886 = vpop.permute.xlu0 %1885
      %1887 = vrot.lane.b32.xlu0 %v1155, 56
      %v1888 = vpop.permute.xlu0 %1887
      %1889 = vrot.lane.b32.xlu0 %v1158, 56
      %v1890 = vpop.permute.xlu0 %1889
      %1891 = vrot.lane.b32.xlu0 %v1160, 56
      %v1892 = vpop.permute.xlu0 %1891
      %1893 = vrot.lane.b32.xlu0 %v1163, 56
      %v1894 = vpop.permute.xlu0 %1893
      %1895 = vrot.lane.b32.xlu0 %v1165, 56
      %v1896 = vpop.permute.xlu0 %1895
      %1897 = vrot.lane.b32.xlu0 %v1168, 56
      %v1898 = vpop.permute.xlu0 %1897
      %1899 = vrot.lane.b32.xlu0 %v1170, 56
      %v1900 = vpop.permute.xlu0 %1899
      %1901 = vrot.lane.b32.xlu0 %v1173, 56
      %v1902 = vpop.permute.xlu0 %1901
      %1903 = vrot.lane.b32.xlu0 %v1175, 56
      %v1904 = vpop.permute.xlu0 %1903
      %1905 = vrot.lane.b32.xlu0 %v1178, 56
      %v1906 = vpop.permute.xlu0 %1905
      %1907 = vrot.lane.b32.xlu0 %v1180, 56
      %v1908 = vpop.permute.xlu0 %1907
      %1909 = vrot.lane.b32.xlu0 %v1183, 56
      %v1910 = vpop.permute.xlu0 %1909
      %1911 = vrot.lane.b32.xlu0 %v1185, 56
      %v1912 = vpop.permute.xlu0 %1911
      %1913 = vrot.lane.b32.xlu0 %v1188, 56
      %v1914 = vpop.permute.xlu0 %1913
      %1915 = vrot.lane.b32.xlu0 %v1190, 56
      %v1916 = vpop.permute.xlu0 %1915
      %1917 = vrot.lane.b32.xlu0 %v1193, 56
      %v1918 = vpop.permute.xlu0 %1917
      %1919 = vrot.lane.b32.xlu0 %v1195, 56
      %v1920 = vpop.permute.xlu0 %1919
      %1921 = vrot.lane.b32.xlu0 %v1198, 56
      %v1922 = vpop.permute.xlu0 %1921
      %1923 = vrot.lane.b32.xlu0 %v1200, 56
      %v1924 = vpop.permute.xlu0 %1923
      %1925 = vrot.lane.b32.xlu0 %v1203, 56
      %v1926 = vpop.permute.xlu0 %1925
      %1927 = vrot.lane.b32.xlu0 %v1205, 56
      %v1928 = vpop.permute.xlu0 %1927
      %1929 = vrot.lane.b32.xlu0 %v1208, 56
      %v1930 = vpop.permute.xlu0 %1929
      %1931 = vrot.lane.b32.xlu0 %v1210, 56
      %v1932 = vpop.permute.xlu0 %1931
      %1933 = vrot.lane.b32.xlu0 %v1213, 56
      %v1934 = vpop.permute.xlu0 %1933
      %1935 = vrot.lane.b32.xlu0 %v1215, 56
      %v1936 = vpop.permute.xlu0 %1935
      %1937 = vrot.lane.b32.xlu0 %v1218, 56
      %v1938 = vpop.permute.xlu0 %1937
      %1939 = vrot.lane.b32.xlu0 %v1220, 56
      %v1940 = vpop.permute.xlu0 %1939
      %1973 = vrot.lane.b32.xlu0 %v1223, 64
      %v1974 = vpop.permute.xlu0 %1973
      %1975 = vrot.lane.b32.xlu0 %v1225, 64
      %v1976 = vpop.permute.xlu0 %1975
      %1977 = vrot.lane.b32.xlu0 %v1228, 64
      %v1978 = vpop.permute.xlu0 %1977
      %1979 = vrot.lane.b32.xlu0 %v1230, 64
      %v1980 = vpop.permute.xlu0 %1979
      %1981 = vrot.lane.b32.xlu0 %v1233, 64
      %v1982 = vpop.permute.xlu0 %1981
      %1983 = vrot.lane.b32.xlu0 %v1235, 64
      %v1984 = vpop.permute.xlu0 %1983
      %1985 = vrot.lane.b32.xlu0 %v1238, 64
      %v1986 = vpop.permute.xlu0 %1985
      %1987 = vrot.lane.b32.xlu0 %v1240, 64
      %v1988 = vpop.permute.xlu0 %1987
      %1989 = vrot.lane.b32.xlu0 %v1243, 64
      %v1990 = vpop.permute.xlu0 %1989
      %1991 = vrot.lane.b32.xlu0 %v1245, 64
      %v1992 = vpop.permute.xlu0 %1991
      %1993 = vrot.lane.b32.xlu0 %v1248, 64
      %v1994 = vpop.permute.xlu0 %1993
      %1995 = vrot.lane.b32.xlu0 %v1250, 64
      %v1996 = vpop.permute.xlu0 %1995
      %1997 = vrot.lane.b32.xlu0 %v1253, 64
      %v1998 = vpop.permute.xlu0 %1997
      %1999 = vrot.lane.b32.xlu0 %v1255, 64
      %v2000 = vpop.permute.xlu0 %1999
      %2001 = vrot.lane.b32.xlu0 %v1258, 64
      %v2002 = vpop.permute.xlu0 %2001
      %2003 = vrot.lane.b32.xlu0 %v1260, 64
      %v2004 = vpop.permute.xlu0 %2003
      %2005 = vrot.lane.b32.xlu0 %v1263, 64
      %v2006 = vpop.permute.xlu0 %2005
      %2007 = vrot.lane.b32.xlu0 %v1265, 64
      %v2008 = vpop.permute.xlu0 %2007
      %2009 = vrot.lane.b32.xlu0 %v1268, 64
      %v2010 = vpop.permute.xlu0 %2009
      %2011 = vrot.lane.b32.xlu0 %v1270, 64
      %v2012 = vpop.permute.xlu0 %2011
      %2013 = vrot.lane.b32.xlu0 %v1273, 64
      %v2014 = vpop.permute.xlu0 %2013
      %2015 = vrot.lane.b32.xlu0 %v1275, 64
      %v2016 = vpop.permute.xlu0 %2015
      %2017 = vrot.lane.b32.xlu0 %v1278, 64
      %v2018 = vpop.permute.xlu0 %2017
      %2019 = vrot.lane.b32.xlu0 %v1280, 64
      %v2020 = vpop.permute.xlu0 %2019
      %2021 = vrot.lane.b32.xlu0 %v1283, 64
      %v2022 = vpop.permute.xlu0 %2021
      %2023 = vrot.lane.b32.xlu0 %v1285, 64
      %v2024 = vpop.permute.xlu0 %2023
      %2025 = vrot.lane.b32.xlu0 %v1288, 64
      %v2026 = vpop.permute.xlu0 %2025
      %2027 = vrot.lane.b32.xlu0 %v1290, 64
      %v2028 = vpop.permute.xlu0 %2027
      %2029 = vrot.lane.b32.xlu0 %v1293, 64
      %v2030 = vpop.permute.xlu0 %2029
      %2031 = vrot.lane.b32.xlu0 %v1295, 64
      %v2032 = vpop.permute.xlu0 %2031
      %2033 = vrot.lane.b32.xlu0 %v1298, 64
      %v2034 = vpop.permute.xlu0 %2033
      %2035 = vrot.lane.b32.xlu0 %v1300, 64
      %v2036 = vpop.permute.xlu0 %2035
      %v2069 = vsel %vm311, %v530, %v1302
      %v2070 = vsel %vm311, %v531, %v1304
      %v2071 = vsel %vm311, %v533, %v1306
      %v2072 = vsel %vm311, %v534, %v1308
      %v2073 = vsel %vm311, %v536, %v1310
      %v2074 = vsel %vm311, %v537, %v1312
      %v2075 = vsel %vm311, %v539, %v1314
      %v2076 = vsel %vm311, %v540, %v1316
      %v2077 = vsel %vm311, %v542, %v1318
      %v2078 = vsel %vm311, %v543, %v1320
      %v2079 = vsel %vm311, %v545, %v1322
      %v2080 = vsel %vm311, %v546, %v1324
      %v2081 = vsel %vm311, %v548, %v1326
      %v2082 = vsel %vm311, %v549, %v1328
      %v2083 = vsel %vm311, %v551, %v1330
      %v2084 = vsel %vm311, %v552, %v1332
      %v2085 = vsel %vm311, %v554, %v1334
      %v2086 = vsel %vm311, %v555, %v1336
      %v2087 = vsel %vm311, %v557, %v1338
      %v2088 = vsel %vm311, %v558, %v1340
      %v2089 = vsel %vm311, %v560, %v1342
      %v2090 = vsel %vm311, %v561, %v1344
      %v2091 = vsel %vm311, %v563, %v1346
      %v2092 = vsel %vm311, %v564, %v1348
      %v2093 = vsel %vm311, %v566, %v1350
      %v2094 = vsel %vm311, %v567, %v1352
      %v2095 = vsel %vm311, %v569, %v1354
      %v2096 = vsel %vm311, %v570, %v1356
      %v2097 = vsel %vm311, %v572, %v1358
      %v2098 = vsel %vm311, %v573, %v1360
      %v2099 = vsel %vm311, %v575, %v1362
      %v2100 = vsel %vm311, %v576, %v1364
      %vm2101 = vcmask 130048
      %v2102 = vsel %vm2101, %v2069, %v1398
      %v2103 = vsel %vm2101, %v2070, %v1400
      %v2104 = vsel %vm2101, %v2071, %v1402
      %v2105 = vsel %vm2101, %v2072, %v1404
      %v2106 = vsel %vm2101, %v2073, %v1406
      %v2107 = vsel %vm2101, %v2074, %v1408
      %v2108 = vsel %vm2101, %v2075, %v1410
      %v2109 = vsel %vm2101, %v2076, %v1412
      %v2110 = vsel %vm2101, %v2077, %v1414
      %v2111 = vsel %vm2101, %v2078, %v1416
      %v2112 = vsel %vm2101, %v2079, %v1418
      %v2113 = vsel %vm2101, %v2080, %v1420
      %v2114 = vsel %vm2101, %v2081, %v1422
      %v2115 = vsel %vm2101, %v2082, %v1424
      %v2116 = vsel %vm2101, %v2083, %v1426
      %v2117 = vsel %vm2101, %v2084, %v1428
      %v2118 = vsel %vm2101, %v2085, %v1430
      %v2119 = vsel %vm2101, %v2086, %v1432
      %v2120 = vsel %vm2101, %v2087, %v1434
      %v2121 = vsel %vm2101, %v2088, %v1436
      %v2122 = vsel %vm2101, %v2089, %v1438
      %v2123 = vsel %vm2101, %v2090, %v1440
      %v2124 = vsel %vm2101, %v2091, %v1442
      %v2125 = vsel %vm2101, %v2092, %v1444
      %v2126 = vsel %vm2101, %v2093, %v1446
      %v2127 = vsel %vm2101, %v2094, %v1448
      %v2128 = vsel %vm2101, %v2095, %v1450
      %v2129 = vsel %vm2101, %v2096, %v1452
      %v2130 = vsel %vm2101, %v2097, %v1454
      %v2131 = vsel %vm2101, %v2098, %v1456
      %v2132 = vsel %vm2101, %v2099, %v1458
      %v2133 = vsel %vm2101, %v2100, %v1460
      %vm2134 = vcmask 195584
      %v2135 = vsel %vm2134, %v2102, %v1494
      %v2136 = vsel %vm2134, %v2103, %v1496
      %v2137 = vsel %vm2134, %v2104, %v1498
      %v2138 = vsel %vm2134, %v2105, %v1500
      %v2139 = vsel %vm2134, %v2106, %v1502
      %v2140 = vsel %vm2134, %v2107, %v1504
      %v2141 = vsel %vm2134, %v2108, %v1506
      %v2142 = vsel %vm2134, %v2109, %v1508
      %v2143 = vsel %vm2134, %v2110, %v1510
      %v2144 = vsel %vm2134, %v2111, %v1512
      %v2145 = vsel %vm2134, %v2112, %v1514
      %v2146 = vsel %vm2134, %v2113, %v1516
      %v2147 = vsel %vm2134, %v2114, %v1518
      %v2148 = vsel %vm2134, %v2115, %v1520
      %v2149 = vsel %vm2134, %v2116, %v1522
      %v2150 = vsel %vm2134, %v2117, %v1524
      %v2151 = vsel %vm2134, %v2118, %v1526
      %v2152 = vsel %vm2134, %v2119, %v1528
      %v2153 = vsel %vm2134, %v2120, %v1530
      %v2154 = vsel %vm2134, %v2121, %v1532
      %v2155 = vsel %vm2134, %v2122, %v1534
      %v2156 = vsel %vm2134, %v2123, %v1536
      %v2157 = vsel %vm2134, %v2124, %v1538
      %v2158 = vsel %vm2134, %v2125, %v1540
      %v2159 = vsel %vm2134, %v2126, %v1542
      %v2160 = vsel %vm2134, %v2127, %v1544
      %v2161 = vsel %vm2134, %v2128, %v1546
      %v2162 = vsel %vm2134, %v2129, %v1548
      %v2163 = vsel %vm2134, %v2130, %v1550
      %v2164 = vsel %vm2134, %v2131, %v1552
      %v2165 = vsel %vm2134, %v2132, %v1554
      %v2166 = vsel %vm2134, %v2133, %v1556
      %vm2167 = vcmask 261120
      %v2168 = vsel %vm2167, %v2135, %v1590
      %v2169 = vsel %vm2167, %v2136, %v1592
      %v2170 = vsel %vm2167, %v2137, %v1594
      %v2171 = vsel %vm2167, %v2138, %v1596
      %v2172 = vsel %vm2167, %v2139, %v1598
      %v2173 = vsel %vm2167, %v2140, %v1600
      %v2174 = vsel %vm2167, %v2141, %v1602
      %v2175 = vsel %vm2167, %v2142, %v1604
      %v2176 = vsel %vm2167, %v2143, %v1606
      %v2177 = vsel %vm2167, %v2144, %v1608
      %v2178 = vsel %vm2167, %v2145, %v1610
      %v2179 = vsel %vm2167, %v2146, %v1612
      %v2180 = vsel %vm2167, %v2147, %v1614
      %v2181 = vsel %vm2167, %v2148, %v1616
      %v2182 = vsel %vm2167, %v2149, %v1618
      %v2183 = vsel %vm2167, %v2150, %v1620
      %v2184 = vsel %vm2167, %v2151, %v1622
      %v2185 = vsel %vm2167, %v2152, %v1624
      %v2186 = vsel %vm2167, %v2153, %v1626
      %v2187 = vsel %vm2167, %v2154, %v1628
      %v2188 = vsel %vm2167, %v2155, %v1630
      %v2189 = vsel %vm2167, %v2156, %v1632
      %v2190 = vsel %vm2167, %v2157, %v1634
      %v2191 = vsel %vm2167, %v2158, %v1636
      %v2192 = vsel %vm2167, %v2159, %v1638
      %v2193 = vsel %vm2167, %v2160, %v1640
      %v2194 = vsel %vm2167, %v2161, %v1642
      %v2195 = vsel %vm2167, %v2162, %v1644
      %v2196 = vsel %vm2167, %v2163, %v1646
      %v2197 = vsel %vm2167, %v2164, %v1648
      %v2198 = vsel %vm2167, %v2165, %v1650
      %v2199 = vsel %vm2167, %v2166, %v1652
      %vm2200 = vcmask 326656
      %v2201 = vsel %vm2200, %v2168, %v1686
      %v2202 = vsel %vm2200, %v2169, %v1688
      %v2203 = vsel %vm2200, %v2170, %v1690
      %v2204 = vsel %vm2200, %v2171, %v1692
      %v2205 = vsel %vm2200, %v2172, %v1694
      %v2206 = vsel %vm2200, %v2173, %v1696
      %v2207 = vsel %vm2200, %v2174, %v1698
      %v2208 = vsel %vm2200, %v2175, %v1700
      %v2209 = vsel %vm2200, %v2176, %v1702
      %v2210 = vsel %vm2200, %v2177, %v1704
      %v2211 = vsel %vm2200, %v2178, %v1706
      %v2212 = vsel %vm2200, %v2179, %v1708
      %v2213 = vsel %vm2200, %v2180, %v1710
      %v2214 = vsel %vm2200, %v2181, %v1712
      %v2215 = vsel %vm2200, %v2182, %v1714
      %v2216 = vsel %vm2200, %v2183, %v1716
      %v2217 = vsel %vm2200, %v2184, %v1718
      %v2218 = vsel %vm2200, %v2185, %v1720
      %v2219 = vsel %vm2200, %v2186, %v1722
      %v2220 = vsel %vm2200, %v2187, %v1724
      %v2221 = vsel %vm2200, %v2188, %v1726
      %v2222 = vsel %vm2200, %v2189, %v1728
      %v2223 = vsel %vm2200, %v2190, %v1730
      %v2224 = vsel %vm2200, %v2191, %v1732
      %v2225 = vsel %vm2200, %v2192, %v1734
      %v2226 = vsel %vm2200, %v2193, %v1736
      %v2227 = vsel %vm2200, %v2194, %v1738
      %v2228 = vsel %vm2200, %v2195, %v1740
      %v2229 = vsel %vm2200, %v2196, %v1742
      %v2230 = vsel %vm2200, %v2197, %v1744
      %v2231 = vsel %vm2200, %v2198, %v1746
      %v2232 = vsel %vm2200, %v2199, %v1748
      %vm2233 = vcmask 392192
      %v2234 = vsel %vm2233, %v2201, %v1782
      %v2235 = vsel %vm2233, %v2202, %v1784
      %v2236 = vsel %vm2233, %v2203, %v1786
      %v2237 = vsel %vm2233, %v2204, %v1788
      %v2238 = vsel %vm2233, %v2205, %v1790
      %v2239 = vsel %vm2233, %v2206, %v1792
      %v2240 = vsel %vm2233, %v2207, %v1794
      %v2241 = vsel %vm2233, %v2208, %v1796
      %v2242 = vsel %vm2233, %v2209, %v1798
      %v2243 = vsel %vm2233, %v2210, %v1800
      %v2244 = vsel %vm2233, %v2211, %v1802
      %v2245 = vsel %vm2233, %v2212, %v1804
      %v2246 = vsel %vm2233, %v2213, %v1806
      %v2247 = vsel %vm2233, %v2214, %v1808
      %v2248 = vsel %vm2233, %v2215, %v1810
      %v2249 = vsel %vm2233, %v2216, %v1812
      %v2250 = vsel %vm2233, %v2217, %v1814
      %v2251 = vsel %vm2233, %v2218, %v1816
      %v2252 = vsel %vm2233, %v2219, %v1818
      %v2253 = vsel %vm2233, %v2220, %v1820
      %v2254 = vsel %vm2233, %v2221, %v1822
      %v2255 = vsel %vm2233, %v2222, %v1824
      %v2256 = vsel %vm2233, %v2223, %v1826
      %v2257 = vsel %vm2233, %v2224, %v1828
      %v2258 = vsel %vm2233, %v2225, %v1830
      %v2259 = vsel %vm2233, %v2226, %v1832
      %v2260 = vsel %vm2233, %v2227, %v1834
      %v2261 = vsel %vm2233, %v2228, %v1836
      %v2262 = vsel %vm2233, %v2229, %v1838
      %v2263 = vsel %vm2233, %v2230, %v1840
      %v2264 = vsel %vm2233, %v2231, %v1842
      %v2265 = vsel %vm2233, %v2232, %v1844
      %vm2266 = vcmask 457728
      %v2267 = vsel %vm2266, %v2234, %v1878
      %v2268 = vsel %vm2266, %v2235, %v1880
      %v2269 = vsel %vm2266, %v2236, %v1882
      %v2270 = vsel %vm2266, %v2237, %v1884
      %v2271 = vsel %vm2266, %v2238, %v1886
      %v2272 = vsel %vm2266, %v2239, %v1888
      %v2273 = vsel %vm2266, %v2240, %v1890
      %v2274 = vsel %vm2266, %v2241, %v1892
      %v2275 = vsel %vm2266, %v2242, %v1894
      %v2276 = vsel %vm2266, %v2243, %v1896
      %v2277 = vsel %vm2266, %v2244, %v1898
      %v2278 = vsel %vm2266, %v2245, %v1900
      %v2279 = vsel %vm2266, %v2246, %v1902
      %v2280 = vsel %vm2266, %v2247, %v1904
      %v2281 = vsel %vm2266, %v2248, %v1906
      %v2282 = vsel %vm2266, %v2249, %v1908
      %v2283 = vsel %vm2266, %v2250, %v1910
      %v2284 = vsel %vm2266, %v2251, %v1912
      %v2285 = vsel %vm2266, %v2252, %v1914
      %v2286 = vsel %vm2266, %v2253, %v1916
      %v2287 = vsel %vm2266, %v2254, %v1918
      %v2288 = vsel %vm2266, %v2255, %v1920
      %v2289 = vsel %vm2266, %v2256, %v1922
      %v2290 = vsel %vm2266, %v2257, %v1924
      %v2291 = vsel %vm2266, %v2258, %v1926
      %v2292 = vsel %vm2266, %v2259, %v1928
      %v2293 = vsel %vm2266, %v2260, %v1930
      %v2294 = vsel %vm2266, %v2261, %v1932
      %v2295 = vsel %vm2266, %v2262, %v1934
      %v2296 = vsel %vm2266, %v2263, %v1936
      %v2297 = vsel %vm2266, %v2264, %v1938
      %v2298 = vsel %vm2266, %v2265, %v1940
      %vm2299 = vcmask 523264
      %v2300 = vsel %vm2299, %v2267, %v1974
      %v2301 = vsel %vm2299, %v2268, %v1976
      %v2302 = vsel %vm2299, %v2269, %v1978
      %v2303 = vsel %vm2299, %v2270, %v1980
      %v2304 = vsel %vm2299, %v2271, %v1982
      %v2305 = vsel %vm2299, %v2272, %v1984
      %v2306 = vsel %vm2299, %v2273, %v1986
      %v2307 = vsel %vm2299, %v2274, %v1988
      %v2308 = vsel %vm2299, %v2275, %v1990
      %v2309 = vsel %vm2299, %v2276, %v1992
      %v2310 = vsel %vm2299, %v2277, %v1994
      %v2311 = vsel %vm2299, %v2278, %v1996
      %v2312 = vsel %vm2299, %v2279, %v1998
      %v2313 = vsel %vm2299, %v2280, %v2000
      %v2314 = vsel %vm2299, %v2281, %v2002
      %v2315 = vsel %vm2299, %v2282, %v2004
      %v2316 = vsel %vm2299, %v2283, %v2006
      %v2317 = vsel %vm2299, %v2284, %v2008
      %v2318 = vsel %vm2299, %v2285, %v2010
      %v2319 = vsel %vm2299, %v2286, %v2012
      %v2320 = vsel %vm2299, %v2287, %v2014
      %v2321 = vsel %vm2299, %v2288, %v2016
      %v2322 = vsel %vm2299, %v2289, %v2018
      %v2323 = vsel %vm2299, %v2290, %v2020
      %v2324 = vsel %vm2299, %v2291, %v2022
      %v2325 = vsel %vm2299, %v2292, %v2024
      %v2326 = vsel %vm2299, %v2293, %v2026
      %v2327 = vsel %vm2299, %v2294, %v2028
      %v2328 = vsel %vm2299, %v2295, %v2030
      %v2329 = vsel %vm2299, %v2296, %v2032
      %v2330 = vsel %vm2299, %v2297, %v2034
      %v2331 = vsel %vm2299, %v2298, %v2036
      %v2332 = vld [vmem:[%s1] sm:$0xff]
      %v2333 = vld [vmem:[%s1 + $0x8] sm:$0xff]
      %v2334 = vld [vmem:[%s1 + $0x10] sm:$0xff]
      %v2335 = vld [vmem:[%s1 + $0x18] sm:$0xff]
      %v2336 = vld [vmem:[%s1 + $0x20] sm:$0xff]
      %v2337 = vld [vmem:[%s1 + $0x28] sm:$0xff]
      %v2338 = vld [vmem:[%s1 + $0x30] sm:$0xff]
      %v2339 = vld [vmem:[%s1 + $0x38] sm:$0xff]
      %v2340 = vld [vmem:[%s1 + $0x40] sm:$0xff]
      %vm2341 = vcmask 588800
      %v2343 = vsel %vm2341, %v2300, 0
      %v2346 = vsel %vm2341, %v2301, 0
      %v2349 = vsel %vm2341, %v2302, 0
      %v2352 = vsel %vm2341, %v2303, 0
      %v2355 = vsel %vm2341, %v2304, 0
      %v2358 = vsel %vm2341, %v2305, 0
      %v2361 = vsel %vm2341, %v2306, 0
      %v2364 = vsel %vm2341, %v2307, 0
      %v2367 = vsel %vm2341, %v2308, 0
      %v2370 = vsel %vm2341, %v2309, 0
      %v2373 = vsel %vm2341, %v2310, 0
      %v2376 = vsel %vm2341, %v2311, 0
      %v2379 = vsel %vm2341, %v2312, 0
      %v2382 = vsel %vm2341, %v2313, 0
      %v2385 = vsel %vm2341, %v2314, 0
      %v2388 = vsel %vm2341, %v2315, 0
      %v2391 = vsel %vm2341, %v2316, 0
      %v2394 = vsel %vm2341, %v2317, 0
      %v2397 = vsel %vm2341, %v2318, 0
      %v2400 = vsel %vm2341, %v2319, 0
      %v2403 = vsel %vm2341, %v2320, 0
      %v2406 = vsel %vm2341, %v2321, 0
      %v2409 = vsel %vm2341, %v2322, 0
      %v2412 = vsel %vm2341, %v2323, 0
      %v2415 = vsel %vm2341, %v2324, 0
      %v2418 = vsel %vm2341, %v2325, 0
      %v2421 = vsel %vm2341, %v2326, 0
      %v2424 = vsel %vm2341, %v2327, 0
      %v2427 = vsel %vm2341, %v2328, 0
      %v2430 = vsel %vm2341, %v2329, 0
      %v2433 = vsel %vm2341, %v2330, 0
      %v2436 = vsel %vm2341, %v2331, 0
      %2438 = vmatprep.subr.mxu0 0.0
      %2439 = vmatpush1.msra.mxu0 0.0
      %2440 = vmatprep.subr.mxu0 0.0
      %2441 = vmatpush1.msra.mxu0 0.0
      %2442 = vmatprep.subr.mxu0 0.0
      %2443 = vmatpush1.msra.mxu0 0.0
      %2444 = vmatprep.subr.mxu0 0.0
      %2445 = vmatpush1.msra.mxu0 0.0
      %2446 = vmatprep.subr.mxu0 0.0
      %2447 = vmatpush1.msra.mxu0 0.0
      %2448 = vmatprep.subr.mxu0 0.0
      %2449 = vmatpush1.msra.mxu0 0.0
      %2450 = vmatprep.subr.mxu0 0.0
      %2451 = vmatpush1.msra.mxu0 0.0
      %2452 = vmatprep.subr.mxu0 0.0
      %2453 = vmatpush1.msra.mxu0 %v2340
      %2454 = vmatprep.subr.mxu0 0.0
      %2455 = vmatpush1.msra.mxu0 %v2339
      %2456 = vmatprep.subr.mxu0 0.0
      %2457 = vmatpush1.msra.mxu0 %v2338
      %2458 = vmatprep.subr.mxu0 0.0
      %2459 = vmatpush1.msra.mxu0 %v2337
      %2460 = vmatprep.subr.mxu0 0.0
      %2461 = vmatpush1.msra.mxu0 %v2336
      %2462 = vmatprep.subr.mxu0 0.0
      %2463 = vmatpush1.msra.mxu0 %v2335
      %2464 = vmatprep.subr.mxu0 0.0
      %2465 = vmatpush1.msra.mxu0 %v2334
      %2466 = vmatprep.subr.mxu0 0.0
      %2467 = vmatpush1.msra.mxu0 %v2333
      %2468 = vmatprep.subr.mxu0 0.0
      %2469 = vmatpush1.msra.mxu0 %v2332
      %2470 = vmatprep.subr.mxu0 0.0
      %2471 = vmatpush2.msra.mxu0 0.0
      %2472 = vmatprep.subr.mxu0 0.0
      %2473 = vmatpush2.msra.mxu0 0.0
      %2474 = vmatprep.subr.mxu0 0.0
      %2475 = vmatpush2.msra.mxu0 0.0
      %2476 = vmatprep.subr.mxu0 0.0
      %2477 = vmatpush2.msra.mxu0 0.0
      %2478 = vmatprep.subr.mxu0 0.0
      %2479 = vmatpush2.msra.mxu0 0.0
      %2480 = vmatprep.subr.mxu0 0.0
      %2481 = vmatpush2.msra.mxu0 0.0
      %2482 = vmatprep.subr.mxu0 0.0
      %2483 = vmatpush2.msra.mxu0 0.0
      %2484 = vmatprep.subr.mxu0 0.0
      %2485 = vmatpush2.msra.mxu0 0.0
      %2486 = vmatprep.subr.mxu0 0.0
      %2487 = vmatpush2.msra.mxu0 0.0
      %2488 = vmatprep.subr.mxu0 0.0
      %2489 = vmatpush2.msra.mxu0 0.0
      %2490 = vmatprep.subr.mxu0 0.0
      %2491 = vmatpush2.msra.mxu0 0.0
      %2492 = vmatprep.subr.mxu0 0.0
      %2493 = vmatpush2.msra.mxu0 0.0
      %2494 = vmatprep.subr.mxu0 0.0
      %2495 = vmatpush2.msra.mxu0 0.0
      %2496 = vmatprep.subr.mxu0 0.0
      %2497 = vmatpush2.msra.mxu0 0.0
      %2498 = vmatprep.subr.mxu0 0.0
      %2499 = vmatpush2.msra.mxu0 0.0
      %2500 = vmatprep.subr.mxu0 0.0
      %2501 = vmatpush2.msra.mxu0 0.0
      %2502 = vmatprep.mubr.f32.mxu0 0.0
      %2503 = vmatmul.mubr.f32.gmra.mxu0 %v2343
      %v2504 = vpop.f32.mrf.mxu0
      %v2505 = vadd.f32 0.0, %v2504
      %v2506 = vpop.f32.mrf.mxu0
      %2507 = vmatprep.mubr.f32.mxu0 0.0
      %2508 = vmatmul.mubr.f32.gmra.mxu0 %v2346
      %v2509 = vpop.f32.mrf.mxu0
      %v2510 = vadd.f32 0.0, %v2509
      %v2511 = vpop.f32.mrf.mxu0
      %2512 = vmatprep.mubr.f32.mxu0 0.0
      %2513 = vmatmul.mubr.f32.gmra.mxu0 %v2349
      %v2514 = vpop.f32.mrf.mxu0
      %v2515 = vadd.f32 0.0, %v2514
      %v2516 = vpop.f32.mrf.mxu0
      %2517 = vmatprep.mubr.f32.mxu0 0.0
      %2518 = vmatmul.mubr.f32.gmra.mxu0 %v2352
      %v2519 = vpop.f32.mrf.mxu0
      %v2520 = vadd.f32 0.0, %v2519
      %v2521 = vpop.f32.mrf.mxu0
      %2522 = vmatprep.mubr.f32.mxu0 0.0
      %2523 = vmatmul.mubr.f32.gmra.mxu0 %v2355
      %v2524 = vpop.f32.mrf.mxu0
      %v2525 = vadd.f32 0.0, %v2524
      %v2526 = vpop.f32.mrf.mxu0
      %2527 = vmatprep.mubr.f32.mxu0 0.0
      %2528 = vmatmul.mubr.f32.gmra.mxu0 %v2358
      %v2529 = vpop.f32.mrf.mxu0
      %v2530 = vadd.f32 0.0, %v2529
      %v2531 = vpop.f32.mrf.mxu0
      %2532 = vmatprep.mubr.f32.mxu0 0.0
      %2533 = vmatmul.mubr.f32.gmra.mxu0 %v2361
      %v2534 = vpop.f32.mrf.mxu0
      %v2535 = vadd.f32 0.0, %v2534
      %v2536 = vpop.f32.mrf.mxu0
      %2537 = vmatprep.mubr.f32.mxu0 0.0
      %2538 = vmatmul.mubr.f32.gmra.mxu0 %v2364
      %v2539 = vpop.f32.mrf.mxu0
      %v2540 = vadd.f32 0.0, %v2539
      %v2541 = vpop.f32.mrf.mxu0
      %2542 = vmatprep.mubr.f32.mxu0 0.0
      %2543 = vmatmul.mubr.f32.gmra.mxu0 %v2367
      %v2544 = vpop.f32.mrf.mxu0
      %v2545 = vadd.f32 0.0, %v2544
      %v2546 = vpop.f32.mrf.mxu0
      %2547 = vmatprep.mubr.f32.mxu0 0.0
      %2548 = vmatmul.mubr.f32.gmra.mxu0 %v2370
      %v2549 = vpop.f32.mrf.mxu0
      %v2550 = vadd.f32 0.0, %v2549
      %v2551 = vpop.f32.mrf.mxu0
      %2552 = vmatprep.mubr.f32.mxu0 0.0
      %2553 = vmatmul.mubr.f32.gmra.mxu0 %v2373
      %v2554 = vpop.f32.mrf.mxu0
      %v2555 = vadd.f32 0.0, %v2554
      %v2556 = vpop.f32.mrf.mxu0
      %2557 = vmatprep.mubr.f32.mxu0 0.0
      %2558 = vmatmul.mubr.f32.gmra.mxu0 %v2376
      %v2559 = vpop.f32.mrf.mxu0
      %v2560 = vadd.f32 0.0, %v2559
      %v2561 = vpop.f32.mrf.mxu0
      %2562 = vmatprep.mubr.f32.mxu0 0.0
      %2563 = vmatmul.mubr.f32.gmra.mxu0 %v2379
      %v2564 = vpop.f32.mrf.mxu0
      %v2565 = vadd.f32 0.0, %v2564
      %v2566 = vpop.f32.mrf.mxu0
      %2567 = vmatprep.mubr.f32.mxu0 0.0
      %2568 = vmatmul.mubr.f32.gmra.mxu0 %v2382
      %v2569 = vpop.f32.mrf.mxu0
      %v2570 = vadd.f32 0.0, %v2569
      %v2571 = vpop.f32.mrf.mxu0
      %2572 = vmatprep.mubr.f32.mxu0 0.0
      %2573 = vmatmul.mubr.f32.gmra.mxu0 %v2385
      %v2574 = vpop.f32.mrf.mxu0
      %v2575 = vadd.f32 0.0, %v2574
      %v2576 = vpop.f32.mrf.mxu0
      %2577 = vmatprep.mubr.f32.mxu0 0.0
      %2578 = vmatmul.mubr.f32.gmra.mxu0 %v2388
      %v2579 = vpop.f32.mrf.mxu0
      %v2580 = vadd.f32 0.0, %v2579
      %v2581 = vpop.f32.mrf.mxu0
      %2582 = vmatprep.mubr.f32.mxu0 0.0
      %2583 = vmatmul.mubr.f32.gmra.mxu0 %v2391
      %v2584 = vpop.f32.mrf.mxu0
      %v2585 = vadd.f32 0.0, %v2584
      %v2586 = vpop.f32.mrf.mxu0
      %2587 = vmatprep.mubr.f32.mxu0 0.0
      %2588 = vmatmul.mubr.f32.gmra.mxu0 %v2394
      %v2589 = vpop.f32.mrf.mxu0
      %v2590 = vadd.f32 0.0, %v2589
      %v2591 = vpop.f32.mrf.mxu0
      %2592 = vmatprep.mubr.f32.mxu0 0.0
      %2593 = vmatmul.mubr.f32.gmra.mxu0 %v2397
      %v2594 = vpop.f32.mrf.mxu0
      %v2595 = vadd.f32 0.0, %v2594
      %v2596 = vpop.f32.mrf.mxu0
      %2597 = vmatprep.mubr.f32.mxu0 0.0
      %2598 = vmatmul.mubr.f32.gmra.mxu0 %v2400
      %v2599 = vpop.f32.mrf.mxu0
      %v2600 = vadd.f32 0.0, %v2599
      %v2601 = vpop.f32.mrf.mxu0
      %2602 = vmatprep.mubr.f32.mxu0 0.0
      %2603 = vmatmul.mubr.f32.gmra.mxu0 %v2403
      %v2604 = vpop.f32.mrf.mxu0
      %v2605 = vadd.f32 0.0, %v2604
      %v2606 = vpop.f32.mrf.mxu0
      %2607 = vmatprep.mubr.f32.mxu0 0.0
      %2608 = vmatmul.mubr.f32.gmra.mxu0 %v2406
      %v2609 = vpop.f32.mrf.mxu0
      %v2610 = vadd.f32 0.0, %v2609
      %v2611 = vpop.f32.mrf.mxu0
      %2612 = vmatprep.mubr.f32.mxu0 0.0
      %2613 = vmatmul.mubr.f32.gmra.mxu0 %v2409
      %v2614 = vpop.f32.mrf.mxu0
      %v2615 = vadd.f32 0.0, %v2614
      %v2616 = vpop.f32.mrf.mxu0
      %2617 = vmatprep.mubr.f32.mxu0 0.0
      %2618 = vmatmul.mubr.f32.gmra.mxu0 %v2412
      %v2619 = vpop.f32.mrf.mxu0
      %v2620 = vadd.f32 0.0, %v2619
      %v2621 = vpop.f32.mrf.mxu0
      %2622 = vmatprep.mubr.f32.mxu0 0.0
      %2623 = vmatmul.mubr.f32.gmra.mxu0 %v2415
      %v2624 = vpop.f32.mrf.mxu0
      %v2625 = vadd.f32 0.0, %v2624
      %v2626 = vpop.f32.mrf.mxu0
      %2627 = vmatprep.mubr.f32.mxu0 0.0
      %2628 = vmatmul.mubr.f32.gmra.mxu0 %v2418
      %v2629 = vpop.f32.mrf.mxu0
      %v2630 = vadd.f32 0.0, %v2629
      %v2631 = vpop.f32.mrf.mxu0
      %2632 = vmatprep.mubr.f32.mxu0 0.0
      %2633 = vmatmul.mubr.f32.gmra.mxu0 %v2421
      %v2634 = vpop.f32.mrf.mxu0
      %v2635 = vadd.f32 0.0, %v2634
      %v2636 = vpop.f32.mrf.mxu0
      %2637 = vmatprep.mubr.f32.mxu0 0.0
      %2638 = vmatmul.mubr.f32.gmra.mxu0 %v2424
      %v2639 = vpop.f32.mrf.mxu0
      %v2640 = vadd.f32 0.0, %v2639
      %v2641 = vpop.f32.mrf.mxu0
      %2642 = vmatprep.mubr.f32.mxu0 0.0
      %2643 = vmatmul.mubr.f32.gmra.mxu0 %v2427
      %v2644 = vpop.f32.mrf.mxu0
      %v2645 = vadd.f32 0.0, %v2644
      %v2646 = vpop.f32.mrf.mxu0
      %2647 = vmatprep.mubr.f32.mxu0 0.0
      %2648 = vmatmul.mubr.f32.gmra.mxu0 %v2430
      %v2649 = vpop.f32.mrf.mxu0
      %v2650 = vadd.f32 0.0, %v2649
      %v2651 = vpop.f32.mrf.mxu0
      %2652 = vmatprep.mubr.f32.mxu0 0.0
      %2653 = vmatmul.mubr.f32.gmra.mxu0 %v2433
      %v2654 = vpop.f32.mrf.mxu0
      %v2655 = vadd.f32 0.0, %v2654
      %v2656 = vpop.f32.mrf.mxu0
      %2657 = vmatprep.mubr.f32.mxu0 0.0
      %2658 = vmatmul.mubr.f32.gmra.mxu0 %v2436
      %v2659 = vpop.f32.mrf.mxu0
      %v2660 = vadd.f32 0.0, %v2659
      %v2661 = vpop.f32.mrf.mxu0
      %2662 = vdwg.mxu0
      %v2663 = vld [vmem:[%s2] sm:$0x1]
      %v2665 = vlaneseq
      %v2666 = vshrl.u32 %v2665, 7
      %v2667 = vsub.s32 0, %v2666
      %v2668 = vrot.slane %v2663, %v2667
      %v2670 = vmul.f32 %v2505, %v2668
      %v2671 = vmul.f32 %v2510, %v2668
      %v2672 = vmul.f32 %v2515, %v2668
      %v2673 = vmul.f32 %v2520, %v2668
      %v2674 = vmul.f32 %v2525, %v2668
      %v2675 = vmul.f32 %v2530, %v2668
      %v2676 = vmul.f32 %v2535, %v2668
      %v2677 = vmul.f32 %v2540, %v2668
      %v2678 = vmul.f32 %v2545, %v2668
      %v2679 = vmul.f32 %v2550, %v2668
      %v2680 = vmul.f32 %v2555, %v2668
      %v2681 = vmul.f32 %v2560, %v2668
      %v2682 = vmul.f32 %v2565, %v2668
      %v2683 = vmul.f32 %v2570, %v2668
      %v2684 = vmul.f32 %v2575, %v2668
      %v2685 = vmul.f32 %v2580, %v2668
      %v2686 = vmul.f32 %v2585, %v2668
      %v2687 = vmul.f32 %v2590, %v2668
      %v2688 = vmul.f32 %v2595, %v2668
      %v2689 = vmul.f32 %v2600, %v2668
      %v2690 = vmul.f32 %v2605, %v2668
      %v2691 = vmul.f32 %v2610, %v2668
      %v2692 = vmul.f32 %v2615, %v2668
      %v2693 = vmul.f32 %v2620, %v2668
      %v2694 = vmul.f32 %v2625, %v2668
      %v2695 = vmul.f32 %v2630, %v2668
      %v2696 = vmul.f32 %v2635, %v2668
      %v2697 = vmul.f32 %v2640, %v2668
      %v2698 = vmul.f32 %v2645, %v2668
      %v2699 = vmul.f32 %v2650, %v2668
      %v2700 = vmul.f32 %v2655, %v2668
      %v2701 = vmul.f32 %v2660, %v2668
      %v2702 = vld [vmem:[%s3] sm:$0x1]
      %v2704 = vlaneseq
      %v2705 = vshrl.u32 %v2704, 7
      %v2706 = vsub.s32 0, %v2705
      %v2707 = vrot.slane %v2702, %v2706
      %v2709 = vadd.f32 %v2670, %v2707
      %v2710 = vadd.f32 %v2671, %v2707
      %v2711 = vadd.f32 %v2672, %v2707
      %v2712 = vadd.f32 %v2673, %v2707
      %v2713 = vadd.f32 %v2674, %v2707
      %v2714 = vadd.f32 %v2675, %v2707
      %v2715 = vadd.f32 %v2676, %v2707
      %v2716 = vadd.f32 %v2677, %v2707
      %v2717 = vadd.f32 %v2678, %v2707
      %v2718 = vadd.f32 %v2679, %v2707
      %v2719 = vadd.f32 %v2680, %v2707
      %v2720 = vadd.f32 %v2681, %v2707
      %v2721 = vadd.f32 %v2682, %v2707
      %v2722 = vadd.f32 %v2683, %v2707
      %v2723 = vadd.f32 %v2684, %v2707
      %v2724 = vadd.f32 %v2685, %v2707
      %v2725 = vadd.f32 %v2686, %v2707
      %v2726 = vadd.f32 %v2687, %v2707
      %v2727 = vadd.f32 %v2688, %v2707
      %v2728 = vadd.f32 %v2689, %v2707
      %v2729 = vadd.f32 %v2690, %v2707
      %v2730 = vadd.f32 %v2691, %v2707
      %v2731 = vadd.f32 %v2692, %v2707
      %v2732 = vadd.f32 %v2693, %v2707
      %v2733 = vadd.f32 %v2694, %v2707
      %v2734 = vadd.f32 %v2695, %v2707
      %v2735 = vadd.f32 %v2696, %v2707
      %v2736 = vadd.f32 %v2697, %v2707
      %v2737 = vadd.f32 %v2698, %v2707
      %v2738 = vadd.f32 %v2699, %v2707
      %v2739 = vadd.f32 %v2700, %v2707
      %v2740 = vadd.f32 %v2701, %v2707
      %v2741 = vsub.f32 0.0, %v2709
      %v2742 = vsub.f32 0.0, %v2710
      %v2743 = vsub.f32 0.0, %v2711
      %v2744 = vsub.f32 0.0, %v2712
      %v2745 = vsub.f32 0.0, %v2713
      %v2746 = vsub.f32 0.0, %v2714
      %v2747 = vsub.f32 0.0, %v2715
      %v2748 = vsub.f32 0.0, %v2716
      %v2749 = vsub.f32 0.0, %v2717
      %v2750 = vsub.f32 0.0, %v2718
      %v2751 = vsub.f32 0.0, %v2719
      %v2752 = vsub.f32 0.0, %v2720
      %v2753 = vsub.f32 0.0, %v2721
      %v2754 = vsub.f32 0.0, %v2722
      %v2755 = vsub.f32 0.0, %v2723
      %v2756 = vsub.f32 0.0, %v2724
      %v2757 = vsub.f32 0.0, %v2725
      %v2758 = vsub.f32 0.0, %v2726
      %v2759 = vsub.f32 0.0, %v2727
      %v2760 = vsub.f32 0.0, %v2728
      %v2761 = vsub.f32 0.0, %v2729
      %v2762 = vsub.f32 0.0, %v2730
      %v2763 = vsub.f32 0.0, %v2731
      %v2764 = vsub.f32 0.0, %v2732
      %v2765 = vsub.f32 0.0, %v2733
      %v2766 = vsub.f32 0.0, %v2734
      %v2767 = vsub.f32 0.0, %v2735
      %v2768 = vsub.f32 0.0, %v2736
      %v2769 = vsub.f32 0.0, %v2737
      %v2770 = vsub.f32 0.0, %v2738
      %v2771 = vsub.f32 0.0, %v2739
      %v2772 = vsub.f32 0.0, %v2740
      %v2773 = vmul.f32 %v2741, 1.442695
      %v2774 = vpow.pop %v2773
      %v2775 = vmul.f32 %v2742, 1.442695
      %v2776 = vpow.pop %v2775
      %v2777 = vmul.f32 %v2743, 1.442695
      %v2778 = vpow.pop %v2777
      %v2779 = vmul.f32 %v2744, 1.442695
      %v2780 = vpow.pop %v2779
      %v2781 = vmul.f32 %v2745, 1.442695
      %v2782 = vpow.pop %v2781
      %v2783 = vmul.f32 %v2746, 1.442695
      %v2784 = vpow.pop %v2783
      %v2785 = vmul.f32 %v2747, 1.442695
      %v2786 = vpow.pop %v2785
      %v2787 = vmul.f32 %v2748, 1.442695
      %v2788 = vpow.pop %v2787
      %v2789 = vmul.f32 %v2749, 1.442695
      %v2790 = vpow.pop %v2789
      %v2791 = vmul.f32 %v2750, 1.442695
      %v2792 = vpow.pop %v2791
      %v2793 = vmul.f32 %v2751, 1.442695
      %v2794 = vpow.pop %v2793
      %v2795 = vmul.f32 %v2752, 1.442695
      %v2796 = vpow.pop %v2795
      %v2797 = vmul.f32 %v2753, 1.442695
      %v2798 = vpow.pop %v2797
      %v2799 = vmul.f32 %v2754, 1.442695
      %v2800 = vpow.pop %v2799
      %v2801 = vmul.f32 %v2755, 1.442695
      %v2802 = vpow.pop %v2801
      %v2803 = vmul.f32 %v2756, 1.442695
      %v2804 = vpow.pop %v2803
      %v2805 = vmul.f32 %v2757, 1.442695
      %v2806 = vpow.pop %v2805
      %v2807 = vmul.f32 %v2758, 1.442695
      %v2808 = vpow.pop %v2807
      %v2809 = vmul.f32 %v2759, 1.442695
      %v2810 = vpow.pop %v2809
      %v2811 = vmul.f32 %v2760, 1.442695
      %v2812 = vpow.pop %v2811
      %v2813 = vmul.f32 %v2761, 1.442695
      %v2814 = vpow.pop %v2813
      %v2815 = vmul.f32 %v2762, 1.442695
      %v2816 = vpow.pop %v2815
      %v2817 = vmul.f32 %v2763, 1.442695
      %v2818 = vpow.pop %v2817
      %v2819 = vmul.f32 %v2764, 1.442695
      %v2820 = vpow.pop %v2819
      %v2821 = vmul.f32 %v2765, 1.442695
      %v2822 = vpow.pop %v2821
      %v2823 = vmul.f32 %v2766, 1.442695
      %v2824 = vpow.pop %v2823
      %v2825 = vmul.f32 %v2767, 1.442695
      %v2826 = vpow.pop %v2825
      %v2827 = vmul.f32 %v2768, 1.442695
      %v2828 = vpow.pop %v2827
      %v2829 = vmul.f32 %v2769, 1.442695
      %v2830 = vpow.pop %v2829
      %v2831 = vmul.f32 %v2770, 1.442695
      %v2832 = vpow.pop %v2831
      %v2833 = vmul.f32 %v2771, 1.442695
      %v2834 = vpow.pop %v2833
      %v2835 = vmul.f32 %v2772, 1.442695
      %v2836 = vpow.pop %v2835
      %v2837 = vadd.f32 %v2774, 1.0
      %v2838 = vadd.f32 %v2776, 1.0
      %v2839 = vadd.f32 %v2778, 1.0
      %v2840 = vadd.f32 %v2780, 1.0
      %v2841 = vadd.f32 %v2782, 1.0
      %v2842 = vadd.f32 %v2784, 1.0
      %v2843 = vadd.f32 %v2786, 1.0
      %v2844 = vadd.f32 %v2788, 1.0
      %v2845 = vadd.f32 %v2790, 1.0
      %v2846 = vadd.f32 %v2792, 1.0
      %v2847 = vadd.f32 %v2794, 1.0
      %v2848 = vadd.f32 %v2796, 1.0
      %v2849 = vadd.f32 %v2798, 1.0
      %v2850 = vadd.f32 %v2800, 1.0
      %v2851 = vadd.f32 %v2802, 1.0
      %v2852 = vadd.f32 %v2804, 1.0
      %v2853 = vadd.f32 %v2806, 1.0
      %v2854 = vadd.f32 %v2808, 1.0
      %v2855 = vadd.f32 %v2810, 1.0
      %v2856 = vadd.f32 %v2812, 1.0
      %v2857 = vadd.f32 %v2814, 1.0
      %v2858 = vadd.f32 %v2816, 1.0
      %v2859 = vadd.f32 %v2818, 1.0
      %v2860 = vadd.f32 %v2820, 1.0
      %v2861 = vadd.f32 %v2822, 1.0
      %v2862 = vadd.f32 %v2824, 1.0
      %v2863 = vadd.f32 %v2826, 1.0
      %v2864 = vadd.f32 %v2828, 1.0
      %v2865 = vadd.f32 %v2830, 1.0
      %v2866 = vadd.f32 %v2832, 1.0
      %v2867 = vadd.f32 %v2834, 1.0
      %v2868 = vadd.f32 %v2836, 1.0
      %v2869 = vrcp.pop %v2837
      %v2870 = vrcp.pop %v2838
      %v2871 = vrcp.pop %v2839
      %v2872 = vrcp.pop %v2840
      %v2873 = vrcp.pop %v2841
      %v2874 = vrcp.pop %v2842
      %v2875 = vrcp.pop %v2843
      %v2876 = vrcp.pop %v2844
      %v2877 = vrcp.pop %v2845
      %v2878 = vrcp.pop %v2846
      %v2879 = vrcp.pop %v2847
      %v2880 = vrcp.pop %v2848
      %v2881 = vrcp.pop %v2849
      %v2882 = vrcp.pop %v2850
      %v2883 = vrcp.pop %v2851
      %v2884 = vrcp.pop %v2852
      %v2885 = vrcp.pop %v2853
      %v2886 = vrcp.pop %v2854
      %v2887 = vrcp.pop %v2855
      %v2888 = vrcp.pop %v2856
      %v2889 = vrcp.pop %v2857
      %v2890 = vrcp.pop %v2858
      %v2891 = vrcp.pop %v2859
      %v2892 = vrcp.pop %v2860
      %v2893 = vrcp.pop %v2861
      %v2894 = vrcp.pop %v2862
      %v2895 = vrcp.pop %v2863
      %v2896 = vrcp.pop %v2864
      %v2897 = vrcp.pop %v2865
      %v2898 = vrcp.pop %v2866
      %v2899 = vrcp.pop %v2867
      %v2900 = vrcp.pop %v2868
      %v2901 = vmul.f32 %v2709, %v2869
      %v2902 = vmul.f32 %v2710, %v2870
      %v2903 = vmul.f32 %v2711, %v2871
      %v2904 = vmul.f32 %v2712, %v2872
      %v2905 = vmul.f32 %v2713, %v2873
      %v2906 = vmul.f32 %v2714, %v2874
      %v2907 = vmul.f32 %v2715, %v2875
      %v2908 = vmul.f32 %v2716, %v2876
      %v2909 = vmul.f32 %v2717, %v2877
      %v2910 = vmul.f32 %v2718, %v2878
      %v2911 = vmul.f32 %v2719, %v2879
      %v2912 = vmul.f32 %v2720, %v2880
      %v2913 = vmul.f32 %v2721, %v2881
      %v2914 = vmul.f32 %v2722, %v2882
      %v2915 = vmul.f32 %v2723, %v2883
      %v2916 = vmul.f32 %v2724, %v2884
      %v2917 = vmul.f32 %v2725, %v2885
      %v2918 = vmul.f32 %v2726, %v2886
      %v2919 = vmul.f32 %v2727, %v2887
      %v2920 = vmul.f32 %v2728, %v2888
      %v2921 = vmul.f32 %v2729, %v2889
      %v2922 = vmul.f32 %v2730, %v2890
      %v2923 = vmul.f32 %v2731, %v2891
      %v2924 = vmul.f32 %v2732, %v2892
      %v2925 = vmul.f32 %v2733, %v2893
      %v2926 = vmul.f32 %v2734, %v2894
      %v2927 = vmul.f32 %v2735, %v2895
      %v2928 = vmul.f32 %v2736, %v2896
      %v2929 = vmul.f32 %v2737, %v2897
      %v2930 = vmul.f32 %v2738, %v2898
      %v2931 = vmul.f32 %v2739, %v2899
      %v2932 = vmul.f32 %v2740, %v2900
      %2933 = vst.msk [vmem:[#allocation3] sm:$0xff] %vm311, 0.0
      %2934 = vst.msk [vmem:[#allocation3 + $0x8] sm:$0xff] %vm311, 0.0
      %2935 = vst.msk [vmem:[#allocation3 + $0x10] sm:$0x3] %vm314, 0.0
      %s2936 = scalar_lea.vmem [#allocation3], 408
      %2937 = vst.msk [vmem:[%s2936] sm:$0xff] %vm311, 0.0
      %2938 = vst.msk [vmem:[%s2936 + $0x8] sm:$0xff] %vm311, 0.0
      %2939 = vst.msk [vmem:[%s2936 + $0x10] sm:$0x3] %vm314, 0.0
      %v2972 = vrot.slane %v2901, 7
      %v2973 = vrot.slane %v2902, 7
      %v2974 = vsel %vm352, %v2972, %v2973
      %v2975 = vrot.slane %v2903, 7
      %v2976 = vrot.slane %v2904, 7
      %v2977 = vsel %vm352, %v2975, %v2976
      %v2978 = vrot.slane %v2905, 7
      %v2979 = vrot.slane %v2906, 7
      %v2980 = vsel %vm352, %v2978, %v2979
      %v2981 = vrot.slane %v2907, 7
      %v2982 = vrot.slane %v2908, 7
      %v2983 = vsel %vm352, %v2981, %v2982
      %v2984 = vrot.slane %v2909, 7
      %v2985 = vrot.slane %v2910, 7
      %v2986 = vsel %vm352, %v2984, %v2985
      %v2987 = vrot.slane %v2911, 7
      %v2988 = vrot.slane %v2912, 7
      %v2989 = vsel %vm352, %v2987, %v2988
      %v2990 = vrot.slane %v2913, 7
      %v2991 = vrot.slane %v2914, 7
      %v2992 = vsel %vm352, %v2990, %v2991
      %v2993 = vrot.slane %v2915, 7
      %v2994 = vrot.slane %v2916, 7
      %v2995 = vsel %vm352, %v2993, %v2994
      %v2996 = vrot.slane %v2917, 7
      %v2997 = vrot.slane %v2918, 7
      %v2998 = vsel %vm352, %v2996, %v2997
      %v2999 = vrot.slane %v2919, 7
      %v3000 = vrot.slane %v2920, 7
      %v3001 = vsel %vm352, %v2999, %v3000
      %v3002 = vrot.slane %v2921, 7
      %v3003 = vrot.slane %v2922, 7
      %v3004 = vsel %vm352, %v3002, %v3003
      %v3005 = vrot.slane %v2923, 7
      %v3006 = vrot.slane %v2924, 7
      %v3007 = vsel %vm352, %v3005, %v3006
      %v3008 = vrot.slane %v2925, 7
      %v3009 = vrot.slane %v2926, 7
      %v3010 = vsel %vm352, %v3008, %v3009
      %v3011 = vrot.slane %v2927, 7
      %v3012 = vrot.slane %v2928, 7
      %v3013 = vsel %vm352, %v3011, %v3012
      %v3014 = vrot.slane %v2929, 7
      %v3015 = vrot.slane %v2930, 7
      %v3016 = vsel %vm352, %v3014, %v3015
      %v3017 = vrot.slane %v2931, 7
      %v3018 = vrot.slane %v2932, 7
      %v3019 = vsel %vm352, %v3017, %v3018
      %v3068 = vsel %vm352, 0.0, %v2972
      %v3069 = vsel %vm352, 0.0, %v2975
      %v3070 = vsel %vm352, 0.0, %v2978
      %v3071 = vsel %vm352, 0.0, %v2981
      %v3072 = vsel %vm352, 0.0, %v2984
      %v3073 = vsel %vm352, 0.0, %v2987
      %v3074 = vsel %vm352, 0.0, %v2990
      %v3075 = vsel %vm352, 0.0, %v2993
      %v3076 = vsel %vm352, 0.0, %v2996
      %v3077 = vsel %vm352, 0.0, %v2999
      %v3078 = vsel %vm352, 0.0, %v3002
      %v3079 = vsel %vm352, 0.0, %v3005
      %v3080 = vsel %vm352, 0.0, %v3008
      %v3081 = vsel %vm352, 0.0, %v3011
      %v3082 = vsel %vm352, 0.0, %v3014
      %v3083 = vsel %vm352, 0.0, %v3017
      %v3084 = vsel %vm352, %v2973, 0.0
      %v3085 = vsel %vm352, %v2976, 0.0
      %v3086 = vsel %vm352, %v2979, 0.0
      %v3087 = vsel %vm352, %v2982, 0.0
      %v3088 = vsel %vm352, %v2985, 0.0
      %v3089 = vsel %vm352, %v2988, 0.0
      %v3090 = vsel %vm352, %v2991, 0.0
      %v3091 = vsel %vm352, %v2994, 0.0
      %v3092 = vsel %vm352, %v2997, 0.0
      %v3093 = vsel %vm352, %v3000, 0.0
      %v3094 = vsel %vm352, %v3003, 0.0
      %v3095 = vsel %vm352, %v3006, 0.0
      %v3096 = vsel %vm352, %v3009, 0.0
      %v3097 = vsel %vm352, %v3012, 0.0
      %v3098 = vsel %vm352, %v3015, 0.0
      %v3099 = vsel %vm352, %v3018, 0.0
      %s3100 = scalar_lea.vmem [#allocation3], 24
      %3101 = vst.msk [vmem:[%s3100] sm:$0xff] %vm311, %v3068
      %3102 = vst.msk [vmem:[%s3100 + $0x8] sm:$0xff] %vm311, %v2974
      %3103 = vst.msk [vmem:[%s3100 + $0x10] sm:$0x3] %vm314, %v3084
      %3104 = vst.msk [vmem:[%s3100 + $0x18] sm:$0xff] %vm311, %v3069
      %3105 = vst.msk [vmem:[%s3100 + $0x20] sm:$0xff] %vm311, %v2977
      %3106 = vst.msk [vmem:[%s3100 + $0x28] sm:$0x3] %vm314, %v3085
      %3107 = vst.msk [vmem:[%s3100 + $0x30] sm:$0xff] %vm311, %v3070
      %3108 = vst.msk [vmem:[%s3100 + $0x38] sm:$0xff] %vm311, %v2980
      %3109 = vst.msk [vmem:[%s3100 + $0x40] sm:$0x3] %vm314, %v3086
      %3110 = vst.msk [vmem:[%s3100 + $0x48] sm:$0xff] %vm311, %v3071
      %3111 = vst.msk [vmem:[%s3100 + $0x50] sm:$0xff] %vm311, %v2983
      %3112 = vst.msk [vmem:[%s3100 + $0x58] sm:$0x3] %vm314, %v3087
      %3113 = vst.msk [vmem:[%s3100 + $0x60] sm:$0xff] %vm311, %v3072
      %3114 = vst.msk [vmem:[%s3100 + $0x68] sm:$0xff] %vm311, %v2986
      %3115 = vst.msk [vmem:[%s3100 + $0x70] sm:$0x3] %vm314, %v3088
      %3116 = vst.msk [vmem:[%s3100 + $0x78] sm:$0xff] %vm311, %v3073
      %3117 = vst.msk [vmem:[%s3100 + $0x80] sm:$0xff] %vm311, %v2989
      %3118 = vst.msk [vmem:[%s3100 + $0x88] sm:$0x3] %vm314, %v3089
      %3119 = vst.msk [vmem:[%s3100 + $0x90] sm:$0xff] %vm311, %v3074
      %3120 = vst.msk [vmem:[%s3100 + $0x98] sm:$0xff] %vm311, %v2992
      %3121 = vst.msk [vmem:[%s3100 + $0xa0] sm:$0x3] %vm314, %v3090
      %3122 = vst.msk [vmem:[%s3100 + $0xa8] sm:$0xff] %vm311, %v3075
      %3123 = vst.msk [vmem:[%s3100 + $0xb0] sm:$0xff] %vm311, %v2995
      %3124 = vst.msk [vmem:[%s3100 + $0xb8] sm:$0x3] %vm314, %v3091
      %3125 = vst.msk [vmem:[%s3100 + $0xc0] sm:$0xff] %vm311, %v3076
      %3126 = vst.msk [vmem:[%s3100 + $0xc8] sm:$0xff] %vm311, %v2998
      %3127 = vst.msk [vmem:[%s3100 + $0xd0] sm:$0x3] %vm314, %v3092
      %3128 = vst.msk [vmem:[%s3100 + $0xd8] sm:$0xff] %vm311, %v3077
      %3129 = vst.msk [vmem:[%s3100 + $0xe0] sm:$0xff] %vm311, %v3001
      %3130 = vst.msk [vmem:[%s3100 + $0xe8] sm:$0x3] %vm314, %v3093
      %3131 = vst.msk [vmem:[%s3100 + $0xf0] sm:$0xff] %vm311, %v3078
      %3132 = vst.msk [vmem:[%s3100 + $0xf8] sm:$0xff] %vm311, %v3004
      %3133 = vst.msk [vmem:[%s3100 + $0x100] sm:$0x3] %vm314, %v3094
      %3134 = vst.msk [vmem:[%s3100 + $0x108] sm:$0xff] %vm311, %v3079
      %3135 = vst.msk [vmem:[%s3100 + $0x110] sm:$0xff] %vm311, %v3007
      %3136 = vst.msk [vmem:[%s3100 + $0x118] sm:$0x3] %vm314, %v3095
      %3137 = vst.msk [vmem:[%s3100 + $0x120] sm:$0xff] %vm311, %v3080
      %3138 = vst.msk [vmem:[%s3100 + $0x128] sm:$0xff] %vm311, %v3010
      %3139 = vst.msk [vmem:[%s3100 + $0x130] sm:$0x3] %vm314, %v3096
      %3140 = vst.msk [vmem:[%s3100 + $0x138] sm:$0xff] %vm311, %v3081
      %3141 = vst.msk [vmem:[%s3100 + $0x140] sm:$0xff] %vm311, %v3013
      %3142 = vst.msk [vmem:[%s3100 + $0x148] sm:$0x3] %vm314, %v3097
      %3143 = vst.msk [vmem:[%s3100 + $0x150] sm:$0xff] %vm311, %v3082
      %3144 = vst.msk [vmem:[%s3100 + $0x158] sm:$0xff] %vm311, %v3016
      %3145 = vst.msk [vmem:[%s3100 + $0x160] sm:$0x3] %vm314, %v3098
      %3146 = vst.msk [vmem:[%s3100 + $0x168] sm:$0xff] %vm311, %v3083
      %3147 = vst.msk [vmem:[%s3100 + $0x170] sm:$0xff] %vm311, %v3019
      %3148 = vst.msk [vmem:[%s3100 + $0x178] sm:$0x3] %vm314, %v3099
      %v3149 = vld [vmem:[#allocation3] sm:$0xff]
      %v3150 = vld [vmem:[#allocation3 + $0x8] sm:$0xff]
      %v3151 = vld [vmem:[#allocation3 + $0x10] sm:$0x3]
      %v3152 = vld [vmem:[#allocation3 + $0x18] sm:$0xff]
      %v3153 = vld [vmem:[#allocation3 + $0x20] sm:$0xff]
      %v3154 = vld [vmem:[#allocation3 + $0x28] sm:$0x3]
      %v3155 = vld [vmem:[#allocation3 + $0x30] sm:$0xff]
      %v3156 = vld [vmem:[#allocation3 + $0x38] sm:$0xff]
      %v3157 = vld [vmem:[#allocation3 + $0x40] sm:$0x3]
      %v3158 = vld [vmem:[#allocation3 + $0x48] sm:$0xff]
      %v3159 = vld [vmem:[#allocation3 + $0x50] sm:$0xff]
      %v3160 = vld [vmem:[#allocation3 + $0x58] sm:$0x3]
      %v3161 = vld [vmem:[#allocation3 + $0x60] sm:$0xff]
      %v3162 = vld [vmem:[#allocation3 + $0x68] sm:$0xff]
      %v3163 = vld [vmem:[#allocation3 + $0x70] sm:$0x3]
      %v3164 = vld [vmem:[#allocation3 + $0x78] sm:$0xff]
      %v3165 = vld [vmem:[#allocation3 + $0x80] sm:$0xff]
      %v3166 = vld [vmem:[#allocation3 + $0x88] sm:$0x3]
      %v3167 = vld [vmem:[#allocation3 + $0x90] sm:$0xff]
      %v3168 = vld [vmem:[#allocation3 + $0x98] sm:$0xff]
      %v3169 = vld [vmem:[#allocation3 + $0xa0] sm:$0x3]
      %v3170 = vld [vmem:[#allocation3 + $0xa8] sm:$0xff]
      %v3171 = vld [vmem:[#allocation3 + $0xb0] sm:$0xff]
      %v3172 = vld [vmem:[#allocation3 + $0xb8] sm:$0x3]
      %v3173 = vld [vmem:[#allocation3 + $0xc0] sm:$0xff]
      %v3174 = vld [vmem:[#allocation3 + $0xc8] sm:$0xff]
      %v3175 = vld [vmem:[#allocation3 + $0xd0] sm:$0x3]
      %v3176 = vld [vmem:[#allocation3 + $0xd8] sm:$0xff]
      %v3177 = vld [vmem:[#allocation3 + $0xe0] sm:$0xff]
      %v3178 = vld [vmem:[#allocation3 + $0xe8] sm:$0x3]
      %v3179 = vld [vmem:[#allocation3 + $0xf0] sm:$0xff]
      %v3180 = vld [vmem:[#allocation3 + $0xf8] sm:$0xff]
      %v3181 = vld [vmem:[#allocation3 + $0x100] sm:$0x3]
      %v3182 = vld [vmem:[#allocation3 + $0x108] sm:$0xff]
      %v3183 = vld [vmem:[#allocation3 + $0x110] sm:$0xff]
      %v3184 = vld [vmem:[#allocation3 + $0x118] sm:$0x3]
      %v3185 = vld [vmem:[#allocation3 + $0x120] sm:$0xff]
      %v3186 = vld [vmem:[#allocation3 + $0x128] sm:$0xff]
      %v3187 = vld [vmem:[#allocation3 + $0x130] sm:$0x3]
      %v3188 = vld [vmem:[#allocation3 + $0x138] sm:$0xff]
      %v3189 = vld [vmem:[#allocation3 + $0x140] sm:$0xff]
      %v3190 = vld [vmem:[#allocation3 + $0x148] sm:$0x3]
      %v3191 = vld [vmem:[#allocation3 + $0x150] sm:$0xff]
      %v3192 = vld [vmem:[#allocation3 + $0x158] sm:$0xff]
      %v3193 = vld [vmem:[#allocation3 + $0x160] sm:$0x3]
      %v3194 = vld [vmem:[#allocation3 + $0x168] sm:$0xff]
      %v3195 = vld [vmem:[#allocation3 + $0x170] sm:$0xff]
      %v3196 = vld [vmem:[#allocation3 + $0x178] sm:$0x3]
      %v3245 = vrot.slane %v3149, 1
      %v3246 = vrot.slane %v3150, 1
      %v3247 = vsel %vm626, %v3245, %v3246
      %v3248 = vrot.slane %v3151, 1
      %v3249 = vsel %vm626, %v3246, %v3248
      %v3250 = vrot.slane %v3152, 1
      %v3251 = vrot.slane %v3153, 1
      %v3252 = vsel %vm626, %v3250, %v3251
      %v3253 = vrot.slane %v3154, 1
      %v3254 = vsel %vm626, %v3251, %v3253
      %v3255 = vrot.slane %v3155, 1
      %v3256 = vrot.slane %v3156, 1
      %v3257 = vsel %vm626, %v3255, %v3256
      %v3258 = vrot.slane %v3157, 1
      %v3259 = vsel %vm626, %v3256, %v3258
      %v3260 = vrot.slane %v3158, 1
      %v3261 = vrot.slane %v3159, 1
      %v3262 = vsel %vm626, %v3260, %v3261
      %v3263 = vrot.slane %v3160, 1
      %v3264 = vsel %vm626, %v3261, %v3263
      %v3265 = vrot.slane %v3161, 1
      %v3266 = vrot.slane %v3162, 1
      %v3267 = vsel %vm626, %v3265, %v3266
      %v3268 = vrot.slane %v3163, 1
      %v3269 = vsel %vm626, %v3266, %v3268
      %v3270 = vrot.slane %v3164, 1
      %v3271 = vrot.slane %v3165, 1
      %v3272 = vsel %vm626, %v3270, %v3271
      %v3273 = vrot.slane %v3166, 1
      %v3274 = vsel %vm626, %v3271, %v3273
      %v3275 = vrot.slane %v3167, 1
      %v3276 = vrot.slane %v3168, 1
      %v3277 = vsel %vm626, %v3275, %v3276
      %v3278 = vrot.slane %v3169, 1
      %v3279 = vsel %vm626, %v3276, %v3278
      %v3280 = vrot.slane %v3170, 1
      %v3281 = vrot.slane %v3171, 1
      %v3282 = vsel %vm626, %v3280, %v3281
      %v3283 = vrot.slane %v3172, 1
      %v3284 = vsel %vm626, %v3281, %v3283
      %v3285 = vrot.slane %v3173, 1
      %v3286 = vrot.slane %v3174, 1
      %v3287 = vsel %vm626, %v3285, %v3286
      %v3288 = vrot.slane %v3175, 1
      %v3289 = vsel %vm626, %v3286, %v3288
      %v3290 = vrot.slane %v3176, 1
      %v3291 = vrot.slane %v3177, 1
      %v3292 = vsel %vm626, %v3290, %v3291
      %v3293 = vrot.slane %v3178, 1
      %v3294 = vsel %vm626, %v3291, %v3293
      %v3295 = vrot.slane %v3179, 1
      %v3296 = vrot.slane %v3180, 1
      %v3297 = vsel %vm626, %v3295, %v3296
      %v3298 = vrot.slane %v3181, 1
      %v3299 = vsel %vm626, %v3296, %v3298
      %v3300 = vrot.slane %v3182, 1
      %v3301 = vrot.slane %v3183, 1
      %v3302 = vsel %vm626, %v3300, %v3301
      %v3303 = vrot.slane %v3184, 1
      %v3304 = vsel %vm626, %v3301, %v3303
      %v3305 = vrot.slane %v3185, 1
      %v3306 = vrot.slane %v3186, 1
      %v3307 = vsel %vm626, %v3305, %v3306
      %v3308 = vrot.slane %v3187, 1
      %v3309 = vsel %vm626, %v3306, %v3308
      %v3310 = vrot.slane %v3188, 1
      %v3311 = vrot.slane %v3189, 1
      %v3312 = vsel %vm626, %v3310, %v3311
      %v3313 = vrot.slane %v3190, 1
      %v3314 = vsel %vm626, %v3311, %v3313
      %v3315 = vrot.slane %v3191, 1
      %v3316 = vrot.slane %v3192, 1
      %v3317 = vsel %vm626, %v3315, %v3316
      %v3318 = vrot.slane %v3193, 1
      %v3319 = vsel %vm626, %v3316, %v3318
      %v3320 = vrot.slane %v3194, 1
      %v3321 = vrot.slane %v3195, 1
      %v3322 = vsel %vm626, %v3320, %v3321
      %v3323 = vrot.slane %v3196, 1
      %v3324 = vsel %vm626, %v3321, %v3323
      %v3325 = vrot.slane %v3149, 2
      %v3326 = vrot.slane %v3150, 2
      %v3327 = vsel %vm707, %v3325, %v3326
      %v3328 = vrot.slane %v3151, 2
      %v3329 = vsel %vm707, %v3326, %v3328
      %v3330 = vrot.slane %v3152, 2
      %v3331 = vrot.slane %v3153, 2
      %v3332 = vsel %vm707, %v3330, %v3331
      %v3333 = vrot.slane %v3154, 2
      %v3334 = vsel %vm707, %v3331, %v3333
      %v3335 = vrot.slane %v3155, 2
      %v3336 = vrot.slane %v3156, 2
      %v3337 = vsel %vm707, %v3335, %v3336
      %v3338 = vrot.slane %v3157, 2
      %v3339 = vsel %vm707, %v3336, %v3338
      %v3340 = vrot.slane %v3158, 2
      %v3341 = vrot.slane %v3159, 2
      %v3342 = vsel %vm707, %v3340, %v3341
      %v3343 = vrot.slane %v3160, 2
      %v3344 = vsel %vm707, %v3341, %v3343
      %v3345 = vrot.slane %v3161, 2
      %v3346 = vrot.slane %v3162, 2
      %v3347 = vsel %vm707, %v3345, %v3346
      %v3348 = vrot.slane %v3163, 2
      %v3349 = vsel %vm707, %v3346, %v3348
      %v3350 = vrot.slane %v3164, 2
      %v3351 = vrot.slane %v3165, 2
      %v3352 = vsel %vm707, %v3350, %v3351
      %v3353 = vrot.slane %v3166, 2
      %v3354 = vsel %vm707, %v3351, %v3353
      %v3355 = vrot.slane %v3167, 2
      %v3356 = vrot.slane %v3168, 2
      %v3357 = vsel %vm707, %v3355, %v3356
      %v3358 = vrot.slane %v3169, 2
      %v3359 = vsel %vm707, %v3356, %v3358
      %v3360 = vrot.slane %v3170, 2
      %v3361 = vrot.slane %v3171, 2
      %v3362 = vsel %vm707, %v3360, %v3361
      %v3363 = vrot.slane %v3172, 2
      %v3364 = vsel %vm707, %v3361, %v3363
      %v3365 = vrot.slane %v3173, 2
      %v3366 = vrot.slane %v3174, 2
      %v3367 = vsel %vm707, %v3365, %v3366
      %v3368 = vrot.slane %v3175, 2
      %v3369 = vsel %vm707, %v3366, %v3368
      %v3370 = vrot.slane %v3176, 2
      %v3371 = vrot.slane %v3177, 2
      %v3372 = vsel %vm707, %v3370, %v3371
      %v3373 = vrot.slane %v3178, 2
      %v3374 = vsel %vm707, %v3371, %v3373
      %v3375 = vrot.slane %v3179, 2
      %v3376 = vrot.slane %v3180, 2
      %v3377 = vsel %vm707, %v3375, %v3376
      %v3378 = vrot.slane %v3181, 2
      %v3379 = vsel %vm707, %v3376, %v3378
      %v3380 = vrot.slane %v3182, 2
      %v3381 = vrot.slane %v3183, 2
      %v3382 = vsel %vm707, %v3380, %v3381
      %v3383 = vrot.slane %v3184, 2
      %v3384 = vsel %vm707, %v3381, %v3383
      %v3385 = vrot.slane %v3185, 2
      %v3386 = vrot.slane %v3186, 2
      %v3387 = vsel %vm707, %v3385, %v3386
      %v3388 = vrot.slane %v3187, 2
      %v3389 = vsel %vm707, %v3386, %v3388
      %v3390 = vrot.slane %v3188, 2
      %v3391 = vrot.slane %v3189, 2
      %v3392 = vsel %vm707, %v3390, %v3391
      %v3393 = vrot.slane %v3190, 2
      %v3394 = vsel %vm707, %v3391, %v3393
      %v3395 = vrot.slane %v3191, 2
      %v3396 = vrot.slane %v3192, 2
      %v3397 = vsel %vm707, %v3395, %v3396
      %v3398 = vrot.slane %v3193, 2
      %v3399 = vsel %vm707, %v3396, %v3398
      %v3400 = vrot.slane %v3194, 2
      %v3401 = vrot.slane %v3195, 2
      %v3402 = vsel %vm707, %v3400, %v3401
      %v3403 = vrot.slane %v3196, 2
      %v3404 = vsel %vm707, %v3401, %v3403
      %v3405 = vld [vmem:[%s3100] sm:$0xff]
      %v3406 = vld [vmem:[%s3100 + $0x8] sm:$0xff]
      %v3407 = vld [vmem:[%s3100 + $0x10] sm:$0x3]
      %v3408 = vld [vmem:[%s3100 + $0x18] sm:$0xff]
      %v3409 = vld [vmem:[%s3100 + $0x20] sm:$0xff]
      %v3410 = vld [vmem:[%s3100 + $0x28] sm:$0x3]
      %v3411 = vld [vmem:[%s3100 + $0x30] sm:$0xff]
      %v3412 = vld [vmem:[%s3100 + $0x38] sm:$0xff]
      %v3413 = vld [vmem:[%s3100 + $0x40] sm:$0x3]
      %v3414 = vld [vmem:[%s3100 + $0x48] sm:$0xff]
      %v3415 = vld [vmem:[%s3100 + $0x50] sm:$0xff]
      %v3416 = vld [vmem:[%s3100 + $0x58] sm:$0x3]
      %v3417 = vld [vmem:[%s3100 + $0x60] sm:$0xff]
      %v3418 = vld [vmem:[%s3100 + $0x68] sm:$0xff]
      %v3419 = vld [vmem:[%s3100 + $0x70] sm:$0x3]
      %v3420 = vld [vmem:[%s3100 + $0x78] sm:$0xff]
      %v3421 = vld [vmem:[%s3100 + $0x80] sm:$0xff]
      %v3422 = vld [vmem:[%s3100 + $0x88] sm:$0x3]
      %v3423 = vld [vmem:[%s3100 + $0x90] sm:$0xff]
      %v3424 = vld [vmem:[%s3100 + $0x98] sm:$0xff]
      %v3425 = vld [vmem:[%s3100 + $0xa0] sm:$0x3]
      %v3426 = vld [vmem:[%s3100 + $0xa8] sm:$0xff]
      %v3427 = vld [vmem:[%s3100 + $0xb0] sm:$0xff]
      %v3428 = vld [vmem:[%s3100 + $0xb8] sm:$0x3]
      %v3429 = vld [vmem:[%s3100 + $0xc0] sm:$0xff]
      %v3430 = vld [vmem:[%s3100 + $0xc8] sm:$0xff]
      %v3431 = vld [vmem:[%s3100 + $0xd0] sm:$0x3]
      %v3432 = vld [vmem:[%s3100 + $0xd8] sm:$0xff]
      %v3433 = vld [vmem:[%s3100 + $0xe0] sm:$0xff]
      %v3434 = vld [vmem:[%s3100 + $0xe8] sm:$0x3]
      %v3435 = vld [vmem:[%s3100 + $0xf0] sm:$0xff]
      %v3436 = vld [vmem:[%s3100 + $0xf8] sm:$0xff]
      %v3437 = vld [vmem:[%s3100 + $0x100] sm:$0x3]
      %v3438 = vld [vmem:[%s3100 + $0x108] sm:$0xff]
      %v3439 = vld [vmem:[%s3100 + $0x110] sm:$0xff]
      %v3440 = vld [vmem:[%s3100 + $0x118] sm:$0x3]
      %v3441 = vld [vmem:[%s3100 + $0x120] sm:$0xff]
      %v3442 = vld [vmem:[%s3100 + $0x128] sm:$0xff]
      %v3443 = vld [vmem:[%s3100 + $0x130] sm:$0x3]
      %v3444 = vld [vmem:[%s3100 + $0x138] sm:$0xff]
      %v3445 = vld [vmem:[%s3100 + $0x140] sm:$0xff]
      %v3446 = vld [vmem:[%s3100 + $0x148] sm:$0x3]
      %v3447 = vld [vmem:[%s3100 + $0x150] sm:$0xff]
      %v3448 = vld [vmem:[%s3100 + $0x158] sm:$0xff]
      %v3449 = vld [vmem:[%s3100 + $0x160] sm:$0x3]
      %v3450 = vld [vmem:[%s3100 + $0x168] sm:$0xff]
      %v3451 = vld [vmem:[%s3100 + $0x170] sm:$0xff]
      %v3452 = vld [vmem:[%s3100 + $0x178] sm:$0x3]
      %v3501 = vrot.slane %v3405, 1
      %v3502 = vrot.slane %v3406, 1
      %v3503 = vsel %vm626, %v3501, %v3502
      %v3504 = vrot.slane %v3407, 1
      %v3505 = vsel %vm626, %v3502, %v3504
      %v3506 = vrot.slane %v3408, 1
      %v3507 = vrot.slane %v3409, 1
      %v3508 = vsel %vm626, %v3506, %v3507
      %v3509 = vrot.slane %v3410, 1
      %v3510 = vsel %vm626, %v3507, %v3509
      %v3511 = vrot.slane %v3411, 1
      %v3512 = vrot.slane %v3412, 1
      %v3513 = vsel %vm626, %v3511, %v3512
      %v3514 = vrot.slane %v3413, 1
      %v3515 = vsel %vm626, %v3512, %v3514
      %v3516 = vrot.slane %v3414, 1
      %v3517 = vrot.slane %v3415, 1
      %v3518 = vsel %vm626, %v3516, %v3517
      %v3519 = vrot.slane %v3416, 1
      %v3520 = vsel %vm626, %v3517, %v3519
      %v3521 = vrot.slane %v3417, 1
      %v3522 = vrot.slane %v3418, 1
      %v3523 = vsel %vm626, %v3521, %v3522
      %v3524 = vrot.slane %v3419, 1
      %v3525 = vsel %vm626, %v3522, %v3524
      %v3526 = vrot.slane %v3420, 1
      %v3527 = vrot.slane %v3421, 1
      %v3528 = vsel %vm626, %v3526, %v3527
      %v3529 = vrot.slane %v3422, 1
      %v3530 = vsel %vm626, %v3527, %v3529
      %v3531 = vrot.slane %v3423, 1
      %v3532 = vrot.slane %v3424, 1
      %v3533 = vsel %vm626, %v3531, %v3532
      %v3534 = vrot.slane %v3425, 1
      %v3535 = vsel %vm626, %v3532, %v3534
      %v3536 = vrot.slane %v3426, 1
      %v3537 = vrot.slane %v3427, 1
      %v3538 = vsel %vm626, %v3536, %v3537
      %v3539 = vrot.slane %v3428, 1
      %v3540 = vsel %vm626, %v3537, %v3539
      %v3541 = vrot.slane %v3429, 1
      %v3542 = vrot.slane %v3430, 1
      %v3543 = vsel %vm626, %v3541, %v3542
      %v3544 = vrot.slane %v3431, 1
      %v3545 = vsel %vm626, %v3542, %v3544
      %v3546 = vrot.slane %v3432, 1
      %v3547 = vrot.slane %v3433, 1
      %v3548 = vsel %vm626, %v3546, %v3547
      %v3549 = vrot.slane %v3434, 1
      %v3550 = vsel %vm626, %v3547, %v3549
      %v3551 = vrot.slane %v3435, 1
      %v3552 = vrot.slane %v3436, 1
      %v3553 = vsel %vm626, %v3551, %v3552
      %v3554 = vrot.slane %v3437, 1
      %v3555 = vsel %vm626, %v3552, %v3554
      %v3556 = vrot.slane %v3438, 1
      %v3557 = vrot.slane %v3439, 1
      %v3558 = vsel %vm626, %v3556, %v3557
      %v3559 = vrot.slane %v3440, 1
      %v3560 = vsel %vm626, %v3557, %v3559
      %v3561 = vrot.slane %v3441, 1
      %v3562 = vrot.slane %v3442, 1
      %v3563 = vsel %vm626, %v3561, %v3562
      %v3564 = vrot.slane %v3443, 1
      %v3565 = vsel %vm626, %v3562, %v3564
      %v3566 = vrot.slane %v3444, 1
      %v3567 = vrot.slane %v3445, 1
      %v3568 = vsel %vm626, %v3566, %v3567
      %v3569 = vrot.slane %v3446, 1
      %v3570 = vsel %vm626, %v3567, %v3569
      %v3571 = vrot.slane %v3447, 1
      %v3572 = vrot.slane %v3448, 1
      %v3573 = vsel %vm626, %v3571, %v3572
      %v3574 = vrot.slane %v3449, 1
      %v3575 = vsel %vm626, %v3572, %v3574
      %v3576 = vrot.slane %v3450, 1
      %v3577 = vrot.slane %v3451, 1
      %v3578 = vsel %vm626, %v3576, %v3577
      %v3579 = vrot.slane %v3452, 1
      %v3580 = vsel %vm626, %v3577, %v3579
      %v3581 = vrot.slane %v3405, 2
      %v3582 = vrot.slane %v3406, 2
      %v3583 = vsel %vm707, %v3581, %v3582
      %v3584 = vrot.slane %v3407, 2
      %v3585 = vsel %vm707, %v3582, %v3584
      %v3586 = vrot.slane %v3408, 2
      %v3587 = vrot.slane %v3409, 2
      %v3588 = vsel %vm707, %v3586, %v3587
      %v3589 = vrot.slane %v3410, 2
      %v3590 = vsel %vm707, %v3587, %v3589
      %v3591 = vrot.slane %v3411, 2
      %v3592 = vrot.slane %v3412, 2
      %v3593 = vsel %vm707, %v3591, %v3592
      %v3594 = vrot.slane %v3413, 2
      %v3595 = vsel %vm707, %v3592, %v3594
      %v3596 = vrot.slane %v3414, 2
      %v3597 = vrot.slane %v3415, 2
      %v3598 = vsel %vm707, %v3596, %v3597
      %v3599 = vrot.slane %v3416, 2
      %v3600 = vsel %vm707, %v3597, %v3599
      %v3601 = vrot.slane %v3417, 2
      %v3602 = vrot.slane %v3418, 2
      %v3603 = vsel %vm707, %v3601, %v3602
      %v3604 = vrot.slane %v3419, 2
      %v3605 = vsel %vm707, %v3602, %v3604
      %v3606 = vrot.slane %v3420, 2
      %v3607 = vrot.slane %v3421, 2
      %v3608 = vsel %vm707, %v3606, %v3607
      %v3609 = vrot.slane %v3422, 2
      %v3610 = vsel %vm707, %v3607, %v3609
      %v3611 = vrot.slane %v3423, 2
      %v3612 = vrot.slane %v3424, 2
      %v3613 = vsel %vm707, %v3611, %v3612
      %v3614 = vrot.slane %v3425, 2
      %v3615 = vsel %vm707, %v3612, %v3614
      %v3616 = vrot.slane %v3426, 2
      %v3617 = vrot.slane %v3427, 2
      %v3618 = vsel %vm707, %v3616, %v3617
      %v3619 = vrot.slane %v3428, 2
      %v3620 = vsel %vm707, %v3617, %v3619
      %v3621 = vrot.slane %v3429, 2
      %v3622 = vrot.slane %v3430, 2
      %v3623 = vsel %vm707, %v3621, %v3622
      %v3624 = vrot.slane %v3431, 2
      %v3625 = vsel %vm707, %v3622, %v3624
      %v3626 = vrot.slane %v3432, 2
      %v3627 = vrot.slane %v3433, 2
      %v3628 = vsel %vm707, %v3626, %v3627
      %v3629 = vrot.slane %v3434, 2
      %v3630 = vsel %vm707, %v3627, %v3629
      %v3631 = vrot.slane %v3435, 2
      %v3632 = vrot.slane %v3436, 2
      %v3633 = vsel %vm707, %v3631, %v3632
      %v3634 = vrot.slane %v3437, 2
      %v3635 = vsel %vm707, %v3632, %v3634
      %v3636 = vrot.slane %v3438, 2
      %v3637 = vrot.slane %v3439, 2
      %v3638 = vsel %vm707, %v3636, %v3637
      %v3639 = vrot.slane %v3440, 2
      %v3640 = vsel %vm707, %v3637, %v3639
      %v3641 = vrot.slane %v3441, 2
      %v3642 = vrot.slane %v3442, 2
      %v3643 = vsel %vm707, %v3641, %v3642
      %v3644 = vrot.slane %v3443, 2
      %v3645 = vsel %vm707, %v3642, %v3644
      %v3646 = vrot.slane %v3444, 2
      %v3647 = vrot.slane %v3445, 2
      %v3648 = vsel %vm707, %v3646, %v3647
      %v3649 = vrot.slane %v3446, 2
      %v3650 = vsel %vm707, %v3647, %v3649
      %v3651 = vrot.slane %v3447, 2
      %v3652 = vrot.slane %v3448, 2
      %v3653 = vsel %vm707, %v3651, %v3652
      %v3654 = vrot.slane %v3449, 2
      %v3655 = vsel %vm707, %v3652, %v3654
      %v3656 = vrot.slane %v3450, 2
      %v3657 = vrot.slane %v3451, 2
      %v3658 = vsel %vm707, %v3656, %v3657
      %v3659 = vrot.slane %v3452, 2
      %v3660 = vsel %vm707, %v3657, %v3659
      %s3661 = scalar_lea.vmem [#allocation3], 48
      %v3662 = vld [vmem:[%s3661] sm:$0xff]
      %v3663 = vld [vmem:[%s3661 + $0x8] sm:$0xff]
      %v3664 = vld [vmem:[%s3661 + $0x10] sm:$0x3]
      %v3665 = vld [vmem:[%s3661 + $0x18] sm:$0xff]
      %v3666 = vld [vmem:[%s3661 + $0x20] sm:$0xff]
      %v3667 = vld [vmem:[%s3661 + $0x28] sm:$0x3]
      %v3668 = vld [vmem:[%s3661 + $0x30] sm:$0xff]
      %v3669 = vld [vmem:[%s3661 + $0x38] sm:$0xff]
      %v3670 = vld [vmem:[%s3661 + $0x40] sm:$0x3]
      %v3671 = vld [vmem:[%s3661 + $0x48] sm:$0xff]
      %v3672 = vld [vmem:[%s3661 + $0x50] sm:$0xff]
      %v3673 = vld [vmem:[%s3661 + $0x58] sm:$0x3]
      %v3674 = vld [vmem:[%s3661 + $0x60] sm:$0xff]
      %v3675 = vld [vmem:[%s3661 + $0x68] sm:$0xff]
      %v3676 = vld [vmem:[%s3661 + $0x70] sm:$0x3]
      %v3677 = vld [vmem:[%s3661 + $0x78] sm:$0xff]
      %v3678 = vld [vmem:[%s3661 + $0x80] sm:$0xff]
      %v3679 = vld [vmem:[%s3661 + $0x88] sm:$0x3]
      %v3680 = vld [vmem:[%s3661 + $0x90] sm:$0xff]
      %v3681 = vld [vmem:[%s3661 + $0x98] sm:$0xff]
      %v3682 = vld [vmem:[%s3661 + $0xa0] sm:$0x3]
      %v3683 = vld [vmem:[%s3661 + $0xa8] sm:$0xff]
      %v3684 = vld [vmem:[%s3661 + $0xb0] sm:$0xff]
      %v3685 = vld [vmem:[%s3661 + $0xb8] sm:$0x3]
      %v3686 = vld [vmem:[%s3661 + $0xc0] sm:$0xff]
      %v3687 = vld [vmem:[%s3661 + $0xc8] sm:$0xff]
      %v3688 = vld [vmem:[%s3661 + $0xd0] sm:$0x3]
      %v3689 = vld [vmem:[%s3661 + $0xd8] sm:$0xff]
      %v3690 = vld [vmem:[%s3661 + $0xe0] sm:$0xff]
      %v3691 = vld [vmem:[%s3661 + $0xe8] sm:$0x3]
      %v3692 = vld [vmem:[%s3661 + $0xf0] sm:$0xff]
      %v3693 = vld [vmem:[%s3661 + $0xf8] sm:$0xff]
      %v3694 = vld [vmem:[%s3661 + $0x100] sm:$0x3]
      %v3695 = vld [vmem:[%s3661 + $0x108] sm:$0xff]
      %v3696 = vld [vmem:[%s3661 + $0x110] sm:$0xff]
      %v3697 = vld [vmem:[%s3661 + $0x118] sm:$0x3]
      %v3698 = vld [vmem:[%s3661 + $0x120] sm:$0xff]
      %v3699 = vld [vmem:[%s3661 + $0x128] sm:$0xff]
      %v3700 = vld [vmem:[%s3661 + $0x130] sm:$0x3]
      %v3701 = vld [vmem:[%s3661 + $0x138] sm:$0xff]
      %v3702 = vld [vmem:[%s3661 + $0x140] sm:$0xff]
      %v3703 = vld [vmem:[%s3661 + $0x148] sm:$0x3]
      %v3704 = vld [vmem:[%s3661 + $0x150] sm:$0xff]
      %v3705 = vld [vmem:[%s3661 + $0x158] sm:$0xff]
      %v3706 = vld [vmem:[%s3661 + $0x160] sm:$0x3]
      %v3707 = vld [vmem:[%s3661 + $0x168] sm:$0xff]
      %v3708 = vld [vmem:[%s3661 + $0x170] sm:$0xff]
      %v3709 = vld [vmem:[%s3661 + $0x178] sm:$0x3]
      %v3758 = vrot.slane %v3662, 1
      %v3759 = vrot.slane %v3663, 1
      %v3760 = vsel %vm626, %v3758, %v3759
      %v3761 = vrot.slane %v3664, 1
      %v3762 = vsel %vm626, %v3759, %v3761
      %v3763 = vrot.slane %v3665, 1
      %v3764 = vrot.slane %v3666, 1
      %v3765 = vsel %vm626, %v3763, %v3764
      %v3766 = vrot.slane %v3667, 1
      %v3767 = vsel %vm626, %v3764, %v3766
      %v3768 = vrot.slane %v3668, 1
      %v3769 = vrot.slane %v3669, 1
      %v3770 = vsel %vm626, %v3768, %v3769
      %v3771 = vrot.slane %v3670, 1
      %v3772 = vsel %vm626, %v3769, %v3771
      %v3773 = vrot.slane %v3671, 1
      %v3774 = vrot.slane %v3672, 1
      %v3775 = vsel %vm626, %v3773, %v3774
      %v3776 = vrot.slane %v3673, 1
      %v3777 = vsel %vm626, %v3774, %v3776
      %v3778 = vrot.slane %v3674, 1
      %v3779 = vrot.slane %v3675, 1
      %v3780 = vsel %vm626, %v3778, %v3779
      %v3781 = vrot.slane %v3676, 1
      %v3782 = vsel %vm626, %v3779, %v3781
      %v3783 = vrot.slane %v3677, 1
      %v3784 = vrot.slane %v3678, 1
      %v3785 = vsel %vm626, %v3783, %v3784
      %v3786 = vrot.slane %v3679, 1
      %v3787 = vsel %vm626, %v3784, %v3786
      %v3788 = vrot.slane %v3680, 1
      %v3789 = vrot.slane %v3681, 1
      %v3790 = vsel %vm626, %v3788, %v3789
      %v3791 = vrot.slane %v3682, 1
      %v3792 = vsel %vm626, %v3789, %v3791
      %v3793 = vrot.slane %v3683, 1
      %v3794 = vrot.slane %v3684, 1
      %v3795 = vsel %vm626, %v3793, %v3794
      %v3796 = vrot.slane %v3685, 1
      %v3797 = vsel %vm626, %v3794, %v3796
      %v3798 = vrot.slane %v3686, 1
      %v3799 = vrot.slane %v3687, 1
      %v3800 = vsel %vm626, %v3798, %v3799
      %v3801 = vrot.slane %v3688, 1
      %v3802 = vsel %vm626, %v3799, %v3801
      %v3803 = vrot.slane %v3689, 1
      %v3804 = vrot.slane %v3690, 1
      %v3805 = vsel %vm626, %v3803, %v3804
      %v3806 = vrot.slane %v3691, 1
      %v3807 = vsel %vm626, %v3804, %v3806
      %v3808 = vrot.slane %v3692, 1
      %v3809 = vrot.slane %v3693, 1
      %v3810 = vsel %vm626, %v3808, %v3809
      %v3811 = vrot.slane %v3694, 1
      %v3812 = vsel %vm626, %v3809, %v3811
      %v3813 = vrot.slane %v3695, 1
      %v3814 = vrot.slane %v3696, 1
      %v3815 = vsel %vm626, %v3813, %v3814
      %v3816 = vrot.slane %v3697, 1
      %v3817 = vsel %vm626, %v3814, %v3816
      %v3818 = vrot.slane %v3698, 1
      %v3819 = vrot.slane %v3699, 1
      %v3820 = vsel %vm626, %v3818, %v3819
      %v3821 = vrot.slane %v3700, 1
      %v3822 = vsel %vm626, %v3819, %v3821
      %v3823 = vrot.slane %v3701, 1
      %v3824 = vrot.slane %v3702, 1
      %v3825 = vsel %vm626, %v3823, %v3824
      %v3826 = vrot.slane %v3703, 1
      %v3827 = vsel %vm626, %v3824, %v3826
      %v3828 = vrot.slane %v3704, 1
      %v3829 = vrot.slane %v3705, 1
      %v3830 = vsel %vm626, %v3828, %v3829
      %v3831 = vrot.slane %v3706, 1
      %v3832 = vsel %vm626, %v3829, %v3831
      %v3833 = vrot.slane %v3707, 1
      %v3834 = vrot.slane %v3708, 1
      %v3835 = vsel %vm626, %v3833, %v3834
      %v3836 = vrot.slane %v3709, 1
      %v3837 = vsel %vm626, %v3834, %v3836
      %v3838 = vrot.slane %v3662, 2
      %v3839 = vrot.slane %v3663, 2
      %v3840 = vsel %vm707, %v3838, %v3839
      %v3841 = vrot.slane %v3664, 2
      %v3842 = vsel %vm707, %v3839, %v3841
      %v3843 = vrot.slane %v3665, 2
      %v3844 = vrot.slane %v3666, 2
      %v3845 = vsel %vm707, %v3843, %v3844
      %v3846 = vrot.slane %v3667, 2
      %v3847 = vsel %vm707, %v3844, %v3846
      %v3848 = vrot.slane %v3668, 2
      %v3849 = vrot.slane %v3669, 2
      %v3850 = vsel %vm707, %v3848, %v3849
      %v3851 = vrot.slane %v3670, 2
      %v3852 = vsel %vm707, %v3849, %v3851
      %v3853 = vrot.slane %v3671, 2
      %v3854 = vrot.slane %v3672, 2
      %v3855 = vsel %vm707, %v3853, %v3854
      %v3856 = vrot.slane %v3673, 2
      %v3857 = vsel %vm707, %v3854, %v3856
      %v3858 = vrot.slane %v3674, 2
      %v3859 = vrot.slane %v3675, 2
      %v3860 = vsel %vm707, %v3858, %v3859
      %v3861 = vrot.slane %v3676, 2
      %v3862 = vsel %vm707, %v3859, %v3861
      %v3863 = vrot.slane %v3677, 2
      %v3864 = vrot.slane %v3678, 2
      %v3865 = vsel %vm707, %v3863, %v3864
      %v3866 = vrot.slane %v3679, 2
      %v3867 = vsel %vm707, %v3864, %v3866
      %v3868 = vrot.slane %v3680, 2
      %v3869 = vrot.slane %v3681, 2
      %v3870 = vsel %vm707, %v3868, %v3869
      %v3871 = vrot.slane %v3682, 2
      %v3872 = vsel %vm707, %v3869, %v3871
      %v3873 = vrot.slane %v3683, 2
      %v3874 = vrot.slane %v3684, 2
      %v3875 = vsel %vm707, %v3873, %v3874
      %v3876 = vrot.slane %v3685, 2
      %v3877 = vsel %vm707, %v3874, %v3876
      %v3878 = vrot.slane %v3686, 2
      %v3879 = vrot.slane %v3687, 2
      %v3880 = vsel %vm707, %v3878, %v3879
      %v3881 = vrot.slane %v3688, 2
      %v3882 = vsel %vm707, %v3879, %v3881
      %v3883 = vrot.slane %v3689, 2
      %v3884 = vrot.slane %v3690, 2
      %v3885 = vsel %vm707, %v3883, %v3884
      %v3886 = vrot.slane %v3691, 2
      %v3887 = vsel %vm707, %v3884, %v3886
      %v3888 = vrot.slane %v3692, 2
      %v3889 = vrot.slane %v3693, 2
      %v3890 = vsel %vm707, %v3888, %v3889
      %v3891 = vrot.slane %v3694, 2
      %v3892 = vsel %vm707, %v3889, %v3891
      %v3893 = vrot.slane %v3695, 2
      %v3894 = vrot.slane %v3696, 2
      %v3895 = vsel %vm707, %v3893, %v3894
      %v3896 = vrot.slane %v3697, 2
      %v3897 = vsel %vm707, %v3894, %v3896
      %v3898 = vrot.slane %v3698, 2
      %v3899 = vrot.slane %v3699, 2
      %v3900 = vsel %vm707, %v3898, %v3899
      %v3901 = vrot.slane %v3700, 2
      %v3902 = vsel %vm707, %v3899, %v3901
      %v3903 = vrot.slane %v3701, 2
      %v3904 = vrot.slane %v3702, 2
      %v3905 = vsel %vm707, %v3903, %v3904
      %v3906 = vrot.slane %v3703, 2
      %v3907 = vsel %vm707, %v3904, %v3906
      %v3908 = vrot.slane %v3704, 2
      %v3909 = vrot.slane %v3705, 2
      %v3910 = vsel %vm707, %v3908, %v3909
      %v3911 = vrot.slane %v3706, 2
      %v3912 = vsel %vm707, %v3909, %v3911
      %v3913 = vrot.slane %v3707, 2
      %v3914 = vrot.slane %v3708, 2
      %v3915 = vsel %vm707, %v3913, %v3914
      %v3916 = vrot.slane %v3709, 2
      %v3917 = vsel %vm707, %v3914, %v3916
      %3918 = vrot.lane.b32.xlu0 %v3247, 8
      %v3919 = vpop.permute.xlu0 %3918
      %3920 = vrot.lane.b32.xlu0 %v3249, 8
      %v3921 = vpop.permute.xlu0 %3920
      %3922 = vrot.lane.b32.xlu0 %v3252, 8
      %v3923 = vpop.permute.xlu0 %3922
      %3924 = vrot.lane.b32.xlu0 %v3254, 8
      %v3925 = vpop.permute.xlu0 %3924
      %3926 = vrot.lane.b32.xlu0 %v3257, 8
      %v3927 = vpop.permute.xlu0 %3926
      %3928 = vrot.lane.b32.xlu0 %v3259, 8
      %v3929 = vpop.permute.xlu0 %3928
      %3930 = vrot.lane.b32.xlu0 %v3262, 8
      %v3931 = vpop.permute.xlu0 %3930
      %3932 = vrot.lane.b32.xlu0 %v3264, 8
      %v3933 = vpop.permute.xlu0 %3932
      %3934 = vrot.lane.b32.xlu0 %v3267, 8
      %v3935 = vpop.permute.xlu0 %3934
      %3936 = vrot.lane.b32.xlu0 %v3269, 8
      %v3937 = vpop.permute.xlu0 %3936
      %3938 = vrot.lane.b32.xlu0 %v3272, 8
      %v3939 = vpop.permute.xlu0 %3938
      %3940 = vrot.lane.b32.xlu0 %v3274, 8
      %v3941 = vpop.permute.xlu0 %3940
      %3942 = vrot.lane.b32.xlu0 %v3277, 8
      %v3943 = vpop.permute.xlu0 %3942
      %3944 = vrot.lane.b32.xlu0 %v3279, 8
      %v3945 = vpop.permute.xlu0 %3944
      %3946 = vrot.lane.b32.xlu0 %v3282, 8
      %v3947 = vpop.permute.xlu0 %3946
      %3948 = vrot.lane.b32.xlu0 %v3284, 8
      %v3949 = vpop.permute.xlu0 %3948
      %3950 = vrot.lane.b32.xlu0 %v3287, 8
      %v3951 = vpop.permute.xlu0 %3950
      %3952 = vrot.lane.b32.xlu0 %v3289, 8
      %v3953 = vpop.permute.xlu0 %3952
      %3954 = vrot.lane.b32.xlu0 %v3292, 8
      %v3955 = vpop.permute.xlu0 %3954
      %3956 = vrot.lane.b32.xlu0 %v3294, 8
      %v3957 = vpop.permute.xlu0 %3956
      %3958 = vrot.lane.b32.xlu0 %v3297, 8
      %v3959 = vpop.permute.xlu0 %3958
      %3960 = vrot.lane.b32.xlu0 %v3299, 8
      %v3961 = vpop.permute.xlu0 %3960
      %3962 = vrot.lane.b32.xlu0 %v3302, 8
      %v3963 = vpop.permute.xlu0 %3962
      %3964 = vrot.lane.b32.xlu0 %v3304, 8
      %v3965 = vpop.permute.xlu0 %3964
      %3966 = vrot.lane.b32.xlu0 %v3307, 8
      %v3967 = vpop.permute.xlu0 %3966
      %3968 = vrot.lane.b32.xlu0 %v3309, 8
      %v3969 = vpop.permute.xlu0 %3968
      %3970 = vrot.lane.b32.xlu0 %v3312, 8
      %v3971 = vpop.permute.xlu0 %3970
      %3972 = vrot.lane.b32.xlu0 %v3314, 8
      %v3973 = vpop.permute.xlu0 %3972
      %3974 = vrot.lane.b32.xlu0 %v3317, 8
      %v3975 = vpop.permute.xlu0 %3974
      %3976 = vrot.lane.b32.xlu0 %v3319, 8
      %v3977 = vpop.permute.xlu0 %3976
      %3978 = vrot.lane.b32.xlu0 %v3322, 8
      %v3979 = vpop.permute.xlu0 %3978
      %3980 = vrot.lane.b32.xlu0 %v3324, 8
      %v3981 = vpop.permute.xlu0 %3980
      %4014 = vrot.lane.b32.xlu0 %v3327, 16
      %v4015 = vpop.permute.xlu0 %4014
      %4016 = vrot.lane.b32.xlu0 %v3329, 16
      %v4017 = vpop.permute.xlu0 %4016
      %4018 = vrot.lane.b32.xlu0 %v3332, 16
      %v4019 = vpop.permute.xlu0 %4018
      %4020 = vrot.lane.b32.xlu0 %v3334, 16
      %v4021 = vpop.permute.xlu0 %4020
      %4022 = vrot.lane.b32.xlu0 %v3337, 16
      %v4023 = vpop.permute.xlu0 %4022
      %4024 = vrot.lane.b32.xlu0 %v3339, 16
      %v4025 = vpop.permute.xlu0 %4024
      %4026 = vrot.lane.b32.xlu0 %v3342, 16
      %v4027 = vpop.permute.xlu0 %4026
      %4028 = vrot.lane.b32.xlu0 %v3344, 16
      %v4029 = vpop.permute.xlu0 %4028
      %4030 = vrot.lane.b32.xlu0 %v3347, 16
      %v4031 = vpop.permute.xlu0 %4030
      %4032 = vrot.lane.b32.xlu0 %v3349, 16
      %v4033 = vpop.permute.xlu0 %4032
      %4034 = vrot.lane.b32.xlu0 %v3352, 16
      %v4035 = vpop.permute.xlu0 %4034
      %4036 = vrot.lane.b32.xlu0 %v3354, 16
      %v4037 = vpop.permute.xlu0 %4036
      %4038 = vrot.lane.b32.xlu0 %v3357, 16
      %v4039 = vpop.permute.xlu0 %4038
      %4040 = vrot.lane.b32.xlu0 %v3359, 16
      %v4041 = vpop.permute.xlu0 %4040
      %4042 = vrot.lane.b32.xlu0 %v3362, 16
      %v4043 = vpop.permute.xlu0 %4042
      %4044 = vrot.lane.b32.xlu0 %v3364, 16
      %v4045 = vpop.permute.xlu0 %4044
      %4046 = vrot.lane.b32.xlu0 %v3367, 16
      %v4047 = vpop.permute.xlu0 %4046
      %4048 = vrot.lane.b32.xlu0 %v3369, 16
      %v4049 = vpop.permute.xlu0 %4048
      %4050 = vrot.lane.b32.xlu0 %v3372, 16
      %v4051 = vpop.permute.xlu0 %4050
      %4052 = vrot.lane.b32.xlu0 %v3374, 16
      %v4053 = vpop.permute.xlu0 %4052
      %4054 = vrot.lane.b32.xlu0 %v3377, 16
      %v4055 = vpop.permute.xlu0 %4054
      %4056 = vrot.lane.b32.xlu0 %v3379, 16
      %v4057 = vpop.permute.xlu0 %4056
      %4058 = vrot.lane.b32.xlu0 %v3382, 16
      %v4059 = vpop.permute.xlu0 %4058
      %4060 = vrot.lane.b32.xlu0 %v3384, 16
      %v4061 = vpop.permute.xlu0 %4060
      %4062 = vrot.lane.b32.xlu0 %v3387, 16
      %v4063 = vpop.permute.xlu0 %4062
      %4064 = vrot.lane.b32.xlu0 %v3389, 16
      %v4065 = vpop.permute.xlu0 %4064
      %4066 = vrot.lane.b32.xlu0 %v3392, 16
      %v4067 = vpop.permute.xlu0 %4066
      %4068 = vrot.lane.b32.xlu0 %v3394, 16
      %v4069 = vpop.permute.xlu0 %4068
      %4070 = vrot.lane.b32.xlu0 %v3397, 16
      %v4071 = vpop.permute.xlu0 %4070
      %4072 = vrot.lane.b32.xlu0 %v3399, 16
      %v4073 = vpop.permute.xlu0 %4072
      %4074 = vrot.lane.b32.xlu0 %v3402, 16
      %v4075 = vpop.permute.xlu0 %4074
      %4076 = vrot.lane.b32.xlu0 %v3404, 16
      %v4077 = vpop.permute.xlu0 %4076
      %4110 = vrot.lane.b32.xlu0 %v3405, 24
      %v4111 = vpop.permute.xlu0 %4110
      %4112 = vrot.lane.b32.xlu0 %v3406, 24
      %v4113 = vpop.permute.xlu0 %4112
      %4114 = vrot.lane.b32.xlu0 %v3408, 24
      %v4115 = vpop.permute.xlu0 %4114
      %4116 = vrot.lane.b32.xlu0 %v3409, 24
      %v4117 = vpop.permute.xlu0 %4116
      %4118 = vrot.lane.b32.xlu0 %v3411, 24
      %v4119 = vpop.permute.xlu0 %4118
      %4120 = vrot.lane.b32.xlu0 %v3412, 24
      %v4121 = vpop.permute.xlu0 %4120
      %4122 = vrot.lane.b32.xlu0 %v3414, 24
      %v4123 = vpop.permute.xlu0 %4122
      %4124 = vrot.lane.b32.xlu0 %v3415, 24
      %v4125 = vpop.permute.xlu0 %4124
      %4126 = vrot.lane.b32.xlu0 %v3417, 24
      %v4127 = vpop.permute.xlu0 %4126
      %4128 = vrot.lane.b32.xlu0 %v3418, 24
      %v4129 = vpop.permute.xlu0 %4128
      %4130 = vrot.lane.b32.xlu0 %v3420, 24
      %v4131 = vpop.permute.xlu0 %4130
      %4132 = vrot.lane.b32.xlu0 %v3421, 24
      %v4133 = vpop.permute.xlu0 %4132
      %4134 = vrot.lane.b32.xlu0 %v3423, 24
      %v4135 = vpop.permute.xlu0 %4134
      %4136 = vrot.lane.b32.xlu0 %v3424, 24
      %v4137 = vpop.permute.xlu0 %4136
      %4138 = vrot.lane.b32.xlu0 %v3426, 24
      %v4139 = vpop.permute.xlu0 %4138
      %4140 = vrot.lane.b32.xlu0 %v3427, 24
      %v4141 = vpop.permute.xlu0 %4140
      %4142 = vrot.lane.b32.xlu0 %v3429, 24
      %v4143 = vpop.permute.xlu0 %4142
      %4144 = vrot.lane.b32.xlu0 %v3430, 24
      %v4145 = vpop.permute.xlu0 %4144
      %4146 = vrot.lane.b32.xlu0 %v3432, 24
      %v4147 = vpop.permute.xlu0 %4146
      %4148 = vrot.lane.b32.xlu0 %v3433, 24
      %v4149 = vpop.permute.xlu0 %4148
      %4150 = vrot.lane.b32.xlu0 %v3435, 24
      %v4151 = vpop.permute.xlu0 %4150
      %4152 = vrot.lane.b32.xlu0 %v3436, 24
      %v4153 = vpop.permute.xlu0 %4152
      %4154 = vrot.lane.b32.xlu0 %v3438, 24
      %v4155 = vpop.permute.xlu0 %4154
      %4156 = vrot.lane.b32.xlu0 %v3439, 24
      %v4157 = vpop.permute.xlu0 %4156
      %4158 = vrot.lane.b32.xlu0 %v3441, 24
      %v4159 = vpop.permute.xlu0 %4158
      %4160 = vrot.lane.b32.xlu0 %v3442, 24
      %v4161 = vpop.permute.xlu0 %4160
      %4162 = vrot.lane.b32.xlu0 %v3444, 24
      %v4163 = vpop.permute.xlu0 %4162
      %4164 = vrot.lane.b32.xlu0 %v3445, 24
      %v4165 = vpop.permute.xlu0 %4164
      %4166 = vrot.lane.b32.xlu0 %v3447, 24
      %v4167 = vpop.permute.xlu0 %4166
      %4168 = vrot.lane.b32.xlu0 %v3448, 24
      %v4169 = vpop.permute.xlu0 %4168
      %4170 = vrot.lane.b32.xlu0 %v3450, 24
      %v4171 = vpop.permute.xlu0 %4170
      %4172 = vrot.lane.b32.xlu0 %v3451, 24
      %v4173 = vpop.permute.xlu0 %4172
      %4206 = vrot.lane.b32.xlu0 %v3503, 32
      %v4207 = vpop.permute.xlu0 %4206
      %4208 = vrot.lane.b32.xlu0 %v3505, 32
      %v4209 = vpop.permute.xlu0 %4208
      %4210 = vrot.lane.b32.xlu0 %v3508, 32
      %v4211 = vpop.permute.xlu0 %4210
      %4212 = vrot.lane.b32.xlu0 %v3510, 32
      %v4213 = vpop.permute.xlu0 %4212
      %4214 = vrot.lane.b32.xlu0 %v3513, 32
      %v4215 = vpop.permute.xlu0 %4214
      %4216 = vrot.lane.b32.xlu0 %v3515, 32
      %v4217 = vpop.permute.xlu0 %4216
      %4218 = vrot.lane.b32.xlu0 %v3518, 32
      %v4219 = vpop.permute.xlu0 %4218
      %4220 = vrot.lane.b32.xlu0 %v3520, 32
      %v4221 = vpop.permute.xlu0 %4220
      %4222 = vrot.lane.b32.xlu0 %v3523, 32
      %v4223 = vpop.permute.xlu0 %4222
      %4224 = vrot.lane.b32.xlu0 %v3525, 32
      %v4225 = vpop.permute.xlu0 %4224
      %4226 = vrot.lane.b32.xlu0 %v3528, 32
      %v4227 = vpop.permute.xlu0 %4226
      %4228 = vrot.lane.b32.xlu0 %v3530, 32
      %v4229 = vpop.permute.xlu0 %4228
      %4230 = vrot.lane.b32.xlu0 %v3533, 32
      %v4231 = vpop.permute.xlu0 %4230
      %4232 = vrot.lane.b32.xlu0 %v3535, 32
      %v4233 = vpop.permute.xlu0 %4232
      %4234 = vrot.lane.b32.xlu0 %v3538, 32
      %v4235 = vpop.permute.xlu0 %4234
      %4236 = vrot.lane.b32.xlu0 %v3540, 32
      %v4237 = vpop.permute.xlu0 %4236
      %4238 = vrot.lane.b32.xlu0 %v3543, 32
      %v4239 = vpop.permute.xlu0 %4238
      %4240 = vrot.lane.b32.xlu0 %v3545, 32
      %v4241 = vpop.permute.xlu0 %4240
      %4242 = vrot.lane.b32.xlu0 %v3548, 32
      %v4243 = vpop.permute.xlu0 %4242
      %4244 = vrot.lane.b32.xlu0 %v3550, 32
      %v4245 = vpop.permute.xlu0 %4244
      %4246 = vrot.lane.b32.xlu0 %v3553, 32
      %v4247 = vpop.permute.xlu0 %4246
      %4248 = vrot.lane.b32.xlu0 %v3555, 32
      %v4249 = vpop.permute.xlu0 %4248
      %4250 = vrot.lane.b32.xlu0 %v3558, 32
      %v4251 = vpop.permute.xlu0 %4250
      %4252 = vrot.lane.b32.xlu0 %v3560, 32
      %v4253 = vpop.permute.xlu0 %4252
      %4254 = vrot.lane.b32.xlu0 %v3563, 32
      %v4255 = vpop.permute.xlu0 %4254
      %4256 = vrot.lane.b32.xlu0 %v3565, 32
      %v4257 = vpop.permute.xlu0 %4256
      %4258 = vrot.lane.b32.xlu0 %v3568, 32
      %v4259 = vpop.permute.xlu0 %4258
      %4260 = vrot.lane.b32.xlu0 %v3570, 32
      %v4261 = vpop.permute.xlu0 %4260
      %4262 = vrot.lane.b32.xlu0 %v3573, 32
      %v4263 = vpop.permute.xlu0 %4262
      %4264 = vrot.lane.b32.xlu0 %v3575, 32
      %v4265 = vpop.permute.xlu0 %4264
      %4266 = vrot.lane.b32.xlu0 %v3578, 32
      %v4267 = vpop.permute.xlu0 %4266
      %4268 = vrot.lane.b32.xlu0 %v3580, 32
      %v4269 = vpop.permute.xlu0 %4268
      %4302 = vrot.lane.b32.xlu0 %v3583, 40
      %v4303 = vpop.permute.xlu0 %4302
      %4304 = vrot.lane.b32.xlu0 %v3585, 40
      %v4305 = vpop.permute.xlu0 %4304
      %4306 = vrot.lane.b32.xlu0 %v3588, 40
      %v4307 = vpop.permute.xlu0 %4306
      %4308 = vrot.lane.b32.xlu0 %v3590, 40
      %v4309 = vpop.permute.xlu0 %4308
      %4310 = vrot.lane.b32.xlu0 %v3593, 40
      %v4311 = vpop.permute.xlu0 %4310
      %4312 = vrot.lane.b32.xlu0 %v3595, 40
      %v4313 = vpop.permute.xlu0 %4312
      %4314 = vrot.lane.b32.xlu0 %v3598, 40
      %v4315 = vpop.permute.xlu0 %4314
      %4316 = vrot.lane.b32.xlu0 %v3600, 40
      %v4317 = vpop.permute.xlu0 %4316
      %4318 = vrot.lane.b32.xlu0 %v3603, 40
      %v4319 = vpop.permute.xlu0 %4318
      %4320 = vrot.lane.b32.xlu0 %v3605, 40
      %v4321 = vpop.permute.xlu0 %4320
      %4322 = vrot.lane.b32.xlu0 %v3608, 40
      %v4323 = vpop.permute.xlu0 %4322
      %4324 = vrot.lane.b32.xlu0 %v3610, 40
      %v4325 = vpop.permute.xlu0 %4324
      %4326 = vrot.lane.b32.xlu0 %v3613, 40
      %v4327 = vpop.permute.xlu0 %4326
      %4328 = vrot.lane.b32.xlu0 %v3615, 40
      %v4329 = vpop.permute.xlu0 %4328
      %4330 = vrot.lane.b32.xlu0 %v3618, 40
      %v4331 = vpop.permute.xlu0 %4330
      %4332 = vrot.lane.b32.xlu0 %v3620, 40
      %v4333 = vpop.permute.xlu0 %4332
      %4334 = vrot.lane.b32.xlu0 %v3623, 40
      %v4335 = vpop.permute.xlu0 %4334
      %4336 = vrot.lane.b32.xlu0 %v3625, 40
      %v4337 = vpop.permute.xlu0 %4336
      %4338 = vrot.lane.b32.xlu0 %v3628, 40
      %v4339 = vpop.permute.xlu0 %4338
      %4340 = vrot.lane.b32.xlu0 %v3630, 40
      %v4341 = vpop.permute.xlu0 %4340
      %4342 = vrot.lane.b32.xlu0 %v3633, 40
      %v4343 = vpop.permute.xlu0 %4342
      %4344 = vrot.lane.b32.xlu0 %v3635, 40
      %v4345 = vpop.permute.xlu0 %4344
      %4346 = vrot.lane.b32.xlu0 %v3638, 40
      %v4347 = vpop.permute.xlu0 %4346
      %4348 = vrot.lane.b32.xlu0 %v3640, 40
      %v4349 = vpop.permute.xlu0 %4348
      %4350 = vrot.lane.b32.xlu0 %v3643, 40
      %v4351 = vpop.permute.xlu0 %4350
      %4352 = vrot.lane.b32.xlu0 %v3645, 40
      %v4353 = vpop.permute.xlu0 %4352
      %4354 = vrot.lane.b32.xlu0 %v3648, 40
      %v4355 = vpop.permute.xlu0 %4354
      %4356 = vrot.lane.b32.xlu0 %v3650, 40
      %v4357 = vpop.permute.xlu0 %4356
      %4358 = vrot.lane.b32.xlu0 %v3653, 40
      %v4359 = vpop.permute.xlu0 %4358
      %4360 = vrot.lane.b32.xlu0 %v3655, 40
      %v4361 = vpop.permute.xlu0 %4360
      %4362 = vrot.lane.b32.xlu0 %v3658, 40
      %v4363 = vpop.permute.xlu0 %4362
      %4364 = vrot.lane.b32.xlu0 %v3660, 40
      %v4365 = vpop.permute.xlu0 %4364
      %4398 = vrot.lane.b32.xlu0 %v3662, 48
      %v4399 = vpop.permute.xlu0 %4398
      %4400 = vrot.lane.b32.xlu0 %v3663, 48
      %v4401 = vpop.permute.xlu0 %4400
      %4402 = vrot.lane.b32.xlu0 %v3665, 48
      %v4403 = vpop.permute.xlu0 %4402
      %4404 = vrot.lane.b32.xlu0 %v3666, 48
      %v4405 = vpop.permute.xlu0 %4404
      %4406 = vrot.lane.b32.xlu0 %v3668, 48
      %v4407 = vpop.permute.xlu0 %4406
      %4408 = vrot.lane.b32.xlu0 %v3669, 48
      %v4409 = vpop.permute.xlu0 %4408
      %4410 = vrot.lane.b32.xlu0 %v3671, 48
      %v4411 = vpop.permute.xlu0 %4410
      %4412 = vrot.lane.b32.xlu0 %v3672, 48
      %v4413 = vpop.permute.xlu0 %4412
      %4414 = vrot.lane.b32.xlu0 %v3674, 48
      %v4415 = vpop.permute.xlu0 %4414
      %4416 = vrot.lane.b32.xlu0 %v3675, 48
      %v4417 = vpop.permute.xlu0 %4416
      %4418 = vrot.lane.b32.xlu0 %v3677, 48
      %v4419 = vpop.permute.xlu0 %4418
      %4420 = vrot.lane.b32.xlu0 %v3678, 48
      %v4421 = vpop.permute.xlu0 %4420
      %4422 = vrot.lane.b32.xlu0 %v3680, 48
      %v4423 = vpop.permute.xlu0 %4422
      %4424 = vrot.lane.b32.xlu0 %v3681, 48
      %v4425 = vpop.permute.xlu0 %4424
      %4426 = vrot.lane.b32.xlu0 %v3683, 48
      %v4427 = vpop.permute.xlu0 %4426
      %4428 = vrot.lane.b32.xlu0 %v3684, 48
      %v4429 = vpop.permute.xlu0 %4428
      %4430 = vrot.lane.b32.xlu0 %v3686, 48
      %v4431 = vpop.permute.xlu0 %4430
      %4432 = vrot.lane.b32.xlu0 %v3687, 48
      %v4433 = vpop.permute.xlu0 %4432
      %4434 = vrot.lane.b32.xlu0 %v3689, 48
      %v4435 = vpop.permute.xlu0 %4434
      %4436 = vrot.lane.b32.xlu0 %v3690, 48
      %v4437 = vpop.permute.xlu0 %4436
      %4438 = vrot.lane.b32.xlu0 %v3692, 48
      %v4439 = vpop.permute.xlu0 %4438
      %4440 = vrot.lane.b32.xlu0 %v3693, 48
      %v4441 = vpop.permute.xlu0 %4440
      %4442 = vrot.lane.b32.xlu0 %v3695, 48
      %v4443 = vpop.permute.xlu0 %4442
      %4444 = vrot.lane.b32.xlu0 %v3696, 48
      %v4445 = vpop.permute.xlu0 %4444
      %4446 = vrot.lane.b32.xlu0 %v3698, 48
      %v4447 = vpop.permute.xlu0 %4446
      %4448 = vrot.lane.b32.xlu0 %v3699, 48
      %v4449 = vpop.permute.xlu0 %4448
      %4450 = vrot.lane.b32.xlu0 %v3701, 48
      %v4451 = vpop.permute.xlu0 %4450
      %4452 = vrot.lane.b32.xlu0 %v3702, 48
      %v4453 = vpop.permute.xlu0 %4452
      %4454 = vrot.lane.b32.xlu0 %v3704, 48
      %v4455 = vpop.permute.xlu0 %4454
      %4456 = vrot.lane.b32.xlu0 %v3705, 48
      %v4457 = vpop.permute.xlu0 %4456
      %4458 = vrot.lane.b32.xlu0 %v3707, 48
      %v4459 = vpop.permute.xlu0 %4458
      %4460 = vrot.lane.b32.xlu0 %v3708, 48
      %v4461 = vpop.permute.xlu0 %4460
      %4494 = vrot.lane.b32.xlu0 %v3760, 56
      %v4495 = vpop.permute.xlu0 %4494
      %4496 = vrot.lane.b32.xlu0 %v3762, 56
      %v4497 = vpop.permute.xlu0 %4496
      %4498 = vrot.lane.b32.xlu0 %v3765, 56
      %v4499 = vpop.permute.xlu0 %4498
      %4500 = vrot.lane.b32.xlu0 %v3767, 56
      %v4501 = vpop.permute.xlu0 %4500
      %4502 = vrot.lane.b32.xlu0 %v3770, 56
      %v4503 = vpop.permute.xlu0 %4502
      %4504 = vrot.lane.b32.xlu0 %v3772, 56
      %v4505 = vpop.permute.xlu0 %4504
      %4506 = vrot.lane.b32.xlu0 %v3775, 56
      %v4507 = vpop.permute.xlu0 %4506
      %4508 = vrot.lane.b32.xlu0 %v3777, 56
      %v4509 = vpop.permute.xlu0 %4508
      %4510 = vrot.lane.b32.xlu0 %v3780, 56
      %v4511 = vpop.permute.xlu0 %4510
      %4512 = vrot.lane.b32.xlu0 %v3782, 56
      %v4513 = vpop.permute.xlu0 %4512
      %4514 = vrot.lane.b32.xlu0 %v3785, 56
      %v4515 = vpop.permute.xlu0 %4514
      %4516 = vrot.lane.b32.xlu0 %v3787, 56
      %v4517 = vpop.permute.xlu0 %4516
      %4518 = vrot.lane.b32.xlu0 %v3790, 56
      %v4519 = vpop.permute.xlu0 %4518
      %4520 = vrot.lane.b32.xlu0 %v3792, 56
      %v4521 = vpop.permute.xlu0 %4520
      %4522 = vrot.lane.b32.xlu0 %v3795, 56
      %v4523 = vpop.permute.xlu0 %4522
      %4524 = vrot.lane.b32.xlu0 %v3797, 56
      %v4525 = vpop.permute.xlu0 %4524
      %4526 = vrot.lane.b32.xlu0 %v3800, 56
      %v4527 = vpop.permute.xlu0 %4526
      %4528 = vrot.lane.b32.xlu0 %v3802, 56
      %v4529 = vpop.permute.xlu0 %4528
      %4530 = vrot.lane.b32.xlu0 %v3805, 56
      %v4531 = vpop.permute.xlu0 %4530
      %4532 = vrot.lane.b32.xlu0 %v3807, 56
      %v4533 = vpop.permute.xlu0 %4532
      %4534 = vrot.lane.b32.xlu0 %v3810, 56
      %v4535 = vpop.permute.xlu0 %4534
      %4536 = vrot.lane.b32.xlu0 %v3812, 56
      %v4537 = vpop.permute.xlu0 %4536
      %4538 = vrot.lane.b32.xlu0 %v3815, 56
      %v4539 = vpop.permute.xlu0 %4538
      %4540 = vrot.lane.b32.xlu0 %v3817, 56
      %v4541 = vpop.permute.xlu0 %4540
      %4542 = vrot.lane.b32.xlu0 %v3820, 56
      %v4543 = vpop.permute.xlu0 %4542
      %4544 = vrot.lane.b32.xlu0 %v3822, 56
      %v4545 = vpop.permute.xlu0 %4544
      %4546 = vrot.lane.b32.xlu0 %v3825, 56
      %v4547 = vpop.permute.xlu0 %4546
      %4548 = vrot.lane.b32.xlu0 %v3827, 56
      %v4549 = vpop.permute.xlu0 %4548
      %4550 = vrot.lane.b32.xlu0 %v3830, 56
      %v4551 = vpop.permute.xlu0 %4550
      %4552 = vrot.lane.b32.xlu0 %v3832, 56
      %v4553 = vpop.permute.xlu0 %4552
      %4554 = vrot.lane.b32.xlu0 %v3835, 56
      %v4555 = vpop.permute.xlu0 %4554
      %4556 = vrot.lane.b32.xlu0 %v3837, 56
      %v4557 = vpop.permute.xlu0 %4556
      %4590 = vrot.lane.b32.xlu0 %v3840, 64
      %v4591 = vpop.permute.xlu0 %4590
      %4592 = vrot.lane.b32.xlu0 %v3842, 64
      %v4593 = vpop.permute.xlu0 %4592
      %4594 = vrot.lane.b32.xlu0 %v3845, 64
      %v4595 = vpop.permute.xlu0 %4594
      %4596 = vrot.lane.b32.xlu0 %v3847, 64
      %v4597 = vpop.permute.xlu0 %4596
      %4598 = vrot.lane.b32.xlu0 %v3850, 64
      %v4599 = vpop.permute.xlu0 %4598
      %4600 = vrot.lane.b32.xlu0 %v3852, 64
      %v4601 = vpop.permute.xlu0 %4600
      %4602 = vrot.lane.b32.xlu0 %v3855, 64
      %v4603 = vpop.permute.xlu0 %4602
      %4604 = vrot.lane.b32.xlu0 %v3857, 64
      %v4605 = vpop.permute.xlu0 %4604
      %4606 = vrot.lane.b32.xlu0 %v3860, 64
      %v4607 = vpop.permute.xlu0 %4606
      %4608 = vrot.lane.b32.xlu0 %v3862, 64
      %v4609 = vpop.permute.xlu0 %4608
      %4610 = vrot.lane.b32.xlu0 %v3865, 64
      %v4611 = vpop.permute.xlu0 %4610
      %4612 = vrot.lane.b32.xlu0 %v3867, 64
      %v4613 = vpop.permute.xlu0 %4612
      %4614 = vrot.lane.b32.xlu0 %v3870, 64
      %v4615 = vpop.permute.xlu0 %4614
      %4616 = vrot.lane.b32.xlu0 %v3872, 64
      %v4617 = vpop.permute.xlu0 %4616
      %4618 = vrot.lane.b32.xlu0 %v3875, 64
      %v4619 = vpop.permute.xlu0 %4618
      %4620 = vrot.lane.b32.xlu0 %v3877, 64
      %v4621 = vpop.permute.xlu0 %4620
      %4622 = vrot.lane.b32.xlu0 %v3880, 64
      %v4623 = vpop.permute.xlu0 %4622
      %4624 = vrot.lane.b32.xlu0 %v3882, 64
      %v4625 = vpop.permute.xlu0 %4624
      %4626 = vrot.lane.b32.xlu0 %v3885, 64
      %v4627 = vpop.permute.xlu0 %4626
      %4628 = vrot.lane.b32.xlu0 %v3887, 64
      %v4629 = vpop.permute.xlu0 %4628
      %4630 = vrot.lane.b32.xlu0 %v3890, 64
      %v4631 = vpop.permute.xlu0 %4630
      %4632 = vrot.lane.b32.xlu0 %v3892, 64
      %v4633 = vpop.permute.xlu0 %4632
      %4634 = vrot.lane.b32.xlu0 %v3895, 64
      %v4635 = vpop.permute.xlu0 %4634
      %4636 = vrot.lane.b32.xlu0 %v3897, 64
      %v4637 = vpop.permute.xlu0 %4636
      %4638 = vrot.lane.b32.xlu0 %v3900, 64
      %v4639 = vpop.permute.xlu0 %4638
      %4640 = vrot.lane.b32.xlu0 %v3902, 64
      %v4641 = vpop.permute.xlu0 %4640
      %4642 = vrot.lane.b32.xlu0 %v3905, 64
      %v4643 = vpop.permute.xlu0 %4642
      %4644 = vrot.lane.b32.xlu0 %v3907, 64
      %v4645 = vpop.permute.xlu0 %4644
      %4646 = vrot.lane.b32.xlu0 %v3910, 64
      %v4647 = vpop.permute.xlu0 %4646
      %4648 = vrot.lane.b32.xlu0 %v3912, 64
      %v4649 = vpop.permute.xlu0 %4648
      %4650 = vrot.lane.b32.xlu0 %v3915, 64
      %v4651 = vpop.permute.xlu0 %4650
      %4652 = vrot.lane.b32.xlu0 %v3917, 64
      %v4653 = vpop.permute.xlu0 %4652
      %v4686 = vsel %vm311, %v3149, %v3919
      %v4687 = vsel %vm311, %v3150, %v3921
      %v4688 = vsel %vm311, %v3152, %v3923
      %v4689 = vsel %vm311, %v3153, %v3925
      %v4690 = vsel %vm311, %v3155, %v3927
      %v4691 = vsel %vm311, %v3156, %v3929
      %v4692 = vsel %vm311, %v3158, %v3931
      %v4693 = vsel %vm311, %v3159, %v3933
      %v4694 = vsel %vm311, %v3161, %v3935
      %v4695 = vsel %vm311, %v3162, %v3937
      %v4696 = vsel %vm311, %v3164, %v3939
      %v4697 = vsel %vm311, %v3165, %v3941
      %v4698 = vsel %vm311, %v3167, %v3943
      %v4699 = vsel %vm311, %v3168, %v3945
      %v4700 = vsel %vm311, %v3170, %v3947
      %v4701 = vsel %vm311, %v3171, %v3949
      %v4702 = vsel %vm311, %v3173, %v3951
      %v4703 = vsel %vm311, %v3174, %v3953
      %v4704 = vsel %vm311, %v3176, %v3955
      %v4705 = vsel %vm311, %v3177, %v3957
      %v4706 = vsel %vm311, %v3179, %v3959
      %v4707 = vsel %vm311, %v3180, %v3961
      %v4708 = vsel %vm311, %v3182, %v3963
      %v4709 = vsel %vm311, %v3183, %v3965
      %v4710 = vsel %vm311, %v3185, %v3967
      %v4711 = vsel %vm311, %v3186, %v3969
      %v4712 = vsel %vm311, %v3188, %v3971
      %v4713 = vsel %vm311, %v3189, %v3973
      %v4714 = vsel %vm311, %v3191, %v3975
      %v4715 = vsel %vm311, %v3192, %v3977
      %v4716 = vsel %vm311, %v3194, %v3979
      %v4717 = vsel %vm311, %v3195, %v3981
      %v4718 = vsel %vm2101, %v4686, %v4015
      %v4719 = vsel %vm2101, %v4687, %v4017
      %v4720 = vsel %vm2101, %v4688, %v4019
      %v4721 = vsel %vm2101, %v4689, %v4021
      %v4722 = vsel %vm2101, %v4690, %v4023
      %v4723 = vsel %vm2101, %v4691, %v4025
      %v4724 = vsel %vm2101, %v4692, %v4027
      %v4725 = vsel %vm2101, %v4693, %v4029
      %v4726 = vsel %vm2101, %v4694, %v4031
      %v4727 = vsel %vm2101, %v4695, %v4033
      %v4728 = vsel %vm2101, %v4696, %v4035
      %v4729 = vsel %vm2101, %v4697, %v4037
      %v4730 = vsel %vm2101, %v4698, %v4039
      %v4731 = vsel %vm2101, %v4699, %v4041
      %v4732 = vsel %vm2101, %v4700, %v4043
      %v4733 = vsel %vm2101, %v4701, %v4045
      %v4734 = vsel %vm2101, %v4702, %v4047
      %v4735 = vsel %vm2101, %v4703, %v4049
      %v4736 = vsel %vm2101, %v4704, %v4051
      %v4737 = vsel %vm2101, %v4705, %v4053
      %v4738 = vsel %vm2101, %v4706, %v4055
      %v4739 = vsel %vm2101, %v4707, %v4057
      %v4740 = vsel %vm2101, %v4708, %v4059
      %v4741 = vsel %vm2101, %v4709, %v4061
      %v4742 = vsel %vm2101, %v4710, %v4063
      %v4743 = vsel %vm2101, %v4711, %v4065
      %v4744 = vsel %vm2101, %v4712, %v4067
      %v4745 = vsel %vm2101, %v4713, %v4069
      %v4746 = vsel %vm2101, %v4714, %v4071
      %v4747 = vsel %vm2101, %v4715, %v4073
      %v4748 = vsel %vm2101, %v4716, %v4075
      %v4749 = vsel %vm2101, %v4717, %v4077
      %v4750 = vsel %vm2134, %v4718, %v4111
      %v4751 = vsel %vm2134, %v4719, %v4113
      %v4752 = vsel %vm2134, %v4720, %v4115
      %v4753 = vsel %vm2134, %v4721, %v4117
      %v4754 = vsel %vm2134, %v4722, %v4119
      %v4755 = vsel %vm2134, %v4723, %v4121
      %v4756 = vsel %vm2134, %v4724, %v4123
      %v4757 = vsel %vm2134, %v4725, %v4125
      %v4758 = vsel %vm2134, %v4726, %v4127
      %v4759 = vsel %vm2134, %v4727, %v4129
      %v4760 = vsel %vm2134, %v4728, %v4131
      %v4761 = vsel %vm2134, %v4729, %v4133
      %v4762 = vsel %vm2134, %v4730, %v4135
      %v4763 = vsel %vm2134, %v4731, %v4137
      %v4764 = vsel %vm2134, %v4732, %v4139
      %v4765 = vsel %vm2134, %v4733, %v4141
      %v4766 = vsel %vm2134, %v4734, %v4143
      %v4767 = vsel %vm2134, %v4735, %v4145
      %v4768 = vsel %vm2134, %v4736, %v4147
      %v4769 = vsel %vm2134, %v4737, %v4149
      %v4770 = vsel %vm2134, %v4738, %v4151
      %v4771 = vsel %vm2134, %v4739, %v4153
      %v4772 = vsel %vm2134, %v4740, %v4155
      %v4773 = vsel %vm2134, %v4741, %v4157
      %v4774 = vsel %vm2134, %v4742, %v4159
      %v4775 = vsel %vm2134, %v4743, %v4161
      %v4776 = vsel %vm2134, %v4744, %v4163
      %v4777 = vsel %vm2134, %v4745, %v4165
      %v4778 = vsel %vm2134, %v4746, %v4167
      %v4779 = vsel %vm2134, %v4747, %v4169
      %v4780 = vsel %vm2134, %v4748, %v4171
      %v4781 = vsel %vm2134, %v4749, %v4173
      %v4782 = vsel %vm2167, %v4750, %v4207
      %v4783 = vsel %vm2167, %v4751, %v4209
      %v4784 = vsel %vm2167, %v4752, %v4211
      %v4785 = vsel %vm2167, %v4753, %v4213
      %v4786 = vsel %vm2167, %v4754, %v4215
      %v4787 = vsel %vm2167, %v4755, %v4217
      %v4788 = vsel %vm2167, %v4756, %v4219
      %v4789 = vsel %vm2167, %v4757, %v4221
      %v4790 = vsel %vm2167, %v4758, %v4223
      %v4791 = vsel %vm2167, %v4759, %v4225
      %v4792 = vsel %vm2167, %v4760, %v4227
      %v4793 = vsel %vm2167, %v4761, %v4229
      %v4794 = vsel %vm2167, %v4762, %v4231
      %v4795 = vsel %vm2167, %v4763, %v4233
      %v4796 = vsel %vm2167, %v4764, %v4235
      %v4797 = vsel %vm2167, %v4765, %v4237
      %v4798 = vsel %vm2167, %v4766, %v4239
      %v4799 = vsel %vm2167, %v4767, %v4241
      %v4800 = vsel %vm2167, %v4768, %v4243
      %v4801 = vsel %vm2167, %v4769, %v4245
      %v4802 = vsel %vm2167, %v4770, %v4247
      %v4803 = vsel %vm2167, %v4771, %v4249
      %v4804 = vsel %vm2167, %v4772, %v4251
      %v4805 = vsel %vm2167, %v4773, %v4253
      %v4806 = vsel %vm2167, %v4774, %v4255
      %v4807 = vsel %vm2167, %v4775, %v4257
      %v4808 = vsel %vm2167, %v4776, %v4259
      %v4809 = vsel %vm2167, %v4777, %v4261
      %v4810 = vsel %vm2167, %v4778, %v4263
      %v4811 = vsel %vm2167, %v4779, %v4265
      %v4812 = vsel %vm2167, %v4780, %v4267
      %v4813 = vsel %vm2167, %v4781, %v4269
      %v4814 = vsel %vm2200, %v4782, %v4303
      %v4815 = vsel %vm2200, %v4783, %v4305
      %v4816 = vsel %vm2200, %v4784, %v4307
      %v4817 = vsel %vm2200, %v4785, %v4309
      %v4818 = vsel %vm2200, %v4786, %v4311
      %v4819 = vsel %vm2200, %v4787, %v4313
      %v4820 = vsel %vm2200, %v4788, %v4315
      %v4821 = vsel %vm2200, %v4789, %v4317
      %v4822 = vsel %vm2200, %v4790, %v4319
      %v4823 = vsel %vm2200, %v4791, %v4321
      %v4824 = vsel %vm2200, %v4792, %v4323
      %v4825 = vsel %vm2200, %v4793, %v4325
      %v4826 = vsel %vm2200, %v4794, %v4327
      %v4827 = vsel %vm2200, %v4795, %v4329
      %v4828 = vsel %vm2200, %v4796, %v4331
      %v4829 = vsel %vm2200, %v4797, %v4333
      %v4830 = vsel %vm2200, %v4798, %v4335
      %v4831 = vsel %vm2200, %v4799, %v4337
      %v4832 = vsel %vm2200, %v4800, %v4339
      %v4833 = vsel %vm2200, %v4801, %v4341
      %v4834 = vsel %vm2200, %v4802, %v4343
      %v4835 = vsel %vm2200, %v4803, %v4345
      %v4836 = vsel %vm2200, %v4804, %v4347
      %v4837 = vsel %vm2200, %v4805, %v4349
      %v4838 = vsel %vm2200, %v4806, %v4351
      %v4839 = vsel %vm2200, %v4807, %v4353
      %v4840 = vsel %vm2200, %v4808, %v4355
      %v4841 = vsel %vm2200, %v4809, %v4357
      %v4842 = vsel %vm2200, %v4810, %v4359
      %v4843 = vsel %vm2200, %v4811, %v4361
      %v4844 = vsel %vm2200, %v4812, %v4363
      %v4845 = vsel %vm2200, %v4813, %v4365
      %v4846 = vsel %vm2233, %v4814, %v4399
      %v4847 = vsel %vm2233, %v4815, %v4401
      %v4848 = vsel %vm2233, %v4816, %v4403
      %v4849 = vsel %vm2233, %v4817, %v4405
      %v4850 = vsel %vm2233, %v4818, %v4407
      %v4851 = vsel %vm2233, %v4819, %v4409
      %v4852 = vsel %vm2233, %v4820, %v4411
      %v4853 = vsel %vm2233, %v4821, %v4413
      %v4854 = vsel %vm2233, %v4822, %v4415
      %v4855 = vsel %vm2233, %v4823, %v4417
      %v4856 = vsel %vm2233, %v4824, %v4419
      %v4857 = vsel %vm2233, %v4825, %v4421
      %v4858 = vsel %vm2233, %v4826, %v4423
      %v4859 = vsel %vm2233, %v4827, %v4425
      %v4860 = vsel %vm2233, %v4828, %v4427
      %v4861 = vsel %vm2233, %v4829, %v4429
      %v4862 = vsel %vm2233, %v4830, %v4431
      %v4863 = vsel %vm2233, %v4831, %v4433
      %v4864 = vsel %vm2233, %v4832, %v4435
      %v4865 = vsel %vm2233, %v4833, %v4437
      %v4866 = vsel %vm2233, %v4834, %v4439
      %v4867 = vsel %vm2233, %v4835, %v4441
      %v4868 = vsel %vm2233, %v4836, %v4443
      %v4869 = vsel %vm2233, %v4837, %v4445
      %v4870 = vsel %vm2233, %v4838, %v4447
      %v4871 = vsel %vm2233, %v4839, %v4449
      %v4872 = vsel %vm2233, %v4840, %v4451
      %v4873 = vsel %vm2233, %v4841, %v4453
      %v4874 = vsel %vm2233, %v4842, %v4455
      %v4875 = vsel %vm2233, %v4843, %v4457
      %v4876 = vsel %vm2233, %v4844, %v4459
      %v4877 = vsel %vm2233, %v4845, %v4461
      %v4878 = vsel %vm2266, %v4846, %v4495
      %v4879 = vsel %vm2266, %v4847, %v4497
      %v4880 = vsel %vm2266, %v4848, %v4499
      %v4881 = vsel %vm2266, %v4849, %v4501
      %v4882 = vsel %vm2266, %v4850, %v4503
      %v4883 = vsel %vm2266, %v4851, %v4505
      %v4884 = vsel %vm2266, %v4852, %v4507
      %v4885 = vsel %vm2266, %v4853, %v4509
      %v4886 = vsel %vm2266, %v4854, %v4511
      %v4887 = vsel %vm2266, %v4855, %v4513
      %v4888 = vsel %vm2266, %v4856, %v4515
      %v4889 = vsel %vm2266, %v4857, %v4517
      %v4890 = vsel %vm2266, %v4858, %v4519
      %v4891 = vsel %vm2266, %v4859, %v4521
      %v4892 = vsel %vm2266, %v4860, %v4523
      %v4893 = vsel %vm2266, %v4861, %v4525
      %v4894 = vsel %vm2266, %v4862, %v4527
      %v4895 = vsel %vm2266, %v4863, %v4529
      %v4896 = vsel %vm2266, %v4864, %v4531
      %v4897 = vsel %vm2266, %v4865, %v4533
      %v4898 = vsel %vm2266, %v4866, %v4535
      %v4899 = vsel %vm2266, %v4867, %v4537
      %v4900 = vsel %vm2266, %v4868, %v4539
      %v4901 = vsel %vm2266, %v4869, %v4541
      %v4902 = vsel %vm2266, %v4870, %v4543
      %v4903 = vsel %vm2266, %v4871, %v4545
      %v4904 = vsel %vm2266, %v4872, %v4547
      %v4905 = vsel %vm2266, %v4873, %v4549
      %v4906 = vsel %vm2266, %v4874, %v4551
      %v4907 = vsel %vm2266, %v4875, %v4553
      %v4908 = vsel %vm2266, %v4876, %v4555
      %v4909 = vsel %vm2266, %v4877, %v4557
      %v4910 = vsel %vm2299, %v4878, %v4591
      %v4911 = vsel %vm2299, %v4879, %v4593
      %v4912 = vsel %vm2299, %v4880, %v4595
      %v4913 = vsel %vm2299, %v4881, %v4597
      %v4914 = vsel %vm2299, %v4882, %v4599
      %v4915 = vsel %vm2299, %v4883, %v4601
      %v4916 = vsel %vm2299, %v4884, %v4603
      %v4917 = vsel %vm2299, %v4885, %v4605
      %v4918 = vsel %vm2299, %v4886, %v4607
      %v4919 = vsel %vm2299, %v4887, %v4609
      %v4920 = vsel %vm2299, %v4888, %v4611
      %v4921 = vsel %vm2299, %v4889, %v4613
      %v4922 = vsel %vm2299, %v4890, %v4615
      %v4923 = vsel %vm2299, %v4891, %v4617
      %v4924 = vsel %vm2299, %v4892, %v4619
      %v4925 = vsel %vm2299, %v4893, %v4621
      %v4926 = vsel %vm2299, %v4894, %v4623
      %v4927 = vsel %vm2299, %v4895, %v4625
      %v4928 = vsel %vm2299, %v4896, %v4627
      %v4929 = vsel %vm2299, %v4897, %v4629
      %v4930 = vsel %vm2299, %v4898, %v4631
      %v4931 = vsel %vm2299, %v4899, %v4633
      %v4932 = vsel %vm2299, %v4900, %v4635
      %v4933 = vsel %vm2299, %v4901, %v4637
      %v4934 = vsel %vm2299, %v4902, %v4639
      %v4935 = vsel %vm2299, %v4903, %v4641
      %v4936 = vsel %vm2299, %v4904, %v4643
      %v4937 = vsel %vm2299, %v4905, %v4645
      %v4938 = vsel %vm2299, %v4906, %v4647
      %v4939 = vsel %vm2299, %v4907, %v4649
      %v4940 = vsel %vm2299, %v4908, %v4651
      %v4941 = vsel %vm2299, %v4909, %v4653
      %v4942 = vld [vmem:[%s4] sm:$0xff]
      %v4943 = vld [vmem:[%s4 + $0x8] sm:$0xff]
      %v4944 = vld [vmem:[%s4 + $0x10] sm:$0xff]
      %v4945 = vld [vmem:[%s4 + $0x18] sm:$0xff]
      %v4946 = vld [vmem:[%s4 + $0x20] sm:$0xff]
      %v4947 = vld [vmem:[%s4 + $0x28] sm:$0xff]
      %v4948 = vld [vmem:[%s4 + $0x30] sm:$0xff]
      %v4949 = vld [vmem:[%s4 + $0x38] sm:$0xff]
      %v4950 = vld [vmem:[%s4 + $0x40] sm:$0xff]
      %v4952 = vsel %vm2341, %v4910, 0
      %v4955 = vsel %vm2341, %v4911, 0
      %v4958 = vsel %vm2341, %v4912, 0
      %v4961 = vsel %vm2341, %v4913, 0
      %v4964 = vsel %vm2341, %v4914, 0
      %v4967 = vsel %vm2341, %v4915, 0
      %v4970 = vsel %vm2341, %v4916, 0
      %v4973 = vsel %vm2341, %v4917, 0
      %v4976 = vsel %vm2341, %v4918, 0
      %v4979 = vsel %vm2341, %v4919, 0
      %v4982 = vsel %vm2341, %v4920, 0
      %v4985 = vsel %vm2341, %v4921, 0
      %v4988 = vsel %vm2341, %v4922, 0
      %v4991 = vsel %vm2341, %v4923, 0
      %v4994 = vsel %vm2341, %v4924, 0
      %v4997 = vsel %vm2341, %v4925, 0
      %v5000 = vsel %vm2341, %v4926, 0
      %v5003 = vsel %vm2341, %v4927, 0
      %v5006 = vsel %vm2341, %v4928, 0
      %v5009 = vsel %vm2341, %v4929, 0
      %v5012 = vsel %vm2341, %v4930, 0
      %v5015 = vsel %vm2341, %v4931, 0
      %v5018 = vsel %vm2341, %v4932, 0
      %v5021 = vsel %vm2341, %v4933, 0
      %v5024 = vsel %vm2341, %v4934, 0
      %v5027 = vsel %vm2341, %v4935, 0
      %v5030 = vsel %vm2341, %v4936, 0
      %v5033 = vsel %vm2341, %v4937, 0
      %v5036 = vsel %vm2341, %v4938, 0
      %v5039 = vsel %vm2341, %v4939, 0
      %v5042 = vsel %vm2341, %v4940, 0
      %v5045 = vsel %vm2341, %v4941, 0
      %5047 = vmatprep.subr.mxu0 0.0
      %5048 = vmatpush1.msra.mxu0 0.0
      %5049 = vmatprep.subr.mxu0 0.0
      %5050 = vmatpush1.msra.mxu0 0.0
      %5051 = vmatprep.subr.mxu0 0.0
      %5052 = vmatpush1.msra.mxu0 0.0
      %5053 = vmatprep.subr.mxu0 0.0
      %5054 = vmatpush1.msra.mxu0 0.0
      %5055 = vmatprep.subr.mxu0 0.0
      %5056 = vmatpush1.msra.mxu0 0.0
      %5057 = vmatprep.subr.mxu0 0.0
      %5058 = vmatpush1.msra.mxu0 0.0
      %5059 = vmatprep.subr.mxu0 0.0
      %5060 = vmatpush1.msra.mxu0 0.0
      %5061 = vmatprep.subr.mxu0 0.0
      %5062 = vmatpush1.msra.mxu0 %v4950
      %5063 = vmatprep.subr.mxu0 0.0
      %5064 = vmatpush1.msra.mxu0 %v4949
      %5065 = vmatprep.subr.mxu0 0.0
      %5066 = vmatpush1.msra.mxu0 %v4948
      %5067 = vmatprep.subr.mxu0 0.0
      %5068 = vmatpush1.msra.mxu0 %v4947
      %5069 = vmatprep.subr.mxu0 0.0
      %5070 = vmatpush1.msra.mxu0 %v4946
      %5071 = vmatprep.subr.mxu0 0.0
      %5072 = vmatpush1.msra.mxu0 %v4945
      %5073 = vmatprep.subr.mxu0 0.0
      %5074 = vmatpush1.msra.mxu0 %v4944
      %5075 = vmatprep.subr.mxu0 0.0
      %5076 = vmatpush1.msra.mxu0 %v4943
      %5077 = vmatprep.subr.mxu0 0.0
      %5078 = vmatpush1.msra.mxu0 %v4942
      %5079 = vmatprep.subr.mxu0 0.0
      %5080 = vmatpush2.msra.mxu0 0.0
      %5081 = vmatprep.subr.mxu0 0.0
      %5082 = vmatpush2.msra.mxu0 0.0
      %5083 = vmatprep.subr.mxu0 0.0
      %5084 = vmatpush2.msra.mxu0 0.0
      %5085 = vmatprep.subr.mxu0 0.0
      %5086 = vmatpush2.msra.mxu0 0.0
      %5087 = vmatprep.subr.mxu0 0.0
      %5088 = vmatpush2.msra.mxu0 0.0
      %5089 = vmatprep.subr.mxu0 0.0
      %5090 = vmatpush2.msra.mxu0 0.0
      %5091 = vmatprep.subr.mxu0 0.0
      %5092 = vmatpush2.msra.mxu0 0.0
      %5093 = vmatprep.subr.mxu0 0.0
      %5094 = vmatpush2.msra.mxu0 0.0
      %5095 = vmatprep.subr.mxu0 0.0
      %5096 = vmatpush2.msra.mxu0 0.0
      %5097 = vmatprep.subr.mxu0 0.0
      %5098 = vmatpush2.msra.mxu0 0.0
      %5099 = vmatprep.subr.mxu0 0.0
      %5100 = vmatpush2.msra.mxu0 0.0
      %5101 = vmatprep.subr.mxu0 0.0
      %5102 = vmatpush2.msra.mxu0 0.0
      %5103 = vmatprep.subr.mxu0 0.0
      %5104 = vmatpush2.msra.mxu0 0.0
      %5105 = vmatprep.subr.mxu0 0.0
      %5106 = vmatpush2.msra.mxu0 0.0
      %5107 = vmatprep.subr.mxu0 0.0
      %5108 = vmatpush2.msra.mxu0 0.0
      %5109 = vmatprep.subr.mxu0 0.0
      %5110 = vmatpush2.msra.mxu0 0.0
      %5111 = vmatprep.mubr.f32.mxu0 0.0
      %5112 = vmatmul.mubr.f32.gmra.mxu0 %v4952
      %v5113 = vpop.f32.mrf.mxu0
      %v5114 = vadd.f32 0.0, %v5113
      %v5115 = vpop.f32.mrf.mxu0
      %5116 = vmatprep.mubr.f32.mxu0 0.0
      %5117 = vmatmul.mubr.f32.gmra.mxu0 %v4955
      %v5118 = vpop.f32.mrf.mxu0
      %v5119 = vadd.f32 0.0, %v5118
      %v5120 = vpop.f32.mrf.mxu0
      %5121 = vmatprep.mubr.f32.mxu0 0.0
      %5122 = vmatmul.mubr.f32.gmra.mxu0 %v4958
      %v5123 = vpop.f32.mrf.mxu0
      %v5124 = vadd.f32 0.0, %v5123
      %v5125 = vpop.f32.mrf.mxu0
      %5126 = vmatprep.mubr.f32.mxu0 0.0
      %5127 = vmatmul.mubr.f32.gmra.mxu0 %v4961
      %v5128 = vpop.f32.mrf.mxu0
      %v5129 = vadd.f32 0.0, %v5128
      %v5130 = vpop.f32.mrf.mxu0
      %5131 = vmatprep.mubr.f32.mxu0 0.0
      %5132 = vmatmul.mubr.f32.gmra.mxu0 %v4964
      %v5133 = vpop.f32.mrf.mxu0
      %v5134 = vadd.f32 0.0, %v5133
      %v5135 = vpop.f32.mrf.mxu0
      %5136 = vmatprep.mubr.f32.mxu0 0.0
      %5137 = vmatmul.mubr.f32.gmra.mxu0 %v4967
      %v5138 = vpop.f32.mrf.mxu0
      %v5139 = vadd.f32 0.0, %v5138
      %v5140 = vpop.f32.mrf.mxu0
      %5141 = vmatprep.mubr.f32.mxu0 0.0
      %5142 = vmatmul.mubr.f32.gmra.mxu0 %v4970
      %v5143 = vpop.f32.mrf.mxu0
      %v5144 = vadd.f32 0.0, %v5143
      %v5145 = vpop.f32.mrf.mxu0
      %5146 = vmatprep.mubr.f32.mxu0 0.0
      %5147 = vmatmul.mubr.f32.gmra.mxu0 %v4973
      %v5148 = vpop.f32.mrf.mxu0
      %v5149 = vadd.f32 0.0, %v5148
      %v5150 = vpop.f32.mrf.mxu0
      %5151 = vmatprep.mubr.f32.mxu0 0.0
      %5152 = vmatmul.mubr.f32.gmra.mxu0 %v4976
      %v5153 = vpop.f32.mrf.mxu0
      %v5154 = vadd.f32 0.0, %v5153
      %v5155 = vpop.f32.mrf.mxu0
      %5156 = vmatprep.mubr.f32.mxu0 0.0
      %5157 = vmatmul.mubr.f32.gmra.mxu0 %v4979
      %v5158 = vpop.f32.mrf.mxu0
      %v5159 = vadd.f32 0.0, %v5158
      %v5160 = vpop.f32.mrf.mxu0
      %5161 = vmatprep.mubr.f32.mxu0 0.0
      %5162 = vmatmul.mubr.f32.gmra.mxu0 %v4982
      %v5163 = vpop.f32.mrf.mxu0
      %v5164 = vadd.f32 0.0, %v5163
      %v5165 = vpop.f32.mrf.mxu0
      %5166 = vmatprep.mubr.f32.mxu0 0.0
      %5167 = vmatmul.mubr.f32.gmra.mxu0 %v4985
      %v5168 = vpop.f32.mrf.mxu0
      %v5169 = vadd.f32 0.0, %v5168
      %v5170 = vpop.f32.mrf.mxu0
      %5171 = vmatprep.mubr.f32.mxu0 0.0
      %5172 = vmatmul.mubr.f32.gmra.mxu0 %v4988
      %v5173 = vpop.f32.mrf.mxu0
      %v5174 = vadd.f32 0.0, %v5173
      %v5175 = vpop.f32.mrf.mxu0
      %5176 = vmatprep.mubr.f32.mxu0 0.0
      %5177 = vmatmul.mubr.f32.gmra.mxu0 %v4991
      %v5178 = vpop.f32.mrf.mxu0
      %v5179 = vadd.f32 0.0, %v5178
      %v5180 = vpop.f32.mrf.mxu0
      %5181 = vmatprep.mubr.f32.mxu0 0.0
      %5182 = vmatmul.mubr.f32.gmra.mxu0 %v4994
      %v5183 = vpop.f32.mrf.mxu0
      %v5184 = vadd.f32 0.0, %v5183
      %v5185 = vpop.f32.mrf.mxu0
      %5186 = vmatprep.mubr.f32.mxu0 0.0
      %5187 = vmatmul.mubr.f32.gmra.mxu0 %v4997
      %v5188 = vpop.f32.mrf.mxu0
      %v5189 = vadd.f32 0.0, %v5188
      %v5190 = vpop.f32.mrf.mxu0
      %5191 = vmatprep.mubr.f32.mxu0 0.0
      %5192 = vmatmul.mubr.f32.gmra.mxu0 %v5000
      %v5193 = vpop.f32.mrf.mxu0
      %v5194 = vadd.f32 0.0, %v5193
      %v5195 = vpop.f32.mrf.mxu0
      %5196 = vmatprep.mubr.f32.mxu0 0.0
      %5197 = vmatmul.mubr.f32.gmra.mxu0 %v5003
      %v5198 = vpop.f32.mrf.mxu0
      %v5199 = vadd.f32 0.0, %v5198
      %v5200 = vpop.f32.mrf.mxu0
      %5201 = vmatprep.mubr.f32.mxu0 0.0
      %5202 = vmatmul.mubr.f32.gmra.mxu0 %v5006
      %v5203 = vpop.f32.mrf.mxu0
      %v5204 = vadd.f32 0.0, %v5203
      %v5205 = vpop.f32.mrf.mxu0
      %5206 = vmatprep.mubr.f32.mxu0 0.0
      %5207 = vmatmul.mubr.f32.gmra.mxu0 %v5009
      %v5208 = vpop.f32.mrf.mxu0
      %v5209 = vadd.f32 0.0, %v5208
      %v5210 = vpop.f32.mrf.mxu0
      %5211 = vmatprep.mubr.f32.mxu0 0.0
      %5212 = vmatmul.mubr.f32.gmra.mxu0 %v5012
      %v5213 = vpop.f32.mrf.mxu0
      %v5214 = vadd.f32 0.0, %v5213
      %v5215 = vpop.f32.mrf.mxu0
      %5216 = vmatprep.mubr.f32.mxu0 0.0
      %5217 = vmatmul.mubr.f32.gmra.mxu0 %v5015
      %v5218 = vpop.f32.mrf.mxu0
      %v5219 = vadd.f32 0.0, %v5218
      %v5220 = vpop.f32.mrf.mxu0
      %5221 = vmatprep.mubr.f32.mxu0 0.0
      %5222 = vmatmul.mubr.f32.gmra.mxu0 %v5018
      %v5223 = vpop.f32.mrf.mxu0
      %v5224 = vadd.f32 0.0, %v5223
      %v5225 = vpop.f32.mrf.mxu0
      %5226 = vmatprep.mubr.f32.mxu0 0.0
      %5227 = vmatmul.mubr.f32.gmra.mxu0 %v5021
      %v5228 = vpop.f32.mrf.mxu0
      %v5229 = vadd.f32 0.0, %v5228
      %v5230 = vpop.f32.mrf.mxu0
      %5231 = vmatprep.mubr.f32.mxu0 0.0
      %5232 = vmatmul.mubr.f32.gmra.mxu0 %v5024
      %v5233 = vpop.f32.mrf.mxu0
      %v5234 = vadd.f32 0.0, %v5233
      %v5235 = vpop.f32.mrf.mxu0
      %5236 = vmatprep.mubr.f32.mxu0 0.0
      %5237 = vmatmul.mubr.f32.gmra.mxu0 %v5027
      %v5238 = vpop.f32.mrf.mxu0
      %v5239 = vadd.f32 0.0, %v5238
      %v5240 = vpop.f32.mrf.mxu0
      %5241 = vmatprep.mubr.f32.mxu0 0.0
      %5242 = vmatmul.mubr.f32.gmra.mxu0 %v5030
      %v5243 = vpop.f32.mrf.mxu0
      %v5244 = vadd.f32 0.0, %v5243
      %v5245 = vpop.f32.mrf.mxu0
      %5246 = vmatprep.mubr.f32.mxu0 0.0
      %5247 = vmatmul.mubr.f32.gmra.mxu0 %v5033
      %v5248 = vpop.f32.mrf.mxu0
      %v5249 = vadd.f32 0.0, %v5248
      %v5250 = vpop.f32.mrf.mxu0
      %5251 = vmatprep.mubr.f32.mxu0 0.0
      %5252 = vmatmul.mubr.f32.gmra.mxu0 %v5036
      %v5253 = vpop.f32.mrf.mxu0
      %v5254 = vadd.f32 0.0, %v5253
      %v5255 = vpop.f32.mrf.mxu0
      %5256 = vmatprep.mubr.f32.mxu0 0.0
      %5257 = vmatmul.mubr.f32.gmra.mxu0 %v5039
      %v5258 = vpop.f32.mrf.mxu0
      %v5259 = vadd.f32 0.0, %v5258
      %v5260 = vpop.f32.mrf.mxu0
      %5261 = vmatprep.mubr.f32.mxu0 0.0
      %5262 = vmatmul.mubr.f32.gmra.mxu0 %v5042
      %v5263 = vpop.f32.mrf.mxu0
      %v5264 = vadd.f32 0.0, %v5263
      %v5265 = vpop.f32.mrf.mxu0
      %5266 = vmatprep.mubr.f32.mxu0 0.0
      %5267 = vmatmul.mubr.f32.gmra.mxu0 %v5045
      %v5268 = vpop.f32.mrf.mxu0
      %v5269 = vadd.f32 0.0, %v5268
      %v5270 = vpop.f32.mrf.mxu0
      %5271 = vdwg.mxu0
      %v5272 = vld [vmem:[%s5] sm:$0x1]
      %v5274 = vlaneseq
      %v5275 = vshrl.u32 %v5274, 7
      %v5276 = vsub.s32 0, %v5275
      %v5277 = vrot.slane %v5272, %v5276
      %v5279 = vmul.f32 %v5114, %v5277
      %v5280 = vmul.f32 %v5119, %v5277
      %v5281 = vmul.f32 %v5124, %v5277
      %v5282 = vmul.f32 %v5129, %v5277
      %v5283 = vmul.f32 %v5134, %v5277
      %v5284 = vmul.f32 %v5139, %v5277
      %v5285 = vmul.f32 %v5144, %v5277
      %v5286 = vmul.f32 %v5149, %v5277
      %v5287 = vmul.f32 %v5154, %v5277
      %v5288 = vmul.f32 %v5159, %v5277
      %v5289 = vmul.f32 %v5164, %v5277
      %v5290 = vmul.f32 %v5169, %v5277
      %v5291 = vmul.f32 %v5174, %v5277
      %v5292 = vmul.f32 %v5179, %v5277
      %v5293 = vmul.f32 %v5184, %v5277
      %v5294 = vmul.f32 %v5189, %v5277
      %v5295 = vmul.f32 %v5194, %v5277
      %v5296 = vmul.f32 %v5199, %v5277
      %v5297 = vmul.f32 %v5204, %v5277
      %v5298 = vmul.f32 %v5209, %v5277
      %v5299 = vmul.f32 %v5214, %v5277
      %v5300 = vmul.f32 %v5219, %v5277
      %v5301 = vmul.f32 %v5224, %v5277
      %v5302 = vmul.f32 %v5229, %v5277
      %v5303 = vmul.f32 %v5234, %v5277
      %v5304 = vmul.f32 %v5239, %v5277
      %v5305 = vmul.f32 %v5244, %v5277
      %v5306 = vmul.f32 %v5249, %v5277
      %v5307 = vmul.f32 %v5254, %v5277
      %v5308 = vmul.f32 %v5259, %v5277
      %v5309 = vmul.f32 %v5264, %v5277
      %v5310 = vmul.f32 %v5269, %v5277
      %v5311 = vld [vmem:[%s6] sm:$0x1]
      %v5313 = vlaneseq
      %v5314 = vshrl.u32 %v5313, 7
      %v5315 = vsub.s32 0, %v5314
      %v5316 = vrot.slane %v5311, %v5315
      %v5318 = vadd.f32 %v5279, %v5316
      %v5319 = vadd.f32 %v5280, %v5316
      %v5320 = vadd.f32 %v5281, %v5316
      %v5321 = vadd.f32 %v5282, %v5316
      %v5322 = vadd.f32 %v5283, %v5316
      %v5323 = vadd.f32 %v5284, %v5316
      %v5324 = vadd.f32 %v5285, %v5316
      %v5325 = vadd.f32 %v5286, %v5316
      %v5326 = vadd.f32 %v5287, %v5316
      %v5327 = vadd.f32 %v5288, %v5316
      %v5328 = vadd.f32 %v5289, %v5316
      %v5329 = vadd.f32 %v5290, %v5316
      %v5330 = vadd.f32 %v5291, %v5316
      %v5331 = vadd.f32 %v5292, %v5316
      %v5332 = vadd.f32 %v5293, %v5316
      %v5333 = vadd.f32 %v5294, %v5316
      %v5334 = vadd.f32 %v5295, %v5316
      %v5335 = vadd.f32 %v5296, %v5316
      %v5336 = vadd.f32 %v5297, %v5316
      %v5337 = vadd.f32 %v5298, %v5316
      %v5338 = vadd.f32 %v5299, %v5316
      %v5339 = vadd.f32 %v5300, %v5316
      %v5340 = vadd.f32 %v5301, %v5316
      %v5341 = vadd.f32 %v5302, %v5316
      %v5342 = vadd.f32 %v5303, %v5316
      %v5343 = vadd.f32 %v5304, %v5316
      %v5344 = vadd.f32 %v5305, %v5316
      %v5345 = vadd.f32 %v5306, %v5316
      %v5346 = vadd.f32 %v5307, %v5316
      %v5347 = vadd.f32 %v5308, %v5316
      %v5348 = vadd.f32 %v5309, %v5316
      %v5349 = vadd.f32 %v5310, %v5316
      %v5350 = vsub.f32 0.0, %v5318
      %v5351 = vsub.f32 0.0, %v5319
      %v5352 = vsub.f32 0.0, %v5320
      %v5353 = vsub.f32 0.0, %v5321
      %v5354 = vsub.f32 0.0, %v5322
      %v5355 = vsub.f32 0.0, %v5323
      %v5356 = vsub.f32 0.0, %v5324
      %v5357 = vsub.f32 0.0, %v5325
      %v5358 = vsub.f32 0.0, %v5326
      %v5359 = vsub.f32 0.0, %v5327
      %v5360 = vsub.f32 0.0, %v5328
      %v5361 = vsub.f32 0.0, %v5329
      %v5362 = vsub.f32 0.0, %v5330
      %v5363 = vsub.f32 0.0, %v5331
      %v5364 = vsub.f32 0.0, %v5332
      %v5365 = vsub.f32 0.0, %v5333
      %v5366 = vsub.f32 0.0, %v5334
      %v5367 = vsub.f32 0.0, %v5335
      %v5368 = vsub.f32 0.0, %v5336
      %v5369 = vsub.f32 0.0, %v5337
      %v5370 = vsub.f32 0.0, %v5338
      %v5371 = vsub.f32 0.0, %v5339
      %v5372 = vsub.f32 0.0, %v5340
      %v5373 = vsub.f32 0.0, %v5341
      %v5374 = vsub.f32 0.0, %v5342
      %v5375 = vsub.f32 0.0, %v5343
      %v5376 = vsub.f32 0.0, %v5344
      %v5377 = vsub.f32 0.0, %v5345
      %v5378 = vsub.f32 0.0, %v5346
      %v5379 = vsub.f32 0.0, %v5347
      %v5380 = vsub.f32 0.0, %v5348
      %v5381 = vsub.f32 0.0, %v5349
      %v5382 = vmul.f32 %v5350, 1.442695
      %v5383 = vpow.pop %v5382
      %v5384 = vmul.f32 %v5351, 1.442695
      %v5385 = vpow.pop %v5384
      %v5386 = vmul.f32 %v5352, 1.442695
      %v5387 = vpow.pop %v5386
      %v5388 = vmul.f32 %v5353, 1.442695
      %v5389 = vpow.pop %v5388
      %v5390 = vmul.f32 %v5354, 1.442695
      %v5391 = vpow.pop %v5390
      %v5392 = vmul.f32 %v5355, 1.442695
      %v5393 = vpow.pop %v5392
      %v5394 = vmul.f32 %v5356, 1.442695
      %v5395 = vpow.pop %v5394
      %v5396 = vmul.f32 %v5357, 1.442695
      %v5397 = vpow.pop %v5396
      %v5398 = vmul.f32 %v5358, 1.442695
      %v5399 = vpow.pop %v5398
      %v5400 = vmul.f32 %v5359, 1.442695
      %v5401 = vpow.pop %v5400
      %v5402 = vmul.f32 %v5360, 1.442695
      %v5403 = vpow.pop %v5402
      %v5404 = vmul.f32 %v5361, 1.442695
      %v5405 = vpow.pop %v5404
      %v5406 = vmul.f32 %v5362, 1.442695
      %v5407 = vpow.pop %v5406
      %v5408 = vmul.f32 %v5363, 1.442695
      %v5409 = vpow.pop %v5408
      %v5410 = vmul.f32 %v5364, 1.442695
      %v5411 = vpow.pop %v5410
      %v5412 = vmul.f32 %v5365, 1.442695
      %v5413 = vpow.pop %v5412
      %v5414 = vmul.f32 %v5366, 1.442695
      %v5415 = vpow.pop %v5414
      %v5416 = vmul.f32 %v5367, 1.442695
      %v5417 = vpow.pop %v5416
      %v5418 = vmul.f32 %v5368, 1.442695
      %v5419 = vpow.pop %v5418
      %v5420 = vmul.f32 %v5369, 1.442695
      %v5421 = vpow.pop %v5420
      %v5422 = vmul.f32 %v5370, 1.442695
      %v5423 = vpow.pop %v5422
      %v5424 = vmul.f32 %v5371, 1.442695
      %v5425 = vpow.pop %v5424
      %v5426 = vmul.f32 %v5372, 1.442695
      %v5427 = vpow.pop %v5426
      %v5428 = vmul.f32 %v5373, 1.442695
      %v5429 = vpow.pop %v5428
      %v5430 = vmul.f32 %v5374, 1.442695
      %v5431 = vpow.pop %v5430
      %v5432 = vmul.f32 %v5375, 1.442695
      %v5433 = vpow.pop %v5432
      %v5434 = vmul.f32 %v5376, 1.442695
      %v5435 = vpow.pop %v5434
      %v5436 = vmul.f32 %v5377, 1.442695
      %v5437 = vpow.pop %v5436
      %v5438 = vmul.f32 %v5378, 1.442695
      %v5439 = vpow.pop %v5438
      %v5440 = vmul.f32 %v5379, 1.442695
      %v5441 = vpow.pop %v5440
      %v5442 = vmul.f32 %v5380, 1.442695
      %v5443 = vpow.pop %v5442
      %v5444 = vmul.f32 %v5381, 1.442695
      %v5445 = vpow.pop %v5444
      %v5446 = vadd.f32 %v5383, 1.0
      %v5447 = vadd.f32 %v5385, 1.0
      %v5448 = vadd.f32 %v5387, 1.0
      %v5449 = vadd.f32 %v5389, 1.0
      %v5450 = vadd.f32 %v5391, 1.0
      %v5451 = vadd.f32 %v5393, 1.0
      %v5452 = vadd.f32 %v5395, 1.0
      %v5453 = vadd.f32 %v5397, 1.0
      %v5454 = vadd.f32 %v5399, 1.0
      %v5455 = vadd.f32 %v5401, 1.0
      %v5456 = vadd.f32 %v5403, 1.0
      %v5457 = vadd.f32 %v5405, 1.0
      %v5458 = vadd.f32 %v5407, 1.0
      %v5459 = vadd.f32 %v5409, 1.0
      %v5460 = vadd.f32 %v5411, 1.0
      %v5461 = vadd.f32 %v5413, 1.0
      %v5462 = vadd.f32 %v5415, 1.0
      %v5463 = vadd.f32 %v5417, 1.0
      %v5464 = vadd.f32 %v5419, 1.0
      %v5465 = vadd.f32 %v5421, 1.0
      %v5466 = vadd.f32 %v5423, 1.0
      %v5467 = vadd.f32 %v5425, 1.0
      %v5468 = vadd.f32 %v5427, 1.0
      %v5469 = vadd.f32 %v5429, 1.0
      %v5470 = vadd.f32 %v5431, 1.0
      %v5471 = vadd.f32 %v5433, 1.0
      %v5472 = vadd.f32 %v5435, 1.0
      %v5473 = vadd.f32 %v5437, 1.0
      %v5474 = vadd.f32 %v5439, 1.0
      %v5475 = vadd.f32 %v5441, 1.0
      %v5476 = vadd.f32 %v5443, 1.0
      %v5477 = vadd.f32 %v5445, 1.0
      %v5478 = vrcp.pop %v5446
      %v5479 = vrcp.pop %v5447
      %v5480 = vrcp.pop %v5448
      %v5481 = vrcp.pop %v5449
      %v5482 = vrcp.pop %v5450
      %v5483 = vrcp.pop %v5451
      %v5484 = vrcp.pop %v5452
      %v5485 = vrcp.pop %v5453
      %v5486 = vrcp.pop %v5454
      %v5487 = vrcp.pop %v5455
      %v5488 = vrcp.pop %v5456
      %v5489 = vrcp.pop %v5457
      %v5490 = vrcp.pop %v5458
      %v5491 = vrcp.pop %v5459
      %v5492 = vrcp.pop %v5460
      %v5493 = vrcp.pop %v5461
      %v5494 = vrcp.pop %v5462
      %v5495 = vrcp.pop %v5463
      %v5496 = vrcp.pop %v5464
      %v5497 = vrcp.pop %v5465
      %v5498 = vrcp.pop %v5466
      %v5499 = vrcp.pop %v5467
      %v5500 = vrcp.pop %v5468
      %v5501 = vrcp.pop %v5469
      %v5502 = vrcp.pop %v5470
      %v5503 = vrcp.pop %v5471
      %v5504 = vrcp.pop %v5472
      %v5505 = vrcp.pop %v5473
      %v5506 = vrcp.pop %v5474
      %v5507 = vrcp.pop %v5475
      %v5508 = vrcp.pop %v5476
      %v5509 = vrcp.pop %v5477
      %v5510 = vmul.f32 %v5318, %v5478
      %v5511 = vmul.f32 %v5319, %v5479
      %v5512 = vmul.f32 %v5320, %v5480
      %v5513 = vmul.f32 %v5321, %v5481
      %v5514 = vmul.f32 %v5322, %v5482
      %v5515 = vmul.f32 %v5323, %v5483
      %v5516 = vmul.f32 %v5324, %v5484
      %v5517 = vmul.f32 %v5325, %v5485
      %v5518 = vmul.f32 %v5326, %v5486
      %v5519 = vmul.f32 %v5327, %v5487
      %v5520 = vmul.f32 %v5328, %v5488
      %v5521 = vmul.f32 %v5329, %v5489
      %v5522 = vmul.f32 %v5330, %v5490
      %v5523 = vmul.f32 %v5331, %v5491
      %v5524 = vmul.f32 %v5332, %v5492
      %v5525 = vmul.f32 %v5333, %v5493
      %v5526 = vmul.f32 %v5334, %v5494
      %v5527 = vmul.f32 %v5335, %v5495
      %v5528 = vmul.f32 %v5336, %v5496
      %v5529 = vmul.f32 %v5337, %v5497
      %v5530 = vmul.f32 %v5338, %v5498
      %v5531 = vmul.f32 %v5339, %v5499
      %v5532 = vmul.f32 %v5340, %v5500
      %v5533 = vmul.f32 %v5341, %v5501
      %v5534 = vmul.f32 %v5342, %v5502
      %v5535 = vmul.f32 %v5343, %v5503
      %v5536 = vmul.f32 %v5344, %v5504
      %v5537 = vmul.f32 %v5345, %v5505
      %v5538 = vmul.f32 %v5346, %v5506
      %v5539 = vmul.f32 %v5347, %v5507
      %v5540 = vmul.f32 %v5348, %v5508
      %v5541 = vmul.f32 %v5349, %v5509
      %v5542 = vadd.f32 %v5510, %v279
      %v5543 = vadd.f32 %v5511, %v280
      %v5544 = vadd.f32 %v5512, %v281
      %v5545 = vadd.f32 %v5513, %v282
      %v5546 = vadd.f32 %v5514, %v283
      %v5547 = vadd.f32 %v5515, %v284
      %v5548 = vadd.f32 %v5516, %v285
      %v5549 = vadd.f32 %v5517, %v286
      %v5550 = vadd.f32 %v5518, %v287
      %v5551 = vadd.f32 %v5519, %v288
      %v5552 = vadd.f32 %v5520, %v289
      %v5553 = vadd.f32 %v5521, %v290
      %v5554 = vadd.f32 %v5522, %v291
      %v5555 = vadd.f32 %v5523, %v292
      %v5556 = vadd.f32 %v5524, %v293
      %v5557 = vadd.f32 %v5525, %v294
      %v5558 = vadd.f32 %v5526, %v295
      %v5559 = vadd.f32 %v5527, %v296
      %v5560 = vadd.f32 %v5528, %v297
      %v5561 = vadd.f32 %v5529, %v298
      %v5562 = vadd.f32 %v5530, %v299
      %v5563 = vadd.f32 %v5531, %v300
      %v5564 = vadd.f32 %v5532, %v301
      %v5565 = vadd.f32 %v5533, %v302
      %v5566 = vadd.f32 %v5534, %v303
      %v5567 = vadd.f32 %v5535, %v304
      %v5568 = vadd.f32 %v5536, %v305
      %v5569 = vadd.f32 %v5537, %v306
      %v5570 = vadd.f32 %v5538, %v307
      %v5571 = vadd.f32 %v5539, %v308
      %v5572 = vadd.f32 %v5540, %v309
      %v5573 = vadd.f32 %v5541, %v310
      %5574 = vst.msk [vmem:[%s278] sm:$0xff] %vm311, %v5542
      %5575 = vst.msk [vmem:[%s278 + $0x8] sm:$0xff] %vm311, %v5543
      %5576 = vst.msk [vmem:[%s278 + $0x10] sm:$0xff] %vm311, %v5544
      %5577 = vst.msk [vmem:[%s278 + $0x18] sm:$0xff] %vm311, %v5545
      %5578 = vst.msk [vmem:[%s278 + $0x20] sm:$0xff] %vm311, %v5546
      %5579 = vst.msk [vmem:[%s278 + $0x28] sm:$0xff] %vm311, %v5547
      %5580 = vst.msk [vmem:[%s278 + $0x30] sm:$0xff] %vm311, %v5548
      %5581 = vst.msk [vmem:[%s278 + $0x38] sm:$0xff] %vm311, %v5549
      %5582 = vst.msk [vmem:[%s278 + $0x40] sm:$0xff] %vm311, %v5550
      %5583 = vst.msk [vmem:[%s278 + $0x48] sm:$0xff] %vm311, %v5551
      %5584 = vst.msk [vmem:[%s278 + $0x50] sm:$0xff] %vm311, %v5552
      %5585 = vst.msk [vmem:[%s278 + $0x58] sm:$0xff] %vm311, %v5553
      %5586 = vst.msk [vmem:[%s278 + $0x60] sm:$0xff] %vm311, %v5554
      %5587 = vst.msk [vmem:[%s278 + $0x68] sm:$0xff] %vm311, %v5555
      %5588 = vst.msk [vmem:[%s278 + $0x70] sm:$0xff] %vm311, %v5556
      %5589 = vst.msk [vmem:[%s278 + $0x78] sm:$0xff] %vm311, %v5557
      %5590 = vst.msk [vmem:[%s278 + $0x80] sm:$0xff] %vm311, %v5558
      %5591 = vst.msk [vmem:[%s278 + $0x88] sm:$0xff] %vm311, %v5559
      %5592 = vst.msk [vmem:[%s278 + $0x90] sm:$0xff] %vm311, %v5560
      %5593 = vst.msk [vmem:[%s278 + $0x98] sm:$0xff] %vm311, %v5561
      %5594 = vst.msk [vmem:[%s278 + $0xa0] sm:$0xff] %vm311, %v5562
      %5595 = vst.msk [vmem:[%s278 + $0xa8] sm:$0xff] %vm311, %v5563
      %5596 = vst.msk [vmem:[%s278 + $0xb0] sm:$0xff] %vm311, %v5564
      %5597 = vst.msk [vmem:[%s278 + $0xb8] sm:$0xff] %vm311, %v5565
      %5598 = vst.msk [vmem:[%s278 + $0xc0] sm:$0xff] %vm311, %v5566
      %5599 = vst.msk [vmem:[%s278 + $0xc8] sm:$0xff] %vm311, %v5567
      %5600 = vst.msk [vmem:[%s278 + $0xd0] sm:$0xff] %vm311, %v5568
      %5601 = vst.msk [vmem:[%s278 + $0xd8] sm:$0xff] %vm311, %v5569
      %5602 = vst.msk [vmem:[%s278 + $0xe0] sm:$0xff] %vm311, %v5570
      %5603 = vst.msk [vmem:[%s278 + $0xe8] sm:$0xff] %vm311, %v5571
      %5604 = vst.msk [vmem:[%s278 + $0xf0] sm:$0xff] %vm311, %v5572
      %5605 = vst.msk [vmem:[%s278 + $0xf8] sm:$0xff] %vm311, %v5573
      %p5606 = scmp.lt.s32.totalorder %s18, 1
      %s5607 = scalar_select %p5606, %s18, 1
      %s5608 = smul.addr %s5607, 32
      %s5609 = smul.addr %s5608, 8
      %s5610 = scalar_lea.vmem %s7, %s5609
      // Predicated region
      $region49: #{c2_forward.4} parent=47 // pred_check
        %p5611 = pneg %p188
      $region50: #{c2_forward.4} parent=47 // pred_check_branch
        %5613 = sbr.rel (%p5611) target = $region52
      $region51: #{c2_forward.4} parent=47 // pred_region
        _
      $region52: #{c2_forward.4} parent=47 // pred_fallthru
        _
    $region48: #{c2_forward.4} parent=5 // pred_fallthru
      _
    %p5614 = scmp.le.s32.totalorder 2, %s13
    // Predicated region
    $region53: #{c2_forward.4} parent=5 // pred_check
      %p5615 = pneg %p5614
    $region54: #{c2_forward.4} parent=5 // pred_check_branch
      %5617 = sbr.rel (%p5615) target = $region56
    $region55: #{c2_forward.4} parent=5 // pred_region
      %s5618 = ssub.s32 %s13, 2
      // Predicated region
      $region57: #{c2_forward.4} parent=55 // pred_check
        %p5619 = pneg %p194
      $region58: #{c2_forward.4} parent=55 // pred_check_branch
        %5621 = sbr.rel (%p5619) target = $region60
      $region59: #{c2_forward.4} parent=55 // pred_region
        %p5622 = scmp.lt.s32.totalorder %s19, 1
        %s5623 = scalar_select %p5622, %s19, 1
        %s5624 = smul.addr %s5623, 32
        %s5625 = smul.addr %s5624, 8
        %s5626 = scalar_lea.vmem %s7, %s5625
      $region60: #{c2_forward.4} parent=55 // pred_fallthru
        _
    $region56: #{c2_forward.4} parent=5 // pred_fallthru
      _
  $region6: #{c2_forward.4} parent=0 // loop_footer
    %s17 = sadd.s32 1, %s13
  $region7: #{c2_forward.4} parent=0 // loop_footer_branch
    %12 = sbr.rel target = $region3
  $region8: #{c2_forward.4} parent=0 // loop_exit
    _

</llo_original>
